<compile_context>
chip_gen: v7x
topology: tpu7x:2x2x1
jax: 0.10.0
libtpu: 0.0.40
codegen_flags: <defaults>
</compile_context>

<pallas_src>
import jax
import jax.numpy as jnp
from jax.experimental import pallas as pl
from jax.experimental.pallas import tpu as pltpu

EPS = 1e-5
LANE = 128


# ----------------------------------------------------------------------------
# Fused per-batch kernel
# ----------------------------------------------------------------------------
def _mam_kernel(xa_ref, xb_ref,
                wqk_a_ref, bqk_a_ref, wqk_b_ref, bqk_b_ref,
                w11_ref, b11_ref, w12_ref, b12_ref,
                w21sc_ref, b21sc_ref, w22_ref, b22_ref,
                wo_ref, bo_ref,
                out_a_ref, out_b_ref):
    f32 = jnp.float32
    bf16 = jnp.bfloat16

    xa = xa_ref[0]                      # (Na, Cp) bf16
    xb = xb_ref[0]                      # (Nb, Cp) bf16
    cp = xa.shape[-1]

    # Packed q/k projections: [q | k] along output channels (one MXU pass each).
    qk_a = jnp.dot(xa, wqk_a_ref[...], preferred_element_type=f32) + bqk_a_ref[...]
    qk_b = jnp.dot(xb, wqk_b_ref[...], preferred_element_type=f32) + bqk_b_ref[...]
    qa, ka = qk_a[:, :cp], qk_a[:, cp:]
    qb, kb = qk_b[:, :cp], qk_b[:, cp:]

    # energy[n, m] = <qa[n], qb[m]>  — contract the channel axis of both
    # operands directly (no transposed copy of qb).
    energy = jax.lax.dot_general(
        qa.astype(bf16), qb.astype(bf16),
        dimension_numbers=(((1,), (1,)), ((), ())),
        preferred_element_type=f32)                      # (Na, Nb)

    # softmax over the fully flattened Na*Nb energies of (max(E) - E)
    #   == exp(min(E) - E) / sum(...).
    # Normalization is deferred to the (N, C) outputs: one EUP reciprocal +
    # (Na+Nb)*C multiplies instead of Na*Nb divides.
    e_min = jnp.min(energy)
    p = jnp.exp(e_min - energy)                          # f32, (Na, Nb)
    inv = pl.reciprocal(jnp.sum(p, keepdims=True), approx=True)  # (1, 1)
    p16 = p.astype(bf16)

    xb_att = jnp.dot(p16, kb.astype(bf16), preferred_element_type=f32) * inv  # (Na, Cp)
    # attention^T @ ka without materializing the transpose.
    xa_att = jax.lax.dot_general(
        p16, ka.astype(bf16),
        dimension_numbers=(((0,), (0,)), ((), ())),
        preferred_element_type=f32) * inv                                     # (Nb, Cp)

    def branch(x_tok, att, i):
        # y = cat([x, att], channel axis); kept in f32 for the residual add.
        y = jnp.concatenate([x_tok.astype(f32), att], axis=-1)   # (N, 2Cp)
        y16 = y.astype(bf16)
        # BasicBlock 1 (2c -> 2c, identity shortcut).
        h1 = jnp.maximum(
            jnp.dot(y16, w11_ref[i], preferred_element_type=f32) + b11_ref[i], 0.0)
        h2 = jnp.dot(h1.astype(bf16), w12_ref[i], preferred_element_type=f32) + b12_ref[i]
        h = jnp.maximum(h2 + y, 0.0)
        h16 = h.astype(bf16)
        # BasicBlock 2 (2c -> 4c): conv1 and conv-shortcut fused in one matmul.
        gsc = jnp.dot(h16, w21sc_ref[i], preferred_element_type=f32) + b21sc_ref[i]
        c4 = gsc.shape[-1] // 2
        g1 = jnp.maximum(gsc[:, :c4], 0.0)
        sc = gsc[:, c4:]
        g2 = jnp.dot(g1.astype(bf16), w22_ref[i], preferred_element_type=f32) + b22_ref[i]
        g = jnp.maximum(g2 + sc, 0.0)
        # out_conv (4c -> c) with folded BN.
        return jnp.dot(g.astype(bf16), wo_ref[i], preferred_element_type=f32) + bo_ref[i]

    out_a_ref[0, :, :] = branch(xa, xb_att, 0).astype(out_a_ref.dtype)
    out_b_ref[0, :, :] = branch(xb, xa_att, 1).astype(out_b_ref.dtype)


# ----------------------------------------------------------------------------
# Host-side packing: block-pad channels to multiples of 128, fuse weights.
# ----------------------------------------------------------------------------
def _block_pad_w(w, c, cp):
    """(k_in*c, k_out*c) -> (k_in*cp, k_out*cp); each cxc block goes to the
    top-left corner of its own cp x cp block (padded channels stay zero)."""
    kin, kout = w.shape[0] // c, w.shape[1] // c
    out = jnp.zeros((kin * cp, kout * cp), jnp.float32)
    for i in range(kin):
        for j in range(kout):
            out = out.at[i * cp:i * cp + c, j * cp:j * cp + c].set(
                w[i * c:(i + 1) * c, j * c:(j + 1) * c])
    return out


def _block_pad_b(bvec, c, cp):
    kout = bvec.shape[-1] // c
    out = jnp.zeros((1, kout * cp), jnp.float32)
    for j in range(kout):
        out = out.at[:, j * cp:j * cp + c].set(
            bvec[..., j * c:(j + 1) * c].reshape(1, c))
    return out


def _pack_kernel_params(qk, bpa, bpb, c, cp):
    bf16 = jnp.bfloat16
    pw = lambda w: _block_pad_w(w, c, cp)
    pb = lambda v: _block_pad_b(v, c, cp)

    kp = {}
    # Packed q/k projection weights: [W_q | W_k] on the output-channel axis.
    kp['wqk_a'] = jnp.concatenate([pw(qk['wqa']), pw(qk['wka'])], axis=1).astype(bf16)
    kp['bqk_a'] = jnp.concatenate([pb(qk['bqa']), pb(qk['bka'])], axis=1)
    kp['wqk_b'] = jnp.concatenate([pw(qk['wqb']), pw(qk['wkb'])], axis=1).astype(bf16)
    kp['bqk_b'] = jnp.concatenate([pb(qk['bqb']), pb(qk['bkb'])], axis=1)

    def stack_w(name):
        return jnp.stack([pw(bpa[name]), pw(bpb[name])], axis=0).astype(bf16)

    def stack_b(name):
        return jnp.stack([pb(bpa[name]), pb(bpb[name])], axis=0)

    kp['w11'], kp['b11'] = stack_w('w11'), stack_b('b11')
    kp['w12'], kp['b12'] = stack_w('w12'), stack_b('b12')
    # Fuse res-block-2 conv1 (w21) and conv-shortcut (wsc): both consume h.
    kp['w21sc'] = jnp.stack(
        [jnp.concatenate([pw(bp['w21']), pw(bp['wsc'])], axis=1) for bp in (bpa, bpb)],
        axis=0).astype(bf16)
    kp['b21sc'] = jnp.stack(
        [jnp.concatenate([pb(bp['b21']), pb(bp['bsc'])], axis=1) for bp in (bpa, bpb)],
        axis=0)
    kp['w22'], kp['b22'] = stack_w('w22'), stack_b('b22')
    kp['wo'], kp['bo'] = stack_w('wo'), stack_b('bo')
    return kp


def _full_spec(shape):
    zeros = (0,) * len(shape)
    return pl.BlockSpec(shape, lambda i: zeros)


# ----------------------------------------------------------------------------
# Full MAM forward (NCHW <-> lane-padded token layout glue + fused kernel)
# ----------------------------------------------------------------------------
def mam_forward(x_a, x_b, qk, bpa, bpb):
    b, c, ha, wa = x_a.shape
    hb, wb = x_b.shape[2], x_b.shape[3]
    na, nb = ha * wa, hb * wb
    cp = max(LANE, -(-c // LANE) * LANE)       # channel padded to multiple of 128

    def to_tokens(x, n):
        t = x.reshape(b, c, n).transpose(0, 2, 1)          # (B, N, C)
        t = jnp.pad(t, ((0, 0), (0, 0), (0, cp - c)))      # lane-dense channels
        return t.astype(jnp.bfloat16)

    xa_tok = to_tokens(x_a, na)
    xb_tok = to_tokens(x_b, nb)

    kp = _pack_kernel_params(qk, bpa, bpb, c, cp)
    param_order = ('wqk_a', 'bqk_a', 'wqk_b', 'bqk_b',
                   'w11', 'b11', 'w12', 'b12',
                   'w21sc', 'b21sc', 'w22', 'b22', 'wo', 'bo')
    params = [kp[k] for k in param_order]

    in_specs = [
        pl.BlockSpec((1, na, cp), lambda i: (i, 0, 0)),
        pl.BlockSpec((1, nb, cp), lambda i: (i, 0, 0)),
    ] + [_full_spec(p.shape) for p in params]

    out_a, out_b = pl.pallas_call(
        _mam_kernel,
        grid=(b,),
        in_specs=in_specs,
        out_specs=[
            pl.BlockSpec((1, na, cp), lambda i: (i, 0, 0)),
            pl.BlockSpec((1, nb, cp), lambda i: (i, 0, 0)),
        ],
        out_shape=[
            jax.ShapeDtypeStruct((b, na, cp), jnp.float32),
            jax.ShapeDtypeStruct((b, nb, cp), jnp.float32),
        ],
        compiler_params=pltpu.CompilerParams(
            dimension_semantics=("parallel",)),
    )(xa_tok, xb_tok, *params)

    out_a = out_a[..., :c].transpose(0, 2, 1).reshape(b, c, ha, wa)
    out_b = out_b[..., :c].transpose(0, 2, 1).reshape(b, c, hb, wb)
    return out_a, out_b


# ----------------------------------------------------------------------------
# Parameter init (deterministic, synthetic) + BN folding
# ----------------------------------------------------------------------------
def _bf16_round(x):
    return x.astype(jnp.bfloat16).astype(jnp.float32)


def init_params(key, c):
    keys = iter(jax.random.split(key, 128))

    def conv_w(cin, cout):  # stored pre-transposed: (c_in, c_out), bf16-representable
        return _bf16_round(jax.random.normal(next(keys), (cin, cout), jnp.float32) * 0.1)

    def conv_b(cout):
        return jax.random.normal(next(keys), (1, cout), jnp.float32) * 0.1

    def bn(cout):
        gamma = jax.random.uniform(next(keys), (cout,), jnp.float32, 0.5, 1.5)
        beta = jax.random.normal(next(keys), (cout,), jnp.float32) * 0.1
        mean = jax.random.normal(next(keys), (cout,), jnp.float32) * 0.1
        var = jax.random.uniform(next(keys), (cout,), jnp.float32, 0.5, 1.5)
        return gamma, beta, mean, var

    def fold(w_mat, bn_p):  # fold eval-mode BN into bias-free 1x1 conv
        gamma, beta, mean, var = bn_p
        scale = gamma / jnp.sqrt(var + EPS)
        return _bf16_round(w_mat * scale[None, :]), (beta - mean * scale)[None, :]

    qk = dict(
        wqa=conv_w(c, c), bqa=conv_b(c),
        wqb=conv_w(c, c), bqb=conv_b(c),
        wka=conv_w(c, c), bka=conv_b(c),
        wkb=conv_w(c, c), bkb=conv_b(c),
    )
    # TODO(synk): value_a/value_b convs and gamma_a/gamma_b parameters exist in
    # the PyTorch __init__ but are never used in forward(); omitted here.

    def branch():
        w11, b11 = fold(conv_w(2 * c, 2 * c), bn(2 * c))
        w12, b12 = fold(conv_w(2 * c, 2 * c), bn(2 * c))
        w21, b21 = fold(conv_w(2 * c, 4 * c), bn(4 * c))
        w22, b22 = fold(conv_w(4 * c, 4 * c), bn(4 * c))
        wsc, bsc = fold(conv_w(2 * c, 4 * c), bn(4 * c))
        wo, bo = fold(conv_w(4 * c, c), bn(c))
        return dict(w11=w11, b11=b11, w12=w12, b12=b12,
                    w21=w21, b21=b21, w22=w22, b22=b22,
                    wsc=wsc, bsc=bsc, wo=wo, bo=bo)

    return qk, branch(), branch()


# ----------------------------------------------------------------------------
# Pure-JAX f32 reference (same params, unpadded) for numerical validation.
# ----------------------------------------------------------------------------
def mam_reference(x_a, x_b, qk, bpa, bpb):
    b, c, ha, wa = x_a.shape
    hb, wb = x_b.shape[2], x_b.shape[3]
    xa = x_a.reshape(b, c, -1).transpose(0, 2, 1)
    xb = x_b.reshape(b, c, -1).transpose(0, 2, 1)
    qa = xa @ qk['wqa'] + qk['bqa']
    qb = xb @ qk['wqb'] + qk['bqb']
    ka = xa @ qk['wka'] + qk['bka']
    kb = xb @ qk['wkb'] + qk['bkb']
    energy = jnp.einsum('bnc,bmc->bnm', qa, qb)
    flat = energy.reshape(b, -1)
    en = jnp.max(flat, axis=-1, keepdims=True) - flat
    att = jax.nn.softmax(en, axis=-1).reshape(energy.shape)
    xb_att = jnp.einsum('bnm,bmc->bnc', att, kb)
    xa_att = jnp.einsum('bnm,bnc->bmc', att, ka)

    def branch(y, p):
        h = jax.nn.relu(y @ p['w11'] + p['b11'])
        h = jax.nn.relu(h @ p['w12'] + p['b12'] + y)
        g = jax.nn.relu(h @ p['w21'] + p['b21'])
        g = jax.nn.relu(g @ p['w22'] + p['b22'] + (h @ p['wsc'] + p['bsc']))
        return g @ p['wo'] + p['bo']

    ya = branch(jnp.concatenate([xa, xb_att], -1), bpa)
    yb = branch(jnp.concatenate([xb, xa_att], -1), bpb)
    return (ya.transpose(0, 2, 1).reshape(b, c, ha, wa),
            yb.transpose(0, 2, 1).reshape(b, c, hb, wb))


if __name__ == "__main__":
    key = jax.random.PRNGKey(0)
    k1, k2, k3 = jax.random.split(key, 3)
    B, C = 2, 4
    Ha = Wa = 8   # Na = 64
    Hb = Wb = 4   # Nb = 16
    # bf16-representable inputs so kernel (bf16) and reference (f32) see the
    # same numbers; remaining diffs are intermediate bf16 rounding only.
    x_a = _bf16_round(jax.random.normal(k1, (B, C, Ha, Wa), jnp.float32))
    x_b = _bf16_round(jax.random.normal(k2, (B, C, Hb, Wb), jnp.float32))
    qk, bpa, bpb = init_params(k3, C)

    y_a, y_b = mam_forward(x_a, x_b, qk, bpa, bpb)
    jax.block_until_ready((y_a, y_b))

    ra, rb = mam_reference(x_a, x_b, qk, bpa, bpb)
    assert y_a.shape == (B, C, Ha, Wa) and y_b.shape == (B, C, Hb, Wb)
    ok_a = jnp.allclose(y_a, ra, atol=5e-2, rtol=5e-2)
    ok_b = jnp.allclose(y_b, rb, atol=5e-2, rtol=5e-2)
    if bool(ok_a) and bool(ok_b):
        print("KERNEL_OK")
    else:
        raise SystemExit("Pallas result mismatch vs JAX reference")
</pallas_src>

<mosaic_0001>
module attributes {stable_mosaic.version = 11 : i64} {
  func.func @_mam_kernel(%arg0: i32, %arg1: memref<1x64x128xbf16, #tpu.memory_space<vmem>>, %arg2: memref<1x16x128xbf16, #tpu.memory_space<vmem>>, %arg3: memref<128x256xbf16, #tpu.memory_space<vmem>>, %arg4: memref<1x256xf32, #tpu.memory_space<vmem>>, %arg5: memref<128x256xbf16, #tpu.memory_space<vmem>>, %arg6: memref<1x256xf32, #tpu.memory_space<vmem>>, %arg7: memref<2x256x256xbf16, #tpu.memory_space<vmem>>, %arg8: memref<2x1x256xf32, #tpu.memory_space<vmem>>, %arg9: memref<2x256x256xbf16, #tpu.memory_space<vmem>>, %arg10: memref<2x1x256xf32, #tpu.memory_space<vmem>>, %arg11: memref<2x256x1024xbf16, #tpu.memory_space<vmem>>, %arg12: memref<2x1x1024xf32, #tpu.memory_space<vmem>>, %arg13: memref<2x512x512xbf16, #tpu.memory_space<vmem>>, %arg14: memref<2x1x512xf32, #tpu.memory_space<vmem>>, %arg15: memref<2x512x128xbf16, #tpu.memory_space<vmem>>, %arg16: memref<2x1x128xf32, #tpu.memory_space<vmem>>, %arg17: memref<1x64x128xf32, #tpu.memory_space<vmem>>, %arg18: memref<1x16x128xf32, #tpu.memory_space<vmem>>) attributes {dimension_semantics = [#tpu.dimension_semantics<parallel>], iteration_bounds = array<i64: 2>, scalar_prefetch = 0 : i64, scratch_operands = 0 : i64, tpu.core_type = #tpu.core_type<tc>, window_params = [{transform_indices = @transform_0, window_bounds = array<i64: 1, 64, 128>}, {transform_indices = @transform_1, window_bounds = array<i64: 1, 16, 128>}, {pipeline_mode = #tpu.pipeline_mode<synchronous>, transform_indices = @transform_2, window_bounds = array<i64: 128, 256>}, {pipeline_mode = #tpu.pipeline_mode<synchronous>, transform_indices = @transform_3, window_bounds = array<i64: 1, 256>}, {pipeline_mode = #tpu.pipeline_mode<synchronous>, transform_indices = @transform_4, window_bounds = array<i64: 128, 256>}, {pipeline_mode = #tpu.pipeline_mode<synchronous>, transform_indices = @transform_5, window_bounds = array<i64: 1, 256>}, {pipeline_mode = #tpu.pipeline_mode<synchronous>, transform_indices = @transform_6, window_bounds = array<i64: 2, 256, 256>}, {pipeline_mode = #tpu.pipeline_mode<synchronous>, transform_indices = @transform_7, window_bounds = array<i64: 2, 1, 256>}, {pipeline_mode = #tpu.pipeline_mode<synchronous>, transform_indices = @transform_8, window_bounds = array<i64: 2, 256, 256>}, {pipeline_mode = #tpu.pipeline_mode<synchronous>, transform_indices = @transform_9, window_bounds = array<i64: 2, 1, 256>}, {pipeline_mode = #tpu.pipeline_mode<synchronous>, transform_indices = @transform_10, window_bounds = array<i64: 2, 256, 1024>}, {pipeline_mode = #tpu.pipeline_mode<synchronous>, transform_indices = @transform_11, window_bounds = array<i64: 2, 1, 1024>}, {pipeline_mode = #tpu.pipeline_mode<synchronous>, transform_indices = @transform_12, window_bounds = array<i64: 2, 512, 512>}, {pipeline_mode = #tpu.pipeline_mode<synchronous>, transform_indices = @transform_13, window_bounds = array<i64: 2, 1, 512>}, {pipeline_mode = #tpu.pipeline_mode<synchronous>, transform_indices = @transform_14, window_bounds = array<i64: 2, 512, 128>}, {pipeline_mode = #tpu.pipeline_mode<synchronous>, transform_indices = @transform_15, window_bounds = array<i64: 2, 1, 128>}, {transform_indices = @transform_16, window_bounds = array<i64: 1, 64, 128>}, {transform_indices = @transform_17, window_bounds = array<i64: 1, 16, 128>}]} {
    %c0 = arith.constant 0 : index
    %c0_0 = arith.constant 0 : index
    %c0_1 = arith.constant 0 : index
    %0 = vector.load %arg1[%c0, %c0_0, %c0_1] : memref<1x64x128xbf16, #tpu.memory_space<vmem>>, vector<1x64x128xbf16>
    %1 = vector.shape_cast %0 : vector<1x64x128xbf16> to vector<64x128xbf16>
    %c0_2 = arith.constant 0 : index
    %c0_3 = arith.constant 0 : index
    %c0_4 = arith.constant 0 : index
    %2 = vector.load %arg2[%c0_2, %c0_3, %c0_4] : memref<1x16x128xbf16, #tpu.memory_space<vmem>>, vector<1x16x128xbf16>
    %3 = vector.shape_cast %2 : vector<1x16x128xbf16> to vector<16x128xbf16>
    %c0_5 = arith.constant 0 : index
    %c0_6 = arith.constant 0 : index
    %4 = vector.load %arg3[%c0_5, %c0_6] : memref<128x256xbf16, #tpu.memory_space<vmem>>, vector<128x256xbf16>
    %cst = arith.constant dense<0.000000e+00> : vector<64x256xf32>
    %5 = tpu.matmul %1, %4, %cst {dimension_numbers = #tpu.dot_dimension_numbers<[1], [0], [0], [1], [0, 0, 1, 1], [], []>} : vector<64x128xbf16>, vector<128x256xbf16>, vector<64x256xf32> -> vector<64x256xf32>
    %c0_7 = arith.constant 0 : index
    %c0_8 = arith.constant 0 : index
    %6 = vector.load %arg4[%c0_7, %c0_8] : memref<1x256xf32, #tpu.memory_space<vmem>>, vector<1x256xf32>
    %7 = vector.broadcast %6 : vector<1x256xf32> to vector<64x256xf32>
    %8 = arith.addf %5, %7 : vector<64x256xf32>
    %c0_9 = arith.constant 0 : index
    %c0_10 = arith.constant 0 : index
    %9 = vector.load %arg5[%c0_9, %c0_10] : memref<128x256xbf16, #tpu.memory_space<vmem>>, vector<128x256xbf16>
    %cst_11 = arith.constant dense<0.000000e+00> : vector<16x256xf32>
    %10 = tpu.matmul %3, %9, %cst_11 {dimension_numbers = #tpu.dot_dimension_numbers<[1], [0], [0], [1], [0, 0, 1, 1], [], []>} : vector<16x128xbf16>, vector<128x256xbf16>, vector<16x256xf32> -> vector<16x256xf32>
    %c0_12 = arith.constant 0 : index
    %c0_13 = arith.constant 0 : index
    %11 = vector.load %arg6[%c0_12, %c0_13] : memref<1x256xf32, #tpu.memory_space<vmem>>, vector<1x256xf32>
    %12 = vector.broadcast %11 : vector<1x256xf32> to vector<16x256xf32>
    %13 = arith.addf %10, %12 : vector<16x256xf32>
    %14 = vector.extract_strided_slice %8 {offsets = [0, 0], sizes = [64, 128], strides = [1, 1]} : vector<64x256xf32> to vector<64x128xf32>
    %15 = vector.extract_strided_slice %8 {offsets = [0, 128], sizes = [64, 128], strides = [1, 1]} : vector<64x256xf32> to vector<64x128xf32>
    %16 = vector.extract_strided_slice %13 {offsets = [0, 0], sizes = [16, 128], strides = [1, 1]} : vector<16x256xf32> to vector<16x128xf32>
    %17 = vector.extract_strided_slice %13 {offsets = [0, 128], sizes = [16, 128], strides = [1, 1]} : vector<16x256xf32> to vector<16x128xf32>
    %18 = arith.truncf %14 : vector<64x128xf32> to vector<64x128xbf16>
    %19 = arith.truncf %16 : vector<16x128xf32> to vector<16x128xbf16>
    %cst_14 = arith.constant dense<0.000000e+00> : vector<64x16xf32>
    %20 = tpu.matmul %18, %19, %cst_14 {dimension_numbers = #tpu.dot_dimension_numbers<[1], [1], [0], [0], [0, 0, 1, 0], [], []>} : vector<64x128xbf16>, vector<16x128xbf16>, vector<64x16xf32> -> vector<64x16xf32>
    %21 = vector.shape_cast %20 : vector<64x16xf32> to vector<1x64x16xf32>
    %cst_15 = arith.constant dense<0x7F800000> : vector<1xf32>
    %22 = vector.multi_reduction <minimumf>, %21, %cst_15 [1, 2] : vector<1x64x16xf32> to vector<1xf32>
    %23 = vector.shape_cast %22 : vector<1xf32> to vector<1x1x1xf32>
    %24 = vector.extract %23[0, 0, 0] : f32 from vector<1x1x1xf32>
    %25 = vector.broadcast %24 : f32 to vector<64x16xf32>
    %26 = arith.subf %25, %20 : vector<64x16xf32>
    %27 = math.exp %26 : vector<64x16xf32>
    %28 = vector.shape_cast %27 : vector<64x16xf32> to vector<1x64x16xf32>
    %cst_16 = arith.constant dense<0.000000e+00> : vector<1xf32>
    %29 = vector.multi_reduction <add>, %28, %cst_16 [1, 2] : vector<1x64x16xf32> to vector<1xf32>
    %30 = vector.shape_cast %29 : vector<1xf32> to vector<1x1x1xf32>
    %31 = vector.extract %30[0, 0, 0] : f32 from vector<1x1x1xf32>
    %32 = vector.broadcast %31 : f32 to vector<1x1xf32>
    %33 = tpu.reciprocal %32 {approx = true} : vector<1x1xf32> -> vector<1x1xf32>
    %34 = arith.truncf %27 : vector<64x16xf32> to vector<64x16xbf16>
    %35 = arith.truncf %17 : vector<16x128xf32> to vector<16x128xbf16>
    %cst_17 = arith.constant dense<0.000000e+00> : vector<64x128xf32>
    %36 = tpu.matmul %34, %35, %cst_17 {dimension_numbers = #tpu.dot_dimension_numbers<[1], [0], [0], [1], [0, 0, 1, 1], [], []>} : vector<64x16xbf16>, vector<16x128xbf16>, vector<64x128xf32> -> vector<64x128xf32>
    %37 = vector.broadcast %33 : vector<1x1xf32> to vector<64x128xf32>
    %38 = arith.mulf %36, %37 : vector<64x128xf32>
    %39 = arith.truncf %15 : vector<64x128xf32> to vector<64x128xbf16>
    %cst_18 = arith.constant dense<0.000000e+00> : vector<16x128xf32>
    %40 = tpu.matmul %34, %39, %cst_18 {dimension_numbers = #tpu.dot_dimension_numbers<[0], [0], [1], [1], [0, 1, 1, 1], [], []>} : vector<64x16xbf16>, vector<64x128xbf16>, vector<16x128xf32> -> vector<16x128xf32>
    %41 = vector.broadcast %33 : vector<1x1xf32> to vector<16x128xf32>
    %42 = arith.mulf %40, %41 : vector<16x128xf32>
    %43 = arith.extf %1 : vector<64x128xbf16> to vector<64x128xf32>
    %44 = tpu.concatenate %43, %38 in 1 : vector<64x128xf32>, vector<64x128xf32> -> vector<64x256xf32>
    %45 = arith.truncf %44 : vector<64x256xf32> to vector<64x256xbf16>
    %c0_19 = arith.constant 0 : index
    %c0_20 = arith.constant 0 : index
    %c0_21 = arith.constant 0 : index
    %46 = vector.load %arg7[%c0_19, %c0_20, %c0_21] : memref<2x256x256xbf16, #tpu.memory_space<vmem>>, vector<1x256x256xbf16>
    %47 = vector.shape_cast %46 : vector<1x256x256xbf16> to vector<256x256xbf16>
    %cst_22 = arith.constant dense<0.000000e+00> : vector<64x256xf32>
    %48 = tpu.matmul %45, %47, %cst_22 {dimension_numbers = #tpu.dot_dimension_numbers<[1], [0], [0], [1], [0, 0, 1, 1], [], []>} : vector<64x256xbf16>, vector<256x256xbf16>, vector<64x256xf32> -> vector<64x256xf32>
    %c0_23 = arith.constant 0 : index
    %c0_24 = arith.constant 0 : index
    %c0_25 = arith.constant 0 : index
    %49 = vector.load %arg8[%c0_23, %c0_24, %c0_25] : memref<2x1x256xf32, #tpu.memory_space<vmem>>, vector<1x1x256xf32>
    %50 = vector.shape_cast %49 : vector<1x1x256xf32> to vector<1x256xf32>
    %51 = vector.broadcast %50 : vector<1x256xf32> to vector<64x256xf32>
    %52 = arith.addf %48, %51 : vector<64x256xf32>
    %cst_26 = arith.constant 0.000000e+00 : f32
    %53 = vector.broadcast %cst_26 : f32 to vector<64x256xf32>
    %54 = arith.maximumf %52, %53 : vector<64x256xf32>
    %55 = arith.truncf %54 : vector<64x256xf32> to vector<64x256xbf16>
    %c0_27 = arith.constant 0 : index
    %c0_28 = arith.constant 0 : index
    %c0_29 = arith.constant 0 : index
    %56 = vector.load %arg9[%c0_27, %c0_28, %c0_29] : memref<2x256x256xbf16, #tpu.memory_space<vmem>>, vector<1x256x256xbf16>
    %57 = vector.shape_cast %56 : vector<1x256x256xbf16> to vector<256x256xbf16>
    %cst_30 = arith.constant dense<0.000000e+00> : vector<64x256xf32>
    %58 = tpu.matmul %55, %57, %cst_30 {dimension_numbers = #tpu.dot_dimension_numbers<[1], [0], [0], [1], [0, 0, 1, 1], [], []>} : vector<64x256xbf16>, vector<256x256xbf16>, vector<64x256xf32> -> vector<64x256xf32>
    %c0_31 = arith.constant 0 : index
    %c0_32 = arith.constant 0 : index
    %c0_33 = arith.constant 0 : index
    %59 = vector.load %arg10[%c0_31, %c0_32, %c0_33] : memref<2x1x256xf32, #tpu.memory_space<vmem>>, vector<1x1x256xf32>
    %60 = vector.shape_cast %59 : vector<1x1x256xf32> to vector<1x256xf32>
    %61 = vector.broadcast %60 : vector<1x256xf32> to vector<64x256xf32>
    %62 = arith.addf %58, %61 : vector<64x256xf32>
    %63 = arith.addf %62, %44 : vector<64x256xf32>
    %cst_34 = arith.constant 0.000000e+00 : f32
    %64 = vector.broadcast %cst_34 : f32 to vector<64x256xf32>
    %65 = arith.maximumf %63, %64 : vector<64x256xf32>
    %66 = arith.truncf %65 : vector<64x256xf32> to vector<64x256xbf16>
    %c0_35 = arith.constant 0 : index
    %c0_36 = arith.constant 0 : index
    %c0_37 = arith.constant 0 : index
    %67 = vector.load %arg11[%c0_35, %c0_36, %c0_37] : memref<2x256x1024xbf16, #tpu.memory_space<vmem>>, vector<1x256x1024xbf16>
    %68 = vector.shape_cast %67 : vector<1x256x1024xbf16> to vector<256x1024xbf16>
    %cst_38 = arith.constant dense<0.000000e+00> : vector<64x1024xf32>
    %69 = tpu.matmul %66, %68, %cst_38 {dimension_numbers = #tpu.dot_dimension_numbers<[1], [0], [0], [1], [0, 0, 1, 1], [], []>} : vector<64x256xbf16>, vector<256x1024xbf16>, vector<64x1024xf32> -> vector<64x1024xf32>
    %c0_39 = arith.constant 0 : index
    %c0_40 = arith.constant 0 : index
    %c0_41 = arith.constant 0 : index
    %70 = vector.load %arg12[%c0_39, %c0_40, %c0_41] : memref<2x1x1024xf32, #tpu.memory_space<vmem>>, vector<1x1x1024xf32>
    %71 = vector.shape_cast %70 : vector<1x1x1024xf32> to vector<1x1024xf32>
    %72 = vector.broadcast %71 : vector<1x1024xf32> to vector<64x1024xf32>
    %73 = arith.addf %69, %72 : vector<64x1024xf32>
    %74 = vector.extract_strided_slice %73 {offsets = [0, 0], sizes = [64, 512], strides = [1, 1]} : vector<64x1024xf32> to vector<64x512xf32>
    %cst_42 = arith.constant 0.000000e+00 : f32
    %75 = vector.broadcast %cst_42 : f32 to vector<64x512xf32>
    %76 = arith.maximumf %74, %75 : vector<64x512xf32>
    %77 = vector.extract_strided_slice %73 {offsets = [0, 512], sizes = [64, 512], strides = [1, 1]} : vector<64x1024xf32> to vector<64x512xf32>
    %78 = arith.truncf %76 : vector<64x512xf32> to vector<64x512xbf16>
    %c0_43 = arith.constant 0 : index
    %c0_44 = arith.constant 0 : index
    %c0_45 = arith.constant 0 : index
    %79 = vector.load %arg13[%c0_43, %c0_44, %c0_45] : memref<2x512x512xbf16, #tpu.memory_space<vmem>>, vector<1x512x512xbf16>
    %80 = vector.shape_cast %79 : vector<1x512x512xbf16> to vector<512x512xbf16>
    %cst_46 = arith.constant dense<0.000000e+00> : vector<64x512xf32>
    %81 = tpu.matmul %78, %80, %cst_46 {dimension_numbers = #tpu.dot_dimension_numbers<[1], [0], [0], [1], [0, 0, 1, 1], [], []>} : vector<64x512xbf16>, vector<512x512xbf16>, vector<64x512xf32> -> vector<64x512xf32>
    %c0_47 = arith.constant 0 : index
    %c0_48 = arith.constant 0 : index
    %c0_49 = arith.constant 0 : index
    %82 = vector.load %arg14[%c0_47, %c0_48, %c0_49] : memref<2x1x512xf32, #tpu.memory_space<vmem>>, vector<1x1x512xf32>
    %83 = vector.shape_cast %82 : vector<1x1x512xf32> to vector<1x512xf32>
    %84 = vector.broadcast %83 : vector<1x512xf32> to vector<64x512xf32>
    %85 = arith.addf %81, %84 : vector<64x512xf32>
    %86 = arith.addf %85, %77 : vector<64x512xf32>
    %cst_50 = arith.constant 0.000000e+00 : f32
    %87 = vector.broadcast %cst_50 : f32 to vector<64x512xf32>
    %88 = arith.maximumf %86, %87 : vector<64x512xf32>
    %89 = arith.truncf %88 : vector<64x512xf32> to vector<64x512xbf16>
    %c0_51 = arith.constant 0 : index
    %c0_52 = arith.constant 0 : index
    %c0_53 = arith.constant 0 : index
    %90 = vector.load %arg15[%c0_51, %c0_52, %c0_53] : memref<2x512x128xbf16, #tpu.memory_space<vmem>>, vector<1x512x128xbf16>
    %91 = vector.shape_cast %90 : vector<1x512x128xbf16> to vector<512x128xbf16>
    %cst_54 = arith.constant dense<0.000000e+00> : vector<64x128xf32>
    %92 = tpu.matmul %89, %91, %cst_54 {dimension_numbers = #tpu.dot_dimension_numbers<[1], [0], [0], [1], [0, 0, 1, 1], [], []>} : vector<64x512xbf16>, vector<512x128xbf16>, vector<64x128xf32> -> vector<64x128xf32>
    %c0_55 = arith.constant 0 : index
    %c0_56 = arith.constant 0 : index
    %c0_57 = arith.constant 0 : index
    %93 = vector.load %arg16[%c0_55, %c0_56, %c0_57] : memref<2x1x128xf32, #tpu.memory_space<vmem>>, vector<1x1x128xf32>
    %94 = vector.shape_cast %93 : vector<1x1x128xf32> to vector<1x128xf32>
    %95 = vector.broadcast %94 : vector<1x128xf32> to vector<64x128xf32>
    %96 = arith.addf %92, %95 : vector<64x128xf32>
    %c0_58 = arith.constant 0 : index
    %c0_59 = arith.constant 0 : index
    %c0_60 = arith.constant 0 : index
    %97 = vector.load %arg17[%c0_58, %c0_59, %c0_60] : memref<1x64x128xf32, #tpu.memory_space<vmem>>, vector<1x64x128xf32>
    %98 = vector.shape_cast %97 : vector<1x64x128xf32> to vector<64x128xf32>
    %99 = vector.shape_cast %96 : vector<64x128xf32> to vector<1x64x128xf32>
    tpu.vector_store %arg17[%c0_58, %c0_59, %c0_60], %99 {strides = array<i32>} : memref<1x64x128xf32, #tpu.memory_space<vmem>>, vector<1x64x128xf32>,
    %100 = arith.extf %3 : vector<16x128xbf16> to vector<16x128xf32>
    %101 = tpu.concatenate %100, %42 in 1 : vector<16x128xf32>, vector<16x128xf32> -> vector<16x256xf32>
    %102 = arith.truncf %101 : vector<16x256xf32> to vector<16x256xbf16>
    %c1 = arith.constant 1 : index
    %c0_61 = arith.constant 0 : index
    %c0_62 = arith.constant 0 : index
    %103 = vector.load %arg7[%c1, %c0_61, %c0_62] : memref<2x256x256xbf16, #tpu.memory_space<vmem>>, vector<1x256x256xbf16>
    %104 = vector.shape_cast %103 : vector<1x256x256xbf16> to vector<256x256xbf16>
    %cst_63 = arith.constant dense<0.000000e+00> : vector<16x256xf32>
    %105 = tpu.matmul %102, %104, %cst_63 {dimension_numbers = #tpu.dot_dimension_numbers<[1], [0], [0], [1], [0, 0, 1, 1], [], []>} : vector<16x256xbf16>, vector<256x256xbf16>, vector<16x256xf32> -> vector<16x256xf32>
    %c1_64 = arith.constant 1 : index
    %c0_65 = arith.constant 0 : index
    %c0_66 = arith.constant 0 : index
    %106 = vector.load %arg8[%c1_64, %c0_65, %c0_66] : memref<2x1x256xf32, #tpu.memory_space<vmem>>, vector<1x1x256xf32>
    %107 = vector.shape_cast %106 : vector<1x1x256xf32> to vector<1x256xf32>
    %108 = vector.broadcast %107 : vector<1x256xf32> to vector<16x256xf32>
    %109 = arith.addf %105, %108 : vector<16x256xf32>
    %cst_67 = arith.constant 0.000000e+00 : f32
    %110 = vector.broadcast %cst_67 : f32 to vector<16x256xf32>
    %111 = arith.maximumf %109, %110 : vector<16x256xf32>
    %112 = arith.truncf %111 : vector<16x256xf32> to vector<16x256xbf16>
    %c1_68 = arith.constant 1 : index
    %c0_69 = arith.constant 0 : index
    %c0_70 = arith.constant 0 : index
    %113 = vector.load %arg9[%c1_68, %c0_69, %c0_70] : memref<2x256x256xbf16, #tpu.memory_space<vmem>>, vector<1x256x256xbf16>
    %114 = vector.shape_cast %113 : vector<1x256x256xbf16> to vector<256x256xbf16>
    %cst_71 = arith.constant dense<0.000000e+00> : vector<16x256xf32>
    %115 = tpu.matmul %112, %114, %cst_71 {dimension_numbers = #tpu.dot_dimension_numbers<[1], [0], [0], [1], [0, 0, 1, 1], [], []>} : vector<16x256xbf16>, vector<256x256xbf16>, vector<16x256xf32> -> vector<16x256xf32>
    %c1_72 = arith.constant 1 : index
    %c0_73 = arith.constant 0 : index
    %c0_74 = arith.constant 0 : index
    %116 = vector.load %arg10[%c1_72, %c0_73, %c0_74] : memref<2x1x256xf32, #tpu.memory_space<vmem>>, vector<1x1x256xf32>
    %117 = vector.shape_cast %116 : vector<1x1x256xf32> to vector<1x256xf32>
    %118 = vector.broadcast %117 : vector<1x256xf32> to vector<16x256xf32>
    %119 = arith.addf %115, %118 : vector<16x256xf32>
    %120 = arith.addf %119, %101 : vector<16x256xf32>
    %cst_75 = arith.constant 0.000000e+00 : f32
    %121 = vector.broadcast %cst_75 : f32 to vector<16x256xf32>
    %122 = arith.maximumf %120, %121 : vector<16x256xf32>
    %123 = arith.truncf %122 : vector<16x256xf32> to vector<16x256xbf16>
    %c1_76 = arith.constant 1 : index
    %c0_77 = arith.constant 0 : index
    %c0_78 = arith.constant 0 : index
    %124 = vector.load %arg11[%c1_76, %c0_77, %c0_78] : memref<2x256x1024xbf16, #tpu.memory_space<vmem>>, vector<1x256x1024xbf16>
    %125 = vector.shape_cast %124 : vector<1x256x1024xbf16> to vector<256x1024xbf16>
    %cst_79 = arith.constant dense<0.000000e+00> : vector<16x1024xf32>
    %126 = tpu.matmul %123, %125, %cst_79 {dimension_numbers = #tpu.dot_dimension_numbers<[1], [0], [0], [1], [0, 0, 1, 1], [], []>} : vector<16x256xbf16>, vector<256x1024xbf16>, vector<16x1024xf32> -> vector<16x1024xf32>
    %c1_80 = arith.constant 1 : index
    %c0_81 = arith.constant 0 : index
    %c0_82 = arith.constant 0 : index
    %127 = vector.load %arg12[%c1_80, %c0_81, %c0_82] : memref<2x1x1024xf32, #tpu.memory_space<vmem>>, vector<1x1x1024xf32>
    %128 = vector.shape_cast %127 : vector<1x1x1024xf32> to vector<1x1024xf32>
    %129 = vector.broadcast %128 : vector<1x1024xf32> to vector<16x1024xf32>
    %130 = arith.addf %126, %129 : vector<16x1024xf32>
    %131 = vector.extract_strided_slice %130 {offsets = [0, 0], sizes = [16, 512], strides = [1, 1]} : vector<16x1024xf32> to vector<16x512xf32>
    %cst_83 = arith.constant 0.000000e+00 : f32
    %132 = vector.broadcast %cst_83 : f32 to vector<16x512xf32>
    %133 = arith.maximumf %131, %132 : vector<16x512xf32>
    %134 = vector.extract_strided_slice %130 {offsets = [0, 512], sizes = [16, 512], strides = [1, 1]} : vector<16x1024xf32> to vector<16x512xf32>
    %135 = arith.truncf %133 : vector<16x512xf32> to vector<16x512xbf16>
    %c1_84 = arith.constant 1 : index
    %c0_85 = arith.constant 0 : index
    %c0_86 = arith.constant 0 : index
    %136 = vector.load %arg13[%c1_84, %c0_85, %c0_86] : memref<2x512x512xbf16, #tpu.memory_space<vmem>>, vector<1x512x512xbf16>
    %137 = vector.shape_cast %136 : vector<1x512x512xbf16> to vector<512x512xbf16>
    %cst_87 = arith.constant dense<0.000000e+00> : vector<16x512xf32>
    %138 = tpu.matmul %135, %137, %cst_87 {dimension_numbers = #tpu.dot_dimension_numbers<[1], [0], [0], [1], [0, 0, 1, 1], [], []>} : vector<16x512xbf16>, vector<512x512xbf16>, vector<16x512xf32> -> vector<16x512xf32>
    %c1_88 = arith.constant 1 : index
    %c0_89 = arith.constant 0 : index
    %c0_90 = arith.constant 0 : index
    %139 = vector.load %arg14[%c1_88, %c0_89, %c0_90] : memref<2x1x512xf32, #tpu.memory_space<vmem>>, vector<1x1x512xf32>
    %140 = vector.shape_cast %139 : vector<1x1x512xf32> to vector<1x512xf32>
    %141 = vector.broadcast %140 : vector<1x512xf32> to vector<16x512xf32>
    %142 = arith.addf %138, %141 : vector<16x512xf32>
    %143 = arith.addf %142, %134 : vector<16x512xf32>
    %cst_91 = arith.constant 0.000000e+00 : f32
    %144 = vector.broadcast %cst_91 : f32 to vector<16x512xf32>
    %145 = arith.maximumf %143, %144 : vector<16x512xf32>
    %146 = arith.truncf %145 : vector<16x512xf32> to vector<16x512xbf16>
    %c1_92 = arith.constant 1 : index
    %c0_93 = arith.constant 0 : index
    %c0_94 = arith.constant 0 : index
    %147 = vector.load %arg15[%c1_92, %c0_93, %c0_94] : memref<2x512x128xbf16, #tpu.memory_space<vmem>>, vector<1x512x128xbf16>
    %148 = vector.shape_cast %147 : vector<1x512x128xbf16> to vector<512x128xbf16>
    %cst_95 = arith.constant dense<0.000000e+00> : vector<16x128xf32>
    %149 = tpu.matmul %146, %148, %cst_95 {dimension_numbers = #tpu.dot_dimension_numbers<[1], [0], [0], [1], [0, 0, 1, 1], [], []>} : vector<16x512xbf16>, vector<512x128xbf16>, vector<16x128xf32> -> vector<16x128xf32>
    %c1_96 = arith.constant 1 : index
    %c0_97 = arith.constant 0 : index
    %c0_98 = arith.constant 0 : index
    %150 = vector.load %arg16[%c1_96, %c0_97, %c0_98] : memref<2x1x128xf32, #tpu.memory_space<vmem>>, vector<1x1x128xf32>
    %151 = vector.shape_cast %150 : vector<1x1x128xf32> to vector<1x128xf32>
    %152 = vector.broadcast %151 : vector<1x128xf32> to vector<16x128xf32>
    %153 = arith.addf %149, %152 : vector<16x128xf32>
    %c0_99 = arith.constant 0 : index
    %c0_100 = arith.constant 0 : index
    %c0_101 = arith.constant 0 : index
    %154 = vector.load %arg18[%c0_99, %c0_100, %c0_101] : memref<1x16x128xf32, #tpu.memory_space<vmem>>, vector<1x16x128xf32>
    %155 = vector.shape_cast %154 : vector<1x16x128xf32> to vector<16x128xf32>
    %156 = vector.shape_cast %153 : vector<16x128xf32> to vector<1x16x128xf32>
    tpu.vector_store %arg18[%c0_99, %c0_100, %c0_101], %156 {strides = array<i32>} : memref<1x16x128xf32, #tpu.memory_space<vmem>>, vector<1x16x128xf32>,
    return
  }
  func.func @transform_0(%arg0: i32) -> (i32, i32, i32) {
    %c0_i32 = arith.constant 0 : i32
    %c0_i32_0 = arith.constant 0 : i32
    %c0_i32_1 = arith.constant 0 : i32
    return %arg0, %c0_i32, %c0_i32_0 : i32, i32, i32
  }
  func.func @transform_1(%arg0: i32) -> (i32, i32, i32) {
    %c0_i32 = arith.constant 0 : i32
    %c0_i32_0 = arith.constant 0 : i32
    %c0_i32_1 = arith.constant 0 : i32
    return %arg0, %c0_i32, %c0_i32_0 : i32, i32, i32
  }
  func.func @transform_2(%arg0: i32) -> (i32, i32) {
    %c0_i32 = arith.constant 0 : i32
    %c0_i32_0 = arith.constant 0 : i32
    %c0_i32_1 = arith.constant 0 : i32
    return %c0_i32, %c0_i32_0 : i32, i32
  }
  func.func @transform_3(%arg0: i32) -> (i32, i32) {
    %c0_i32 = arith.constant 0 : i32
    %c0_i32_0 = arith.constant 0 : i32
    %c0_i32_1 = arith.constant 0 : i32
    return %c0_i32, %c0_i32_0 : i32, i32
  }
  func.func @transform_4(%arg0: i32) -> (i32, i32) {
    %c0_i32 = arith.constant 0 : i32
    %c0_i32_0 = arith.constant 0 : i32
    %c0_i32_1 = arith.constant 0 : i32
    return %c0_i32, %c0_i32_0 : i32, i32
  }
  func.func @transform_5(%arg0: i32) -> (i32, i32) {
    %c0_i32 = arith.constant 0 : i32
    %c0_i32_0 = arith.constant 0 : i32
    %c0_i32_1 = arith.constant 0 : i32
    return %c0_i32, %c0_i32_0 : i32, i32
  }
  func.func @transform_6(%arg0: i32) -> (i32, i32, i32) {
    %c0_i32 = arith.constant 0 : i32
    %c0_i32_0 = arith.constant 0 : i32
    %c0_i32_1 = arith.constant 0 : i32
    %c0_i32_2 = arith.constant 0 : i32
    return %c0_i32, %c0_i32_0, %c0_i32_1 : i32, i32, i32
  }
  func.func @transform_7(%arg0: i32) -> (i32, i32, i32) {
    %c0_i32 = arith.constant 0 : i32
    %c0_i32_0 = arith.constant 0 : i32
    %c0_i32_1 = arith.constant 0 : i32
    %c0_i32_2 = arith.constant 0 : i32
    return %c0_i32, %c0_i32_0, %c0_i32_1 : i32, i32, i32
  }
  func.func @transform_8(%arg0: i32) -> (i32, i32, i32) {
    %c0_i32 = arith.constant 0 : i32
    %c0_i32_0 = arith.constant 0 : i32
    %c0_i32_1 = arith.constant 0 : i32
    %c0_i32_2 = arith.constant 0 : i32
    return %c0_i32, %c0_i32_0, %c0_i32_1 : i32, i32, i32
  }
  func.func @transform_9(%arg0: i32) -> (i32, i32, i32) {
    %c0_i32 = arith.constant 0 : i32
    %c0_i32_0 = arith.constant 0 : i32
    %c0_i32_1 = arith.constant 0 : i32
    %c0_i32_2 = arith.constant 0 : i32
    return %c0_i32, %c0_i32_0, %c0_i32_1 : i32, i32, i32
  }
  func.func @transform_10(%arg0: i32) -> (i32, i32, i32) {
    %c0_i32 = arith.constant 0 : i32
    %c0_i32_0 = arith.constant 0 : i32
    %c0_i32_1 = arith.constant 0 : i32
    %c0_i32_2 = arith.constant 0 : i32
    return %c0_i32, %c0_i32_0, %c0_i32_1 : i32, i32, i32
  }
  func.func @transform_11(%arg0: i32) -> (i32, i32, i32) {
    %c0_i32 = arith.constant 0 : i32
    %c0_i32_0 = arith.constant 0 : i32
    %c0_i32_1 = arith.constant 0 : i32
    %c0_i32_2 = arith.constant 0 : i32
    return %c0_i32, %c0_i32_0, %c0_i32_1 : i32, i32, i32
  }
  func.func @transform_12(%arg0: i32) -> (i32, i32, i32) {
    %c0_i32 = arith.constant 0 : i32
    %c0_i32_0 = arith.constant 0 : i32
    %c0_i32_1 = arith.constant 0 : i32
    %c0_i32_2 = arith.constant 0 : i32
    return %c0_i32, %c0_i32_0, %c0_i32_1 : i32, i32, i32
  }
  func.func @transform_13(%arg0: i32) -> (i32, i32, i32) {
    %c0_i32 = arith.constant 0 : i32
    %c0_i32_0 = arith.constant 0 : i32
    %c0_i32_1 = arith.constant 0 : i32
    %c0_i32_2 = arith.constant 0 : i32
    return %c0_i32, %c0_i32_0, %c0_i32_1 : i32, i32, i32
  }
  func.func @transform_14(%arg0: i32) -> (i32, i32, i32) {
    %c0_i32 = arith.constant 0 : i32
    %c0_i32_0 = arith.constant 0 : i32
    %c0_i32_1 = arith.constant 0 : i32
    %c0_i32_2 = arith.constant 0 : i32
    return %c0_i32, %c0_i32_0, %c0_i32_1 : i32, i32, i32
  }
  func.func @transform_15(%arg0: i32) -> (i32, i32, i32) {
    %c0_i32 = arith.constant 0 : i32
    %c0_i32_0 = arith.constant 0 : i32
    %c0_i32_1 = arith.constant 0 : i32
    %c0_i32_2 = arith.constant 0 : i32
    return %c0_i32, %c0_i32_0, %c0_i32_1 : i32, i32, i32
  }
  func.func @transform_16(%arg0: i32) -> (i32, i32, i32) {
    %c0_i32 = arith.constant 0 : i32
    %c0_i32_0 = arith.constant 0 : i32
    %c0_i32_1 = arith.constant 0 : i32
    return %arg0, %c0_i32, %c0_i32_0 : i32, i32, i32
  }
  func.func @transform_17(%arg0: i32) -> (i32, i32, i32) {
    %c0_i32 = arith.constant 0 : i32
    %c0_i32_0 = arith.constant 0 : i32
    %c0_i32_1 = arith.constant 0 : i32
    return %arg0, %c0_i32, %c0_i32_0 : i32, i32, i32
  }
}

</mosaic_0001>

<llo_original>
// kernel: tpu_custom_call.1
$region0: #{tpu_custom_call.1}
  #allocation0 [shape = 'u32[]', space=smem, size = 0x4, offset = 0x4, fixed_abs, tag = 'smem constant byte address 0x4 - core index']
  #allocation1 [shape = 'u32[144,128]{1,0:T(1,128)}', space=vmem, size = 0x12000, scoped, tag = 'internal scratch']
  %s0 = inlined_call_operand.hbm [shape: bf16[2,64,128], index: 0, kind: input, shape index: {}]
  %s1 = inlined_call_operand.hbm [shape: bf16[2,16,128], index: 1, kind: input, shape index: {}]
  %s2 = inlined_call_operand.hbm [shape: bf16[128,256], index: 2, kind: input, shape index: {}]
  %s3 = inlined_call_operand.vmem [shape: f32[1,256], index: 3, kind: input, shape index: {}]
  %s4 = inlined_call_operand.hbm [shape: bf16[128,256], index: 4, kind: input, shape index: {}]
  %s5 = inlined_call_operand.hbm [shape: f32[1,256], index: 5, kind: input, shape index: {}]
  %s6 = inlined_call_operand.hbm [shape: bf16[2,256,256], index: 6, kind: input, shape index: {}]
  %s7 = inlined_call_operand.vmem [shape: f32[2,1,256], index: 7, kind: input, shape index: {}]
  %s8 = inlined_call_operand.hbm [shape: bf16[2,256,256], index: 8, kind: input, shape index: {}]
  %s9 = inlined_call_operand.vmem [shape: f32[2,1,256], index: 9, kind: input, shape index: {}]
  %s10 = inlined_call_operand.hbm [shape: bf16[2,256,1024], index: 10, kind: input, shape index: {}]
  %s11 = inlined_call_operand.vmem [shape: f32[2,1,1024], index: 11, kind: input, shape index: {}]
  %s12 = inlined_call_operand.hbm [shape: bf16[2,512,512], index: 12, kind: input, shape index: {}]
  %s13 = inlined_call_operand.vmem [shape: f32[2,1,512], index: 13, kind: input, shape index: {}]
  %s14 = inlined_call_operand.hbm [shape: bf16[2,512,128], index: 14, kind: input, shape index: {}]
  %s15 = inlined_call_operand.vmem [shape: f32[2,1,128], index: 15, kind: input, shape index: {}]
  %s16 = inlined_call_operand.hbm [shape: f32[2,64,128], index: 16, kind: output, shape index: {0}]
  %s17 = inlined_call_operand.hbm [shape: f32[2,16,128], index: 17, kind: output, shape index: {1}]
  %18 = xla_tuple %s16, %s17
  %s19 = sld [smem:[#allocation0]]
  $region145: #{tpu_custom_call.1} parent=0
    _
  %s21 = ssub.s32 1, %s19
  %s22 = scalar_select 0, %s21, %s19
  $region1: #{tpu_custom_call.1} parent=0
    #allocation2 [shape = 'u8[32768]{0}', space=vmem, size = 0x8000, scoped, tag = 'input window, operand 0']
    #allocation3 [shape = 's32[2]{0}', space=sflag, size = 0x8, scoped, tag = 'scoped memory for tpu_custom_call.1']
    #allocation4 [shape = 's32[2]{0}', space=sflag, size = 0x8, scoped, tag = 'scoped memory for tpu_custom_call.1']
    #allocation5 [shape = 'u8[8192]{0}', space=vmem, size = 0x2000, scoped, tag = 'input window, operand 1']
    #allocation6 [shape = 's32[2]{0}', space=sflag, size = 0x8, scoped, tag = 'scoped memory for tpu_custom_call.1']
    #allocation7 [shape = 'u8[65536]{0}', space=vmem, size = 0x10000, scoped, tag = 'input window, operand 2, single buffered']
    #allocation8 [shape = 'u8[65536]{0}', space=vmem, size = 0x10000, scoped, tag = 'input window, operand 4, single buffered']
    #allocation9 [shape = 's32[1]{0}', space=sflag, size = 0x4, scoped, tag = 'scoped memory for tpu_custom_call.1']
    #allocation10 [shape = 'u8[1024]{0}', space=vmem, size = 0x400, scoped, tag = 'input window, operand 5, single buffered']
    #allocation11 [shape = 'u8[262144]{0}', space=vmem, size = 0x40000, scoped, tag = 'input window, operand 6, single buffered']
    #allocation12 [shape = 's32[1]{0}', space=sflag, size = 0x4, scoped, tag = 'scoped memory for tpu_custom_call.1']
    #allocation13 [shape = 'u8[262144]{0}', space=vmem, size = 0x40000, scoped, tag = 'input window, operand 8, single buffered']
    #allocation14 [shape = 'u8[1048576]{0}', space=vmem, size = 0x100000, scoped, tag = 'input window, operand 10, single buffered']
    #allocation15 [shape = 's32[1]{0}', space=sflag, size = 0x4, scoped, tag = 'scoped memory for tpu_custom_call.1']
    #allocation16 [shape = 'u8[1048576]{0}', space=vmem, size = 0x100000, scoped, tag = 'input window, operand 12, single buffered']
    #allocation17 [shape = 'u8[262144]{0}', space=vmem, size = 0x40000, scoped, tag = 'input window, operand 14, single buffered']
    #allocation18 [shape = 's32[1]{0}', space=sflag, size = 0x4, scoped, tag = 'scoped memory for tpu_custom_call.1']
    #allocation19 [shape = 'u8[65536]{0}', space=vmem, size = 0x10000, scoped, tag = 'output window, operand 0']
    #allocation20 [shape = 'u8[16384]{0}', space=vmem, size = 0x4000, scoped, tag = 'output window, operand 1']
    #allocation21 [shape = 's32[2]{0}', space=sflag, size = 0x8, scoped, tag = 'scoped memory for tpu_custom_call.1']
    %23 = vsyncpa [#allocation3], 0
    %s24 = scalar_lea.sflag [#allocation3], 1
    %25 = vsyncpa %s24, 0
    %26 = vsyncpa [#allocation6], 0
    %s27 = scalar_lea.sflag [#allocation6], 1
    %28 = vsyncpa %s27, 0
    %29 = vsyncpa [#allocation9], 0
    %30 = vsyncpa [#allocation12], 0
    %31 = vsyncpa [#allocation15], 0
    %32 = vsyncpa [#allocation18], 0
    %33 = vsyncpa [#allocation4], 0
    %s34 = scalar_lea.sflag [#allocation4], 1
    %35 = vsyncpa %s34, 0
    %36 = vsyncpa [#allocation21], 0
    %s37 = scalar_lea.sflag [#allocation21], 1
    %38 = vsyncpa %s37, 0
    loop: start=0, step=1, limit=4
    $region2: #{tpu_custom_call.1} parent=1 // loop_pre_header
      _
    $region3: #{tpu_custom_call.1} parent=1 // loop_header
      %s40 = sphi 0, %s44
      %p41 = scmp.ge.s32.totalorder %s40, 4
      %s50 = sphi 0, %s52
      %s53 = sphi 0, %s50
      %s54 = sphi 0, %s53
      %s70 = sphi 0, %s54
      %s76 = sphi 0, %s78
      %s79 = sphi 0, %s76
      %s80 = sphi 0, %s79
      %s96 = sphi 0, %s80
      %s100 = sphi 0, %s100
      %s102 = sphi 0, %s100
      %s103 = sphi 0, %s102
      %s117 = sphi 0, %s103
      %s121 = sphi 0, %s121
      %s123 = sphi 0, %s121
      %s124 = sphi 0, %s123
      %s138 = sphi 0, %s124
      %s142 = sphi 0, %s142
      %s144 = sphi 0, %s142
      %s145 = sphi 0, %s144
      %s159 = sphi 0, %s145
      %s163 = sphi 0, %s163
      %s165 = sphi 0, %s163
      %s166 = sphi 0, %s165
      %s180 = sphi 0, %s166
      %s184 = sphi 0, %s184
      %s186 = sphi 0, %s184
      %s187 = sphi 0, %s186
      %s201 = sphi 0, %s187
      %s205 = sphi 0, %s205
      %s207 = sphi 0, %s205
      %s208 = sphi 0, %s207
      %s222 = sphi 0, %s208
      %s226 = sphi 0, %s226
      %s228 = sphi 0, %s226
      %s229 = sphi 0, %s228
      %s243 = sphi 0, %s229
      %s247 = sphi 0, %s247
      %s249 = sphi 0, %s247
      %s250 = sphi 0, %s249
      %s264 = sphi 0, %s250
      %s268 = sphi 0, %s268
      %s270 = sphi 0, %s268
      %s271 = sphi 0, %s270
      %s285 = sphi 0, %s271
      %s289 = sphi 0, %s289
      %s291 = sphi 0, %s289
      %s292 = sphi 0, %s291
      %s306 = sphi 0, %s292
      %s310 = sphi 0, %s310
      %s312 = sphi 0, %s310
      %s313 = sphi 0, %s312
      %s327 = sphi 0, %s313
      %s331 = sphi 0, %s331
      %s333 = sphi 0, %s331
      %s334 = sphi 0, %s333
      %s348 = sphi 0, %s334
      %s352 = sphi 0, %s352
      %s354 = sphi 0, %s352
      %s355 = sphi 0, %s354
      %s369 = sphi 0, %s355
      %s373 = sphi 0, %s373
      %s375 = sphi 0, %s373
      %s376 = sphi 0, %s375
      %s390 = sphi 0, %s376
      %s396 = sphi 0, %s398
      %s399 = sphi 0, %s396
      %s400 = sphi 0, %s399
      %s416 = sphi 0, %s400
      %s422 = sphi 0, %s424
      %s425 = sphi 0, %s422
      %s426 = sphi 0, %s425
      %s442 = sphi 0, %s426
    $region4: #{tpu_custom_call.1} parent=1 // loop_header_branch
      %43 = sbr.rel (%p41) target = $region8
    $region5: #{tpu_custom_call.1} parent=1 // loop_body
      %s45 = ssub.s32 %s40, 1
      %s46 = ssub.s32 %s40, 2
      %s47 = sadd.s32 %s40, 1
      %s48 = ssub.s32 %s40, %s47
      %p49 = scmp.eq.s32.totalorder %s48, 0
      %s51 = sadd.s32 %s50, 1
      %s52 = scalar_select %p49, %s50, %s51
      %p55 = pneg %p49
      %p56 = scmp.eq.s32.totalorder %s40, 1
      %p57 = por %p55, %p56
      %p58 = scmp.ne.s32.totalorder %s50, %s53
      %p59 = scmp.eq.s32.totalorder %s40, 0
      %p60 = por %p58, %p59
      %p61 = scmp.ne.s32.totalorder %s50, %s53
      %p62 = scmp.eq.s32.totalorder %s45, 1
      %p63 = por %p61, %p62
      %p64 = scmp.ne.s32.totalorder %s53, %s54
      %p65 = scmp.eq.s32.totalorder %s45, 0
      %p66 = por %p64, %p65
      %p67 = scmp.ne.s32.totalorder %s53, %s54
      %p68 = scmp.eq.s32.totalorder %s46, 1
      %p69 = por %p67, %p68
      %p71 = scmp.ne.s32.totalorder %s54, %s70
      %p72 = scmp.eq.s32.totalorder %s46, 0
      %p73 = por %p71, %p72
      %s74 = ssub.s32 %s40, %s47
      %p75 = scmp.eq.s32.totalorder %s74, 0
      %s77 = sadd.s32 %s76, 1
      %s78 = scalar_select %p75, %s76, %s77
      %p81 = pneg %p75
      %p82 = scmp.eq.s32.totalorder %s40, 1
      %p83 = por %p81, %p82
      %p84 = scmp.ne.s32.totalorder %s76, %s79
      %p85 = scmp.eq.s32.totalorder %s40, 0
      %p86 = por %p84, %p85
      %p87 = scmp.ne.s32.totalorder %s76, %s79
      %p88 = scmp.eq.s32.totalorder %s45, 1
      %p89 = por %p87, %p88
      %p90 = scmp.ne.s32.totalorder %s79, %s80
      %p91 = scmp.eq.s32.totalorder %s45, 0
      %p92 = por %p90, %p91
      %p93 = scmp.ne.s32.totalorder %s79, %s80
      %p94 = scmp.eq.s32.totalorder %s46, 1
      %p95 = por %p93, %p94
      %p97 = scmp.ne.s32.totalorder %s80, %s96
      %p98 = scmp.eq.s32.totalorder %s46, 0
      %p99 = por %p97, %p98
      %s101 = sadd.s32 %s100, 1
      %p104 = scmp.eq.s32.totalorder %s40, 1
      %p105 = scmp.ne.s32.totalorder %s100, %s102
      %p106 = scmp.eq.s32.totalorder %s40, 0
      %p107 = por %p105, %p106
      %p108 = scmp.ne.s32.totalorder %s100, %s102
      %p109 = scmp.eq.s32.totalorder %s45, 1
      %p110 = por %p108, %p109
      %p111 = scmp.ne.s32.totalorder %s102, %s103
      %p112 = scmp.eq.s32.totalorder %s45, 0
      %p113 = por %p111, %p112
      %p114 = scmp.ne.s32.totalorder %s102, %s103
      %p115 = scmp.eq.s32.totalorder %s46, 1
      %p116 = por %p114, %p115
      %p118 = scmp.ne.s32.totalorder %s103, %s117
      %p119 = scmp.eq.s32.totalorder %s46, 0
      %p120 = por %p118, %p119
      %s122 = sadd.s32 %s121, 1
      %p125 = scmp.eq.s32.totalorder %s40, 1
      %p126 = scmp.ne.s32.totalorder %s121, %s123
      %p127 = scmp.eq.s32.totalorder %s40, 0
      %p128 = por %p126, %p127
      %p129 = scmp.ne.s32.totalorder %s121, %s123
      %p130 = scmp.eq.s32.totalorder %s45, 1
      %p131 = por %p129, %p130
      %p132 = scmp.ne.s32.totalorder %s123, %s124
      %p133 = scmp.eq.s32.totalorder %s45, 0
      %p134 = por %p132, %p133
      %p135 = scmp.ne.s32.totalorder %s123, %s124
      %p136 = scmp.eq.s32.totalorder %s46, 1
      %p137 = por %p135, %p136
      %p139 = scmp.ne.s32.totalorder %s124, %s138
      %p140 = scmp.eq.s32.totalorder %s46, 0
      %p141 = por %p139, %p140
      %s143 = sadd.s32 %s142, 1
      %p146 = scmp.eq.s32.totalorder %s40, 1
      %p147 = scmp.ne.s32.totalorder %s142, %s144
      %p148 = scmp.eq.s32.totalorder %s40, 0
      %p149 = por %p147, %p148
      %p150 = scmp.ne.s32.totalorder %s142, %s144
      %p151 = scmp.eq.s32.totalorder %s45, 1
      %p152 = por %p150, %p151
      %p153 = scmp.ne.s32.totalorder %s144, %s145
      %p154 = scmp.eq.s32.totalorder %s45, 0
      %p155 = por %p153, %p154
      %p156 = scmp.ne.s32.totalorder %s144, %s145
      %p157 = scmp.eq.s32.totalorder %s46, 1
      %p158 = por %p156, %p157
      %p160 = scmp.ne.s32.totalorder %s145, %s159
      %p161 = scmp.eq.s32.totalorder %s46, 0
      %p162 = por %p160, %p161
      %s164 = sadd.s32 %s163, 1
      %p167 = scmp.eq.s32.totalorder %s40, 1
      %p168 = scmp.ne.s32.totalorder %s163, %s165
      %p169 = scmp.eq.s32.totalorder %s40, 0
      %p170 = por %p168, %p169
      %p171 = scmp.ne.s32.totalorder %s163, %s165
      %p172 = scmp.eq.s32.totalorder %s45, 1
      %p173 = por %p171, %p172
      %p174 = scmp.ne.s32.totalorder %s165, %s166
      %p175 = scmp.eq.s32.totalorder %s45, 0
      %p176 = por %p174, %p175
      %p177 = scmp.ne.s32.totalorder %s165, %s166
      %p178 = scmp.eq.s32.totalorder %s46, 1
      %p179 = por %p177, %p178
      %p181 = scmp.ne.s32.totalorder %s166, %s180
      %p182 = scmp.eq.s32.totalorder %s46, 0
      %p183 = por %p181, %p182
      %s185 = sadd.s32 %s184, 1
      %p188 = scmp.eq.s32.totalorder %s40, 1
      %p189 = scmp.ne.s32.totalorder %s184, %s186
      %p190 = scmp.eq.s32.totalorder %s40, 0
      %p191 = por %p189, %p190
      %p192 = scmp.ne.s32.totalorder %s184, %s186
      %p193 = scmp.eq.s32.totalorder %s45, 1
      %p194 = por %p192, %p193
      %p195 = scmp.ne.s32.totalorder %s186, %s187
      %p196 = scmp.eq.s32.totalorder %s45, 0
      %p197 = por %p195, %p196
      %p198 = scmp.ne.s32.totalorder %s186, %s187
      %p199 = scmp.eq.s32.totalorder %s46, 1
      %p200 = por %p198, %p199
      %p202 = scmp.ne.s32.totalorder %s187, %s201
      %p203 = scmp.eq.s32.totalorder %s46, 0
      %p204 = por %p202, %p203
      %s206 = sadd.s32 %s205, 1
      %p209 = scmp.eq.s32.totalorder %s40, 1
      %p210 = scmp.ne.s32.totalorder %s205, %s207
      %p211 = scmp.eq.s32.totalorder %s40, 0
      %p212 = por %p210, %p211
      %p213 = scmp.ne.s32.totalorder %s205, %s207
      %p214 = scmp.eq.s32.totalorder %s45, 1
      %p215 = por %p213, %p214
      %p216 = scmp.ne.s32.totalorder %s207, %s208
      %p217 = scmp.eq.s32.totalorder %s45, 0
      %p218 = por %p216, %p217
      %p219 = scmp.ne.s32.totalorder %s207, %s208
      %p220 = scmp.eq.s32.totalorder %s46, 1
      %p221 = por %p219, %p220
      %p223 = scmp.ne.s32.totalorder %s208, %s222
      %p224 = scmp.eq.s32.totalorder %s46, 0
      %p225 = por %p223, %p224
      %s227 = sadd.s32 %s226, 1
      %p230 = scmp.eq.s32.totalorder %s40, 1
      %p231 = scmp.ne.s32.totalorder %s226, %s228
      %p232 = scmp.eq.s32.totalorder %s40, 0
      %p233 = por %p231, %p232
      %p234 = scmp.ne.s32.totalorder %s226, %s228
      %p235 = scmp.eq.s32.totalorder %s45, 1
      %p236 = por %p234, %p235
      %p237 = scmp.ne.s32.totalorder %s228, %s229
      %p238 = scmp.eq.s32.totalorder %s45, 0
      %p239 = por %p237, %p238
      %p240 = scmp.ne.s32.totalorder %s228, %s229
      %p241 = scmp.eq.s32.totalorder %s46, 1
      %p242 = por %p240, %p241
      %p244 = scmp.ne.s32.totalorder %s229, %s243
      %p245 = scmp.eq.s32.totalorder %s46, 0
      %p246 = por %p244, %p245
      %s248 = sadd.s32 %s247, 1
      %p251 = scmp.eq.s32.totalorder %s40, 1
      %p252 = scmp.ne.s32.totalorder %s247, %s249
      %p253 = scmp.eq.s32.totalorder %s40, 0
      %p254 = por %p252, %p253
      %p255 = scmp.ne.s32.totalorder %s247, %s249
      %p256 = scmp.eq.s32.totalorder %s45, 1
      %p257 = por %p255, %p256
      %p258 = scmp.ne.s32.totalorder %s249, %s250
      %p259 = scmp.eq.s32.totalorder %s45, 0
      %p260 = por %p258, %p259
      %p261 = scmp.ne.s32.totalorder %s249, %s250
      %p262 = scmp.eq.s32.totalorder %s46, 1
      %p263 = por %p261, %p262
      %p265 = scmp.ne.s32.totalorder %s250, %s264
      %p266 = scmp.eq.s32.totalorder %s46, 0
      %p267 = por %p265, %p266
      %s269 = sadd.s32 %s268, 1
      %p272 = scmp.eq.s32.totalorder %s40, 1
      %p273 = scmp.ne.s32.totalorder %s268, %s270
      %p274 = scmp.eq.s32.totalorder %s40, 0
      %p275 = por %p273, %p274
      %p276 = scmp.ne.s32.totalorder %s268, %s270
      %p277 = scmp.eq.s32.totalorder %s45, 1
      %p278 = por %p276, %p277
      %p279 = scmp.ne.s32.totalorder %s270, %s271
      %p280 = scmp.eq.s32.totalorder %s45, 0
      %p281 = por %p279, %p280
      %p282 = scmp.ne.s32.totalorder %s270, %s271
      %p283 = scmp.eq.s32.totalorder %s46, 1
      %p284 = por %p282, %p283
      %p286 = scmp.ne.s32.totalorder %s271, %s285
      %p287 = scmp.eq.s32.totalorder %s46, 0
      %p288 = por %p286, %p287
      %s290 = sadd.s32 %s289, 1
      %p293 = scmp.eq.s32.totalorder %s40, 1
      %p294 = scmp.ne.s32.totalorder %s289, %s291
      %p295 = scmp.eq.s32.totalorder %s40, 0
      %p296 = por %p294, %p295
      %p297 = scmp.ne.s32.totalorder %s289, %s291
      %p298 = scmp.eq.s32.totalorder %s45, 1
      %p299 = por %p297, %p298
      %p300 = scmp.ne.s32.totalorder %s291, %s292
      %p301 = scmp.eq.s32.totalorder %s45, 0
      %p302 = por %p300, %p301
      %p303 = scmp.ne.s32.totalorder %s291, %s292
      %p304 = scmp.eq.s32.totalorder %s46, 1
      %p305 = por %p303, %p304
      %p307 = scmp.ne.s32.totalorder %s292, %s306
      %p308 = scmp.eq.s32.totalorder %s46, 0
      %p309 = por %p307, %p308
      %s311 = sadd.s32 %s310, 1
      %p314 = scmp.eq.s32.totalorder %s40, 1
      %p315 = scmp.ne.s32.totalorder %s310, %s312
      %p316 = scmp.eq.s32.totalorder %s40, 0
      %p317 = por %p315, %p316
      %p318 = scmp.ne.s32.totalorder %s310, %s312
      %p319 = scmp.eq.s32.totalorder %s45, 1
      %p320 = por %p318, %p319
      %p321 = scmp.ne.s32.totalorder %s312, %s313
      %p322 = scmp.eq.s32.totalorder %s45, 0
      %p323 = por %p321, %p322
      %p324 = scmp.ne.s32.totalorder %s312, %s313
      %p325 = scmp.eq.s32.totalorder %s46, 1
      %p326 = por %p324, %p325
      %p328 = scmp.ne.s32.totalorder %s313, %s327
      %p329 = scmp.eq.s32.totalorder %s46, 0
      %p330 = por %p328, %p329
      %s332 = sadd.s32 %s331, 1
      %p335 = scmp.eq.s32.totalorder %s40, 1
      %p336 = scmp.ne.s32.totalorder %s331, %s333
      %p337 = scmp.eq.s32.totalorder %s40, 0
      %p338 = por %p336, %p337
      %p339 = scmp.ne.s32.totalorder %s331, %s333
      %p340 = scmp.eq.s32.totalorder %s45, 1
      %p341 = por %p339, %p340
      %p342 = scmp.ne.s32.totalorder %s333, %s334
      %p343 = scmp.eq.s32.totalorder %s45, 0
      %p344 = por %p342, %p343
      %p345 = scmp.ne.s32.totalorder %s333, %s334
      %p346 = scmp.eq.s32.totalorder %s46, 1
      %p347 = por %p345, %p346
      %p349 = scmp.ne.s32.totalorder %s334, %s348
      %p350 = scmp.eq.s32.totalorder %s46, 0
      %p351 = por %p349, %p350
      %s353 = sadd.s32 %s352, 1
      %p356 = scmp.eq.s32.totalorder %s40, 1
      %p357 = scmp.ne.s32.totalorder %s352, %s354
      %p358 = scmp.eq.s32.totalorder %s40, 0
      %p359 = por %p357, %p358
      %p360 = scmp.ne.s32.totalorder %s352, %s354
      %p361 = scmp.eq.s32.totalorder %s45, 1
      %p362 = por %p360, %p361
      %p363 = scmp.ne.s32.totalorder %s354, %s355
      %p364 = scmp.eq.s32.totalorder %s45, 0
      %p365 = por %p363, %p364
      %p366 = scmp.ne.s32.totalorder %s354, %s355
      %p367 = scmp.eq.s32.totalorder %s46, 1
      %p368 = por %p366, %p367
      %p370 = scmp.ne.s32.totalorder %s355, %s369
      %p371 = scmp.eq.s32.totalorder %s46, 0
      %p372 = por %p370, %p371
      %s374 = sadd.s32 %s373, 1
      %p377 = scmp.eq.s32.totalorder %s40, 1
      %p378 = scmp.ne.s32.totalorder %s373, %s375
      %p379 = scmp.eq.s32.totalorder %s40, 0
      %p380 = por %p378, %p379
      %p381 = scmp.ne.s32.totalorder %s373, %s375
      %p382 = scmp.eq.s32.totalorder %s45, 1
      %p383 = por %p381, %p382
      %p384 = scmp.ne.s32.totalorder %s375, %s376
      %p385 = scmp.eq.s32.totalorder %s45, 0
      %p386 = por %p384, %p385
      %p387 = scmp.ne.s32.totalorder %s375, %s376
      %p388 = scmp.eq.s32.totalorder %s46, 1
      %p389 = por %p387, %p388
      %p391 = scmp.ne.s32.totalorder %s376, %s390
      %p392 = scmp.eq.s32.totalorder %s46, 0
      %p393 = por %p391, %p392
      %s394 = ssub.s32 %s40, %s47
      %p395 = scmp.eq.s32.totalorder %s394, 0
      %s397 = sadd.s32 %s396, 1
      %s398 = scalar_select %p395, %s396, %s397
      %p401 = pneg %p395
      %p402 = scmp.eq.s32.totalorder %s40, 1
      %p403 = por %p401, %p402
      %p404 = scmp.ne.s32.totalorder %s396, %s399
      %p405 = scmp.eq.s32.totalorder %s40, 0
      %p406 = por %p404, %p405
      %p407 = scmp.ne.s32.totalorder %s396, %s399
      %p408 = scmp.eq.s32.totalorder %s45, 1
      %p409 = por %p407, %p408
      %p410 = scmp.ne.s32.totalorder %s399, %s400
      %p411 = scmp.eq.s32.totalorder %s45, 0
      %p412 = por %p410, %p411
      %p413 = scmp.ne.s32.totalorder %s399, %s400
      %p414 = scmp.eq.s32.totalorder %s46, 1
      %p415 = por %p413, %p414
      %p417 = scmp.ne.s32.totalorder %s400, %s416
      %p418 = scmp.eq.s32.totalorder %s46, 0
      %p419 = por %p417, %p418
      %s420 = ssub.s32 %s40, %s47
      %p421 = scmp.eq.s32.totalorder %s420, 0
      %s423 = sadd.s32 %s422, 1
      %s424 = scalar_select %p421, %s422, %s423
      %p427 = pneg %p421
      %p428 = scmp.eq.s32.totalorder %s40, 1
      %p429 = por %p427, %p428
      %p430 = scmp.ne.s32.totalorder %s422, %s425
      %p431 = scmp.eq.s32.totalorder %s40, 0
      %p432 = por %p430, %p431
      %p433 = scmp.ne.s32.totalorder %s422, %s425
      %p434 = scmp.eq.s32.totalorder %s45, 1
      %p435 = por %p433, %p434
      %p436 = scmp.ne.s32.totalorder %s425, %s426
      %p437 = scmp.eq.s32.totalorder %s45, 0
      %p438 = por %p436, %p437
      %p439 = scmp.ne.s32.totalorder %s425, %s426
      %p440 = scmp.eq.s32.totalorder %s46, 1
      %p441 = por %p439, %p440
      %p443 = scmp.ne.s32.totalorder %s426, %s442
      %p444 = scmp.eq.s32.totalorder %s46, 0
      %p445 = por %p443, %p444
      %p446 = scmp.le.s32.totalorder 1, %s40
      %p447 = scmp.lt.s32.totalorder %s40, 3
      %p448 = pnand %p446, %p447
      %p449 = pneg %p448
      // Predicated region
      $region9: #{tpu_custom_call.1} parent=5 // pred_check
        _
      $region10: #{tpu_custom_call.1} parent=5 // pred_check_branch
        %451 = sbr.rel (%p448) target = $region12
      $region11: #{tpu_custom_call.1} parent=5 // pred_region
        %s452 = ssub.s32 %s40, 1
        // Predicated region
        $region13: #{tpu_custom_call.1} parent=11 // pred_check
          %p453 = pneg %p113
        $region14: #{tpu_custom_call.1} parent=11 // pred_check_branch
          %455 = sbr.rel (%p453) target = $region16
        $region15: #{tpu_custom_call.1} parent=11 // pred_region
          %s457 = ssub.s32 2048, 2048
          %458 = vsyncadd [#allocation6], %s457
          %s459 = sshll.u32 [#allocation7], 4
          %s460 = int_to_ptr.vmem [resolvable:$true] %s459
          %465 = dma.hbm_to_vmem [thread:$0]  %s2, 2048, %s460, [#allocation6], 128, 128, 8
        $region16: #{tpu_custom_call.1} parent=11 // pred_fallthru
          _
        // Predicated region
        $region17: #{tpu_custom_call.1} parent=11 // pred_check
          %p466 = pneg %p134
        $region18: #{tpu_custom_call.1} parent=11 // pred_check_branch
          %468 = sbr.rel (%p466) target = $region20
        $region19: #{tpu_custom_call.1} parent=11 // pred_region
          _
        $region20: #{tpu_custom_call.1} parent=11 // pred_fallthru
          _
        // Predicated region
        $region21: #{tpu_custom_call.1} parent=11 // pred_check
          %p469 = pneg %p155
        $region22: #{tpu_custom_call.1} parent=11 // pred_check_branch
          %471 = sbr.rel (%p469) target = $region24
        $region23: #{tpu_custom_call.1} parent=11 // pred_region
          %s473 = ssub.s32 2048, 2048
          %474 = vsyncadd [#allocation9], %s473
          %s475 = sshll.u32 [#allocation8], 4
          %s476 = int_to_ptr.vmem [resolvable:$true] %s475
          %481 = dma.hbm_to_vmem [thread:$0]  %s4, 2048, %s476, [#allocation9], 128, 128, 8
        $region24: #{tpu_custom_call.1} parent=11 // pred_fallthru
          _
        // Predicated region
        $region25: #{tpu_custom_call.1} parent=11 // pred_check
          %p482 = pneg %p176
        $region26: #{tpu_custom_call.1} parent=11 // pred_check_branch
          %484 = sbr.rel (%p482) target = $region28
        $region27: #{tpu_custom_call.1} parent=11 // pred_region
          %s486 = ssub.s32 32, 32
          %487 = vsyncadd [#allocation9], %s486
          %s489 = sshll.u32 [#allocation10], 4
          %s490 = int_to_ptr.vmem [resolvable:$true] %s489
          %492 = dma.hbm_to_vmem [thread:$0]  %s5, 32, %s490, [#allocation9]
        $region28: #{tpu_custom_call.1} parent=11 // pred_fallthru
          _
        // Predicated region
        $region29: #{tpu_custom_call.1} parent=11 // pred_check
          %p493 = pneg %p197
        $region30: #{tpu_custom_call.1} parent=11 // pred_check_branch
          %495 = sbr.rel (%p493) target = $region32
        $region31: #{tpu_custom_call.1} parent=11 // pred_region
          %s497 = ssub.s32 8192, 8192
          %498 = vsyncadd [#allocation12], %s497
          %s499 = sshll.u32 [#allocation11], 4
          %s500 = int_to_ptr.vmem [resolvable:$true] %s499
          %505 = dma.hbm_to_vmem [thread:$0]  %s6, 8192, %s500, [#allocation12], 128, 128, 8
        $region32: #{tpu_custom_call.1} parent=11 // pred_fallthru
          _
        // Predicated region
        $region33: #{tpu_custom_call.1} parent=11 // pred_check
          %p506 = pneg %p218
        $region34: #{tpu_custom_call.1} parent=11 // pred_check_branch
          %508 = sbr.rel (%p506) target = $region36
        $region35: #{tpu_custom_call.1} parent=11 // pred_region
          _
        $region36: #{tpu_custom_call.1} parent=11 // pred_fallthru
          _
        // Predicated region
        $region37: #{tpu_custom_call.1} parent=11 // pred_check
          %p509 = pneg %p239
        $region38: #{tpu_custom_call.1} parent=11 // pred_check_branch
          %511 = sbr.rel (%p509) target = $region40
        $region39: #{tpu_custom_call.1} parent=11 // pred_region
          %s513 = ssub.s32 8192, 8192
          %514 = vsyncadd [#allocation12], %s513
          %s515 = sshll.u32 [#allocation13], 4
          %s516 = int_to_ptr.vmem [resolvable:$true] %s515
          %521 = dma.hbm_to_vmem [thread:$0]  %s8, 8192, %s516, [#allocation12], 128, 128, 8
        $region40: #{tpu_custom_call.1} parent=11 // pred_fallthru
          _
        // Predicated region
        $region41: #{tpu_custom_call.1} parent=11 // pred_check
          %p522 = pneg %p260
        $region42: #{tpu_custom_call.1} parent=11 // pred_check_branch
          %524 = sbr.rel (%p522) target = $region44
        $region43: #{tpu_custom_call.1} parent=11 // pred_region
          _
        $region44: #{tpu_custom_call.1} parent=11 // pred_fallthru
          _
        // Predicated region
        $region45: #{tpu_custom_call.1} parent=11 // pred_check
          %p525 = pneg %p281
        $region46: #{tpu_custom_call.1} parent=11 // pred_check_branch
          %527 = sbr.rel (%p525) target = $region48
        $region47: #{tpu_custom_call.1} parent=11 // pred_region
          %s529 = ssub.s32 32768, 32768
          %530 = vsyncadd [#allocation15], %s529
          %s531 = sshll.u32 [#allocation14], 4
          %s532 = int_to_ptr.vmem [resolvable:$true] %s531
          %537 = dma.hbm_to_vmem [thread:$0]  %s10, 32768, %s532, [#allocation15], 512, 512, 32
        $region48: #{tpu_custom_call.1} parent=11 // pred_fallthru
          _
        // Predicated region
        $region49: #{tpu_custom_call.1} parent=11 // pred_check
          %p538 = pneg %p302
        $region50: #{tpu_custom_call.1} parent=11 // pred_check_branch
          %540 = sbr.rel (%p538) target = $region52
        $region51: #{tpu_custom_call.1} parent=11 // pred_region
          _
        $region52: #{tpu_custom_call.1} parent=11 // pred_fallthru
          _
        // Predicated region
        $region53: #{tpu_custom_call.1} parent=11 // pred_check
          %p541 = pneg %p323
        $region54: #{tpu_custom_call.1} parent=11 // pred_check_branch
          %543 = sbr.rel (%p541) target = $region56
        $region55: #{tpu_custom_call.1} parent=11 // pred_region
          %s545 = ssub.s32 32768, 32768
          %546 = vsyncadd [#allocation15], %s545
          %s547 = sshll.u32 [#allocation16], 4
          %s548 = int_to_ptr.vmem [resolvable:$true] %s547
          %553 = dma.hbm_to_vmem [thread:$0]  %s12, 32768, %s548, [#allocation15], 256, 256, 16
        $region56: #{tpu_custom_call.1} parent=11 // pred_fallthru
          _
        // Predicated region
        $region57: #{tpu_custom_call.1} parent=11 // pred_check
          %p554 = pneg %p344
        $region58: #{tpu_custom_call.1} parent=11 // pred_check_branch
          %556 = sbr.rel (%p554) target = $region60
        $region59: #{tpu_custom_call.1} parent=11 // pred_region
          _
        $region60: #{tpu_custom_call.1} parent=11 // pred_fallthru
          _
        // Predicated region
        $region61: #{tpu_custom_call.1} parent=11 // pred_check
          %p557 = pneg %p365
        $region62: #{tpu_custom_call.1} parent=11 // pred_check_branch
          %559 = sbr.rel (%p557) target = $region64
        $region63: #{tpu_custom_call.1} parent=11 // pred_region
          %s561 = ssub.s32 8192, 8192
          %562 = vsyncadd [#allocation18], %s561
          %s563 = sshll.u32 [#allocation17], 4
          %s564 = int_to_ptr.vmem [resolvable:$true] %s563
          %569 = dma.hbm_to_vmem [thread:$0]  %s14, 8192, %s564, [#allocation18], 64, 64, 4
        $region64: #{tpu_custom_call.1} parent=11 // pred_fallthru
          _
        // Predicated region
        $region65: #{tpu_custom_call.1} parent=11 // pred_check
          %p570 = pneg %p386
        $region66: #{tpu_custom_call.1} parent=11 // pred_check_branch
          %572 = sbr.rel (%p570) target = $region68
        $region67: #{tpu_custom_call.1} parent=11 // pred_region
          _
        $region68: #{tpu_custom_call.1} parent=11 // pred_fallthru
          _
      $region12: #{tpu_custom_call.1} parent=5 // pred_fallthru
        _
      %p573 = scmp.lt.s32.totalorder %s40, 2
      // Predicated region
      $region69: #{tpu_custom_call.1} parent=5 // pred_check
        %p574 = pneg %p573
      $region70: #{tpu_custom_call.1} parent=5 // pred_check_branch
        %576 = sbr.rel (%p574) target = $region72
      $region71: #{tpu_custom_call.1} parent=5 // pred_region
        // Predicated region
        $region73: #{tpu_custom_call.1} parent=71 // pred_check
          %p577 = pneg %p60
        $region74: #{tpu_custom_call.1} parent=71 // pred_check_branch
          %579 = sbr.rel (%p577) target = $region76
        $region75: #{tpu_custom_call.1} parent=71 // pred_region
          %s580 = sand.u32 %s50, 1
          %s581 = scalar_lea.sflag [#allocation3], %s580
          %s582 = sand.u32 %s50, 1
          %s583 = smul.addr %s582, 32
          %s584 = scalar_lea.vmem [#allocation2], %s583
          %s586 = ssub.s32 512, 512
          %587 = vsyncadd %s581, %s586
          %s588 = smul.addr %s40, 8
          %s589 = smul.addr %s588, 64
          %s590 = scalar_lea.hbm %s0, %s589
          %s591 = sshll.u32 %s584, 4
          %s592 = int_to_ptr.vmem [resolvable:$true] %s591
          %597 = dma.hbm_to_vmem [thread:$0]  %s590, 512, %s592, %s581, 64, 64, 4
        $region76: #{tpu_custom_call.1} parent=71 // pred_fallthru
          _
        // Predicated region
        $region77: #{tpu_custom_call.1} parent=71 // pred_check
          %p598 = pneg %p86
        $region78: #{tpu_custom_call.1} parent=71 // pred_check_branch
          %600 = sbr.rel (%p598) target = $region80
        $region79: #{tpu_custom_call.1} parent=71 // pred_region
          %s601 = sand.u32 %s40, 1
          %s602 = scalar_lea.sflag [#allocation6], %s601
          %s603 = sand.u32 %s76, 1
          %s604 = smul.addr %s603, 8
          %s605 = scalar_lea.vmem [#allocation5], %s604
          %s607 = ssub.s32 128, 128
          %608 = vsyncadd %s602, %s607
          %s609 = smul.addr %s40, 2
          %s610 = smul.addr %s609, 64
          %s611 = scalar_lea.hbm %s1, %s610
          %s612 = sshll.u32 %s605, 4
          %s613 = int_to_ptr.vmem [resolvable:$true] %s612
          %618 = dma.hbm_to_vmem [thread:$0]  %s611, 128, %s613, %s602, 64, 64, 4
        $region80: #{tpu_custom_call.1} parent=71 // pred_fallthru
          _
      $region72: #{tpu_custom_call.1} parent=5 // pred_fallthru
        _
      %p619 = scmp.le.s32.totalorder 1, %s40
      %p620 = scmp.lt.s32.totalorder %s40, 3
      %p621 = pnand %p619, %p620
      %p622 = pneg %p621
      // Predicated region
      $region81: #{tpu_custom_call.1} parent=5 // pred_check
        _
      $region82: #{tpu_custom_call.1} parent=5 // pred_check_branch
        %624 = sbr.rel (%p621) target = $region84
      $region83: #{tpu_custom_call.1} parent=5 // pred_region
        %s625 = ssub.s32 %s40, 1
        %s626 = sand.u32 %s53, 1
        %s627 = scalar_lea.sflag [#allocation3], %s626
        %s628 = sand.u32 %s53, 1
        %s629 = smul.addr %s628, 32
        %s630 = scalar_lea.vmem [#allocation2], %s629
        // Predicated region
        $region85: #{tpu_custom_call.1} parent=83 // pred_check
          %p631 = pneg %p66
        $region86: #{tpu_custom_call.1} parent=83 // pred_check_branch
          %633 = sbr.rel (%p631) target = $region88
        $region87: #{tpu_custom_call.1} parent=83 // pred_region
          %634 = dma.done %s627, 512
        $region88: #{tpu_custom_call.1} parent=83 // pred_fallthru
          _
        %s635 = sand.u32 %s45, 1
        %s636 = scalar_lea.sflag [#allocation6], %s635
        %s637 = sand.u32 %s79, 1
        %s638 = smul.addr %s637, 8
        %s639 = scalar_lea.vmem [#allocation5], %s638
        // Predicated region
        $region89: #{tpu_custom_call.1} parent=83 // pred_check
          %p640 = pneg %p92
        $region90: #{tpu_custom_call.1} parent=83 // pred_check_branch
          %642 = sbr.rel (%p640) target = $region92
        $region91: #{tpu_custom_call.1} parent=83 // pred_region
          %643 = dma.done %s636, 128
        $region92: #{tpu_custom_call.1} parent=83 // pred_fallthru
          _
        // Predicated region
        $region93: #{tpu_custom_call.1} parent=83 // pred_check
          %p644 = pneg %p113
        $region94: #{tpu_custom_call.1} parent=83 // pred_check_branch
          %646 = sbr.rel (%p644) target = $region96
        $region95: #{tpu_custom_call.1} parent=83 // pred_region
          %647 = dma.done [#allocation6], 2048
        $region96: #{tpu_custom_call.1} parent=83 // pred_fallthru
          _
        // Predicated region
        $region97: #{tpu_custom_call.1} parent=83 // pred_check
          %p648 = pneg %p155
        $region98: #{tpu_custom_call.1} parent=83 // pred_check_branch
          %650 = sbr.rel (%p648) target = $region100
        $region99: #{tpu_custom_call.1} parent=83 // pred_region
          %651 = dma.done [#allocation9], 2048
        $region100: #{tpu_custom_call.1} parent=83 // pred_fallthru
          _
        // Predicated region
        $region101: #{tpu_custom_call.1} parent=83 // pred_check
          %p652 = pneg %p176
        $region102: #{tpu_custom_call.1} parent=83 // pred_check_branch
          %654 = sbr.rel (%p652) target = $region104
        $region103: #{tpu_custom_call.1} parent=83 // pred_region
          %655 = dma.done [#allocation9], 32
        $region104: #{tpu_custom_call.1} parent=83 // pred_fallthru
          _
        // Predicated region
        $region105: #{tpu_custom_call.1} parent=83 // pred_check
          %p656 = pneg %p197
        $region106: #{tpu_custom_call.1} parent=83 // pred_check_branch
          %658 = sbr.rel (%p656) target = $region108
        $region107: #{tpu_custom_call.1} parent=83 // pred_region
          %659 = dma.done [#allocation12], 8192
        $region108: #{tpu_custom_call.1} parent=83 // pred_fallthru
          _
        // Predicated region
        $region109: #{tpu_custom_call.1} parent=83 // pred_check
          %p660 = pneg %p239
        $region110: #{tpu_custom_call.1} parent=83 // pred_check_branch
          %662 = sbr.rel (%p660) target = $region112
        $region111: #{tpu_custom_call.1} parent=83 // pred_region
          %663 = dma.done [#allocation12], 8192
        $region112: #{tpu_custom_call.1} parent=83 // pred_fallthru
          _
        // Predicated region
        $region113: #{tpu_custom_call.1} parent=83 // pred_check
          %p664 = pneg %p281
        $region114: #{tpu_custom_call.1} parent=83 // pred_check_branch
          %666 = sbr.rel (%p664) target = $region116
        $region115: #{tpu_custom_call.1} parent=83 // pred_region
          %667 = dma.done [#allocation15], 32768
        $region116: #{tpu_custom_call.1} parent=83 // pred_fallthru
          _
        // Predicated region
        $region117: #{tpu_custom_call.1} parent=83 // pred_check
          %p668 = pneg %p323
        $region118: #{tpu_custom_call.1} parent=83 // pred_check_branch
          %670 = sbr.rel (%p668) target = $region120
        $region119: #{tpu_custom_call.1} parent=83 // pred_region
          %671 = dma.done [#allocation15], 32768
        $region120: #{tpu_custom_call.1} parent=83 // pred_fallthru
          _
        // Predicated region
        $region121: #{tpu_custom_call.1} parent=83 // pred_check
          %p672 = pneg %p365
        $region122: #{tpu_custom_call.1} parent=83 // pred_check_branch
          %674 = sbr.rel (%p672) target = $region124
        $region123: #{tpu_custom_call.1} parent=83 // pred_region
          %675 = dma.done [#allocation18], 8192
        $region124: #{tpu_custom_call.1} parent=83 // pred_fallthru
          _
        %s676 = sand.u32 %s53, 1
        %s677 = scalar_lea.sflag [#allocation3], %s676
        %s678 = sand.u32 %s53, 1
        %s679 = smul.addr %s678, 32
        %s680 = scalar_lea.vmem [#allocation2], %s679
        %p681 = pneg %p66
        %p682 = pneg %p63
        %s683 = sand.u32 %s45, 1
        %s684 = scalar_lea.sflag [#allocation6], %s683
        %s685 = sand.u32 %s79, 1
        %s686 = smul.addr %s685, 8
        %s687 = scalar_lea.vmem [#allocation5], %s686
        %p688 = pneg %p92
        %p689 = pneg %p89
        %p690 = pneg %p113
        %p691 = pneg %p110
        %p692 = pneg %p134
        %p693 = pneg %p131
        %p694 = pneg %p155
        %p695 = pneg %p152
        %p696 = pneg %p176
        %p697 = pneg %p173
        %p698 = pneg %p197
        %p699 = pneg %p194
        %p700 = pneg %p218
        %p701 = pneg %p215
        %p702 = pneg %p239
        %p703 = pneg %p236
        %p704 = pneg %p260
        %p705 = pneg %p257
        %p706 = pneg %p281
        %p707 = pneg %p278
        %p708 = pneg %p302
        %p709 = pneg %p299
        %p710 = pneg %p323
        %p711 = pneg %p320
        %p712 = pneg %p344
        %p713 = pneg %p341
        %p714 = pneg %p365
        %p715 = pneg %p362
        %p716 = pneg %p386
        %p717 = pneg %p383
        %p718 = pneg %p412
        %p719 = pneg %p409
        %s720 = sand.u32 %s399, 1
        %s721 = scalar_lea.sflag [#allocation4], %s720
        %s722 = sand.u32 %s399, 1
        %s723 = smul.addr %s722, 64
        %s724 = scalar_lea.vmem [#allocation19], %s723
        %p725 = pneg %p438
        %p726 = pneg %p435
        %s727 = sand.u32 %s425, 1
        %s728 = scalar_lea.sflag [#allocation21], %s727
        %s729 = sand.u32 %s425, 1
        %s730 = smul.addr %s729, 16
        %s731 = scalar_lea.vmem [#allocation20], %s730
        %v733 = vld [vmem:[%s630] sm:$0xf]
        %v734 = vld [vmem:[%s630 + $0x4] sm:$0xf]
        %v735 = vld [vmem:[%s630 + $0x8] sm:$0xf]
        %v736 = vld [vmem:[%s630 + $0xc] sm:$0xf]
        %v737 = vld [vmem:[%s630 + $0x10] sm:$0xf]
        %v738 = vld [vmem:[%s630 + $0x14] sm:$0xf]
        %v739 = vld [vmem:[%s630 + $0x18] sm:$0xf]
        %v740 = vld [vmem:[%s630 + $0x1c] sm:$0xf]
        %v741 = vld [vmem:[%s639] sm:$0xf]
        %v742 = vld [vmem:[%s639 + $0x4] sm:$0xf]
        %v743 = vld [vmem:[#allocation7] sm:$0xff]
        %v744 = vld [vmem:[#allocation7 + $0x8] sm:$0xff]
        %v745 = vld [vmem:[#allocation7 + $0x10] sm:$0xff]
        %v746 = vld [vmem:[#allocation7 + $0x18] sm:$0xff]
        %v747 = vld [vmem:[#allocation7 + $0x20] sm:$0xff]
        %v748 = vld [vmem:[#allocation7 + $0x28] sm:$0xff]
        %v749 = vld [vmem:[#allocation7 + $0x30] sm:$0xff]
        %v750 = vld [vmem:[#allocation7 + $0x38] sm:$0xff]
        %v751 = vld [vmem:[#allocation7 + $0x40] sm:$0xff]
        %v752 = vld [vmem:[#allocation7 + $0x48] sm:$0xff]
        %v753 = vld [vmem:[#allocation7 + $0x50] sm:$0xff]
        %v754 = vld [vmem:[#allocation7 + $0x58] sm:$0xff]
        %v755 = vld [vmem:[#allocation7 + $0x60] sm:$0xff]
        %v756 = vld [vmem:[#allocation7 + $0x68] sm:$0xff]
        %v757 = vld [vmem:[#allocation7 + $0x70] sm:$0xff]
        %v758 = vld [vmem:[#allocation7 + $0x78] sm:$0xff]
        %v759 = vld [vmem:[%s3] sm:$0x3]
        %v761 = vlaneseq
        %v762 = vshrl.u32 %v761, 7
        %v763 = vsub.s32 0, %v762
        %v764 = vrot.slane %v759, %v763
        %v765 = vlaneseq
        %v766 = vshrl.u32 %v765, 7
        %v767 = vsub.s32 1, %v766
        %v768 = vrot.slane %v759, %v767
        %v779 = vunpack.c.l.b16 %v733
        %v780 = vunpack.c.l.b16 %v734
        %v781 = vunpack.c.l.b16 %v735
        %v782 = vunpack.c.l.b16 %v736
        %v783 = vunpack.c.l.b16 %v737
        %v784 = vunpack.c.l.b16 %v738
        %v785 = vunpack.c.l.b16 %v739
        %v786 = vunpack.c.l.b16 %v740
        %v787 = vpack.c.b16 %v780, %v779
        %v788 = vpack.c.b16 %v782, %v781
        %v789 = vpack.c.b16 %v784, %v783
        %v790 = vpack.c.b16 %v786, %v785
        %v811 = vunpack.c.l.b16 %v743
        %v812 = vunpack.c.h.b16 %v743
        %v813 = vunpack.c.l.b16 %v744
        %v814 = vunpack.c.h.b16 %v744
        %v815 = vunpack.c.l.b16 %v745
        %v816 = vunpack.c.h.b16 %v745
        %v817 = vunpack.c.l.b16 %v746
        %v818 = vunpack.c.h.b16 %v746
        %v819 = vunpack.c.l.b16 %v747
        %v820 = vunpack.c.h.b16 %v747
        %v821 = vunpack.c.l.b16 %v748
        %v822 = vunpack.c.h.b16 %v748
        %v823 = vunpack.c.l.b16 %v749
        %v824 = vunpack.c.h.b16 %v749
        %v825 = vunpack.c.l.b16 %v750
        %v826 = vunpack.c.h.b16 %v750
        %v827 = vunpack.c.l.b16 %v751
        %v828 = vunpack.c.h.b16 %v751
        %v829 = vunpack.c.l.b16 %v752
        %v830 = vunpack.c.h.b16 %v752
        %v831 = vunpack.c.l.b16 %v753
        %v832 = vunpack.c.h.b16 %v753
        %v833 = vunpack.c.l.b16 %v754
        %v834 = vunpack.c.h.b16 %v754
        %v835 = vunpack.c.l.b16 %v755
        %v836 = vunpack.c.h.b16 %v755
        %v837 = vunpack.c.l.b16 %v756
        %v838 = vunpack.c.h.b16 %v756
        %v839 = vunpack.c.l.b16 %v757
        %v840 = vunpack.c.h.b16 %v757
        %v841 = vunpack.c.l.b16 %v758
        %v842 = vunpack.c.h.b16 %v758
        %v843 = vpack.c.b16 %v813, %v811
        %v844 = vpack.c.b16 %v814, %v812
        %v845 = vpack.c.b16 %v817, %v815
        %v846 = vpack.c.b16 %v818, %v816
        %v847 = vpack.c.b16 %v821, %v819
        %v848 = vpack.c.b16 %v822, %v820
        %v849 = vpack.c.b16 %v825, %v823
        %v850 = vpack.c.b16 %v826, %v824
        %v851 = vpack.c.b16 %v829, %v827
        %v852 = vpack.c.b16 %v830, %v828
        %v853 = vpack.c.b16 %v833, %v831
        %v854 = vpack.c.b16 %v834, %v832
        %v855 = vpack.c.b16 %v837, %v835
        %v856 = vpack.c.b16 %v838, %v836
        %v857 = vpack.c.b16 %v841, %v839
        %v858 = vpack.c.b16 %v842, %v840
        %875 = vmatprep.subr.bf16.mxu0 %v844
        %876 = vmatpush1.bf16.msra.mxu0 %v843
        %877 = vmatprep.subr.bf16.mxu0 %v846
        %878 = vmatpush1.bf16.msra.mxu0 %v845
        %879 = vmatprep.subr.bf16.mxu0 %v848
        %880 = vmatpush1.bf16.msra.mxu0 %v847
        %881 = vmatprep.subr.bf16.mxu0 %v850
        %882 = vmatpush1.bf16.msra.mxu0 %v849
        %883 = vmatprep.subr.bf16.mxu0 %v852
        %884 = vmatpush1.bf16.msra.mxu0 %v851
        %885 = vmatprep.subr.bf16.mxu0 %v854
        %886 = vmatpush1.bf16.msra.mxu0 %v853
        %887 = vmatprep.subr.bf16.mxu0 %v856
        %888 = vmatpush1.bf16.msra.mxu0 %v855
        %889 = vmatprep.subr.bf16.mxu0 %v858
        %890 = vmatpush1.bf16.msra.mxu0 %v857
        %891 = vmatprep.subr.bf16.mxu0 0
        %892 = vmatpush1.bf16.msra.mxu0 0
        %893 = vmatprep.subr.bf16.mxu0 0
        %894 = vmatpush1.bf16.msra.mxu0 0
        %895 = vmatprep.subr.bf16.mxu0 0
        %896 = vmatpush1.bf16.msra.mxu0 0
        %897 = vmatprep.subr.bf16.mxu0 0
        %898 = vmatpush1.bf16.msra.mxu0 0
        %899 = vmatprep.subr.bf16.mxu0 0
        %900 = vmatpush1.bf16.msra.mxu0 0
        %901 = vmatprep.subr.bf16.mxu0 0
        %902 = vmatpush1.bf16.msra.mxu0 0
        %903 = vmatprep.subr.bf16.mxu0 0
        %904 = vmatpush1.bf16.msra.mxu0 0
        %905 = vmatprep.subr.bf16.mxu0 0
        %906 = vmatpush1.bf16.msra.mxu0 0
        %907 = vmatprep.mubr.bf16.mxu0 0
        %908 = vmatmul.mubr.bf16.gmra.mrb[0].mxu0 %v787
        %v909 = vpop.f32.mrb[0].mxu0
        %v910 = vadd.f32 %v764, %v909
        %v911 = vpop.f32.mrb[0].mxu0
        %v912 = vadd.f32 %v768, %v911
        %v913 = vpop.f32.mrb[0].mxu0
        %v914 = vadd.f32 %v764, %v913
        %v915 = vpop.f32.mrb[0].mxu0
        %v916 = vadd.f32 %v768, %v915
        %917 = vmatprep.mubr.bf16.mxu0 0
        %918 = vmatmul.mubr.bf16.gmra.mrb[0].mxu0 %v788
        %v919 = vpop.f32.mrb[0].mxu0
        %v920 = vadd.f32 %v764, %v919
        %v921 = vpop.f32.mrb[0].mxu0
        %v922 = vadd.f32 %v768, %v921
        %v923 = vpop.f32.mrb[0].mxu0
        %v924 = vadd.f32 %v764, %v923
        %v925 = vpop.f32.mrb[0].mxu0
        %v926 = vadd.f32 %v768, %v925
        %927 = vmatprep.mubr.bf16.mxu0 0
        %928 = vmatmul.mubr.bf16.gmra.mrb[0].mxu0 %v789
        %v929 = vpop.f32.mrb[0].mxu0
        %v930 = vadd.f32 %v764, %v929
        %v931 = vpop.f32.mrb[0].mxu0
        %v932 = vadd.f32 %v768, %v931
        %v933 = vpop.f32.mrb[0].mxu0
        %v934 = vadd.f32 %v764, %v933
        %v935 = vpop.f32.mrb[0].mxu0
        %v936 = vadd.f32 %v768, %v935
        %937 = vmatprep.mubr.bf16.mxu0 0
        %938 = vmatmul.mubr.bf16.gmra.mrb[0].mxu0 %v790
        %v939 = vpop.f32.mrb[0].mxu0
        %v940 = vadd.f32 %v764, %v939
        %v941 = vpop.f32.mrb[0].mxu0
        %v942 = vadd.f32 %v768, %v941
        %v943 = vpop.f32.mrb[0].mxu0
        %v944 = vadd.f32 %v764, %v943
        %v945 = vpop.f32.mrb[0].mxu0
        %v946 = vadd.f32 %v768, %v945
        %947 = vdwg.mxu0
        %v948 = vld [vmem:[#allocation8] sm:$0xff]
        %v949 = vld [vmem:[#allocation8 + $0x8] sm:$0xff]
        %v950 = vld [vmem:[#allocation8 + $0x10] sm:$0xff]
        %v951 = vld [vmem:[#allocation8 + $0x18] sm:$0xff]
        %v952 = vld [vmem:[#allocation8 + $0x20] sm:$0xff]
        %v953 = vld [vmem:[#allocation8 + $0x28] sm:$0xff]
        %v954 = vld [vmem:[#allocation8 + $0x30] sm:$0xff]
        %v955 = vld [vmem:[#allocation8 + $0x38] sm:$0xff]
        %v956 = vld [vmem:[#allocation8 + $0x40] sm:$0xff]
        %v957 = vld [vmem:[#allocation8 + $0x48] sm:$0xff]
        %v958 = vld [vmem:[#allocation8 + $0x50] sm:$0xff]
        %v959 = vld [vmem:[#allocation8 + $0x58] sm:$0xff]
        %v960 = vld [vmem:[#allocation8 + $0x60] sm:$0xff]
        %v961 = vld [vmem:[#allocation8 + $0x68] sm:$0xff]
        %v962 = vld [vmem:[#allocation8 + $0x70] sm:$0xff]
        %v963 = vld [vmem:[#allocation8 + $0x78] sm:$0xff]
        %v964 = vld [vmem:[#allocation10] sm:$0x3]
        %v966 = vlaneseq
        %v967 = vshrl.u32 %v966, 7
        %v968 = vsub.s32 0, %v967
        %v969 = vrot.slane %v964, %v968
        %v970 = vlaneseq
        %v971 = vshrl.u32 %v970, 7
        %v972 = vsub.s32 1, %v971
        %v973 = vrot.slane %v964, %v972
        %v978 = vunpack.c.l.b16 %v741
        %v979 = vunpack.c.l.b16 %v742
        %v980 = vpack.c.b16 %v979, %v978
        %v998 = vunpack.c.l.b16 %v948
        %v999 = vunpack.c.h.b16 %v948
        %v1000 = vunpack.c.l.b16 %v949
        %v1001 = vunpack.c.h.b16 %v949
        %v1002 = vunpack.c.l.b16 %v950
        %v1003 = vunpack.c.h.b16 %v950
        %v1004 = vunpack.c.l.b16 %v951
        %v1005 = vunpack.c.h.b16 %v951
        %v1006 = vunpack.c.l.b16 %v952
        %v1007 = vunpack.c.h.b16 %v952
        %v1008 = vunpack.c.l.b16 %v953
        %v1009 = vunpack.c.h.b16 %v953
        %v1010 = vunpack.c.l.b16 %v954
        %v1011 = vunpack.c.h.b16 %v954
        %v1012 = vunpack.c.l.b16 %v955
        %v1013 = vunpack.c.h.b16 %v955
        %v1014 = vunpack.c.l.b16 %v956
        %v1015 = vunpack.c.h.b16 %v956
        %v1016 = vunpack.c.l.b16 %v957
        %v1017 = vunpack.c.h.b16 %v957
        %v1018 = vunpack.c.l.b16 %v958
        %v1019 = vunpack.c.h.b16 %v958
        %v1020 = vunpack.c.l.b16 %v959
        %v1021 = vunpack.c.h.b16 %v959
        %v1022 = vunpack.c.l.b16 %v960
        %v1023 = vunpack.c.h.b16 %v960
        %v1024 = vunpack.c.l.b16 %v961
        %v1025 = vunpack.c.h.b16 %v961
        %v1026 = vunpack.c.l.b16 %v962
        %v1027 = vunpack.c.h.b16 %v962
        %v1028 = vunpack.c.l.b16 %v963
        %v1029 = vunpack.c.h.b16 %v963
        %v1030 = vpack.c.b16 %v1000, %v998
        %v1031 = vpack.c.b16 %v1001, %v999
        %v1032 = vpack.c.b16 %v1004, %v1002
        %v1033 = vpack.c.b16 %v1005, %v1003
        %v1034 = vpack.c.b16 %v1008, %v1006
        %v1035 = vpack.c.b16 %v1009, %v1007
        %v1036 = vpack.c.b16 %v1012, %v1010
        %v1037 = vpack.c.b16 %v1013, %v1011
        %v1038 = vpack.c.b16 %v1016, %v1014
        %v1039 = vpack.c.b16 %v1017, %v1015
        %v1040 = vpack.c.b16 %v1020, %v1018
        %v1041 = vpack.c.b16 %v1021, %v1019
        %v1042 = vpack.c.b16 %v1024, %v1022
        %v1043 = vpack.c.b16 %v1025, %v1023
        %v1044 = vpack.c.b16 %v1028, %v1026
        %v1045 = vpack.c.b16 %v1029, %v1027
        %1062 = vmatprep.subr.bf16.mxu0 %v1031
        %1063 = vmatpush1.bf16.msra.mxu0 %v1030
        %1064 = vmatprep.subr.bf16.mxu0 %v1033
        %1065 = vmatpush1.bf16.msra.mxu0 %v1032
        %1066 = vmatprep.subr.bf16.mxu0 %v1035
        %1067 = vmatpush1.bf16.msra.mxu0 %v1034
        %1068 = vmatprep.subr.bf16.mxu0 %v1037
        %1069 = vmatpush1.bf16.msra.mxu0 %v1036
        %1070 = vmatprep.subr.bf16.mxu0 %v1039
        %1071 = vmatpush1.bf16.msra.mxu0 %v1038
        %1072 = vmatprep.subr.bf16.mxu0 %v1041
        %1073 = vmatpush1.bf16.msra.mxu0 %v1040
        %1074 = vmatprep.subr.bf16.mxu0 %v1043
        %1075 = vmatpush1.bf16.msra.mxu0 %v1042
        %1076 = vmatprep.subr.bf16.mxu0 %v1045
        %1077 = vmatpush1.bf16.msra.mxu0 %v1044
        %1078 = vmatprep.subr.bf16.mxu0 0
        %1079 = vmatpush1.bf16.msra.mxu0 0
        %1080 = vmatprep.subr.bf16.mxu0 0
        %1081 = vmatpush1.bf16.msra.mxu0 0
        %1082 = vmatprep.subr.bf16.mxu0 0
        %1083 = vmatpush1.bf16.msra.mxu0 0
        %1084 = vmatprep.subr.bf16.mxu0 0
        %1085 = vmatpush1.bf16.msra.mxu0 0
        %1086 = vmatprep.subr.bf16.mxu0 0
        %1087 = vmatpush1.bf16.msra.mxu0 0
        %1088 = vmatprep.subr.bf16.mxu0 0
        %1089 = vmatpush1.bf16.msra.mxu0 0
        %1090 = vmatprep.subr.bf16.mxu0 0
        %1091 = vmatpush1.bf16.msra.mxu0 0
        %1092 = vmatprep.subr.bf16.mxu0 0
        %1093 = vmatpush1.bf16.msra.mxu0 0
        %1094 = vmatprep.mubr.bf16.mxu0 0
        %1095 = vmatmul.mubr.bf16.gmra.mrb[0].mxu0 %v980
        %v1096 = vpop.f32.mrb[0].mxu0
        %v1097 = vadd.f32 %v969, %v1096
        %v1098 = vpop.f32.mrb[0].mxu0
        %v1099 = vadd.f32 %v973, %v1098
        %v1100 = vpop.f32.mrb[0].mxu0
        %v1101 = vadd.f32 %v969, %v1100
        %v1102 = vpop.f32.mrb[0].mxu0
        %v1103 = vadd.f32 %v973, %v1102
        %1104 = vdwg.mxu0
        %v1105 = vpack.c.bf16 %v914, %v910
        %v1106 = vpack.c.bf16 %v924, %v920
        %v1107 = vpack.c.bf16 %v934, %v930
        %v1108 = vpack.c.bf16 %v944, %v940
        %v1109 = vpack.c.bf16 %v1101, %v1097
        %1110 = vmatprep.subr.bf16.mxu0 0
        %1111 = vmatpush1.bf16.xpose.msra.mxu0 %v1109
        %1112 = vmatprep.subr.bf16.mxu0 0
        %1113 = vmatpush1.bf16.xpose.msra.mxu0 0
        %1114 = vmatprep.subr.bf16.mxu0 0
        %1115 = vmatpush1.bf16.xpose.msra.mxu0 0
        %1116 = vmatprep.subr.bf16.mxu0 0
        %1117 = vmatpush1.bf16.xpose.msra.mxu0 0
        %1118 = vmatprep.subr.bf16.mxu0 0
        %1119 = vmatpush1.bf16.xpose.msra.mxu0 0
        %1120 = vmatprep.subr.bf16.mxu0 0
        %1121 = vmatpush1.bf16.xpose.msra.mxu0 0
        %1122 = vmatprep.subr.bf16.mxu0 0
        %1123 = vmatpush1.bf16.xpose.msra.mxu0 0
        %1124 = vmatprep.subr.bf16.mxu0 0
        %1125 = vmatpush1.bf16.xpose.msra.mxu0 0
        %1126 = vmatprep.subr.bf16.mxu0 0
        %1127 = vmatpush1.bf16.xpose.msra.mxu0 0
        %1128 = vmatprep.subr.bf16.mxu0 0
        %1129 = vmatpush1.bf16.xpose.msra.mxu0 0
        %1130 = vmatprep.subr.bf16.mxu0 0
        %1131 = vmatpush1.bf16.xpose.msra.mxu0 0
        %1132 = vmatprep.subr.bf16.mxu0 0
        %1133 = vmatpush1.bf16.xpose.msra.mxu0 0
        %1134 = vmatprep.subr.bf16.mxu0 0
        %1135 = vmatpush1.bf16.xpose.msra.mxu0 0
        %1136 = vmatprep.subr.bf16.mxu0 0
        %1137 = vmatpush1.bf16.xpose.msra.mxu0 0
        %1138 = vmatprep.subr.bf16.mxu0 0
        %1139 = vmatpush1.bf16.xpose.msra.mxu0 0
        %1140 = vmatprep.subr.bf16.mxu0 0
        %1141 = vmatpush1.bf16.xpose.msra.mxu0 0
        %1142 = vmatprep.mubr.bf16.mxu0 0
        %1143 = vmatmul.mubr.bf16.gmra.mrb[0].mxu0 %v1105
        %v1144 = vpop.f32.mrb[0].mxu0
        %v1145 = vadd.f32 0.0, %v1144
        %v1146 = vpop.f32.mrb[0].mxu0
        %v1147 = vpop.f32.mrb[0].mxu0
        %v1148 = vadd.f32 0.0, %v1147
        %v1149 = vpop.f32.mrb[0].mxu0
        %1150 = vmatprep.mubr.bf16.mxu0 0
        %1151 = vmatmul.mubr.bf16.gmra.mrb[0].mxu0 %v1106
        %v1152 = vpop.f32.mrb[0].mxu0
        %v1153 = vadd.f32 0.0, %v1152
        %v1154 = vpop.f32.mrb[0].mxu0
        %v1155 = vpop.f32.mrb[0].mxu0
        %v1156 = vadd.f32 0.0, %v1155
        %v1157 = vpop.f32.mrb[0].mxu0
        %1158 = vmatprep.mubr.bf16.mxu0 0
        %1159 = vmatmul.mubr.bf16.gmra.mrb[0].mxu0 %v1107
        %v1160 = vpop.f32.mrb[0].mxu0
        %v1161 = vadd.f32 0.0, %v1160
        %v1162 = vpop.f32.mrb[0].mxu0
        %v1163 = vpop.f32.mrb[0].mxu0
        %v1164 = vadd.f32 0.0, %v1163
        %v1165 = vpop.f32.mrb[0].mxu0
        %1166 = vmatprep.mubr.bf16.mxu0 0
        %1167 = vmatmul.mubr.bf16.gmra.mrb[0].mxu0 %v1108
        %v1168 = vpop.f32.mrb[0].mxu0
        %v1169 = vadd.f32 0.0, %v1168
        %v1170 = vpop.f32.mrb[0].mxu0
        %v1171 = vpop.f32.mrb[0].mxu0
        %v1172 = vadd.f32 0.0, %v1171
        %v1173 = vpop.f32.mrb[0].mxu0
        %1174 = vdwg.mxu0
        %vm1175 = vcmask 130048
        %v1176 = vsel %vm1175, %v1145, inf
        %v1177 = vsel %vm1175, %v1148, inf
        %v1178 = vsel %vm1175, %v1153, inf
        %v1179 = vsel %vm1175, %v1156, inf
        %v1180 = vsel %vm1175, %v1161, inf
        %v1181 = vmin.f32 %v1176, %v1180
        %v1182 = vsel %vm1175, %v1164, inf
        %v1183 = vmin.f32 %v1177, %v1182
        %v1184 = vsel %vm1175, %v1169, inf
        %v1185 = vmin.f32 %v1178, %v1184
        %v1186 = vsel %vm1175, %v1172, inf
        %v1187 = vmin.f32 %v1179, %v1186
        %v1188 = vmin.f32 %v1181, %v1183
        %v1189 = vmin.f32 %v1185, %v1187
        %v1190 = vmin.f32 %v1188, %v1189
        %1191 = vmin.xlane.f32.xlu0 %v1190
        %v1192 = vpop.xlane.xlu0 %1191
        %v1193 = vrot.slane %v1192, 4
        %v1194 = vmin.f32 %v1192, %v1193
        %v1195 = vrot.slane %v1194, 2
        %v1196 = vmin.f32 %v1194, %v1195
        %v1197 = vrot.slane %v1196, 1
        %v1198 = vmin.f32 %v1196, %v1197
        %s1199 = vtos %v1198
        %v1200 = vstv %s1199
        %v1201 = vsub.f32 %v1200, %v1145
        %v1202 = vsub.f32 %v1200, %v1148
        %v1203 = vsub.f32 %v1200, %v1153
        %v1204 = vsub.f32 %v1200, %v1156
        %v1205 = vsub.f32 %v1200, %v1161
        %v1206 = vsub.f32 %v1200, %v1164
        %v1207 = vsub.f32 %v1200, %v1169
        %v1208 = vsub.f32 %v1200, %v1172
        %v1209 = vmul.f32 %v1201, 1.442695
        %v1210 = vpow.pop %v1209
        %v1211 = vmul.f32 %v1202, 1.442695
        %v1212 = vpow.pop %v1211
        %v1213 = vmul.f32 %v1203, 1.442695
        %v1214 = vpow.pop %v1213
        %v1215 = vmul.f32 %v1204, 1.442695
        %v1216 = vpow.pop %v1215
        %v1217 = vmul.f32 %v1205, 1.442695
        %v1218 = vpow.pop %v1217
        %v1219 = vmul.f32 %v1206, 1.442695
        %v1220 = vpow.pop %v1219
        %v1221 = vmul.f32 %v1207, 1.442695
        %v1222 = vpow.pop %v1221
        %v1223 = vmul.f32 %v1208, 1.442695
        %v1224 = vpow.pop %v1223
        %v1225 = vsel %vm1175, %v1210, 0.0
        %v1226 = vsel %vm1175, %v1212, 0.0
        %v1227 = vadd.f32 %v1225, %v1226
        %v1228 = vsel %vm1175, %v1214, 0.0
        %v1229 = vadd.f32 %v1227, %v1228
        %v1230 = vsel %vm1175, %v1216, 0.0
        %v1231 = vadd.f32 %v1229, %v1230
        %v1232 = vsel %vm1175, %v1218, 0.0
        %v1233 = vadd.f32 %v1231, %v1232
        %v1234 = vsel %vm1175, %v1220, 0.0
        %v1235 = vadd.f32 %v1233, %v1234
        %v1236 = vsel %vm1175, %v1222, 0.0
        %v1237 = vadd.f32 %v1235, %v1236
        %v1238 = vsel %vm1175, %v1224, 0.0
        %v1239 = vadd.f32 %v1237, %v1238
        %1240 = vadd.xlane.f32.xlu0 %v1239
        %v1241 = vpop.xlane.xlu0 %1240
        %v1242 = vrot.slane %v1241, 4
        %v1243 = vadd.f32 %v1241, %v1242
        %v1244 = vrot.slane %v1243, 2
        %v1245 = vadd.f32 %v1243, %v1244
        %v1246 = vrot.slane %v1245, 1
        %v1247 = vadd.f32 %v1245, %v1246
        %s1248 = vtos %v1247
        %v1249 = vstv %s1248
        %v1250 = vrcp.pop %v1249
        %v1251 = vpack.c.bf16 %v1212, %v1210
        %v1252 = vpack.c.bf16 %v1216, %v1214
        %v1253 = vpack.c.bf16 %v1220, %v1218
        %v1254 = vpack.c.bf16 %v1224, %v1222
        %v1255 = vpack.c.bf16 %v1103, %v1099
        %v1257 = vsel %vm1175, %v1251, 0
        %v1260 = vsel %vm1175, %v1252, 0
        %v1263 = vsel %vm1175, %v1253, 0
        %v1266 = vsel %vm1175, %v1254, 0
        %1268 = vmatprep.subr.bf16.mxu0 0
        %1269 = vmatpush1.bf16.msra.mxu0 %v1255
        %1270 = vmatprep.subr.bf16.mxu0 0
        %1271 = vmatpush1.bf16.msra.mxu0 0
        %1272 = vmatprep.subr.bf16.mxu0 0
        %1273 = vmatpush1.bf16.msra.mxu0 0
        %1274 = vmatprep.subr.bf16.mxu0 0
        %1275 = vmatpush1.bf16.msra.mxu0 0
        %1276 = vmatprep.subr.bf16.mxu0 0
        %1277 = vmatpush1.bf16.msra.mxu0 0
        %1278 = vmatprep.subr.bf16.mxu0 0
        %1279 = vmatpush1.bf16.msra.mxu0 0
        %1280 = vmatprep.subr.bf16.mxu0 0
        %1281 = vmatpush1.bf16.msra.mxu0 0
        %1282 = vmatprep.subr.bf16.mxu0 0
        %1283 = vmatpush1.bf16.msra.mxu0 0
        %1284 = vmatprep.subr.bf16.mxu0 0
        %1285 = vmatpush1.bf16.msra.mxu0 0
        %1286 = vmatprep.subr.bf16.mxu0 0
        %1287 = vmatpush1.bf16.msra.mxu0 0
        %1288 = vmatprep.subr.bf16.mxu0 0
        %1289 = vmatpush1.bf16.msra.mxu0 0
        %1290 = vmatprep.subr.bf16.mxu0 0
        %1291 = vmatpush1.bf16.msra.mxu0 0
        %1292 = vmatprep.subr.bf16.mxu0 0
        %1293 = vmatpush1.bf16.msra.mxu0 0
        %1294 = vmatprep.subr.bf16.mxu0 0
        %1295 = vmatpush1.bf16.msra.mxu0 0
        %1296 = vmatprep.subr.bf16.mxu0 0
        %1297 = vmatpush1.bf16.msra.mxu0 0
        %1298 = vmatprep.subr.bf16.mxu0 0
        %1299 = vmatpush1.bf16.msra.mxu0 0
        %1300 = vmatprep.mubr.bf16.mxu0 0
        %1301 = vmatmul.mubr.bf16.gmra.mrb[0].mxu0 %v1257
        %v1302 = vpop.f32.mrb[0].mxu0
        %v1303 = vadd.f32 0.0, %v1302
        %v1304 = vpop.f32.mrb[0].mxu0
        %v1305 = vpop.f32.mrb[0].mxu0
        %v1306 = vadd.f32 0.0, %v1305
        %v1307 = vpop.f32.mrb[0].mxu0
        %1308 = vmatprep.mubr.bf16.mxu0 0
        %1309 = vmatmul.mubr.bf16.gmra.mrb[0].mxu0 %v1260
        %v1310 = vpop.f32.mrb[0].mxu0
        %v1311 = vadd.f32 0.0, %v1310
        %v1312 = vpop.f32.mrb[0].mxu0
        %v1313 = vpop.f32.mrb[0].mxu0
        %v1314 = vadd.f32 0.0, %v1313
        %v1315 = vpop.f32.mrb[0].mxu0
        %1316 = vmatprep.mubr.bf16.mxu0 0
        %1317 = vmatmul.mubr.bf16.gmra.mrb[0].mxu0 %v1263
        %v1318 = vpop.f32.mrb[0].mxu0
        %v1319 = vadd.f32 0.0, %v1318
        %v1320 = vpop.f32.mrb[0].mxu0
        %v1321 = vpop.f32.mrb[0].mxu0
        %v1322 = vadd.f32 0.0, %v1321
        %v1323 = vpop.f32.mrb[0].mxu0
        %1324 = vmatprep.mubr.bf16.mxu0 0
        %1325 = vmatmul.mubr.bf16.gmra.mrb[0].mxu0 %v1266
        %v1326 = vpop.f32.mrb[0].mxu0
        %v1327 = vadd.f32 0.0, %v1326
        %v1328 = vpop.f32.mrb[0].mxu0
        %v1329 = vpop.f32.mrb[0].mxu0
        %v1330 = vadd.f32 0.0, %v1329
        %v1331 = vpop.f32.mrb[0].mxu0
        %1332 = vdwg.mxu0
        %v1333 = vmul.f32 %v1303, %v1250
        %v1334 = vmul.f32 %v1306, %v1250
        %v1335 = vmul.f32 %v1311, %v1250
        %v1336 = vmul.f32 %v1314, %v1250
        %v1337 = vmul.f32 %v1319, %v1250
        %v1338 = vmul.f32 %v1322, %v1250
        %v1339 = vmul.f32 %v1327, %v1250
        %v1340 = vmul.f32 %v1330, %v1250
        %v1341 = vpack.c.bf16 %v916, %v912
        %v1342 = vpack.c.bf16 %v926, %v922
        %v1343 = vpack.c.bf16 %v936, %v932
        %v1344 = vpack.c.bf16 %v946, %v942
        %1345 = vxpose.xlu0.c.b16.start [1/8] %v1251, 128
        %1346 = vxpose.xlu0.c.b16.cont [2/8] %v1252, 128
        %1347 = vxpose.xlu0.c.b16.cont [3/8] %v1253, 128
        %1348 = vxpose.xlu0.c.b16.cont [4/8] %v1254, 128
        %1349 = vxpose.xlu0.c.b16.cont [5/8] 0, 128
        %1350 = vxpose.xlu0.c.b16.cont [6/8] 0, 128
        %1351 = vxpose.xlu0.c.b16.cont [7/8] 0, 128
        %1352 = vxpose.xlu0.c.b16.end [8/8] 0, 128
        %v1353 = vpop.trf.xlu0
        %v1354 = vpop.trf.xlu0
        %v1355 = vpop.trf.xlu0
        %v1356 = vpop.trf.xlu0
        %v1357 = vpop.trf.xlu0
        %v1358 = vpop.trf.xlu0
        %v1359 = vpop.trf.xlu0
        %v1360 = vpop.trf.xlu0
        %vm1361 = vcmask 523264
        %v1363 = vsel %vm1361, %v1353, 0
        %1365 = vmatprep.subr.bf16.mxu0 0
        %1366 = vmatpush1.bf16.msra.mxu0 %v1341
        %1367 = vmatprep.subr.bf16.mxu0 0
        %1368 = vmatpush1.bf16.msra.mxu0 %v1342
        %1369 = vmatprep.subr.bf16.mxu0 0
        %1370 = vmatpush1.bf16.msra.mxu0 %v1343
        %1371 = vmatprep.subr.bf16.mxu0 0
        %1372 = vmatpush1.bf16.msra.mxu0 %v1344
        %1373 = vmatprep.subr.bf16.mxu0 0
        %1374 = vmatpush1.bf16.msra.mxu0 0
        %1375 = vmatprep.subr.bf16.mxu0 0
        %1376 = vmatpush1.bf16.msra.mxu0 0
        %1377 = vmatprep.subr.bf16.mxu0 0
        %1378 = vmatpush1.bf16.msra.mxu0 0
        %1379 = vmatprep.subr.bf16.mxu0 0
        %1380 = vmatpush1.bf16.msra.mxu0 0
        %1381 = vmatprep.subr.bf16.mxu0 0
        %1382 = vmatpush1.bf16.msra.mxu0 0
        %1383 = vmatprep.subr.bf16.mxu0 0
        %1384 = vmatpush1.bf16.msra.mxu0 0
        %1385 = vmatprep.subr.bf16.mxu0 0
        %1386 = vmatpush1.bf16.msra.mxu0 0
        %1387 = vmatprep.subr.bf16.mxu0 0
        %1388 = vmatpush1.bf16.msra.mxu0 0
        %1389 = vmatprep.subr.bf16.mxu0 0
        %1390 = vmatpush1.bf16.msra.mxu0 0
        %1391 = vmatprep.subr.bf16.mxu0 0
        %1392 = vmatpush1.bf16.msra.mxu0 0
        %1393 = vmatprep.subr.bf16.mxu0 0
        %1394 = vmatpush1.bf16.msra.mxu0 0
        %1395 = vmatprep.subr.bf16.mxu0 0
        %1396 = vmatpush1.bf16.msra.mxu0 0
        %1397 = vmatprep.mubr.bf16.mxu0 0
        %1398 = vmatmul.mubr.bf16.gmra.mrb[0].mxu0 %v1363
        %v1399 = vpop.f32.mrb[0].mxu0
        %v1400 = vadd.f32 0.0, %v1399
        %v1401 = vpop.f32.mrb[0].mxu0
        %v1402 = vpop.f32.mrb[0].mxu0
        %v1403 = vadd.f32 0.0, %v1402
        %v1404 = vpop.f32.mrb[0].mxu0
        %1405 = vdwg.mxu0
        %v1406 = vmul.f32 %v1400, %v1250
        %v1407 = vmul.f32 %v1403, %v1250
        %v1408 = vunpack.c.l.bf16 %v733
        %v1409 = vunpack.c.l.bf16 %v734
        %v1410 = vunpack.c.l.bf16 %v735
        %v1411 = vunpack.c.l.bf16 %v736
        %v1412 = vunpack.c.l.bf16 %v737
        %v1413 = vunpack.c.l.bf16 %v738
        %v1414 = vunpack.c.l.bf16 %v739
        %v1415 = vunpack.c.l.bf16 %v740
        %v1416 = vpack.c.bf16 %v1409, %v1408
        %v1417 = vpack.c.bf16 %v1334, %v1333
        %v1418 = vpack.c.bf16 %v1411, %v1410
        %v1419 = vpack.c.bf16 %v1336, %v1335
        %v1420 = vpack.c.bf16 %v1413, %v1412
        %v1421 = vpack.c.bf16 %v1338, %v1337
        %v1422 = vpack.c.bf16 %v1415, %v1414
        %v1423 = vpack.c.bf16 %v1340, %v1339
        %v1424 = vld [vmem:[#allocation11] sm:$0xff]
        %v1425 = vld [vmem:[#allocation11 + $0x8] sm:$0xff]
        %v1426 = vld [vmem:[#allocation11 + $0x10] sm:$0xff]
        %v1427 = vld [vmem:[#allocation11 + $0x18] sm:$0xff]
        %v1428 = vld [vmem:[#allocation11 + $0x20] sm:$0xff]
        %v1429 = vld [vmem:[#allocation11 + $0x28] sm:$0xff]
        %v1430 = vld [vmem:[#allocation11 + $0x30] sm:$0xff]
        %v1431 = vld [vmem:[#allocation11 + $0x38] sm:$0xff]
        %v1432 = vld [vmem:[#allocation11 + $0x40] sm:$0xff]
        %v1433 = vld [vmem:[#allocation11 + $0x48] sm:$0xff]
        %v1434 = vld [vmem:[#allocation11 + $0x50] sm:$0xff]
        %v1435 = vld [vmem:[#allocation11 + $0x58] sm:$0xff]
        %v1436 = vld [vmem:[#allocation11 + $0x60] sm:$0xff]
        %v1437 = vld [vmem:[#allocation11 + $0x68] sm:$0xff]
        %v1438 = vld [vmem:[#allocation11 + $0x70] sm:$0xff]
        %v1439 = vld [vmem:[#allocation11 + $0x78] sm:$0xff]
        %v1440 = vld [vmem:[#allocation11 + $0x80] sm:$0xff]
        %v1441 = vld [vmem:[#allocation11 + $0x88] sm:$0xff]
        %v1442 = vld [vmem:[#allocation11 + $0x90] sm:$0xff]
        %v1443 = vld [vmem:[#allocation11 + $0x98] sm:$0xff]
        %v1444 = vld [vmem:[#allocation11 + $0xa0] sm:$0xff]
        %v1445 = vld [vmem:[#allocation11 + $0xa8] sm:$0xff]
        %v1446 = vld [vmem:[#allocation11 + $0xb0] sm:$0xff]
        %v1447 = vld [vmem:[#allocation11 + $0xb8] sm:$0xff]
        %v1448 = vld [vmem:[#allocation11 + $0xc0] sm:$0xff]
        %v1449 = vld [vmem:[#allocation11 + $0xc8] sm:$0xff]
        %v1450 = vld [vmem:[#allocation11 + $0xd0] sm:$0xff]
        %v1451 = vld [vmem:[#allocation11 + $0xd8] sm:$0xff]
        %v1452 = vld [vmem:[#allocation11 + $0xe0] sm:$0xff]
        %v1453 = vld [vmem:[#allocation11 + $0xe8] sm:$0xff]
        %v1454 = vld [vmem:[#allocation11 + $0xf0] sm:$0xff]
        %v1455 = vld [vmem:[#allocation11 + $0xf8] sm:$0xff]
        %v1456 = vld [vmem:[%s7] sm:$0x3]
        %v1458 = vlaneseq
        %v1459 = vshrl.u32 %v1458, 7
        %v1460 = vsub.s32 0, %v1459
        %v1461 = vrot.slane %v1456, %v1460
        %v1462 = vlaneseq
        %v1463 = vshrl.u32 %v1462, 7
        %v1464 = vsub.s32 1, %v1463
        %v1465 = vrot.slane %v1456, %v1464
        %v1500 = vunpack.c.l.b16 %v1424
        %v1501 = vunpack.c.h.b16 %v1424
        %v1502 = vunpack.c.l.b16 %v1425
        %v1503 = vunpack.c.h.b16 %v1425
        %v1504 = vunpack.c.l.b16 %v1426
        %v1505 = vunpack.c.h.b16 %v1426
        %v1506 = vunpack.c.l.b16 %v1427
        %v1507 = vunpack.c.h.b16 %v1427
        %v1508 = vunpack.c.l.b16 %v1428
        %v1509 = vunpack.c.h.b16 %v1428
        %v1510 = vunpack.c.l.b16 %v1429
        %v1511 = vunpack.c.h.b16 %v1429
        %v1512 = vunpack.c.l.b16 %v1430
        %v1513 = vunpack.c.h.b16 %v1430
        %v1514 = vunpack.c.l.b16 %v1431
        %v1515 = vunpack.c.h.b16 %v1431
        %v1516 = vunpack.c.l.b16 %v1432
        %v1517 = vunpack.c.h.b16 %v1432
        %v1518 = vunpack.c.l.b16 %v1433
        %v1519 = vunpack.c.h.b16 %v1433
        %v1520 = vunpack.c.l.b16 %v1434
        %v1521 = vunpack.c.h.b16 %v1434
        %v1522 = vunpack.c.l.b16 %v1435
        %v1523 = vunpack.c.h.b16 %v1435
        %v1524 = vunpack.c.l.b16 %v1436
        %v1525 = vunpack.c.h.b16 %v1436
        %v1526 = vunpack.c.l.b16 %v1437
        %v1527 = vunpack.c.h.b16 %v1437
        %v1528 = vunpack.c.l.b16 %v1438
        %v1529 = vunpack.c.h.b16 %v1438
        %v1530 = vunpack.c.l.b16 %v1439
        %v1531 = vunpack.c.h.b16 %v1439
        %v1532 = vunpack.c.l.b16 %v1440
        %v1533 = vunpack.c.h.b16 %v1440
        %v1534 = vunpack.c.l.b16 %v1441
        %v1535 = vunpack.c.h.b16 %v1441
        %v1536 = vunpack.c.l.b16 %v1442
        %v1537 = vunpack.c.h.b16 %v1442
        %v1538 = vunpack.c.l.b16 %v1443
        %v1539 = vunpack.c.h.b16 %v1443
        %v1540 = vunpack.c.l.b16 %v1444
        %v1541 = vunpack.c.h.b16 %v1444
        %v1542 = vunpack.c.l.b16 %v1445
        %v1543 = vunpack.c.h.b16 %v1445
        %v1544 = vunpack.c.l.b16 %v1446
        %v1545 = vunpack.c.h.b16 %v1446
        %v1546 = vunpack.c.l.b16 %v1447
        %v1547 = vunpack.c.h.b16 %v1447
        %v1548 = vunpack.c.l.b16 %v1448
        %v1549 = vunpack.c.h.b16 %v1448
        %v1550 = vunpack.c.l.b16 %v1449
        %v1551 = vunpack.c.h.b16 %v1449
        %v1552 = vunpack.c.l.b16 %v1450
        %v1553 = vunpack.c.h.b16 %v1450
        %v1554 = vunpack.c.l.b16 %v1451
        %v1555 = vunpack.c.h.b16 %v1451
        %v1556 = vunpack.c.l.b16 %v1452
        %v1557 = vunpack.c.h.b16 %v1452
        %v1558 = vunpack.c.l.b16 %v1453
        %v1559 = vunpack.c.h.b16 %v1453
        %v1560 = vunpack.c.l.b16 %v1454
        %v1561 = vunpack.c.h.b16 %v1454
        %v1562 = vunpack.c.l.b16 %v1455
        %v1563 = vunpack.c.h.b16 %v1455
        %v1564 = vpack.c.b16 %v1502, %v1500
        %v1565 = vpack.c.b16 %v1503, %v1501
        %v1566 = vpack.c.b16 %v1506, %v1504
        %v1567 = vpack.c.b16 %v1507, %v1505
        %v1568 = vpack.c.b16 %v1510, %v1508
        %v1569 = vpack.c.b16 %v1511, %v1509
        %v1570 = vpack.c.b16 %v1514, %v1512
        %v1571 = vpack.c.b16 %v1515, %v1513
        %v1572 = vpack.c.b16 %v1518, %v1516
        %v1573 = vpack.c.b16 %v1519, %v1517
        %v1574 = vpack.c.b16 %v1522, %v1520
        %v1575 = vpack.c.b16 %v1523, %v1521
        %v1576 = vpack.c.b16 %v1526, %v1524
        %v1577 = vpack.c.b16 %v1527, %v1525
        %v1578 = vpack.c.b16 %v1530, %v1528
        %v1579 = vpack.c.b16 %v1531, %v1529
        %v1580 = vpack.c.b16 %v1534, %v1532
        %v1581 = vpack.c.b16 %v1535, %v1533
        %v1582 = vpack.c.b16 %v1538, %v1536
        %v1583 = vpack.c.b16 %v1539, %v1537
        %v1584 = vpack.c.b16 %v1542, %v1540
        %v1585 = vpack.c.b16 %v1543, %v1541
        %v1586 = vpack.c.b16 %v1546, %v1544
        %v1587 = vpack.c.b16 %v1547, %v1545
        %v1588 = vpack.c.b16 %v1550, %v1548
        %v1589 = vpack.c.b16 %v1551, %v1549
        %v1590 = vpack.c.b16 %v1554, %v1552
        %v1591 = vpack.c.b16 %v1555, %v1553
        %v1592 = vpack.c.b16 %v1558, %v1556
        %v1593 = vpack.c.b16 %v1559, %v1557
        %v1594 = vpack.c.b16 %v1562, %v1560
        %v1595 = vpack.c.b16 %v1563, %v1561
        %1628 = vmatprep.subr.bf16.mxu0 %v1565
        %1629 = vmatpush1.bf16.msra.mxu0 %v1564
        %1630 = vmatprep.subr.bf16.mxu0 %v1567
        %1631 = vmatpush1.bf16.msra.mxu0 %v1566
        %1632 = vmatprep.subr.bf16.mxu0 %v1569
        %1633 = vmatpush1.bf16.msra.mxu0 %v1568
        %1634 = vmatprep.subr.bf16.mxu0 %v1571
        %1635 = vmatpush1.bf16.msra.mxu0 %v1570
        %1636 = vmatprep.subr.bf16.mxu0 %v1573
        %1637 = vmatpush1.bf16.msra.mxu0 %v1572
        %1638 = vmatprep.subr.bf16.mxu0 %v1575
        %1639 = vmatpush1.bf16.msra.mxu0 %v1574
        %1640 = vmatprep.subr.bf16.mxu0 %v1577
        %1641 = vmatpush1.bf16.msra.mxu0 %v1576
        %1642 = vmatprep.subr.bf16.mxu0 %v1579
        %1643 = vmatpush1.bf16.msra.mxu0 %v1578
        %1644 = vmatprep.subr.bf16.mxu0 %v1581
        %1645 = vmatpush1.bf16.msra.mxu0 %v1580
        %1646 = vmatprep.subr.bf16.mxu0 %v1583
        %1647 = vmatpush1.bf16.msra.mxu0 %v1582
        %1648 = vmatprep.subr.bf16.mxu0 %v1585
        %1649 = vmatpush1.bf16.msra.mxu0 %v1584
        %1650 = vmatprep.subr.bf16.mxu0 %v1587
        %1651 = vmatpush1.bf16.msra.mxu0 %v1586
        %1652 = vmatprep.subr.bf16.mxu0 %v1589
        %1653 = vmatpush1.bf16.msra.mxu0 %v1588
        %1654 = vmatprep.subr.bf16.mxu0 %v1591
        %1655 = vmatpush1.bf16.msra.mxu0 %v1590
        %1656 = vmatprep.subr.bf16.mxu0 %v1593
        %1657 = vmatpush1.bf16.msra.mxu0 %v1592
        %1658 = vmatprep.subr.bf16.mxu0 %v1595
        %1659 = vmatpush1.bf16.msra.mxu0 %v1594
        %1660 = vmatprep.mubr.bf16.mxu0 %v1417
        %1661 = vmatmul.mubr.bf16.gmra.mrb[0].mxu0 %v1416
        %v1662 = vpop.f32.mrb[0].mxu0
        %v1663 = vadd.f32 %v1461, %v1662
        %v1664 = vpop.f32.mrb[0].mxu0
        %v1665 = vadd.f32 %v1465, %v1664
        %v1666 = vpop.f32.mrb[0].mxu0
        %v1667 = vadd.f32 %v1461, %v1666
        %v1668 = vpop.f32.mrb[0].mxu0
        %v1669 = vadd.f32 %v1465, %v1668
        %1670 = vmatprep.mubr.bf16.mxu0 %v1419
        %1671 = vmatmul.mubr.bf16.gmra.mrb[0].mxu0 %v1418
        %v1672 = vpop.f32.mrb[0].mxu0
        %v1673 = vadd.f32 %v1461, %v1672
        %v1674 = vpop.f32.mrb[0].mxu0
        %v1675 = vadd.f32 %v1465, %v1674
        %v1676 = vpop.f32.mrb[0].mxu0
        %v1677 = vadd.f32 %v1461, %v1676
        %v1678 = vpop.f32.mrb[0].mxu0
        %v1679 = vadd.f32 %v1465, %v1678
        %1680 = vmatprep.mubr.bf16.mxu0 %v1421
        %1681 = vmatmul.mubr.bf16.gmra.mrb[0].mxu0 %v1420
        %v1682 = vpop.f32.mrb[0].mxu0
        %v1683 = vadd.f32 %v1461, %v1682
        %v1684 = vpop.f32.mrb[0].mxu0
        %v1685 = vadd.f32 %v1465, %v1684
        %v1686 = vpop.f32.mrb[0].mxu0
        %v1687 = vadd.f32 %v1461, %v1686
        %v1688 = vpop.f32.mrb[0].mxu0
        %v1689 = vadd.f32 %v1465, %v1688
        %1690 = vmatprep.mubr.bf16.mxu0 %v1423
        %1691 = vmatmul.mubr.bf16.gmra.mrb[0].mxu0 %v1422
        %v1692 = vpop.f32.mrb[0].mxu0
        %v1693 = vadd.f32 %v1461, %v1692
        %v1694 = vpop.f32.mrb[0].mxu0
        %v1695 = vadd.f32 %v1465, %v1694
        %v1696 = vpop.f32.mrb[0].mxu0
        %v1697 = vadd.f32 %v1461, %v1696
        %v1698 = vpop.f32.mrb[0].mxu0
        %v1699 = vadd.f32 %v1465, %v1698
        %1700 = vdwg.mxu0
        %v1701 = vmax.f32 %v1663, 0.0
        %v1702 = vmax.f32 %v1665, 0.0
        %v1703 = vmax.f32 %v1667, 0.0
        %v1704 = vmax.f32 %v1669, 0.0
        %v1705 = vmax.f32 %v1673, 0.0
        %v1706 = vmax.f32 %v1675, 0.0
        %v1707 = vmax.f32 %v1677, 0.0
        %v1708 = vmax.f32 %v1679, 0.0
        %v1709 = vmax.f32 %v1683, 0.0
        %v1710 = vmax.f32 %v1685, 0.0
        %v1711 = vmax.f32 %v1687, 0.0
        %v1712 = vmax.f32 %v1689, 0.0
        %v1713 = vmax.f32 %v1693, 0.0
        %v1714 = vmax.f32 %v1695, 0.0
        %v1715 = vmax.f32 %v1697, 0.0
        %v1716 = vmax.f32 %v1699, 0.0
        %v1717 = vpack.c.bf16 %v1703, %v1701
        %v1718 = vpack.c.bf16 %v1704, %v1702
        %v1719 = vpack.c.bf16 %v1707, %v1705
        %v1720 = vpack.c.bf16 %v1708, %v1706
        %v1721 = vpack.c.bf16 %v1711, %v1709
        %v1722 = vpack.c.bf16 %v1712, %v1710
        %v1723 = vpack.c.bf16 %v1715, %v1713
        %v1724 = vpack.c.bf16 %v1716, %v1714
        %v1725 = vld [vmem:[#allocation13] sm:$0xff]
        %v1726 = vld [vmem:[#allocation13 + $0x8] sm:$0xff]
        %v1727 = vld [vmem:[#allocation13 + $0x10] sm:$0xff]
        %v1728 = vld [vmem:[#allocation13 + $0x18] sm:$0xff]
        %v1729 = vld [vmem:[#allocation13 + $0x20] sm:$0xff]
        %v1730 = vld [vmem:[#allocation13 + $0x28] sm:$0xff]
        %v1731 = vld [vmem:[#allocation13 + $0x30] sm:$0xff]
        %v1732 = vld [vmem:[#allocation13 + $0x38] sm:$0xff]
        %v1733 = vld [vmem:[#allocation13 + $0x40] sm:$0xff]
        %v1734 = vld [vmem:[#allocation13 + $0x48] sm:$0xff]
        %v1735 = vld [vmem:[#allocation13 + $0x50] sm:$0xff]
        %v1736 = vld [vmem:[#allocation13 + $0x58] sm:$0xff]
        %v1737 = vld [vmem:[#allocation13 + $0x60] sm:$0xff]
        %v1738 = vld [vmem:[#allocation13 + $0x68] sm:$0xff]
        %v1739 = vld [vmem:[#allocation13 + $0x70] sm:$0xff]
        %v1740 = vld [vmem:[#allocation13 + $0x78] sm:$0xff]
        %v1741 = vld [vmem:[#allocation13 + $0x80] sm:$0xff]
        %v1742 = vld [vmem:[#allocation13 + $0x88] sm:$0xff]
        %v1743 = vld [vmem:[#allocation13 + $0x90] sm:$0xff]
        %v1744 = vld [vmem:[#allocation13 + $0x98] sm:$0xff]
        %v1745 = vld [vmem:[#allocation13 + $0xa0] sm:$0xff]
        %v1746 = vld [vmem:[#allocation13 + $0xa8] sm:$0xff]
        %v1747 = vld [vmem:[#allocation13 + $0xb0] sm:$0xff]
        %v1748 = vld [vmem:[#allocation13 + $0xb8] sm:$0xff]
        %v1749 = vld [vmem:[#allocation13 + $0xc0] sm:$0xff]
        %v1750 = vld [vmem:[#allocation13 + $0xc8] sm:$0xff]
        %v1751 = vld [vmem:[#allocation13 + $0xd0] sm:$0xff]
        %v1752 = vld [vmem:[#allocation13 + $0xd8] sm:$0xff]
        %v1753 = vld [vmem:[#allocation13 + $0xe0] sm:$0xff]
        %v1754 = vld [vmem:[#allocation13 + $0xe8] sm:$0xff]
        %v1755 = vld [vmem:[#allocation13 + $0xf0] sm:$0xff]
        %v1756 = vld [vmem:[#allocation13 + $0xf8] sm:$0xff]
        %v1757 = vld [vmem:[%s9] sm:$0x3]
        %v1759 = vlaneseq
        %v1760 = vshrl.u32 %v1759, 7
        %v1761 = vsub.s32 0, %v1760
        %v1762 = vrot.slane %v1757, %v1761
        %v1763 = vlaneseq
        %v1764 = vshrl.u32 %v1763, 7
        %v1765 = vsub.s32 1, %v1764
        %v1766 = vrot.slane %v1757, %v1765
        %v1801 = vunpack.c.l.b16 %v1725
        %v1802 = vunpack.c.h.b16 %v1725
        %v1803 = vunpack.c.l.b16 %v1726
        %v1804 = vunpack.c.h.b16 %v1726
        %v1805 = vunpack.c.l.b16 %v1727
        %v1806 = vunpack.c.h.b16 %v1727
        %v1807 = vunpack.c.l.b16 %v1728
        %v1808 = vunpack.c.h.b16 %v1728
        %v1809 = vunpack.c.l.b16 %v1729
        %v1810 = vunpack.c.h.b16 %v1729
        %v1811 = vunpack.c.l.b16 %v1730
        %v1812 = vunpack.c.h.b16 %v1730
        %v1813 = vunpack.c.l.b16 %v1731
        %v1814 = vunpack.c.h.b16 %v1731
        %v1815 = vunpack.c.l.b16 %v1732
        %v1816 = vunpack.c.h.b16 %v1732
        %v1817 = vunpack.c.l.b16 %v1733
        %v1818 = vunpack.c.h.b16 %v1733
        %v1819 = vunpack.c.l.b16 %v1734
        %v1820 = vunpack.c.h.b16 %v1734
        %v1821 = vunpack.c.l.b16 %v1735
        %v1822 = vunpack.c.h.b16 %v1735
        %v1823 = vunpack.c.l.b16 %v1736
        %v1824 = vunpack.c.h.b16 %v1736
        %v1825 = vunpack.c.l.b16 %v1737
        %v1826 = vunpack.c.h.b16 %v1737
        %v1827 = vunpack.c.l.b16 %v1738
        %v1828 = vunpack.c.h.b16 %v1738
        %v1829 = vunpack.c.l.b16 %v1739
        %v1830 = vunpack.c.h.b16 %v1739
        %v1831 = vunpack.c.l.b16 %v1740
        %v1832 = vunpack.c.h.b16 %v1740
        %v1833 = vunpack.c.l.b16 %v1741
        %v1834 = vunpack.c.h.b16 %v1741
        %v1835 = vunpack.c.l.b16 %v1742
        %v1836 = vunpack.c.h.b16 %v1742
        %v1837 = vunpack.c.l.b16 %v1743
        %v1838 = vunpack.c.h.b16 %v1743
        %v1839 = vunpack.c.l.b16 %v1744
        %v1840 = vunpack.c.h.b16 %v1744
        %v1841 = vunpack.c.l.b16 %v1745
        %v1842 = vunpack.c.h.b16 %v1745
        %v1843 = vunpack.c.l.b16 %v1746
        %v1844 = vunpack.c.h.b16 %v1746
        %v1845 = vunpack.c.l.b16 %v1747
        %v1846 = vunpack.c.h.b16 %v1747
        %v1847 = vunpack.c.l.b16 %v1748
        %v1848 = vunpack.c.h.b16 %v1748
        %v1849 = vunpack.c.l.b16 %v1749
        %v1850 = vunpack.c.h.b16 %v1749
        %v1851 = vunpack.c.l.b16 %v1750
        %v1852 = vunpack.c.h.b16 %v1750
        %v1853 = vunpack.c.l.b16 %v1751
        %v1854 = vunpack.c.h.b16 %v1751
        %v1855 = vunpack.c.l.b16 %v1752
        %v1856 = vunpack.c.h.b16 %v1752
        %v1857 = vunpack.c.l.b16 %v1753
        %v1858 = vunpack.c.h.b16 %v1753
        %v1859 = vunpack.c.l.b16 %v1754
        %v1860 = vunpack.c.h.b16 %v1754
        %v1861 = vunpack.c.l.b16 %v1755
        %v1862 = vunpack.c.h.b16 %v1755
        %v1863 = vunpack.c.l.b16 %v1756
        %v1864 = vunpack.c.h.b16 %v1756
        %v1865 = vpack.c.b16 %v1803, %v1801
        %v1866 = vpack.c.b16 %v1804, %v1802
        %v1867 = vpack.c.b16 %v1807, %v1805
        %v1868 = vpack.c.b16 %v1808, %v1806
        %v1869 = vpack.c.b16 %v1811, %v1809
        %v1870 = vpack.c.b16 %v1812, %v1810
        %v1871 = vpack.c.b16 %v1815, %v1813
        %v1872 = vpack.c.b16 %v1816, %v1814
        %v1873 = vpack.c.b16 %v1819, %v1817
        %v1874 = vpack.c.b16 %v1820, %v1818
        %v1875 = vpack.c.b16 %v1823, %v1821
        %v1876 = vpack.c.b16 %v1824, %v1822
        %v1877 = vpack.c.b16 %v1827, %v1825
        %v1878 = vpack.c.b16 %v1828, %v1826
        %v1879 = vpack.c.b16 %v1831, %v1829
        %v1880 = vpack.c.b16 %v1832, %v1830
        %v1881 = vpack.c.b16 %v1835, %v1833
        %v1882 = vpack.c.b16 %v1836, %v1834
        %v1883 = vpack.c.b16 %v1839, %v1837
        %v1884 = vpack.c.b16 %v1840, %v1838
        %v1885 = vpack.c.b16 %v1843, %v1841
        %v1886 = vpack.c.b16 %v1844, %v1842
        %v1887 = vpack.c.b16 %v1847, %v1845
        %v1888 = vpack.c.b16 %v1848, %v1846
        %v1889 = vpack.c.b16 %v1851, %v1849
        %v1890 = vpack.c.b16 %v1852, %v1850
        %v1891 = vpack.c.b16 %v1855, %v1853
        %v1892 = vpack.c.b16 %v1856, %v1854
        %v1893 = vpack.c.b16 %v1859, %v1857
        %v1894 = vpack.c.b16 %v1860, %v1858
        %v1895 = vpack.c.b16 %v1863, %v1861
        %v1896 = vpack.c.b16 %v1864, %v1862
        %1929 = vmatprep.subr.bf16.mxu0 %v1866
        %1930 = vmatpush1.bf16.msra.mxu0 %v1865
        %1931 = vmatprep.subr.bf16.mxu0 %v1868
        %1932 = vmatpush1.bf16.msra.mxu0 %v1867
        %1933 = vmatprep.subr.bf16.mxu0 %v1870
        %1934 = vmatpush1.bf16.msra.mxu0 %v1869
        %1935 = vmatprep.subr.bf16.mxu0 %v1872
        %1936 = vmatpush1.bf16.msra.mxu0 %v1871
        %1937 = vmatprep.subr.bf16.mxu0 %v1874
        %1938 = vmatpush1.bf16.msra.mxu0 %v1873
        %1939 = vmatprep.subr.bf16.mxu0 %v1876
        %1940 = vmatpush1.bf16.msra.mxu0 %v1875
        %1941 = vmatprep.subr.bf16.mxu0 %v1878
        %1942 = vmatpush1.bf16.msra.mxu0 %v1877
        %1943 = vmatprep.subr.bf16.mxu0 %v1880
        %1944 = vmatpush1.bf16.msra.mxu0 %v1879
        %1945 = vmatprep.subr.bf16.mxu0 %v1882
        %1946 = vmatpush1.bf16.msra.mxu0 %v1881
        %1947 = vmatprep.subr.bf16.mxu0 %v1884
        %1948 = vmatpush1.bf16.msra.mxu0 %v1883
        %1949 = vmatprep.subr.bf16.mxu0 %v1886
        %1950 = vmatpush1.bf16.msra.mxu0 %v1885
        %1951 = vmatprep.subr.bf16.mxu0 %v1888
        %1952 = vmatpush1.bf16.msra.mxu0 %v1887
        %1953 = vmatprep.subr.bf16.mxu0 %v1890
        %1954 = vmatpush1.bf16.msra.mxu0 %v1889
        %1955 = vmatprep.subr.bf16.mxu0 %v1892
        %1956 = vmatpush1.bf16.msra.mxu0 %v1891
        %1957 = vmatprep.subr.bf16.mxu0 %v1894
        %1958 = vmatpush1.bf16.msra.mxu0 %v1893
        %1959 = vmatprep.subr.bf16.mxu0 %v1896
        %1960 = vmatpush1.bf16.msra.mxu0 %v1895
        %1961 = vmatprep.mubr.bf16.mxu0 %v1718
        %1962 = vmatmul.mubr.bf16.gmra.mrb[0].mxu0 %v1717
        %v1963 = vpop.f32.mrb[0].mxu0
        %v1964 = vadd.f32 %v1762, %v1963
        %v1965 = vpop.f32.mrb[0].mxu0
        %v1966 = vadd.f32 %v1766, %v1965
        %v1967 = vpop.f32.mrb[0].mxu0
        %v1968 = vadd.f32 %v1762, %v1967
        %v1969 = vpop.f32.mrb[0].mxu0
        %v1970 = vadd.f32 %v1766, %v1969
        %1971 = vmatprep.mubr.bf16.mxu0 %v1720
        %1972 = vmatmul.mubr.bf16.gmra.mrb[0].mxu0 %v1719
        %v1973 = vpop.f32.mrb[0].mxu0
        %v1974 = vadd.f32 %v1762, %v1973
        %v1975 = vpop.f32.mrb[0].mxu0
        %v1976 = vadd.f32 %v1766, %v1975
        %v1977 = vpop.f32.mrb[0].mxu0
        %v1978 = vadd.f32 %v1762, %v1977
        %v1979 = vpop.f32.mrb[0].mxu0
        %v1980 = vadd.f32 %v1766, %v1979
        %1981 = vmatprep.mubr.bf16.mxu0 %v1722
        %1982 = vmatmul.mubr.bf16.gmra.mrb[0].mxu0 %v1721
        %v1983 = vpop.f32.mrb[0].mxu0
        %v1984 = vadd.f32 %v1762, %v1983
        %v1985 = vpop.f32.mrb[0].mxu0
        %v1986 = vadd.f32 %v1766, %v1985
        %v1987 = vpop.f32.mrb[0].mxu0
        %v1988 = vadd.f32 %v1762, %v1987
        %v1989 = vpop.f32.mrb[0].mxu0
        %v1990 = vadd.f32 %v1766, %v1989
        %1991 = vmatprep.mubr.bf16.mxu0 %v1724
        %1992 = vmatmul.mubr.bf16.gmra.mrb[0].mxu0 %v1723
        %v1993 = vpop.f32.mrb[0].mxu0
        %v1994 = vadd.f32 %v1762, %v1993
        %v1995 = vpop.f32.mrb[0].mxu0
        %v1996 = vadd.f32 %v1766, %v1995
        %v1997 = vpop.f32.mrb[0].mxu0
        %v1998 = vadd.f32 %v1762, %v1997
        %v1999 = vpop.f32.mrb[0].mxu0
        %v2000 = vadd.f32 %v1766, %v1999
        %2001 = vdwg.mxu0
        %v2002 = vadd.f32 %v1964, %v1408
        %v2003 = vadd.f32 %v1966, %v1333
        %v2004 = vadd.f32 %v1968, %v1409
        %v2005 = vadd.f32 %v1970, %v1334
        %v2006 = vadd.f32 %v1974, %v1410
        %v2007 = vadd.f32 %v1976, %v1335
        %v2008 = vadd.f32 %v1978, %v1411
        %v2009 = vadd.f32 %v1980, %v1336
        %v2010 = vadd.f32 %v1984, %v1412
        %v2011 = vadd.f32 %v1986, %v1337
        %v2012 = vadd.f32 %v1988, %v1413
        %v2013 = vadd.f32 %v1990, %v1338
        %v2014 = vadd.f32 %v1994, %v1414
        %v2015 = vadd.f32 %v1996, %v1339
        %v2016 = vadd.f32 %v1998, %v1415
        %v2017 = vadd.f32 %v2000, %v1340
        %v2018 = vmax.f32 %v2002, 0.0
        %v2019 = vmax.f32 %v2003, 0.0
        %v2020 = vmax.f32 %v2004, 0.0
        %v2021 = vmax.f32 %v2005, 0.0
        %v2022 = vmax.f32 %v2006, 0.0
        %v2023 = vmax.f32 %v2007, 0.0
        %v2024 = vmax.f32 %v2008, 0.0
        %v2025 = vmax.f32 %v2009, 0.0
        %v2026 = vmax.f32 %v2010, 0.0
        %v2027 = vmax.f32 %v2011, 0.0
        %v2028 = vmax.f32 %v2012, 0.0
        %v2029 = vmax.f32 %v2013, 0.0
        %v2030 = vmax.f32 %v2014, 0.0
        %v2031 = vmax.f32 %v2015, 0.0
        %v2032 = vmax.f32 %v2016, 0.0
        %v2033 = vmax.f32 %v2017, 0.0
        %v2034 = vpack.c.bf16 %v2020, %v2018
        %v2035 = vpack.c.bf16 %v2021, %v2019
        %v2036 = vpack.c.bf16 %v2024, %v2022
        %v2037 = vpack.c.bf16 %v2025, %v2023
        %v2038 = vpack.c.bf16 %v2028, %v2026
        %v2039 = vpack.c.bf16 %v2029, %v2027
        %v2040 = vpack.c.bf16 %v2032, %v2030
        %v2041 = vpack.c.bf16 %v2033, %v2031
        %v2042 = vld [vmem:[#allocation14] sm:$0xff]
        %v2043 = vld [vmem:[#allocation14 + $0x8] sm:$0xff]
        %v2044 = vld [vmem:[#allocation14 + $0x10] sm:$0xff]
        %v2045 = vld [vmem:[#allocation14 + $0x18] sm:$0xff]
        %v2046 = vld [vmem:[#allocation14 + $0x20] sm:$0xff]
        %v2047 = vld [vmem:[#allocation14 + $0x28] sm:$0xff]
        %v2048 = vld [vmem:[#allocation14 + $0x30] sm:$0xff]
        %v2049 = vld [vmem:[#allocation14 + $0x38] sm:$0xff]
        %v2050 = vld [vmem:[#allocation14 + $0x40] sm:$0xff]
        %v2051 = vld [vmem:[#allocation14 + $0x48] sm:$0xff]
        %v2052 = vld [vmem:[#allocation14 + $0x50] sm:$0xff]
        %v2053 = vld [vmem:[#allocation14 + $0x58] sm:$0xff]
        %v2054 = vld [vmem:[#allocation14 + $0x60] sm:$0xff]
        %v2055 = vld [vmem:[#allocation14 + $0x68] sm:$0xff]
        %v2056 = vld [vmem:[#allocation14 + $0x70] sm:$0xff]
        %v2057 = vld [vmem:[#allocation14 + $0x78] sm:$0xff]
        %v2058 = vld [vmem:[#allocation14 + $0x80] sm:$0xff]
        %v2059 = vld [vmem:[#allocation14 + $0x88] sm:$0xff]
        %v2060 = vld [vmem:[#allocation14 + $0x90] sm:$0xff]
        %v2061 = vld [vmem:[#allocation14 + $0x98] sm:$0xff]
        %v2062 = vld [vmem:[#allocation14 + $0xa0] sm:$0xff]
        %v2063 = vld [vmem:[#allocation14 + $0xa8] sm:$0xff]
        %v2064 = vld [vmem:[#allocation14 + $0xb0] sm:$0xff]
        %v2065 = vld [vmem:[#allocation14 + $0xb8] sm:$0xff]
        %v2066 = vld [vmem:[#allocation14 + $0xc0] sm:$0xff]
        %v2067 = vld [vmem:[#allocation14 + $0xc8] sm:$0xff]
        %v2068 = vld [vmem:[#allocation14 + $0xd0] sm:$0xff]
        %v2069 = vld [vmem:[#allocation14 + $0xd8] sm:$0xff]
        %v2070 = vld [vmem:[#allocation14 + $0xe0] sm:$0xff]
        %v2071 = vld [vmem:[#allocation14 + $0xe8] sm:$0xff]
        %v2072 = vld [vmem:[#allocation14 + $0xf0] sm:$0xff]
        %v2073 = vld [vmem:[#allocation14 + $0xf8] sm:$0xff]
        %v2074 = vld [vmem:[#allocation14 + $0x100] sm:$0xff]
        %v2075 = vld [vmem:[#allocation14 + $0x108] sm:$0xff]
        %v2076 = vld [vmem:[#allocation14 + $0x110] sm:$0xff]
        %v2077 = vld [vmem:[#allocation14 + $0x118] sm:$0xff]
        %v2078 = vld [vmem:[#allocation14 + $0x120] sm:$0xff]
        %v2079 = vld [vmem:[#allocation14 + $0x128] sm:$0xff]
        %v2080 = vld [vmem:[#allocation14 + $0x130] sm:$0xff]
        %v2081 = vld [vmem:[#allocation14 + $0x138] sm:$0xff]
        %v2082 = vld [vmem:[#allocation14 + $0x140] sm:$0xff]
        %v2083 = vld [vmem:[#allocation14 + $0x148] sm:$0xff]
        %v2084 = vld [vmem:[#allocation14 + $0x150] sm:$0xff]
        %v2085 = vld [vmem:[#allocation14 + $0x158] sm:$0xff]
        %v2086 = vld [vmem:[#allocation14 + $0x160] sm:$0xff]
        %v2087 = vld [vmem:[#allocation14 + $0x168] sm:$0xff]
        %v2088 = vld [vmem:[#allocation14 + $0x170] sm:$0xff]
        %v2089 = vld [vmem:[#allocation14 + $0x178] sm:$0xff]
        %v2090 = vld [vmem:[#allocation14 + $0x180] sm:$0xff]
        %v2091 = vld [vmem:[#allocation14 + $0x188] sm:$0xff]
        %v2092 = vld [vmem:[#allocation14 + $0x190] sm:$0xff]
        %v2093 = vld [vmem:[#allocation14 + $0x198] sm:$0xff]
        %v2094 = vld [vmem:[#allocation14 + $0x1a0] sm:$0xff]
        %v2095 = vld [vmem:[#allocation14 + $0x1a8] sm:$0xff]
        %v2096 = vld [vmem:[#allocation14 + $0x1b0] sm:$0xff]
        %v2097 = vld [vmem:[#allocation14 + $0x1b8] sm:$0xff]
        %v2098 = vld [vmem:[#allocation14 + $0x1c0] sm:$0xff]
        %v2099 = vld [vmem:[#allocation14 + $0x1c8] sm:$0xff]
        %v2100 = vld [vmem:[#allocation14 + $0x1d0] sm:$0xff]
        %v2101 = vld [vmem:[#allocation14 + $0x1d8] sm:$0xff]
        %v2102 = vld [vmem:[#allocation14 + $0x1e0] sm:$0xff]
        %v2103 = vld [vmem:[#allocation14 + $0x1e8] sm:$0xff]
        %v2104 = vld [vmem:[#allocation14 + $0x1f0] sm:$0xff]
        %v2105 = vld [vmem:[#allocation14 + $0x1f8] sm:$0xff]
        %v2106 = vld [vmem:[#allocation14 + $0x200] sm:$0xff]
        %v2107 = vld [vmem:[#allocation14 + $0x208] sm:$0xff]
        %v2108 = vld [vmem:[#allocation14 + $0x210] sm:$0xff]
        %v2109 = vld [vmem:[#allocation14 + $0x218] sm:$0xff]
        %v2110 = vld [vmem:[#allocation14 + $0x220] sm:$0xff]
        %v2111 = vld [vmem:[#allocation14 + $0x228] sm:$0xff]
        %v2112 = vld [vmem:[#allocation14 + $0x230] sm:$0xff]
        %v2113 = vld [vmem:[#allocation14 + $0x238] sm:$0xff]
        %v2114 = vld [vmem:[#allocation14 + $0x240] sm:$0xff]
        %v2115 = vld [vmem:[#allocation14 + $0x248] sm:$0xff]
        %v2116 = vld [vmem:[#allocation14 + $0x250] sm:$0xff]
        %v2117 = vld [vmem:[#allocation14 + $0x258] sm:$0xff]
        %v2118 = vld [vmem:[#allocation14 + $0x260] sm:$0xff]
        %v2119 = vld [vmem:[#allocation14 + $0x268] sm:$0xff]
        %v2120 = vld [vmem:[#allocation14 + $0x270] sm:$0xff]
        %v2121 = vld [vmem:[#allocation14 + $0x278] sm:$0xff]
        %v2122 = vld [vmem:[#allocation14 + $0x280] sm:$0xff]
        %v2123 = vld [vmem:[#allocation14 + $0x288] sm:$0xff]
        %v2124 = vld [vmem:[#allocation14 + $0x290] sm:$0xff]
        %v2125 = vld [vmem:[#allocation14 + $0x298] sm:$0xff]
        %v2126 = vld [vmem:[#allocation14 + $0x2a0] sm:$0xff]
        %v2127 = vld [vmem:[#allocation14 + $0x2a8] sm:$0xff]
        %v2128 = vld [vmem:[#allocation14 + $0x2b0] sm:$0xff]
        %v2129 = vld [vmem:[#allocation14 + $0x2b8] sm:$0xff]
        %v2130 = vld [vmem:[#allocation14 + $0x2c0] sm:$0xff]
        %v2131 = vld [vmem:[#allocation14 + $0x2c8] sm:$0xff]
        %v2132 = vld [vmem:[#allocation14 + $0x2d0] sm:$0xff]
        %v2133 = vld [vmem:[#allocation14 + $0x2d8] sm:$0xff]
        %v2134 = vld [vmem:[#allocation14 + $0x2e0] sm:$0xff]
        %v2135 = vld [vmem:[#allocation14 + $0x2e8] sm:$0xff]
        %v2136 = vld [vmem:[#allocation14 + $0x2f0] sm:$0xff]
        %v2137 = vld [vmem:[#allocation14 + $0x2f8] sm:$0xff]
        %v2138 = vld [vmem:[#allocation14 + $0x300] sm:$0xff]
        %v2139 = vld [vmem:[#allocation14 + $0x308] sm:$0xff]
        %v2140 = vld [vmem:[#allocation14 + $0x310] sm:$0xff]
        %v2141 = vld [vmem:[#allocation14 + $0x318] sm:$0xff]
        %v2142 = vld [vmem:[#allocation14 + $0x320] sm:$0xff]
        %v2143 = vld [vmem:[#allocation14 + $0x328] sm:$0xff]
        %v2144 = vld [vmem:[#allocation14 + $0x330] sm:$0xff]
        %v2145 = vld [vmem:[#allocation14 + $0x338] sm:$0xff]
        %v2146 = vld [vmem:[#allocation14 + $0x340] sm:$0xff]
        %v2147 = vld [vmem:[#allocation14 + $0x348] sm:$0xff]
        %v2148 = vld [vmem:[#allocation14 + $0x350] sm:$0xff]
        %v2149 = vld [vmem:[#allocation14 + $0x358] sm:$0xff]
        %v2150 = vld [vmem:[#allocation14 + $0x360] sm:$0xff]
        %v2151 = vld [vmem:[#allocation14 + $0x368] sm:$0xff]
        %v2152 = vld [vmem:[#allocation14 + $0x370] sm:$0xff]
        %v2153 = vld [vmem:[#allocation14 + $0x378] sm:$0xff]
        %v2154 = vld [vmem:[#allocation14 + $0x380] sm:$0xff]
        %v2155 = vld [vmem:[#allocation14 + $0x388] sm:$0xff]
        %v2156 = vld [vmem:[#allocation14 + $0x390] sm:$0xff]
        %v2157 = vld [vmem:[#allocation14 + $0x398] sm:$0xff]
        %v2158 = vld [vmem:[#allocation14 + $0x3a0] sm:$0xff]
        %v2159 = vld [vmem:[#allocation14 + $0x3a8] sm:$0xff]
        %v2160 = vld [vmem:[#allocation14 + $0x3b0] sm:$0xff]
        %v2161 = vld [vmem:[#allocation14 + $0x3b8] sm:$0xff]
        %v2162 = vld [vmem:[#allocation14 + $0x3c0] sm:$0xff]
        %v2163 = vld [vmem:[#allocation14 + $0x3c8] sm:$0xff]
        %v2164 = vld [vmem:[#allocation14 + $0x3d0] sm:$0xff]
        %v2165 = vld [vmem:[#allocation14 + $0x3d8] sm:$0xff]
        %v2166 = vld [vmem:[#allocation14 + $0x3e0] sm:$0xff]
        %v2167 = vld [vmem:[#allocation14 + $0x3e8] sm:$0xff]
        %v2168 = vld [vmem:[#allocation14 + $0x3f0] sm:$0xff]
        %v2169 = vld [vmem:[#allocation14 + $0x3f8] sm:$0xff]
        %v2170 = vld [vmem:[%s11] sm:$0xff]
        %v2172 = vlaneseq
        %v2173 = vshrl.u32 %v2172, 7
        %v2174 = vsub.s32 0, %v2173
        %v2175 = vrot.slane %v2170, %v2174
        %v2176 = vlaneseq
        %v2177 = vshrl.u32 %v2176, 7
        %v2178 = vsub.s32 1, %v2177
        %v2179 = vrot.slane %v2170, %v2178
        %v2180 = vlaneseq
        %v2181 = vshrl.u32 %v2180, 7
        %v2182 = vsub.s32 2, %v2181
        %v2183 = vrot.slane %v2170, %v2182
        %v2184 = vlaneseq
        %v2185 = vshrl.u32 %v2184, 7
        %v2186 = vsub.s32 3, %v2185
        %v2187 = vrot.slane %v2170, %v2186
        %v2188 = vlaneseq
        %v2189 = vshrl.u32 %v2188, 7
        %v2190 = vsub.s32 4, %v2189
        %v2191 = vrot.slane %v2170, %v2190
        %v2192 = vlaneseq
        %v2193 = vshrl.u32 %v2192, 7
        %v2194 = vsub.s32 5, %v2193
        %v2195 = vrot.slane %v2170, %v2194
        %v2196 = vlaneseq
        %v2197 = vshrl.u32 %v2196, 7
        %v2198 = vsub.s32 6, %v2197
        %v2199 = vrot.slane %v2170, %v2198
        %v2200 = vlaneseq
        %v2201 = vshrl.u32 %v2200, 7
        %v2202 = vsub.s32 7, %v2201
        %v2203 = vrot.slane %v2170, %v2202
        %v2340 = vunpack.c.l.b16 %v2042
        %v2341 = vunpack.c.h.b16 %v2042
        %v2342 = vunpack.c.l.b16 %v2043
        %v2343 = vunpack.c.h.b16 %v2043
        %v2344 = vunpack.c.l.b16 %v2044
        %v2345 = vunpack.c.h.b16 %v2044
        %v2346 = vunpack.c.l.b16 %v2045
        %v2347 = vunpack.c.h.b16 %v2045
        %v2348 = vunpack.c.l.b16 %v2046
        %v2349 = vunpack.c.h.b16 %v2046
        %v2350 = vunpack.c.l.b16 %v2047
        %v2351 = vunpack.c.h.b16 %v2047
        %v2352 = vunpack.c.l.b16 %v2048
        %v2353 = vunpack.c.h.b16 %v2048
        %v2354 = vunpack.c.l.b16 %v2049
        %v2355 = vunpack.c.h.b16 %v2049
        %v2356 = vunpack.c.l.b16 %v2050
        %v2357 = vunpack.c.h.b16 %v2050
        %v2358 = vunpack.c.l.b16 %v2051
        %v2359 = vunpack.c.h.b16 %v2051
        %v2360 = vunpack.c.l.b16 %v2052
        %v2361 = vunpack.c.h.b16 %v2052
        %v2362 = vunpack.c.l.b16 %v2053
        %v2363 = vunpack.c.h.b16 %v2053
        %v2364 = vunpack.c.l.b16 %v2054
        %v2365 = vunpack.c.h.b16 %v2054
        %v2366 = vunpack.c.l.b16 %v2055
        %v2367 = vunpack.c.h.b16 %v2055
        %v2368 = vunpack.c.l.b16 %v2056
        %v2369 = vunpack.c.h.b16 %v2056
        %v2370 = vunpack.c.l.b16 %v2057
        %v2371 = vunpack.c.h.b16 %v2057
        %v2372 = vunpack.c.l.b16 %v2058
        %v2373 = vunpack.c.h.b16 %v2058
        %v2374 = vunpack.c.l.b16 %v2059
        %v2375 = vunpack.c.h.b16 %v2059
        %v2376 = vunpack.c.l.b16 %v2060
        %v2377 = vunpack.c.h.b16 %v2060
        %v2378 = vunpack.c.l.b16 %v2061
        %v2379 = vunpack.c.h.b16 %v2061
        %v2380 = vunpack.c.l.b16 %v2062
        %v2381 = vunpack.c.h.b16 %v2062
        %v2382 = vunpack.c.l.b16 %v2063
        %v2383 = vunpack.c.h.b16 %v2063
        %v2384 = vunpack.c.l.b16 %v2064
        %v2385 = vunpack.c.h.b16 %v2064
        %v2386 = vunpack.c.l.b16 %v2065
        %v2387 = vunpack.c.h.b16 %v2065
        %v2388 = vunpack.c.l.b16 %v2066
        %v2389 = vunpack.c.h.b16 %v2066
        %v2390 = vunpack.c.l.b16 %v2067
        %v2391 = vunpack.c.h.b16 %v2067
        %v2392 = vunpack.c.l.b16 %v2068
        %v2393 = vunpack.c.h.b16 %v2068
        %v2394 = vunpack.c.l.b16 %v2069
        %v2395 = vunpack.c.h.b16 %v2069
        %v2396 = vunpack.c.l.b16 %v2070
        %v2397 = vunpack.c.h.b16 %v2070
        %v2398 = vunpack.c.l.b16 %v2071
        %v2399 = vunpack.c.h.b16 %v2071
        %v2400 = vunpack.c.l.b16 %v2072
        %v2401 = vunpack.c.h.b16 %v2072
        %v2402 = vunpack.c.l.b16 %v2073
        %v2403 = vunpack.c.h.b16 %v2073
        %v2404 = vunpack.c.l.b16 %v2074
        %v2405 = vunpack.c.h.b16 %v2074
        %v2406 = vunpack.c.l.b16 %v2075
        %v2407 = vunpack.c.h.b16 %v2075
        %v2408 = vunpack.c.l.b16 %v2076
        %v2409 = vunpack.c.h.b16 %v2076
        %v2410 = vunpack.c.l.b16 %v2077
        %v2411 = vunpack.c.h.b16 %v2077
        %v2412 = vunpack.c.l.b16 %v2078
        %v2413 = vunpack.c.h.b16 %v2078
        %v2414 = vunpack.c.l.b16 %v2079
        %v2415 = vunpack.c.h.b16 %v2079
        %v2416 = vunpack.c.l.b16 %v2080
        %v2417 = vunpack.c.h.b16 %v2080
        %v2418 = vunpack.c.l.b16 %v2081
        %v2419 = vunpack.c.h.b16 %v2081
        %v2420 = vunpack.c.l.b16 %v2082
        %v2421 = vunpack.c.h.b16 %v2082
        %v2422 = vunpack.c.l.b16 %v2083
        %v2423 = vunpack.c.h.b16 %v2083
        %v2424 = vunpack.c.l.b16 %v2084
        %v2425 = vunpack.c.h.b16 %v2084
        %v2426 = vunpack.c.l.b16 %v2085
        %v2427 = vunpack.c.h.b16 %v2085
        %v2428 = vunpack.c.l.b16 %v2086
        %v2429 = vunpack.c.h.b16 %v2086
        %v2430 = vunpack.c.l.b16 %v2087
        %v2431 = vunpack.c.h.b16 %v2087
        %v2432 = vunpack.c.l.b16 %v2088
        %v2433 = vunpack.c.h.b16 %v2088
        %v2434 = vunpack.c.l.b16 %v2089
        %v2435 = vunpack.c.h.b16 %v2089
        %v2436 = vunpack.c.l.b16 %v2090
        %v2437 = vunpack.c.h.b16 %v2090
        %v2438 = vunpack.c.l.b16 %v2091
        %v2439 = vunpack.c.h.b16 %v2091
        %v2440 = vunpack.c.l.b16 %v2092
        %v2441 = vunpack.c.h.b16 %v2092
        %v2442 = vunpack.c.l.b16 %v2093
        %v2443 = vunpack.c.h.b16 %v2093
        %v2444 = vunpack.c.l.b16 %v2094
        %v2445 = vunpack.c.h.b16 %v2094
        %v2446 = vunpack.c.l.b16 %v2095
        %v2447 = vunpack.c.h.b16 %v2095
        %v2448 = vunpack.c.l.b16 %v2096
        %v2449 = vunpack.c.h.b16 %v2096
        %v2450 = vunpack.c.l.b16 %v2097
        %v2451 = vunpack.c.h.b16 %v2097
        %v2452 = vunpack.c.l.b16 %v2098
        %v2453 = vunpack.c.h.b16 %v2098
        %v2454 = vunpack.c.l.b16 %v2099
        %v2455 = vunpack.c.h.b16 %v2099
        %v2456 = vunpack.c.l.b16 %v2100
        %v2457 = vunpack.c.h.b16 %v2100
        %v2458 = vunpack.c.l.b16 %v2101
        %v2459 = vunpack.c.h.b16 %v2101
        %v2460 = vunpack.c.l.b16 %v2102
        %v2461 = vunpack.c.h.b16 %v2102
        %v2462 = vunpack.c.l.b16 %v2103
        %v2463 = vunpack.c.h.b16 %v2103
        %v2464 = vunpack.c.l.b16 %v2104
        %v2465 = vunpack.c.h.b16 %v2104
        %v2466 = vunpack.c.l.b16 %v2105
        %v2467 = vunpack.c.h.b16 %v2105
        %v2468 = vunpack.c.l.b16 %v2106
        %v2469 = vunpack.c.h.b16 %v2106
        %v2470 = vunpack.c.l.b16 %v2107
        %v2471 = vunpack.c.h.b16 %v2107
        %v2472 = vunpack.c.l.b16 %v2108
        %v2473 = vunpack.c.h.b16 %v2108
        %v2474 = vunpack.c.l.b16 %v2109
        %v2475 = vunpack.c.h.b16 %v2109
        %v2476 = vunpack.c.l.b16 %v2110
        %v2477 = vunpack.c.h.b16 %v2110
        %v2478 = vunpack.c.l.b16 %v2111
        %v2479 = vunpack.c.h.b16 %v2111
        %v2480 = vunpack.c.l.b16 %v2112
        %v2481 = vunpack.c.h.b16 %v2112
        %v2482 = vunpack.c.l.b16 %v2113
        %v2483 = vunpack.c.h.b16 %v2113
        %v2484 = vunpack.c.l.b16 %v2114
        %v2485 = vunpack.c.h.b16 %v2114
        %v2486 = vunpack.c.l.b16 %v2115
        %v2487 = vunpack.c.h.b16 %v2115
        %v2488 = vunpack.c.l.b16 %v2116
        %v2489 = vunpack.c.h.b16 %v2116
        %v2490 = vunpack.c.l.b16 %v2117
        %v2491 = vunpack.c.h.b16 %v2117
        %v2492 = vunpack.c.l.b16 %v2118
        %v2493 = vunpack.c.h.b16 %v2118
        %v2494 = vunpack.c.l.b16 %v2119
        %v2495 = vunpack.c.h.b16 %v2119
        %v2496 = vunpack.c.l.b16 %v2120
        %v2497 = vunpack.c.h.b16 %v2120
        %v2498 = vunpack.c.l.b16 %v2121
        %v2499 = vunpack.c.h.b16 %v2121
        %v2500 = vunpack.c.l.b16 %v2122
        %v2501 = vunpack.c.h.b16 %v2122
        %v2502 = vunpack.c.l.b16 %v2123
        %v2503 = vunpack.c.h.b16 %v2123
        %v2504 = vunpack.c.l.b16 %v2124
        %v2505 = vunpack.c.h.b16 %v2124
        %v2506 = vunpack.c.l.b16 %v2125
        %v2507 = vunpack.c.h.b16 %v2125
        %v2508 = vunpack.c.l.b16 %v2126
        %v2509 = vunpack.c.h.b16 %v2126
        %v2510 = vunpack.c.l.b16 %v2127
        %v2511 = vunpack.c.h.b16 %v2127
        %v2512 = vunpack.c.l.b16 %v2128
        %v2513 = vunpack.c.h.b16 %v2128
        %v2514 = vunpack.c.l.b16 %v2129
        %v2515 = vunpack.c.h.b16 %v2129
        %v2516 = vunpack.c.l.b16 %v2130
        %v2517 = vunpack.c.h.b16 %v2130
        %v2518 = vunpack.c.l.b16 %v2131
        %v2519 = vunpack.c.h.b16 %v2131
        %v2520 = vunpack.c.l.b16 %v2132
        %v2521 = vunpack.c.h.b16 %v2132
        %v2522 = vunpack.c.l.b16 %v2133
        %v2523 = vunpack.c.h.b16 %v2133
        %v2524 = vunpack.c.l.b16 %v2134
        %v2525 = vunpack.c.h.b16 %v2134
        %v2526 = vunpack.c.l.b16 %v2135
        %v2527 = vunpack.c.h.b16 %v2135
        %v2528 = vunpack.c.l.b16 %v2136
        %v2529 = vunpack.c.h.b16 %v2136
        %v2530 = vunpack.c.l.b16 %v2137
        %v2531 = vunpack.c.h.b16 %v2137
        %v2532 = vunpack.c.l.b16 %v2138
        %v2533 = vunpack.c.h.b16 %v2138
        %v2534 = vunpack.c.l.b16 %v2139
        %v2535 = vunpack.c.h.b16 %v2139
        %v2536 = vunpack.c.l.b16 %v2140
        %v2537 = vunpack.c.h.b16 %v2140
        %v2538 = vunpack.c.l.b16 %v2141
        %v2539 = vunpack.c.h.b16 %v2141
        %v2540 = vunpack.c.l.b16 %v2142
        %v2541 = vunpack.c.h.b16 %v2142
        %v2542 = vunpack.c.l.b16 %v2143
        %v2543 = vunpack.c.h.b16 %v2143
        %v2544 = vunpack.c.l.b16 %v2144
        %v2545 = vunpack.c.h.b16 %v2144
        %v2546 = vunpack.c.l.b16 %v2145
        %v2547 = vunpack.c.h.b16 %v2145
        %v2548 = vunpack.c.l.b16 %v2146
        %v2549 = vunpack.c.h.b16 %v2146
        %v2550 = vunpack.c.l.b16 %v2147
        %v2551 = vunpack.c.h.b16 %v2147
        %v2552 = vunpack.c.l.b16 %v2148
        %v2553 = vunpack.c.h.b16 %v2148
        %v2554 = vunpack.c.l.b16 %v2149
        %v2555 = vunpack.c.h.b16 %v2149
        %v2556 = vunpack.c.l.b16 %v2150
        %v2557 = vunpack.c.h.b16 %v2150
        %v2558 = vunpack.c.l.b16 %v2151
        %v2559 = vunpack.c.h.b16 %v2151
        %v2560 = vunpack.c.l.b16 %v2152
        %v2561 = vunpack.c.h.b16 %v2152
        %v2562 = vunpack.c.l.b16 %v2153
        %v2563 = vunpack.c.h.b16 %v2153
        %v2564 = vunpack.c.l.b16 %v2154
        %v2565 = vunpack.c.h.b16 %v2154
        %v2566 = vunpack.c.l.b16 %v2155
        %v2567 = vunpack.c.h.b16 %v2155
        %v2568 = vunpack.c.l.b16 %v2156
        %v2569 = vunpack.c.h.b16 %v2156
        %v2570 = vunpack.c.l.b16 %v2157
        %v2571 = vunpack.c.h.b16 %v2157
        %v2572 = vunpack.c.l.b16 %v2158
        %v2573 = vunpack.c.h.b16 %v2158
        %v2574 = vunpack.c.l.b16 %v2159
        %v2575 = vunpack.c.h.b16 %v2159
        %v2576 = vunpack.c.l.b16 %v2160
        %v2577 = vunpack.c.h.b16 %v2160
        %v2578 = vunpack.c.l.b16 %v2161
        %v2579 = vunpack.c.h.b16 %v2161
        %v2580 = vunpack.c.l.b16 %v2162
        %v2581 = vunpack.c.h.b16 %v2162
        %v2582 = vunpack.c.l.b16 %v2163
        %v2583 = vunpack.c.h.b16 %v2163
        %v2584 = vunpack.c.l.b16 %v2164
        %v2585 = vunpack.c.h.b16 %v2164
        %v2586 = vunpack.c.l.b16 %v2165
        %v2587 = vunpack.c.h.b16 %v2165
        %v2588 = vunpack.c.l.b16 %v2166
        %v2589 = vunpack.c.h.b16 %v2166
        %v2590 = vunpack.c.l.b16 %v2167
        %v2591 = vunpack.c.h.b16 %v2167
        %v2592 = vunpack.c.l.b16 %v2168
        %v2593 = vunpack.c.h.b16 %v2168
        %v2594 = vunpack.c.l.b16 %v2169
        %v2595 = vunpack.c.h.b16 %v2169
        %v2596 = vpack.c.b16 %v2348, %v2340
        %v2597 = vpack.c.b16 %v2349, %v2341
        %v2598 = vpack.c.b16 %v2350, %v2342
        %v2599 = vpack.c.b16 %v2351, %v2343
        %v2600 = vpack.c.b16 %v2352, %v2344
        %v2601 = vpack.c.b16 %v2353, %v2345
        %v2602 = vpack.c.b16 %v2354, %v2346
        %v2603 = vpack.c.b16 %v2355, %v2347
        %v2604 = vpack.c.b16 %v2364, %v2356
        %v2605 = vpack.c.b16 %v2365, %v2357
        %v2606 = vpack.c.b16 %v2366, %v2358
        %v2607 = vpack.c.b16 %v2367, %v2359
        %v2608 = vpack.c.b16 %v2368, %v2360
        %v2609 = vpack.c.b16 %v2369, %v2361
        %v2610 = vpack.c.b16 %v2370, %v2362
        %v2611 = vpack.c.b16 %v2371, %v2363
        %v2612 = vpack.c.b16 %v2380, %v2372
        %v2613 = vpack.c.b16 %v2381, %v2373
        %v2614 = vpack.c.b16 %v2382, %v2374
        %v2615 = vpack.c.b16 %v2383, %v2375
        %v2616 = vpack.c.b16 %v2384, %v2376
        %v2617 = vpack.c.b16 %v2385, %v2377
        %v2618 = vpack.c.b16 %v2386, %v2378
        %v2619 = vpack.c.b16 %v2387, %v2379
        %v2620 = vpack.c.b16 %v2396, %v2388
        %v2621 = vpack.c.b16 %v2397, %v2389
        %v2622 = vpack.c.b16 %v2398, %v2390
        %v2623 = vpack.c.b16 %v2399, %v2391
        %v2624 = vpack.c.b16 %v2400, %v2392
        %v2625 = vpack.c.b16 %v2401, %v2393
        %v2626 = vpack.c.b16 %v2402, %v2394
        %v2627 = vpack.c.b16 %v2403, %v2395
        %v2628 = vpack.c.b16 %v2412, %v2404
        %v2629 = vpack.c.b16 %v2413, %v2405
        %v2630 = vpack.c.b16 %v2414, %v2406
        %v2631 = vpack.c.b16 %v2415, %v2407
        %v2632 = vpack.c.b16 %v2416, %v2408
        %v2633 = vpack.c.b16 %v2417, %v2409
        %v2634 = vpack.c.b16 %v2418, %v2410
        %v2635 = vpack.c.b16 %v2419, %v2411
        %v2636 = vpack.c.b16 %v2428, %v2420
        %v2637 = vpack.c.b16 %v2429, %v2421
        %v2638 = vpack.c.b16 %v2430, %v2422
        %v2639 = vpack.c.b16 %v2431, %v2423
        %v2640 = vpack.c.b16 %v2432, %v2424
        %v2641 = vpack.c.b16 %v2433, %v2425
        %v2642 = vpack.c.b16 %v2434, %v2426
        %v2643 = vpack.c.b16 %v2435, %v2427
        %v2644 = vpack.c.b16 %v2444, %v2436
        %v2645 = vpack.c.b16 %v2445, %v2437
        %v2646 = vpack.c.b16 %v2446, %v2438
        %v2647 = vpack.c.b16 %v2447, %v2439
        %v2648 = vpack.c.b16 %v2448, %v2440
        %v2649 = vpack.c.b16 %v2449, %v2441
        %v2650 = vpack.c.b16 %v2450, %v2442
        %v2651 = vpack.c.b16 %v2451, %v2443
        %v2652 = vpack.c.b16 %v2460, %v2452
        %v2653 = vpack.c.b16 %v2461, %v2453
        %v2654 = vpack.c.b16 %v2462, %v2454
        %v2655 = vpack.c.b16 %v2463, %v2455
        %v2656 = vpack.c.b16 %v2464, %v2456
        %v2657 = vpack.c.b16 %v2465, %v2457
        %v2658 = vpack.c.b16 %v2466, %v2458
        %v2659 = vpack.c.b16 %v2467, %v2459
        %v2660 = vpack.c.b16 %v2476, %v2468
        %v2661 = vpack.c.b16 %v2477, %v2469
        %v2662 = vpack.c.b16 %v2478, %v2470
        %v2663 = vpack.c.b16 %v2479, %v2471
        %v2664 = vpack.c.b16 %v2480, %v2472
        %v2665 = vpack.c.b16 %v2481, %v2473
        %v2666 = vpack.c.b16 %v2482, %v2474
        %v2667 = vpack.c.b16 %v2483, %v2475
        %v2668 = vpack.c.b16 %v2492, %v2484
        %v2669 = vpack.c.b16 %v2493, %v2485
        %v2670 = vpack.c.b16 %v2494, %v2486
        %v2671 = vpack.c.b16 %v2495, %v2487
        %v2672 = vpack.c.b16 %v2496, %v2488
        %v2673 = vpack.c.b16 %v2497, %v2489
        %v2674 = vpack.c.b16 %v2498, %v2490
        %v2675 = vpack.c.b16 %v2499, %v2491
        %v2676 = vpack.c.b16 %v2508, %v2500
        %v2677 = vpack.c.b16 %v2509, %v2501
        %v2678 = vpack.c.b16 %v2510, %v2502
        %v2679 = vpack.c.b16 %v2511, %v2503
        %v2680 = vpack.c.b16 %v2512, %v2504
        %v2681 = vpack.c.b16 %v2513, %v2505
        %v2682 = vpack.c.b16 %v2514, %v2506
        %v2683 = vpack.c.b16 %v2515, %v2507
        %v2684 = vpack.c.b16 %v2524, %v2516
        %v2685 = vpack.c.b16 %v2525, %v2517
        %v2686 = vpack.c.b16 %v2526, %v2518
        %v2687 = vpack.c.b16 %v2527, %v2519
        %v2688 = vpack.c.b16 %v2528, %v2520
        %v2689 = vpack.c.b16 %v2529, %v2521
        %v2690 = vpack.c.b16 %v2530, %v2522
        %v2691 = vpack.c.b16 %v2531, %v2523
        %v2692 = vpack.c.b16 %v2540, %v2532
        %v2693 = vpack.c.b16 %v2541, %v2533
        %v2694 = vpack.c.b16 %v2542, %v2534
        %v2695 = vpack.c.b16 %v2543, %v2535
        %v2696 = vpack.c.b16 %v2544, %v2536
        %v2697 = vpack.c.b16 %v2545, %v2537
        %v2698 = vpack.c.b16 %v2546, %v2538
        %v2699 = vpack.c.b16 %v2547, %v2539
        %v2700 = vpack.c.b16 %v2556, %v2548
        %v2701 = vpack.c.b16 %v2557, %v2549
        %v2702 = vpack.c.b16 %v2558, %v2550
        %v2703 = vpack.c.b16 %v2559, %v2551
        %v2704 = vpack.c.b16 %v2560, %v2552
        %v2705 = vpack.c.b16 %v2561, %v2553
        %v2706 = vpack.c.b16 %v2562, %v2554
        %v2707 = vpack.c.b16 %v2563, %v2555
        %v2708 = vpack.c.b16 %v2572, %v2564
        %v2709 = vpack.c.b16 %v2573, %v2565
        %v2710 = vpack.c.b16 %v2574, %v2566
        %v2711 = vpack.c.b16 %v2575, %v2567
        %v2712 = vpack.c.b16 %v2576, %v2568
        %v2713 = vpack.c.b16 %v2577, %v2569
        %v2714 = vpack.c.b16 %v2578, %v2570
        %v2715 = vpack.c.b16 %v2579, %v2571
        %v2716 = vpack.c.b16 %v2588, %v2580
        %v2717 = vpack.c.b16 %v2589, %v2581
        %v2718 = vpack.c.b16 %v2590, %v2582
        %v2719 = vpack.c.b16 %v2591, %v2583
        %v2720 = vpack.c.b16 %v2592, %v2584
        %v2721 = vpack.c.b16 %v2593, %v2585
        %v2722 = vpack.c.b16 %v2594, %v2586
        %v2723 = vpack.c.b16 %v2595, %v2587
        %2852 = vmatprep.subr.bf16.mxu0 %v2597
        %2853 = vmatpush1.bf16.msra.mxu0 %v2596
        %2854 = vmatprep.subr.bf16.mxu0 %v2605
        %2855 = vmatpush1.bf16.msra.mxu0 %v2604
        %2856 = vmatprep.subr.bf16.mxu0 %v2613
        %2857 = vmatpush1.bf16.msra.mxu0 %v2612
        %2858 = vmatprep.subr.bf16.mxu0 %v2621
        %2859 = vmatpush1.bf16.msra.mxu0 %v2620
        %2860 = vmatprep.subr.bf16.mxu0 %v2629
        %2861 = vmatpush1.bf16.msra.mxu0 %v2628
        %2862 = vmatprep.subr.bf16.mxu0 %v2637
        %2863 = vmatpush1.bf16.msra.mxu0 %v2636
        %2864 = vmatprep.subr.bf16.mxu0 %v2645
        %2865 = vmatpush1.bf16.msra.mxu0 %v2644
        %2866 = vmatprep.subr.bf16.mxu0 %v2653
        %2867 = vmatpush1.bf16.msra.mxu0 %v2652
        %2868 = vmatprep.subr.bf16.mxu0 %v2661
        %2869 = vmatpush1.bf16.msra.mxu0 %v2660
        %2870 = vmatprep.subr.bf16.mxu0 %v2669
        %2871 = vmatpush1.bf16.msra.mxu0 %v2668
        %2872 = vmatprep.subr.bf16.mxu0 %v2677
        %2873 = vmatpush1.bf16.msra.mxu0 %v2676
        %2874 = vmatprep.subr.bf16.mxu0 %v2685
        %2875 = vmatpush1.bf16.msra.mxu0 %v2684
        %2876 = vmatprep.subr.bf16.mxu0 %v2693
        %2877 = vmatpush1.bf16.msra.mxu0 %v2692
        %2878 = vmatprep.subr.bf16.mxu0 %v2701
        %2879 = vmatpush1.bf16.msra.mxu0 %v2700
        %2880 = vmatprep.subr.bf16.mxu0 %v2709
        %2881 = vmatpush1.bf16.msra.mxu0 %v2708
        %2882 = vmatprep.subr.bf16.mxu0 %v2717
        %2883 = vmatpush1.bf16.msra.mxu0 %v2716
        %2884 = vmatprep.mubr.bf16.mxu0 %v2035
        %2885 = vmatmul.mubr.bf16.gmra.mrb[0].mxu0 %v2034
        %v2886 = vpop.f32.mrb[0].mxu0
        %v2887 = vadd.f32 %v2175, %v2886
        %v2888 = vpop.f32.mrb[0].mxu0
        %v2889 = vadd.f32 %v2179, %v2888
        %v2890 = vpop.f32.mrb[0].mxu0
        %v2891 = vadd.f32 %v2175, %v2890
        %v2892 = vpop.f32.mrb[0].mxu0
        %v2893 = vadd.f32 %v2179, %v2892
        %2894 = vmatprep.mubr.bf16.mxu0 %v2037
        %2895 = vmatmul.mubr.bf16.gmra.mrb[0].mxu0 %v2036
        %v2896 = vpop.f32.mrb[0].mxu0
        %v2897 = vadd.f32 %v2175, %v2896
        %v2898 = vpop.f32.mrb[0].mxu0
        %v2899 = vadd.f32 %v2179, %v2898
        %v2900 = vpop.f32.mrb[0].mxu0
        %v2901 = vadd.f32 %v2175, %v2900
        %v2902 = vpop.f32.mrb[0].mxu0
        %v2903 = vadd.f32 %v2179, %v2902
        %2904 = vmatprep.mubr.bf16.mxu0 %v2039
        %2905 = vmatmul.mubr.bf16.gmra.mrb[0].mxu0 %v2038
        %v2906 = vpop.f32.mrb[0].mxu0
        %v2907 = vadd.f32 %v2175, %v2906
        %v2908 = vpop.f32.mrb[0].mxu0
        %v2909 = vadd.f32 %v2179, %v2908
        %v2910 = vpop.f32.mrb[0].mxu0
        %v2911 = vadd.f32 %v2175, %v2910
        %v2912 = vpop.f32.mrb[0].mxu0
        %v2913 = vadd.f32 %v2179, %v2912
        %2914 = vmatprep.mubr.bf16.mxu0 %v2041
        %2915 = vmatmul.mubr.bf16.gmra.mrb[0].mxu0 %v2040
        %v2916 = vpop.f32.mrb[0].mxu0
        %v2917 = vadd.f32 %v2175, %v2916
        %v2918 = vpop.f32.mrb[0].mxu0
        %v2919 = vadd.f32 %v2179, %v2918
        %v2920 = vpop.f32.mrb[0].mxu0
        %v2921 = vadd.f32 %v2175, %v2920
        %v2922 = vpop.f32.mrb[0].mxu0
        %v2923 = vadd.f32 %v2179, %v2922
        %2924 = vdwg.mxu0
        %2925 = vmatprep.subr.bf16.mxu0 %v2599
        %2926 = vmatpush1.bf16.msra.mxu0 %v2598
        %2927 = vmatprep.subr.bf16.mxu0 %v2607
        %2928 = vmatpush1.bf16.msra.mxu0 %v2606
        %2929 = vmatprep.subr.bf16.mxu0 %v2615
        %2930 = vmatpush1.bf16.msra.mxu0 %v2614
        %2931 = vmatprep.subr.bf16.mxu0 %v2623
        %2932 = vmatpush1.bf16.msra.mxu0 %v2622
        %2933 = vmatprep.subr.bf16.mxu0 %v2631
        %2934 = vmatpush1.bf16.msra.mxu0 %v2630
        %2935 = vmatprep.subr.bf16.mxu0 %v2639
        %2936 = vmatpush1.bf16.msra.mxu0 %v2638
        %2937 = vmatprep.subr.bf16.mxu0 %v2647
        %2938 = vmatpush1.bf16.msra.mxu0 %v2646
        %2939 = vmatprep.subr.bf16.mxu0 %v2655
        %2940 = vmatpush1.bf16.msra.mxu0 %v2654
        %2941 = vmatprep.subr.bf16.mxu0 %v2663
        %2942 = vmatpush1.bf16.msra.mxu0 %v2662
        %2943 = vmatprep.subr.bf16.mxu0 %v2671
        %2944 = vmatpush1.bf16.msra.mxu0 %v2670
        %2945 = vmatprep.subr.bf16.mxu0 %v2679
        %2946 = vmatpush1.bf16.msra.mxu0 %v2678
        %2947 = vmatprep.subr.bf16.mxu0 %v2687
        %2948 = vmatpush1.bf16.msra.mxu0 %v2686
        %2949 = vmatprep.subr.bf16.mxu0 %v2695
        %2950 = vmatpush1.bf16.msra.mxu0 %v2694
        %2951 = vmatprep.subr.bf16.mxu0 %v2703
        %2952 = vmatpush1.bf16.msra.mxu0 %v2702
        %2953 = vmatprep.subr.bf16.mxu0 %v2711
        %2954 = vmatpush1.bf16.msra.mxu0 %v2710
        %2955 = vmatprep.subr.bf16.mxu0 %v2719
        %2956 = vmatpush1.bf16.msra.mxu0 %v2718
        %2957 = vmatprep.mubr.bf16.mxu0 %v2035
        %2958 = vmatmul.mubr.bf16.gmra.mrb[0].mxu0 %v2034
        %v2959 = vpop.f32.mrb[0].mxu0
        %v2960 = vadd.f32 %v2183, %v2959
        %v2961 = vpop.f32.mrb[0].mxu0
        %v2962 = vadd.f32 %v2187, %v2961
        %v2963 = vpop.f32.mrb[0].mxu0
        %v2964 = vadd.f32 %v2183, %v2963
        %v2965 = vpop.f32.mrb[0].mxu0
        %v2966 = vadd.f32 %v2187, %v2965
        %2967 = vmatprep.mubr.bf16.mxu0 %v2037
        %2968 = vmatmul.mubr.bf16.gmra.mrb[0].mxu0 %v2036
        %v2969 = vpop.f32.mrb[0].mxu0
        %v2970 = vadd.f32 %v2183, %v2969
        %v2971 = vpop.f32.mrb[0].mxu0
        %v2972 = vadd.f32 %v2187, %v2971
        %v2973 = vpop.f32.mrb[0].mxu0
        %v2974 = vadd.f32 %v2183, %v2973
        %v2975 = vpop.f32.mrb[0].mxu0
        %v2976 = vadd.f32 %v2187, %v2975
        %2977 = vmatprep.mubr.bf16.mxu0 %v2039
        %2978 = vmatmul.mubr.bf16.gmra.mrb[0].mxu0 %v2038
        %v2979 = vpop.f32.mrb[0].mxu0
        %v2980 = vadd.f32 %v2183, %v2979
        %v2981 = vpop.f32.mrb[0].mxu0
        %v2982 = vadd.f32 %v2187, %v2981
        %v2983 = vpop.f32.mrb[0].mxu0
        %v2984 = vadd.f32 %v2183, %v2983
        %v2985 = vpop.f32.mrb[0].mxu0
        %v2986 = vadd.f32 %v2187, %v2985
        %2987 = vmatprep.mubr.bf16.mxu0 %v2041
        %2988 = vmatmul.mubr.bf16.gmra.mrb[0].mxu0 %v2040
        %v2989 = vpop.f32.mrb[0].mxu0
        %v2990 = vadd.f32 %v2183, %v2989
        %v2991 = vpop.f32.mrb[0].mxu0
        %v2992 = vadd.f32 %v2187, %v2991
        %v2993 = vpop.f32.mrb[0].mxu0
        %v2994 = vadd.f32 %v2183, %v2993
        %v2995 = vpop.f32.mrb[0].mxu0
        %v2996 = vadd.f32 %v2187, %v2995
        %2997 = vdwg.mxu0
        %2998 = vmatprep.subr.bf16.mxu0 %v2601
        %2999 = vmatpush1.bf16.msra.mxu0 %v2600
        %3000 = vmatprep.subr.bf16.mxu0 %v2609
        %3001 = vmatpush1.bf16.msra.mxu0 %v2608
        %3002 = vmatprep.subr.bf16.mxu0 %v2617
        %3003 = vmatpush1.bf16.msra.mxu0 %v2616
        %3004 = vmatprep.subr.bf16.mxu0 %v2625
        %3005 = vmatpush1.bf16.msra.mxu0 %v2624
        %3006 = vmatprep.subr.bf16.mxu0 %v2633
        %3007 = vmatpush1.bf16.msra.mxu0 %v2632
        %3008 = vmatprep.subr.bf16.mxu0 %v2641
        %3009 = vmatpush1.bf16.msra.mxu0 %v2640
        %3010 = vmatprep.subr.bf16.mxu0 %v2649
        %3011 = vmatpush1.bf16.msra.mxu0 %v2648
        %3012 = vmatprep.subr.bf16.mxu0 %v2657
        %3013 = vmatpush1.bf16.msra.mxu0 %v2656
        %3014 = vmatprep.subr.bf16.mxu0 %v2665
        %3015 = vmatpush1.bf16.msra.mxu0 %v2664
        %3016 = vmatprep.subr.bf16.mxu0 %v2673
        %3017 = vmatpush1.bf16.msra.mxu0 %v2672
        %3018 = vmatprep.subr.bf16.mxu0 %v2681
        %3019 = vmatpush1.bf16.msra.mxu0 %v2680
        %3020 = vmatprep.subr.bf16.mxu0 %v2689
        %3021 = vmatpush1.bf16.msra.mxu0 %v2688
        %3022 = vmatprep.subr.bf16.mxu0 %v2697
        %3023 = vmatpush1.bf16.msra.mxu0 %v2696
        %3024 = vmatprep.subr.bf16.mxu0 %v2705
        %3025 = vmatpush1.bf16.msra.mxu0 %v2704
        %3026 = vmatprep.subr.bf16.mxu0 %v2713
        %3027 = vmatpush1.bf16.msra.mxu0 %v2712
        %3028 = vmatprep.subr.bf16.mxu0 %v2721
        %3029 = vmatpush1.bf16.msra.mxu0 %v2720
        %3030 = vmatprep.mubr.bf16.mxu0 %v2035
        %3031 = vmatmul.mubr.bf16.gmra.mrb[0].mxu0 %v2034
        %v3032 = vpop.f32.mrb[0].mxu0
        %v3033 = vadd.f32 %v2191, %v3032
        %v3034 = vpop.f32.mrb[0].mxu0
        %v3035 = vadd.f32 %v2195, %v3034
        %v3036 = vpop.f32.mrb[0].mxu0
        %v3037 = vadd.f32 %v2191, %v3036
        %v3038 = vpop.f32.mrb[0].mxu0
        %v3039 = vadd.f32 %v2195, %v3038
        %3040 = vmatprep.mubr.bf16.mxu0 %v2037
        %3041 = vmatmul.mubr.bf16.gmra.mrb[0].mxu0 %v2036
        %v3042 = vpop.f32.mrb[0].mxu0
        %v3043 = vadd.f32 %v2191, %v3042
        %v3044 = vpop.f32.mrb[0].mxu0
        %v3045 = vadd.f32 %v2195, %v3044
        %v3046 = vpop.f32.mrb[0].mxu0
        %v3047 = vadd.f32 %v2191, %v3046
        %v3048 = vpop.f32.mrb[0].mxu0
        %v3049 = vadd.f32 %v2195, %v3048
        %3050 = vmatprep.mubr.bf16.mxu0 %v2039
        %3051 = vmatmul.mubr.bf16.gmra.mrb[0].mxu0 %v2038
        %v3052 = vpop.f32.mrb[0].mxu0
        %v3053 = vadd.f32 %v2191, %v3052
        %v3054 = vpop.f32.mrb[0].mxu0
        %v3055 = vadd.f32 %v2195, %v3054
        %v3056 = vpop.f32.mrb[0].mxu0
        %v3057 = vadd.f32 %v2191, %v3056
        %v3058 = vpop.f32.mrb[0].mxu0
        %v3059 = vadd.f32 %v2195, %v3058
        %3060 = vmatprep.mubr.bf16.mxu0 %v2041
        %3061 = vmatmul.mubr.bf16.gmra.mrb[0].mxu0 %v2040
        %v3062 = vpop.f32.mrb[0].mxu0
        %v3063 = vadd.f32 %v2191, %v3062
        %v3064 = vpop.f32.mrb[0].mxu0
        %v3065 = vadd.f32 %v2195, %v3064
        %v3066 = vpop.f32.mrb[0].mxu0
        %v3067 = vadd.f32 %v2191, %v3066
        %v3068 = vpop.f32.mrb[0].mxu0
        %v3069 = vadd.f32 %v2195, %v3068
        %3070 = vdwg.mxu0
        %3071 = vmatprep.subr.bf16.mxu0 %v2603
        %3072 = vmatpush1.bf16.msra.mxu0 %v2602
        %3073 = vmatprep.subr.bf16.mxu0 %v2611
        %3074 = vmatpush1.bf16.msra.mxu0 %v2610
        %3075 = vmatprep.subr.bf16.mxu0 %v2619
        %3076 = vmatpush1.bf16.msra.mxu0 %v2618
        %3077 = vmatprep.subr.bf16.mxu0 %v2627
        %3078 = vmatpush1.bf16.msra.mxu0 %v2626
        %3079 = vmatprep.subr.bf16.mxu0 %v2635
        %3080 = vmatpush1.bf16.msra.mxu0 %v2634
        %3081 = vmatprep.subr.bf16.mxu0 %v2643
        %3082 = vmatpush1.bf16.msra.mxu0 %v2642
        %3083 = vmatprep.subr.bf16.mxu0 %v2651
        %3084 = vmatpush1.bf16.msra.mxu0 %v2650
        %3085 = vmatprep.subr.bf16.mxu0 %v2659
        %3086 = vmatpush1.bf16.msra.mxu0 %v2658
        %3087 = vmatprep.subr.bf16.mxu0 %v2667
        %3088 = vmatpush1.bf16.msra.mxu0 %v2666
        %3089 = vmatprep.subr.bf16.mxu0 %v2675
        %3090 = vmatpush1.bf16.msra.mxu0 %v2674
        %3091 = vmatprep.subr.bf16.mxu0 %v2683
        %3092 = vmatpush1.bf16.msra.mxu0 %v2682
        %3093 = vmatprep.subr.bf16.mxu0 %v2691
        %3094 = vmatpush1.bf16.msra.mxu0 %v2690
        %3095 = vmatprep.subr.bf16.mxu0 %v2699
        %3096 = vmatpush1.bf16.msra.mxu0 %v2698
        %3097 = vmatprep.subr.bf16.mxu0 %v2707
        %3098 = vmatpush1.bf16.msra.mxu0 %v2706
        %3099 = vmatprep.subr.bf16.mxu0 %v2715
        %3100 = vmatpush1.bf16.msra.mxu0 %v2714
        %3101 = vmatprep.subr.bf16.mxu0 %v2723
        %3102 = vmatpush1.bf16.msra.mxu0 %v2722
        %3103 = vmatprep.mubr.bf16.mxu0 %v2035
        %3104 = vmatmul.mubr.bf16.gmra.mrb[0].mxu0 %v2034
        %v3105 = vpop.f32.mrb[0].mxu0
        %v3106 = vadd.f32 %v2199, %v3105
        %v3107 = vpop.f32.mrb[0].mxu0
        %v3108 = vadd.f32 %v2203, %v3107
        %v3109 = vpop.f32.mrb[0].mxu0
        %v3110 = vadd.f32 %v2199, %v3109
        %v3111 = vpop.f32.mrb[0].mxu0
        %v3112 = vadd.f32 %v2203, %v3111
        %3113 = vmatprep.mubr.bf16.mxu0 %v2037
        %3114 = vmatmul.mubr.bf16.gmra.mrb[0].mxu0 %v2036
        %v3115 = vpop.f32.mrb[0].mxu0
        %v3116 = vadd.f32 %v2199, %v3115
        %v3117 = vpop.f32.mrb[0].mxu0
        %v3118 = vadd.f32 %v2203, %v3117
        %v3119 = vpop.f32.mrb[0].mxu0
        %v3120 = vadd.f32 %v2199, %v3119
        %v3121 = vpop.f32.mrb[0].mxu0
        %v3122 = vadd.f32 %v2203, %v3121
        %3123 = vmatprep.mubr.bf16.mxu0 %v2039
        %3124 = vmatmul.mubr.bf16.gmra.mrb[0].mxu0 %v2038
        %v3125 = vpop.f32.mrb[0].mxu0
        %v3126 = vadd.f32 %v2199, %v3125
        %v3127 = vpop.f32.mrb[0].mxu0
        %v3128 = vadd.f32 %v2203, %v3127
        %v3129 = vpop.f32.mrb[0].mxu0
        %v3130 = vadd.f32 %v2199, %v3129
        %v3131 = vpop.f32.mrb[0].mxu0
        %v3132 = vadd.f32 %v2203, %v3131
        %3133 = vmatprep.mubr.bf16.mxu0 %v2041
        %3134 = vmatmul.mubr.bf16.gmra.mrb[0].mxu0 %v2040
        %v3135 = vpop.f32.mrb[0].mxu0
        %v3136 = vadd.f32 %v2199, %v3135
        %v3137 = vpop.f32.mrb[0].mxu0
        %v3138 = vadd.f32 %v2203, %v3137
        %v3139 = vpop.f32.mrb[0].mxu0
        %v3140 = vadd.f32 %v2199, %v3139
        %v3141 = vpop.f32.mrb[0].mxu0
        %v3142 = vadd.f32 %v2203, %v3141
        %3143 = vdwg.mxu0
        %v3144 = vmax.f32 %v2887, 0.0
        %v3145 = vmax.f32 %v2889, 0.0
        %v3146 = vmax.f32 %v2960, 0.0
        %v3147 = vmax.f32 %v2962, 0.0
        %v3148 = vmax.f32 %v2891, 0.0
        %v3149 = vmax.f32 %v2893, 0.0
        %v3150 = vmax.f32 %v2964, 0.0
        %v3151 = vmax.f32 %v2966, 0.0
        %v3152 = vmax.f32 %v2897, 0.0
        %v3153 = vmax.f32 %v2899, 0.0
        %v3154 = vmax.f32 %v2970, 0.0
        %v3155 = vmax.f32 %v2972, 0.0
        %v3156 = vmax.f32 %v2901, 0.0
        %v3157 = vmax.f32 %v2903, 0.0
        %v3158 = vmax.f32 %v2974, 0.0
        %v3159 = vmax.f32 %v2976, 0.0
        %v3160 = vmax.f32 %v2907, 0.0
        %v3161 = vmax.f32 %v2909, 0.0
        %v3162 = vmax.f32 %v2980, 0.0
        %v3163 = vmax.f32 %v2982, 0.0
        %v3164 = vmax.f32 %v2911, 0.0
        %v3165 = vmax.f32 %v2913, 0.0
        %v3166 = vmax.f32 %v2984, 0.0
        %v3167 = vmax.f32 %v2986, 0.0
        %v3168 = vmax.f32 %v2917, 0.0
        %v3169 = vmax.f32 %v2919, 0.0
        %v3170 = vmax.f32 %v2990, 0.0
        %v3171 = vmax.f32 %v2992, 0.0
        %v3172 = vmax.f32 %v2921, 0.0
        %v3173 = vmax.f32 %v2923, 0.0
        %v3174 = vmax.f32 %v2994, 0.0
        %v3175 = vmax.f32 %v2996, 0.0
        %v3176 = vpack.c.bf16 %v3148, %v3144
        %v3177 = vpack.c.bf16 %v3149, %v3145
        %v3178 = vpack.c.bf16 %v3150, %v3146
        %v3179 = vpack.c.bf16 %v3151, %v3147
        %v3180 = vpack.c.bf16 %v3156, %v3152
        %v3181 = vpack.c.bf16 %v3157, %v3153
        %v3182 = vpack.c.bf16 %v3158, %v3154
        %v3183 = vpack.c.bf16 %v3159, %v3155
        %v3184 = vpack.c.bf16 %v3164, %v3160
        %v3185 = vpack.c.bf16 %v3165, %v3161
        %v3186 = vpack.c.bf16 %v3166, %v3162
        %v3187 = vpack.c.bf16 %v3167, %v3163
        %v3188 = vpack.c.bf16 %v3172, %v3168
        %v3189 = vpack.c.bf16 %v3173, %v3169
        %v3190 = vpack.c.bf16 %v3174, %v3170
        %v3191 = vpack.c.bf16 %v3175, %v3171
        %v3192 = vld [vmem:[#allocation16] sm:$0xff]
        %v3193 = vld [vmem:[#allocation16 + $0x8] sm:$0xff]
        %v3194 = vld [vmem:[#allocation16 + $0x10] sm:$0xff]
        %v3195 = vld [vmem:[#allocation16 + $0x18] sm:$0xff]
        %v3196 = vld [vmem:[#allocation16 + $0x20] sm:$0xff]
        %v3197 = vld [vmem:[#allocation16 + $0x28] sm:$0xff]
        %v3198 = vld [vmem:[#allocation16 + $0x30] sm:$0xff]
        %v3199 = vld [vmem:[#allocation16 + $0x38] sm:$0xff]
        %v3200 = vld [vmem:[#allocation16 + $0x40] sm:$0xff]
        %v3201 = vld [vmem:[#allocation16 + $0x48] sm:$0xff]
        %v3202 = vld [vmem:[#allocation16 + $0x50] sm:$0xff]
        %v3203 = vld [vmem:[#allocation16 + $0x58] sm:$0xff]
        %v3204 = vld [vmem:[#allocation16 + $0x60] sm:$0xff]
        %v3205 = vld [vmem:[#allocation16 + $0x68] sm:$0xff]
        %v3206 = vld [vmem:[#allocation16 + $0x70] sm:$0xff]
        %v3207 = vld [vmem:[#allocation16 + $0x78] sm:$0xff]
        %v3208 = vld [vmem:[#allocation16 + $0x80] sm:$0xff]
        %v3209 = vld [vmem:[#allocation16 + $0x88] sm:$0xff]
        %v3210 = vld [vmem:[#allocation16 + $0x90] sm:$0xff]
        %v3211 = vld [vmem:[#allocation16 + $0x98] sm:$0xff]
        %v3212 = vld [vmem:[#allocation16 + $0xa0] sm:$0xff]
        %v3213 = vld [vmem:[#allocation16 + $0xa8] sm:$0xff]
        %v3214 = vld [vmem:[#allocation16 + $0xb0] sm:$0xff]
        %v3215 = vld [vmem:[#allocation16 + $0xb8] sm:$0xff]
        %v3216 = vld [vmem:[#allocation16 + $0xc0] sm:$0xff]
        %v3217 = vld [vmem:[#allocation16 + $0xc8] sm:$0xff]
        %v3218 = vld [vmem:[#allocation16 + $0xd0] sm:$0xff]
        %v3219 = vld [vmem:[#allocation16 + $0xd8] sm:$0xff]
        %v3220 = vld [vmem:[#allocation16 + $0xe0] sm:$0xff]
        %v3221 = vld [vmem:[#allocation16 + $0xe8] sm:$0xff]
        %v3222 = vld [vmem:[#allocation16 + $0xf0] sm:$0xff]
        %v3223 = vld [vmem:[#allocation16 + $0xf8] sm:$0xff]
        %v3224 = vld [vmem:[#allocation16 + $0x100] sm:$0xff]
        %v3225 = vld [vmem:[#allocation16 + $0x108] sm:$0xff]
        %v3226 = vld [vmem:[#allocation16 + $0x110] sm:$0xff]
        %v3227 = vld [vmem:[#allocation16 + $0x118] sm:$0xff]
        %v3228 = vld [vmem:[#allocation16 + $0x120] sm:$0xff]
        %v3229 = vld [vmem:[#allocation16 + $0x128] sm:$0xff]
        %v3230 = vld [vmem:[#allocation16 + $0x130] sm:$0xff]
        %v3231 = vld [vmem:[#allocation16 + $0x138] sm:$0xff]
        %v3232 = vld [vmem:[#allocation16 + $0x140] sm:$0xff]
        %v3233 = vld [vmem:[#allocation16 + $0x148] sm:$0xff]
        %v3234 = vld [vmem:[#allocation16 + $0x150] sm:$0xff]
        %v3235 = vld [vmem:[#allocation16 + $0x158] sm:$0xff]
        %v3236 = vld [vmem:[#allocation16 + $0x160] sm:$0xff]
        %v3237 = vld [vmem:[#allocation16 + $0x168] sm:$0xff]
        %v3238 = vld [vmem:[#allocation16 + $0x170] sm:$0xff]
        %v3239 = vld [vmem:[#allocation16 + $0x178] sm:$0xff]
        %v3240 = vld [vmem:[#allocation16 + $0x180] sm:$0xff]
        %v3241 = vld [vmem:[#allocation16 + $0x188] sm:$0xff]
        %v3242 = vld [vmem:[#allocation16 + $0x190] sm:$0xff]
        %v3243 = vld [vmem:[#allocation16 + $0x198] sm:$0xff]
        %v3244 = vld [vmem:[#allocation16 + $0x1a0] sm:$0xff]
        %v3245 = vld [vmem:[#allocation16 + $0x1a8] sm:$0xff]
        %v3246 = vld [vmem:[#allocation16 + $0x1b0] sm:$0xff]
        %v3247 = vld [vmem:[#allocation16 + $0x1b8] sm:$0xff]
        %v3248 = vld [vmem:[#allocation16 + $0x1c0] sm:$0xff]
        %v3249 = vld [vmem:[#allocation16 + $0x1c8] sm:$0xff]
        %v3250 = vld [vmem:[#allocation16 + $0x1d0] sm:$0xff]
        %v3251 = vld [vmem:[#allocation16 + $0x1d8] sm:$0xff]
        %v3252 = vld [vmem:[#allocation16 + $0x1e0] sm:$0xff]
        %v3253 = vld [vmem:[#allocation16 + $0x1e8] sm:$0xff]
        %v3254 = vld [vmem:[#allocation16 + $0x1f0] sm:$0xff]
        %v3255 = vld [vmem:[#allocation16 + $0x1f8] sm:$0xff]
        %v3256 = vld [vmem:[#allocation16 + $0x200] sm:$0xff]
        %v3257 = vld [vmem:[#allocation16 + $0x208] sm:$0xff]
        %v3258 = vld [vmem:[#allocation16 + $0x210] sm:$0xff]
        %v3259 = vld [vmem:[#allocation16 + $0x218] sm:$0xff]
        %v3260 = vld [vmem:[#allocation16 + $0x220] sm:$0xff]
        %v3261 = vld [vmem:[#allocation16 + $0x228] sm:$0xff]
        %v3262 = vld [vmem:[#allocation16 + $0x230] sm:$0xff]
        %v3263 = vld [vmem:[#allocation16 + $0x238] sm:$0xff]
        %v3264 = vld [vmem:[#allocation16 + $0x240] sm:$0xff]
        %v3265 = vld [vmem:[#allocation16 + $0x248] sm:$0xff]
        %v3266 = vld [vmem:[#allocation16 + $0x250] sm:$0xff]
        %v3267 = vld [vmem:[#allocation16 + $0x258] sm:$0xff]
        %v3268 = vld [vmem:[#allocation16 + $0x260] sm:$0xff]
        %v3269 = vld [vmem:[#allocation16 + $0x268] sm:$0xff]
        %v3270 = vld [vmem:[#allocation16 + $0x270] sm:$0xff]
        %v3271 = vld [vmem:[#allocation16 + $0x278] sm:$0xff]
        %v3272 = vld [vmem:[#allocation16 + $0x280] sm:$0xff]
        %v3273 = vld [vmem:[#allocation16 + $0x288] sm:$0xff]
        %v3274 = vld [vmem:[#allocation16 + $0x290] sm:$0xff]
        %v3275 = vld [vmem:[#allocation16 + $0x298] sm:$0xff]
        %v3276 = vld [vmem:[#allocation16 + $0x2a0] sm:$0xff]
        %v3277 = vld [vmem:[#allocation16 + $0x2a8] sm:$0xff]
        %v3278 = vld [vmem:[#allocation16 + $0x2b0] sm:$0xff]
        %v3279 = vld [vmem:[#allocation16 + $0x2b8] sm:$0xff]
        %v3280 = vld [vmem:[#allocation16 + $0x2c0] sm:$0xff]
        %v3281 = vld [vmem:[#allocation16 + $0x2c8] sm:$0xff]
        %v3282 = vld [vmem:[#allocation16 + $0x2d0] sm:$0xff]
        %v3283 = vld [vmem:[#allocation16 + $0x2d8] sm:$0xff]
        %v3284 = vld [vmem:[#allocation16 + $0x2e0] sm:$0xff]
        %v3285 = vld [vmem:[#allocation16 + $0x2e8] sm:$0xff]
        %v3286 = vld [vmem:[#allocation16 + $0x2f0] sm:$0xff]
        %v3287 = vld [vmem:[#allocation16 + $0x2f8] sm:$0xff]
        %v3288 = vld [vmem:[#allocation16 + $0x300] sm:$0xff]
        %v3289 = vld [vmem:[#allocation16 + $0x308] sm:$0xff]
        %v3290 = vld [vmem:[#allocation16 + $0x310] sm:$0xff]
        %v3291 = vld [vmem:[#allocation16 + $0x318] sm:$0xff]
        %v3292 = vld [vmem:[#allocation16 + $0x320] sm:$0xff]
        %v3293 = vld [vmem:[#allocation16 + $0x328] sm:$0xff]
        %v3294 = vld [vmem:[#allocation16 + $0x330] sm:$0xff]
        %v3295 = vld [vmem:[#allocation16 + $0x338] sm:$0xff]
        %v3296 = vld [vmem:[#allocation16 + $0x340] sm:$0xff]
        %v3297 = vld [vmem:[#allocation16 + $0x348] sm:$0xff]
        %v3298 = vld [vmem:[#allocation16 + $0x350] sm:$0xff]
        %v3299 = vld [vmem:[#allocation16 + $0x358] sm:$0xff]
        %v3300 = vld [vmem:[#allocation16 + $0x360] sm:$0xff]
        %v3301 = vld [vmem:[#allocation16 + $0x368] sm:$0xff]
        %v3302 = vld [vmem:[#allocation16 + $0x370] sm:$0xff]
        %v3303 = vld [vmem:[#allocation16 + $0x378] sm:$0xff]
        %v3304 = vld [vmem:[#allocation16 + $0x380] sm:$0xff]
        %v3305 = vld [vmem:[#allocation16 + $0x388] sm:$0xff]
        %v3306 = vld [vmem:[#allocation16 + $0x390] sm:$0xff]
        %v3307 = vld [vmem:[#allocation16 + $0x398] sm:$0xff]
        %v3308 = vld [vmem:[#allocation16 + $0x3a0] sm:$0xff]
        %v3309 = vld [vmem:[#allocation16 + $0x3a8] sm:$0xff]
        %v3310 = vld [vmem:[#allocation16 + $0x3b0] sm:$0xff]
        %v3311 = vld [vmem:[#allocation16 + $0x3b8] sm:$0xff]
        %v3312 = vld [vmem:[#allocation16 + $0x3c0] sm:$0xff]
        %v3313 = vld [vmem:[#allocation16 + $0x3c8] sm:$0xff]
        %v3314 = vld [vmem:[#allocation16 + $0x3d0] sm:$0xff]
        %v3315 = vld [vmem:[#allocation16 + $0x3d8] sm:$0xff]
        %v3316 = vld [vmem:[#allocation16 + $0x3e0] sm:$0xff]
        %v3317 = vld [vmem:[#allocation16 + $0x3e8] sm:$0xff]
        %v3318 = vld [vmem:[#allocation16 + $0x3f0] sm:$0xff]
        %v3319 = vld [vmem:[#allocation16 + $0x3f8] sm:$0xff]
        %v3320 = vld [vmem:[%s13] sm:$0xf]
        %v3322 = vlaneseq
        %v3323 = vshrl.u32 %v3322, 7
        %v3324 = vsub.s32 0, %v3323
        %v3325 = vrot.slane %v3320, %v3324
        %v3326 = vlaneseq
        %v3327 = vshrl.u32 %v3326, 7
        %v3328 = vsub.s32 1, %v3327
        %v3329 = vrot.slane %v3320, %v3328
        %v3330 = vlaneseq
        %v3331 = vshrl.u32 %v3330, 7
        %v3332 = vsub.s32 2, %v3331
        %v3333 = vrot.slane %v3320, %v3332
        %v3334 = vlaneseq
        %v3335 = vshrl.u32 %v3334, 7
        %v3336 = vsub.s32 3, %v3335
        %v3337 = vrot.slane %v3320, %v3336
        %v3470 = vunpack.c.l.b16 %v3192
        %v3471 = vunpack.c.h.b16 %v3192
        %v3472 = vunpack.c.l.b16 %v3193
        %v3473 = vunpack.c.h.b16 %v3193
        %v3474 = vunpack.c.l.b16 %v3194
        %v3475 = vunpack.c.h.b16 %v3194
        %v3476 = vunpack.c.l.b16 %v3195
        %v3477 = vunpack.c.h.b16 %v3195
        %v3478 = vunpack.c.l.b16 %v3196
        %v3479 = vunpack.c.h.b16 %v3196
        %v3480 = vunpack.c.l.b16 %v3197
        %v3481 = vunpack.c.h.b16 %v3197
        %v3482 = vunpack.c.l.b16 %v3198
        %v3483 = vunpack.c.h.b16 %v3198
        %v3484 = vunpack.c.l.b16 %v3199
        %v3485 = vunpack.c.h.b16 %v3199
        %v3486 = vunpack.c.l.b16 %v3200
        %v3487 = vunpack.c.h.b16 %v3200
        %v3488 = vunpack.c.l.b16 %v3201
        %v3489 = vunpack.c.h.b16 %v3201
        %v3490 = vunpack.c.l.b16 %v3202
        %v3491 = vunpack.c.h.b16 %v3202
        %v3492 = vunpack.c.l.b16 %v3203
        %v3493 = vunpack.c.h.b16 %v3203
        %v3494 = vunpack.c.l.b16 %v3204
        %v3495 = vunpack.c.h.b16 %v3204
        %v3496 = vunpack.c.l.b16 %v3205
        %v3497 = vunpack.c.h.b16 %v3205
        %v3498 = vunpack.c.l.b16 %v3206
        %v3499 = vunpack.c.h.b16 %v3206
        %v3500 = vunpack.c.l.b16 %v3207
        %v3501 = vunpack.c.h.b16 %v3207
        %v3502 = vunpack.c.l.b16 %v3208
        %v3503 = vunpack.c.h.b16 %v3208
        %v3504 = vunpack.c.l.b16 %v3209
        %v3505 = vunpack.c.h.b16 %v3209
        %v3506 = vunpack.c.l.b16 %v3210
        %v3507 = vunpack.c.h.b16 %v3210
        %v3508 = vunpack.c.l.b16 %v3211
        %v3509 = vunpack.c.h.b16 %v3211
        %v3510 = vunpack.c.l.b16 %v3212
        %v3511 = vunpack.c.h.b16 %v3212
        %v3512 = vunpack.c.l.b16 %v3213
        %v3513 = vunpack.c.h.b16 %v3213
        %v3514 = vunpack.c.l.b16 %v3214
        %v3515 = vunpack.c.h.b16 %v3214
        %v3516 = vunpack.c.l.b16 %v3215
        %v3517 = vunpack.c.h.b16 %v3215
        %v3518 = vunpack.c.l.b16 %v3216
        %v3519 = vunpack.c.h.b16 %v3216
        %v3520 = vunpack.c.l.b16 %v3217
        %v3521 = vunpack.c.h.b16 %v3217
        %v3522 = vunpack.c.l.b16 %v3218
        %v3523 = vunpack.c.h.b16 %v3218
        %v3524 = vunpack.c.l.b16 %v3219
        %v3525 = vunpack.c.h.b16 %v3219
        %v3526 = vunpack.c.l.b16 %v3220
        %v3527 = vunpack.c.h.b16 %v3220
        %v3528 = vunpack.c.l.b16 %v3221
        %v3529 = vunpack.c.h.b16 %v3221
        %v3530 = vunpack.c.l.b16 %v3222
        %v3531 = vunpack.c.h.b16 %v3222
        %v3532 = vunpack.c.l.b16 %v3223
        %v3533 = vunpack.c.h.b16 %v3223
        %v3534 = vunpack.c.l.b16 %v3224
        %v3535 = vunpack.c.h.b16 %v3224
        %v3536 = vunpack.c.l.b16 %v3225
        %v3537 = vunpack.c.h.b16 %v3225
        %v3538 = vunpack.c.l.b16 %v3226
        %v3539 = vunpack.c.h.b16 %v3226
        %v3540 = vunpack.c.l.b16 %v3227
        %v3541 = vunpack.c.h.b16 %v3227
        %v3542 = vunpack.c.l.b16 %v3228
        %v3543 = vunpack.c.h.b16 %v3228
        %v3544 = vunpack.c.l.b16 %v3229
        %v3545 = vunpack.c.h.b16 %v3229
        %v3546 = vunpack.c.l.b16 %v3230
        %v3547 = vunpack.c.h.b16 %v3230
        %v3548 = vunpack.c.l.b16 %v3231
        %v3549 = vunpack.c.h.b16 %v3231
        %v3550 = vunpack.c.l.b16 %v3232
        %v3551 = vunpack.c.h.b16 %v3232
        %v3552 = vunpack.c.l.b16 %v3233
        %v3553 = vunpack.c.h.b16 %v3233
        %v3554 = vunpack.c.l.b16 %v3234
        %v3555 = vunpack.c.h.b16 %v3234
        %v3556 = vunpack.c.l.b16 %v3235
        %v3557 = vunpack.c.h.b16 %v3235
        %v3558 = vunpack.c.l.b16 %v3236
        %v3559 = vunpack.c.h.b16 %v3236
        %v3560 = vunpack.c.l.b16 %v3237
        %v3561 = vunpack.c.h.b16 %v3237
        %v3562 = vunpack.c.l.b16 %v3238
        %v3563 = vunpack.c.h.b16 %v3238
        %v3564 = vunpack.c.l.b16 %v3239
        %v3565 = vunpack.c.h.b16 %v3239
        %v3566 = vunpack.c.l.b16 %v3240
        %v3567 = vunpack.c.h.b16 %v3240
        %v3568 = vunpack.c.l.b16 %v3241
        %v3569 = vunpack.c.h.b16 %v3241
        %v3570 = vunpack.c.l.b16 %v3242
        %v3571 = vunpack.c.h.b16 %v3242
        %v3572 = vunpack.c.l.b16 %v3243
        %v3573 = vunpack.c.h.b16 %v3243
        %v3574 = vunpack.c.l.b16 %v3244
        %v3575 = vunpack.c.h.b16 %v3244
        %v3576 = vunpack.c.l.b16 %v3245
        %v3577 = vunpack.c.h.b16 %v3245
        %v3578 = vunpack.c.l.b16 %v3246
        %v3579 = vunpack.c.h.b16 %v3246
        %v3580 = vunpack.c.l.b16 %v3247
        %v3581 = vunpack.c.h.b16 %v3247
        %v3582 = vunpack.c.l.b16 %v3248
        %v3583 = vunpack.c.h.b16 %v3248
        %v3584 = vunpack.c.l.b16 %v3249
        %v3585 = vunpack.c.h.b16 %v3249
        %v3586 = vunpack.c.l.b16 %v3250
        %v3587 = vunpack.c.h.b16 %v3250
        %v3588 = vunpack.c.l.b16 %v3251
        %v3589 = vunpack.c.h.b16 %v3251
        %v3590 = vunpack.c.l.b16 %v3252
        %v3591 = vunpack.c.h.b16 %v3252
        %v3592 = vunpack.c.l.b16 %v3253
        %v3593 = vunpack.c.h.b16 %v3253
        %v3594 = vunpack.c.l.b16 %v3254
        %v3595 = vunpack.c.h.b16 %v3254
        %v3596 = vunpack.c.l.b16 %v3255
        %v3597 = vunpack.c.h.b16 %v3255
        %v3598 = vunpack.c.l.b16 %v3256
        %v3599 = vunpack.c.h.b16 %v3256
        %v3600 = vunpack.c.l.b16 %v3257
        %v3601 = vunpack.c.h.b16 %v3257
        %v3602 = vunpack.c.l.b16 %v3258
        %v3603 = vunpack.c.h.b16 %v3258
        %v3604 = vunpack.c.l.b16 %v3259
        %v3605 = vunpack.c.h.b16 %v3259
        %v3606 = vunpack.c.l.b16 %v3260
        %v3607 = vunpack.c.h.b16 %v3260
        %v3608 = vunpack.c.l.b16 %v3261
        %v3609 = vunpack.c.h.b16 %v3261
        %v3610 = vunpack.c.l.b16 %v3262
        %v3611 = vunpack.c.h.b16 %v3262
        %v3612 = vunpack.c.l.b16 %v3263
        %v3613 = vunpack.c.h.b16 %v3263
        %v3614 = vunpack.c.l.b16 %v3264
        %v3615 = vunpack.c.h.b16 %v3264
        %v3616 = vunpack.c.l.b16 %v3265
        %v3617 = vunpack.c.h.b16 %v3265
        %v3618 = vunpack.c.l.b16 %v3266
        %v3619 = vunpack.c.h.b16 %v3266
        %v3620 = vunpack.c.l.b16 %v3267
        %v3621 = vunpack.c.h.b16 %v3267
        %v3622 = vunpack.c.l.b16 %v3268
        %v3623 = vunpack.c.h.b16 %v3268
        %v3624 = vunpack.c.l.b16 %v3269
        %v3625 = vunpack.c.h.b16 %v3269
        %v3626 = vunpack.c.l.b16 %v3270
        %v3627 = vunpack.c.h.b16 %v3270
        %v3628 = vunpack.c.l.b16 %v3271
        %v3629 = vunpack.c.h.b16 %v3271
        %v3630 = vunpack.c.l.b16 %v3272
        %v3631 = vunpack.c.h.b16 %v3272
        %v3632 = vunpack.c.l.b16 %v3273
        %v3633 = vunpack.c.h.b16 %v3273
        %v3634 = vunpack.c.l.b16 %v3274
        %v3635 = vunpack.c.h.b16 %v3274
        %v3636 = vunpack.c.l.b16 %v3275
        %v3637 = vunpack.c.h.b16 %v3275
        %v3638 = vunpack.c.l.b16 %v3276
        %v3639 = vunpack.c.h.b16 %v3276
        %v3640 = vunpack.c.l.b16 %v3277
        %v3641 = vunpack.c.h.b16 %v3277
        %v3642 = vunpack.c.l.b16 %v3278
        %v3643 = vunpack.c.h.b16 %v3278
        %v3644 = vunpack.c.l.b16 %v3279
        %v3645 = vunpack.c.h.b16 %v3279
        %v3646 = vunpack.c.l.b16 %v3280
        %v3647 = vunpack.c.h.b16 %v3280
        %v3648 = vunpack.c.l.b16 %v3281
        %v3649 = vunpack.c.h.b16 %v3281
        %v3650 = vunpack.c.l.b16 %v3282
        %v3651 = vunpack.c.h.b16 %v3282
        %v3652 = vunpack.c.l.b16 %v3283
        %v3653 = vunpack.c.h.b16 %v3283
        %v3654 = vunpack.c.l.b16 %v3284
        %v3655 = vunpack.c.h.b16 %v3284
        %v3656 = vunpack.c.l.b16 %v3285
        %v3657 = vunpack.c.h.b16 %v3285
        %v3658 = vunpack.c.l.b16 %v3286
        %v3659 = vunpack.c.h.b16 %v3286
        %v3660 = vunpack.c.l.b16 %v3287
        %v3661 = vunpack.c.h.b16 %v3287
        %v3662 = vunpack.c.l.b16 %v3288
        %v3663 = vunpack.c.h.b16 %v3288
        %v3664 = vunpack.c.l.b16 %v3289
        %v3665 = vunpack.c.h.b16 %v3289
        %v3666 = vunpack.c.l.b16 %v3290
        %v3667 = vunpack.c.h.b16 %v3290
        %v3668 = vunpack.c.l.b16 %v3291
        %v3669 = vunpack.c.h.b16 %v3291
        %v3670 = vunpack.c.l.b16 %v3292
        %v3671 = vunpack.c.h.b16 %v3292
        %v3672 = vunpack.c.l.b16 %v3293
        %v3673 = vunpack.c.h.b16 %v3293
        %v3674 = vunpack.c.l.b16 %v3294
        %v3675 = vunpack.c.h.b16 %v3294
        %v3676 = vunpack.c.l.b16 %v3295
        %v3677 = vunpack.c.h.b16 %v3295
        %v3678 = vunpack.c.l.b16 %v3296
        %v3679 = vunpack.c.h.b16 %v3296
        %v3680 = vunpack.c.l.b16 %v3297
        %v3681 = vunpack.c.h.b16 %v3297
        %v3682 = vunpack.c.l.b16 %v3298
        %v3683 = vunpack.c.h.b16 %v3298
        %v3684 = vunpack.c.l.b16 %v3299
        %v3685 = vunpack.c.h.b16 %v3299
        %v3686 = vunpack.c.l.b16 %v3300
        %v3687 = vunpack.c.h.b16 %v3300
        %v3688 = vunpack.c.l.b16 %v3301
        %v3689 = vunpack.c.h.b16 %v3301
        %v3690 = vunpack.c.l.b16 %v3302
        %v3691 = vunpack.c.h.b16 %v3302
        %v3692 = vunpack.c.l.b16 %v3303
        %v3693 = vunpack.c.h.b16 %v3303
        %v3694 = vunpack.c.l.b16 %v3304
        %v3695 = vunpack.c.h.b16 %v3304
        %v3696 = vunpack.c.l.b16 %v3305
        %v3697 = vunpack.c.h.b16 %v3305
        %v3698 = vunpack.c.l.b16 %v3306
        %v3699 = vunpack.c.h.b16 %v3306
        %v3700 = vunpack.c.l.b16 %v3307
        %v3701 = vunpack.c.h.b16 %v3307
        %v3702 = vunpack.c.l.b16 %v3308
        %v3703 = vunpack.c.h.b16 %v3308
        %v3704 = vunpack.c.l.b16 %v3309
        %v3705 = vunpack.c.h.b16 %v3309
        %v3706 = vunpack.c.l.b16 %v3310
        %v3707 = vunpack.c.h.b16 %v3310
        %v3708 = vunpack.c.l.b16 %v3311
        %v3709 = vunpack.c.h.b16 %v3311
        %v3710 = vunpack.c.l.b16 %v3312
        %v3711 = vunpack.c.h.b16 %v3312
        %v3712 = vunpack.c.l.b16 %v3313
        %v3713 = vunpack.c.h.b16 %v3313
        %v3714 = vunpack.c.l.b16 %v3314
        %v3715 = vunpack.c.h.b16 %v3314
        %v3716 = vunpack.c.l.b16 %v3315
        %v3717 = vunpack.c.h.b16 %v3315
        %v3718 = vunpack.c.l.b16 %v3316
        %v3719 = vunpack.c.h.b16 %v3316
        %v3720 = vunpack.c.l.b16 %v3317
        %v3721 = vunpack.c.h.b16 %v3317
        %v3722 = vunpack.c.l.b16 %v3318
        %v3723 = vunpack.c.h.b16 %v3318
        %v3724 = vunpack.c.l.b16 %v3319
        %v3725 = vunpack.c.h.b16 %v3319
        %v3726 = vpack.c.b16 %v3474, %v3470
        %v3727 = vpack.c.b16 %v3475, %v3471
        %v3728 = vpack.c.b16 %v3476, %v3472
        %v3729 = vpack.c.b16 %v3477, %v3473
        %v3730 = vpack.c.b16 %v3482, %v3478
        %v3731 = vpack.c.b16 %v3483, %v3479
        %v3732 = vpack.c.b16 %v3484, %v3480
        %v3733 = vpack.c.b16 %v3485, %v3481
        %v3734 = vpack.c.b16 %v3490, %v3486
        %v3735 = vpack.c.b16 %v3491, %v3487
        %v3736 = vpack.c.b16 %v3492, %v3488
        %v3737 = vpack.c.b16 %v3493, %v3489
        %v3738 = vpack.c.b16 %v3498, %v3494
        %v3739 = vpack.c.b16 %v3499, %v3495
        %v3740 = vpack.c.b16 %v3500, %v3496
        %v3741 = vpack.c.b16 %v3501, %v3497
        %v3742 = vpack.c.b16 %v3506, %v3502
        %v3743 = vpack.c.b16 %v3507, %v3503
        %v3744 = vpack.c.b16 %v3508, %v3504
        %v3745 = vpack.c.b16 %v3509, %v3505
        %v3746 = vpack.c.b16 %v3514, %v3510
        %v3747 = vpack.c.b16 %v3515, %v3511
        %v3748 = vpack.c.b16 %v3516, %v3512
        %v3749 = vpack.c.b16 %v3517, %v3513
        %v3750 = vpack.c.b16 %v3522, %v3518
        %v3751 = vpack.c.b16 %v3523, %v3519
        %v3752 = vpack.c.b16 %v3524, %v3520
        %v3753 = vpack.c.b16 %v3525, %v3521
        %v3754 = vpack.c.b16 %v3530, %v3526
        %v3755 = vpack.c.b16 %v3531, %v3527
        %v3756 = vpack.c.b16 %v3532, %v3528
        %v3757 = vpack.c.b16 %v3533, %v3529
        %v3758 = vpack.c.b16 %v3538, %v3534
        %v3759 = vpack.c.b16 %v3539, %v3535
        %v3760 = vpack.c.b16 %v3540, %v3536
        %v3761 = vpack.c.b16 %v3541, %v3537
        %v3762 = vpack.c.b16 %v3546, %v3542
        %v3763 = vpack.c.b16 %v3547, %v3543
        %v3764 = vpack.c.b16 %v3548, %v3544
        %v3765 = vpack.c.b16 %v3549, %v3545
        %v3766 = vpack.c.b16 %v3554, %v3550
        %v3767 = vpack.c.b16 %v3555, %v3551
        %v3768 = vpack.c.b16 %v3556, %v3552
        %v3769 = vpack.c.b16 %v3557, %v3553
        %v3770 = vpack.c.b16 %v3562, %v3558
        %v3771 = vpack.c.b16 %v3563, %v3559
        %v3772 = vpack.c.b16 %v3564, %v3560
        %v3773 = vpack.c.b16 %v3565, %v3561
        %v3774 = vpack.c.b16 %v3570, %v3566
        %v3775 = vpack.c.b16 %v3571, %v3567
        %v3776 = vpack.c.b16 %v3572, %v3568
        %v3777 = vpack.c.b16 %v3573, %v3569
        %v3778 = vpack.c.b16 %v3578, %v3574
        %v3779 = vpack.c.b16 %v3579, %v3575
        %v3780 = vpack.c.b16 %v3580, %v3576
        %v3781 = vpack.c.b16 %v3581, %v3577
        %v3782 = vpack.c.b16 %v3586, %v3582
        %v3783 = vpack.c.b16 %v3587, %v3583
        %v3784 = vpack.c.b16 %v3588, %v3584
        %v3785 = vpack.c.b16 %v3589, %v3585
        %v3786 = vpack.c.b16 %v3594, %v3590
        %v3787 = vpack.c.b16 %v3595, %v3591
        %v3788 = vpack.c.b16 %v3596, %v3592
        %v3789 = vpack.c.b16 %v3597, %v3593
        %v3790 = vpack.c.b16 %v3602, %v3598
        %v3791 = vpack.c.b16 %v3603, %v3599
        %v3792 = vpack.c.b16 %v3604, %v3600
        %v3793 = vpack.c.b16 %v3605, %v3601
        %v3794 = vpack.c.b16 %v3610, %v3606
        %v3795 = vpack.c.b16 %v3611, %v3607
        %v3796 = vpack.c.b16 %v3612, %v3608
        %v3797 = vpack.c.b16 %v3613, %v3609
        %v3798 = vpack.c.b16 %v3618, %v3614
        %v3799 = vpack.c.b16 %v3619, %v3615
        %v3800 = vpack.c.b16 %v3620, %v3616
        %v3801 = vpack.c.b16 %v3621, %v3617
        %v3802 = vpack.c.b16 %v3626, %v3622
        %v3803 = vpack.c.b16 %v3627, %v3623
        %v3804 = vpack.c.b16 %v3628, %v3624
        %v3805 = vpack.c.b16 %v3629, %v3625
        %v3806 = vpack.c.b16 %v3634, %v3630
        %v3807 = vpack.c.b16 %v3635, %v3631
        %v3808 = vpack.c.b16 %v3636, %v3632
        %v3809 = vpack.c.b16 %v3637, %v3633
        %v3810 = vpack.c.b16 %v3642, %v3638
        %v3811 = vpack.c.b16 %v3643, %v3639
        %v3812 = vpack.c.b16 %v3644, %v3640
        %v3813 = vpack.c.b16 %v3645, %v3641
        %v3814 = vpack.c.b16 %v3650, %v3646
        %v3815 = vpack.c.b16 %v3651, %v3647
        %v3816 = vpack.c.b16 %v3652, %v3648
        %v3817 = vpack.c.b16 %v3653, %v3649
        %v3818 = vpack.c.b16 %v3658, %v3654
        %v3819 = vpack.c.b16 %v3659, %v3655
        %v3820 = vpack.c.b16 %v3660, %v3656
        %v3821 = vpack.c.b16 %v3661, %v3657
        %v3822 = vpack.c.b16 %v3666, %v3662
        %v3823 = vpack.c.b16 %v3667, %v3663
        %v3824 = vpack.c.b16 %v3668, %v3664
        %v3825 = vpack.c.b16 %v3669, %v3665
        %v3826 = vpack.c.b16 %v3674, %v3670
        %v3827 = vpack.c.b16 %v3675, %v3671
        %v3828 = vpack.c.b16 %v3676, %v3672
        %v3829 = vpack.c.b16 %v3677, %v3673
        %v3830 = vpack.c.b16 %v3682, %v3678
        %v3831 = vpack.c.b16 %v3683, %v3679
        %v3832 = vpack.c.b16 %v3684, %v3680
        %v3833 = vpack.c.b16 %v3685, %v3681
        %v3834 = vpack.c.b16 %v3690, %v3686
        %v3835 = vpack.c.b16 %v3691, %v3687
        %v3836 = vpack.c.b16 %v3692, %v3688
        %v3837 = vpack.c.b16 %v3693, %v3689
        %v3838 = vpack.c.b16 %v3698, %v3694
        %v3839 = vpack.c.b16 %v3699, %v3695
        %v3840 = vpack.c.b16 %v3700, %v3696
        %v3841 = vpack.c.b16 %v3701, %v3697
        %v3842 = vpack.c.b16 %v3706, %v3702
        %v3843 = vpack.c.b16 %v3707, %v3703
        %v3844 = vpack.c.b16 %v3708, %v3704
        %v3845 = vpack.c.b16 %v3709, %v3705
        %v3846 = vpack.c.b16 %v3714, %v3710
        %v3847 = vpack.c.b16 %v3715, %v3711
        %v3848 = vpack.c.b16 %v3716, %v3712
        %v3849 = vpack.c.b16 %v3717, %v3713
        %v3850 = vpack.c.b16 %v3722, %v3718
        %v3851 = vpack.c.b16 %v3723, %v3719
        %v3852 = vpack.c.b16 %v3724, %v3720
        %v3853 = vpack.c.b16 %v3725, %v3721
        %3982 = vmatprep.subr.bf16.mxu0 %v3727
        %3983 = vmatpush1.bf16.msra.mxu0 %v3726
        %3984 = vmatprep.subr.bf16.mxu0 %v3731
        %3985 = vmatpush1.bf16.msra.mxu0 %v3730
        %3986 = vmatprep.subr.bf16.mxu0 %v3735
        %3987 = vmatpush1.bf16.msra.mxu0 %v3734
        %3988 = vmatprep.subr.bf16.mxu0 %v3739
        %3989 = vmatpush1.bf16.msra.mxu0 %v3738
        %3990 = vmatprep.subr.bf16.mxu0 %v3743
        %3991 = vmatpush1.bf16.msra.mxu0 %v3742
        %3992 = vmatprep.subr.bf16.mxu0 %v3747
        %3993 = vmatpush1.bf16.msra.mxu0 %v3746
        %3994 = vmatprep.subr.bf16.mxu0 %v3751
        %3995 = vmatpush1.bf16.msra.mxu0 %v3750
        %3996 = vmatprep.subr.bf16.mxu0 %v3755
        %3997 = vmatpush1.bf16.msra.mxu0 %v3754
        %3998 = vmatprep.subr.bf16.mxu0 %v3759
        %3999 = vmatpush1.bf16.msra.mxu0 %v3758
        %4000 = vmatprep.subr.bf16.mxu0 %v3763
        %4001 = vmatpush1.bf16.msra.mxu0 %v3762
        %4002 = vmatprep.subr.bf16.mxu0 %v3767
        %4003 = vmatpush1.bf16.msra.mxu0 %v3766
        %4004 = vmatprep.subr.bf16.mxu0 %v3771
        %4005 = vmatpush1.bf16.msra.mxu0 %v3770
        %4006 = vmatprep.subr.bf16.mxu0 %v3775
        %4007 = vmatpush1.bf16.msra.mxu0 %v3774
        %4008 = vmatprep.subr.bf16.mxu0 %v3779
        %4009 = vmatpush1.bf16.msra.mxu0 %v3778
        %4010 = vmatprep.subr.bf16.mxu0 %v3783
        %4011 = vmatpush1.bf16.msra.mxu0 %v3782
        %4012 = vmatprep.subr.bf16.mxu0 %v3787
        %4013 = vmatpush1.bf16.msra.mxu0 %v3786
        %4014 = vmatprep.mubr.bf16.mxu0 %v3177
        %4015 = vmatmul.mubr.bf16.gmra.mrb[0].mxu0 %v3176
        %v4016 = vpop.f32.mrb[0].mxu0
        %v4017 = vadd.f32 %v3325, %v4016
        %v4018 = vpop.f32.mrb[0].mxu0
        %v4019 = vadd.f32 %v3329, %v4018
        %v4020 = vpop.f32.mrb[0].mxu0
        %v4021 = vadd.f32 %v3325, %v4020
        %v4022 = vpop.f32.mrb[0].mxu0
        %v4023 = vadd.f32 %v3329, %v4022
        %4024 = vmatprep.mubr.bf16.mxu0 %v3181
        %4025 = vmatmul.mubr.bf16.gmra.mrb[0].mxu0 %v3180
        %v4026 = vpop.f32.mrb[0].mxu0
        %v4027 = vadd.f32 %v3325, %v4026
        %v4028 = vpop.f32.mrb[0].mxu0
        %v4029 = vadd.f32 %v3329, %v4028
        %v4030 = vpop.f32.mrb[0].mxu0
        %v4031 = vadd.f32 %v3325, %v4030
        %v4032 = vpop.f32.mrb[0].mxu0
        %v4033 = vadd.f32 %v3329, %v4032
        %4034 = vmatprep.mubr.bf16.mxu0 %v3185
        %4035 = vmatmul.mubr.bf16.gmra.mrb[0].mxu0 %v3184
        %v4036 = vpop.f32.mrb[0].mxu0
        %v4037 = vadd.f32 %v3325, %v4036
        %v4038 = vpop.f32.mrb[0].mxu0
        %v4039 = vadd.f32 %v3329, %v4038
        %v4040 = vpop.f32.mrb[0].mxu0
        %v4041 = vadd.f32 %v3325, %v4040
        %v4042 = vpop.f32.mrb[0].mxu0
        %v4043 = vadd.f32 %v3329, %v4042
        %4044 = vmatprep.mubr.bf16.mxu0 %v3189
        %4045 = vmatmul.mubr.bf16.gmra.mrb[0].mxu0 %v3188
        %v4046 = vpop.f32.mrb[0].mxu0
        %v4047 = vadd.f32 %v3325, %v4046
        %v4048 = vpop.f32.mrb[0].mxu0
        %v4049 = vadd.f32 %v3329, %v4048
        %v4050 = vpop.f32.mrb[0].mxu0
        %v4051 = vadd.f32 %v3325, %v4050
        %v4052 = vpop.f32.mrb[0].mxu0
        %v4053 = vadd.f32 %v3329, %v4052
        %4054 = vdwg.mxu0
        %4055 = vmatprep.subr.bf16.mxu0 %v3791
        %4056 = vmatpush1.bf16.msra.mxu0 %v3790
        %4057 = vmatprep.subr.bf16.mxu0 %v3795
        %4058 = vmatpush1.bf16.msra.mxu0 %v3794
        %4059 = vmatprep.subr.bf16.mxu0 %v3799
        %4060 = vmatpush1.bf16.msra.mxu0 %v3798
        %4061 = vmatprep.subr.bf16.mxu0 %v3803
        %4062 = vmatpush1.bf16.msra.mxu0 %v3802
        %4063 = vmatprep.subr.bf16.mxu0 %v3807
        %4064 = vmatpush1.bf16.msra.mxu0 %v3806
        %4065 = vmatprep.subr.bf16.mxu0 %v3811
        %4066 = vmatpush1.bf16.msra.mxu0 %v3810
        %4067 = vmatprep.subr.bf16.mxu0 %v3815
        %4068 = vmatpush1.bf16.msra.mxu0 %v3814
        %4069 = vmatprep.subr.bf16.mxu0 %v3819
        %4070 = vmatpush1.bf16.msra.mxu0 %v3818
        %4071 = vmatprep.subr.bf16.mxu0 %v3823
        %4072 = vmatpush1.bf16.msra.mxu0 %v3822
        %4073 = vmatprep.subr.bf16.mxu0 %v3827
        %4074 = vmatpush1.bf16.msra.mxu0 %v3826
        %4075 = vmatprep.subr.bf16.mxu0 %v3831
        %4076 = vmatpush1.bf16.msra.mxu0 %v3830
        %4077 = vmatprep.subr.bf16.mxu0 %v3835
        %4078 = vmatpush1.bf16.msra.mxu0 %v3834
        %4079 = vmatprep.subr.bf16.mxu0 %v3839
        %4080 = vmatpush1.bf16.msra.mxu0 %v3838
        %4081 = vmatprep.subr.bf16.mxu0 %v3843
        %4082 = vmatpush1.bf16.msra.mxu0 %v3842
        %4083 = vmatprep.subr.bf16.mxu0 %v3847
        %4084 = vmatpush1.bf16.msra.mxu0 %v3846
        %4085 = vmatprep.subr.bf16.mxu0 %v3851
        %4086 = vmatpush1.bf16.msra.mxu0 %v3850
        %4087 = vmatprep.mubr.bf16.mxu0 %v3179
        %4088 = vmatmul.mubr.bf16.gmra.mrb[0].mxu0 %v3178
        %v4089 = vpop.f32.mrb[0].mxu0
        %v4090 = vadd.f32 %v4017, %v4089
        %v4091 = vpop.f32.mrb[0].mxu0
        %v4092 = vadd.f32 %v4019, %v4091
        %v4093 = vpop.f32.mrb[0].mxu0
        %v4094 = vadd.f32 %v4021, %v4093
        %v4095 = vpop.f32.mrb[0].mxu0
        %v4096 = vadd.f32 %v4023, %v4095
        %4097 = vmatprep.mubr.bf16.mxu0 %v3183
        %4098 = vmatmul.mubr.bf16.gmra.mrb[0].mxu0 %v3182
        %v4099 = vpop.f32.mrb[0].mxu0
        %v4100 = vadd.f32 %v4027, %v4099
        %v4101 = vpop.f32.mrb[0].mxu0
        %v4102 = vadd.f32 %v4029, %v4101
        %v4103 = vpop.f32.mrb[0].mxu0
        %v4104 = vadd.f32 %v4031, %v4103
        %v4105 = vpop.f32.mrb[0].mxu0
        %v4106 = vadd.f32 %v4033, %v4105
        %4107 = vmatprep.mubr.bf16.mxu0 %v3187
        %4108 = vmatmul.mubr.bf16.gmra.mrb[0].mxu0 %v3186
        %v4109 = vpop.f32.mrb[0].mxu0
        %v4110 = vadd.f32 %v4037, %v4109
        %v4111 = vpop.f32.mrb[0].mxu0
        %v4112 = vadd.f32 %v4039, %v4111
        %v4113 = vpop.f32.mrb[0].mxu0
        %v4114 = vadd.f32 %v4041, %v4113
        %v4115 = vpop.f32.mrb[0].mxu0
        %v4116 = vadd.f32 %v4043, %v4115
        %4117 = vmatprep.mubr.bf16.mxu0 %v3191
        %4118 = vmatmul.mubr.bf16.gmra.mrb[0].mxu0 %v3190
        %v4119 = vpop.f32.mrb[0].mxu0
        %v4120 = vadd.f32 %v4047, %v4119
        %v4121 = vpop.f32.mrb[0].mxu0
        %v4122 = vadd.f32 %v4049, %v4121
        %v4123 = vpop.f32.mrb[0].mxu0
        %v4124 = vadd.f32 %v4051, %v4123
        %v4125 = vpop.f32.mrb[0].mxu0
        %v4126 = vadd.f32 %v4053, %v4125
        %4127 = vdwg.mxu0
        %4128 = vmatprep.subr.bf16.mxu0 %v3729
        %4129 = vmatpush1.bf16.msra.mxu0 %v3728
        %4130 = vmatprep.subr.bf16.mxu0 %v3733
        %4131 = vmatpush1.bf16.msra.mxu0 %v3732
        %4132 = vmatprep.subr.bf16.mxu0 %v3737
        %4133 = vmatpush1.bf16.msra.mxu0 %v3736
        %4134 = vmatprep.subr.bf16.mxu0 %v3741
        %4135 = vmatpush1.bf16.msra.mxu0 %v3740
        %4136 = vmatprep.subr.bf16.mxu0 %v3745
        %4137 = vmatpush1.bf16.msra.mxu0 %v3744
        %4138 = vmatprep.subr.bf16.mxu0 %v3749
        %4139 = vmatpush1.bf16.msra.mxu0 %v3748
        %4140 = vmatprep.subr.bf16.mxu0 %v3753
        %4141 = vmatpush1.bf16.msra.mxu0 %v3752
        %4142 = vmatprep.subr.bf16.mxu0 %v3757
        %4143 = vmatpush1.bf16.msra.mxu0 %v3756
        %4144 = vmatprep.subr.bf16.mxu0 %v3761
        %4145 = vmatpush1.bf16.msra.mxu0 %v3760
        %4146 = vmatprep.subr.bf16.mxu0 %v3765
        %4147 = vmatpush1.bf16.msra.mxu0 %v3764
        %4148 = vmatprep.subr.bf16.mxu0 %v3769
        %4149 = vmatpush1.bf16.msra.mxu0 %v3768
        %4150 = vmatprep.subr.bf16.mxu0 %v3773
        %4151 = vmatpush1.bf16.msra.mxu0 %v3772
        %4152 = vmatprep.subr.bf16.mxu0 %v3777
        %4153 = vmatpush1.bf16.msra.mxu0 %v3776
        %4154 = vmatprep.subr.bf16.mxu0 %v3781
        %4155 = vmatpush1.bf16.msra.mxu0 %v3780
        %4156 = vmatprep.subr.bf16.mxu0 %v3785
        %4157 = vmatpush1.bf16.msra.mxu0 %v3784
        %4158 = vmatprep.subr.bf16.mxu0 %v3789
        %4159 = vmatpush1.bf16.msra.mxu0 %v3788
        %4160 = vmatprep.mubr.bf16.mxu0 %v3177
        %4161 = vmatmul.mubr.bf16.gmra.mrb[0].mxu0 %v3176
        %v4162 = vpop.f32.mrb[0].mxu0
        %v4163 = vadd.f32 %v3333, %v4162
        %v4164 = vpop.f32.mrb[0].mxu0
        %v4165 = vadd.f32 %v3337, %v4164
        %v4166 = vpop.f32.mrb[0].mxu0
        %v4167 = vadd.f32 %v3333, %v4166
        %v4168 = vpop.f32.mrb[0].mxu0
        %v4169 = vadd.f32 %v3337, %v4168
        %4170 = vmatprep.mubr.bf16.mxu0 %v3181
        %4171 = vmatmul.mubr.bf16.gmra.mrb[0].mxu0 %v3180
        %v4172 = vpop.f32.mrb[0].mxu0
        %v4173 = vadd.f32 %v3333, %v4172
        %v4174 = vpop.f32.mrb[0].mxu0
        %v4175 = vadd.f32 %v3337, %v4174
        %v4176 = vpop.f32.mrb[0].mxu0
        %v4177 = vadd.f32 %v3333, %v4176
        %v4178 = vpop.f32.mrb[0].mxu0
        %v4179 = vadd.f32 %v3337, %v4178
        %4180 = vmatprep.mubr.bf16.mxu0 %v3185
        %4181 = vmatmul.mubr.bf16.gmra.mrb[0].mxu0 %v3184
        %v4182 = vpop.f32.mrb[0].mxu0
        %v4183 = vadd.f32 %v3333, %v4182
        %v4184 = vpop.f32.mrb[0].mxu0
        %v4185 = vadd.f32 %v3337, %v4184
        %v4186 = vpop.f32.mrb[0].mxu0
        %v4187 = vadd.f32 %v3333, %v4186
        %v4188 = vpop.f32.mrb[0].mxu0
        %v4189 = vadd.f32 %v3337, %v4188
        %4190 = vmatprep.mubr.bf16.mxu0 %v3189
        %4191 = vmatmul.mubr.bf16.gmra.mrb[0].mxu0 %v3188
        %v4192 = vpop.f32.mrb[0].mxu0
        %v4193 = vadd.f32 %v3333, %v4192
        %v4194 = vpop.f32.mrb[0].mxu0
        %v4195 = vadd.f32 %v3337, %v4194
        %v4196 = vpop.f32.mrb[0].mxu0
        %v4197 = vadd.f32 %v3333, %v4196
        %v4198 = vpop.f32.mrb[0].mxu0
        %v4199 = vadd.f32 %v3337, %v4198
        %4200 = vdwg.mxu0
        %4201 = vmatprep.subr.bf16.mxu0 %v3793
        %4202 = vmatpush1.bf16.msra.mxu0 %v3792
        %4203 = vmatprep.subr.bf16.mxu0 %v3797
        %4204 = vmatpush1.bf16.msra.mxu0 %v3796
        %4205 = vmatprep.subr.bf16.mxu0 %v3801
        %4206 = vmatpush1.bf16.msra.mxu0 %v3800
        %4207 = vmatprep.subr.bf16.mxu0 %v3805
        %4208 = vmatpush1.bf16.msra.mxu0 %v3804
        %4209 = vmatprep.subr.bf16.mxu0 %v3809
        %4210 = vmatpush1.bf16.msra.mxu0 %v3808
        %4211 = vmatprep.subr.bf16.mxu0 %v3813
        %4212 = vmatpush1.bf16.msra.mxu0 %v3812
        %4213 = vmatprep.subr.bf16.mxu0 %v3817
        %4214 = vmatpush1.bf16.msra.mxu0 %v3816
        %4215 = vmatprep.subr.bf16.mxu0 %v3821
        %4216 = vmatpush1.bf16.msra.mxu0 %v3820
        %4217 = vmatprep.subr.bf16.mxu0 %v3825
        %4218 = vmatpush1.bf16.msra.mxu0 %v3824
        %4219 = vmatprep.subr.bf16.mxu0 %v3829
        %4220 = vmatpush1.bf16.msra.mxu0 %v3828
        %4221 = vmatprep.subr.bf16.mxu0 %v3833
        %4222 = vmatpush1.bf16.msra.mxu0 %v3832
        %4223 = vmatprep.subr.bf16.mxu0 %v3837
        %4224 = vmatpush1.bf16.msra.mxu0 %v3836
        %4225 = vmatprep.subr.bf16.mxu0 %v3841
        %4226 = vmatpush1.bf16.msra.mxu0 %v3840
        %4227 = vmatprep.subr.bf16.mxu0 %v3845
        %4228 = vmatpush1.bf16.msra.mxu0 %v3844
        %4229 = vmatprep.subr.bf16.mxu0 %v3849
        %4230 = vmatpush1.bf16.msra.mxu0 %v3848
        %4231 = vmatprep.subr.bf16.mxu0 %v3853
        %4232 = vmatpush1.bf16.msra.mxu0 %v3852
        %4233 = vmatprep.mubr.bf16.mxu0 %v3179
        %4234 = vmatmul.mubr.bf16.gmra.mrb[0].mxu0 %v3178
        %v4235 = vpop.f32.mrb[0].mxu0
        %v4236 = vadd.f32 %v4163, %v4235
        %v4237 = vpop.f32.mrb[0].mxu0
        %v4238 = vadd.f32 %v4165, %v4237
        %v4239 = vpop.f32.mrb[0].mxu0
        %v4240 = vadd.f32 %v4167, %v4239
        %v4241 = vpop.f32.mrb[0].mxu0
        %v4242 = vadd.f32 %v4169, %v4241
        %4243 = vmatprep.mubr.bf16.mxu0 %v3183
        %4244 = vmatmul.mubr.bf16.gmra.mrb[0].mxu0 %v3182
        %v4245 = vpop.f32.mrb[0].mxu0
        %v4246 = vadd.f32 %v4173, %v4245
        %v4247 = vpop.f32.mrb[0].mxu0
        %v4248 = vadd.f32 %v4175, %v4247
        %v4249 = vpop.f32.mrb[0].mxu0
        %v4250 = vadd.f32 %v4177, %v4249
        %v4251 = vpop.f32.mrb[0].mxu0
        %v4252 = vadd.f32 %v4179, %v4251
        %4253 = vmatprep.mubr.bf16.mxu0 %v3187
        %4254 = vmatmul.mubr.bf16.gmra.mrb[0].mxu0 %v3186
        %v4255 = vpop.f32.mrb[0].mxu0
        %v4256 = vadd.f32 %v4183, %v4255
        %v4257 = vpop.f32.mrb[0].mxu0
        %v4258 = vadd.f32 %v4185, %v4257
        %v4259 = vpop.f32.mrb[0].mxu0
        %v4260 = vadd.f32 %v4187, %v4259
        %v4261 = vpop.f32.mrb[0].mxu0
        %v4262 = vadd.f32 %v4189, %v4261
        %4263 = vmatprep.mubr.bf16.mxu0 %v3191
        %4264 = vmatmul.mubr.bf16.gmra.mrb[0].mxu0 %v3190
        %v4265 = vpop.f32.mrb[0].mxu0
        %v4266 = vadd.f32 %v4193, %v4265
        %v4267 = vpop.f32.mrb[0].mxu0
        %v4268 = vadd.f32 %v4195, %v4267
        %v4269 = vpop.f32.mrb[0].mxu0
        %v4270 = vadd.f32 %v4197, %v4269
        %v4271 = vpop.f32.mrb[0].mxu0
        %v4272 = vadd.f32 %v4199, %v4271
        %4273 = vdwg.mxu0
        %v4274 = vadd.f32 %v4090, %v3033
        %v4275 = vadd.f32 %v4092, %v3035
        %v4276 = vadd.f32 %v4236, %v3106
        %v4277 = vadd.f32 %v4238, %v3108
        %v4278 = vadd.f32 %v4094, %v3037
        %v4279 = vadd.f32 %v4096, %v3039
        %v4280 = vadd.f32 %v4240, %v3110
        %v4281 = vadd.f32 %v4242, %v3112
        %v4282 = vadd.f32 %v4100, %v3043
        %v4283 = vadd.f32 %v4102, %v3045
        %v4284 = vadd.f32 %v4246, %v3116
        %v4285 = vadd.f32 %v4248, %v3118
        %v4286 = vadd.f32 %v4104, %v3047
        %v4287 = vadd.f32 %v4106, %v3049
        %v4288 = vadd.f32 %v4250, %v3120
        %v4289 = vadd.f32 %v4252, %v3122
        %v4290 = vadd.f32 %v4110, %v3053
        %v4291 = vadd.f32 %v4112, %v3055
        %v4292 = vadd.f32 %v4256, %v3126
        %v4293 = vadd.f32 %v4258, %v3128
        %v4294 = vadd.f32 %v4114, %v3057
        %v4295 = vadd.f32 %v4116, %v3059
        %v4296 = vadd.f32 %v4260, %v3130
        %v4297 = vadd.f32 %v4262, %v3132
        %v4298 = vadd.f32 %v4120, %v3063
        %v4299 = vadd.f32 %v4122, %v3065
        %v4300 = vadd.f32 %v4266, %v3136
        %v4301 = vadd.f32 %v4268, %v3138
        %v4302 = vadd.f32 %v4124, %v3067
        %v4303 = vadd.f32 %v4126, %v3069
        %v4304 = vadd.f32 %v4270, %v3140
        %v4305 = vadd.f32 %v4272, %v3142
        %v4306 = vmax.f32 %v4274, 0.0
        %v4307 = vmax.f32 %v4275, 0.0
        %v4308 = vmax.f32 %v4276, 0.0
        %v4309 = vmax.f32 %v4277, 0.0
        %v4310 = vmax.f32 %v4278, 0.0
        %v4311 = vmax.f32 %v4279, 0.0
        %v4312 = vmax.f32 %v4280, 0.0
        %v4313 = vmax.f32 %v4281, 0.0
        %v4314 = vmax.f32 %v4282, 0.0
        %v4315 = vmax.f32 %v4283, 0.0
        %v4316 = vmax.f32 %v4284, 0.0
        %v4317 = vmax.f32 %v4285, 0.0
        %v4318 = vmax.f32 %v4286, 0.0
        %v4319 = vmax.f32 %v4287, 0.0
        %v4320 = vmax.f32 %v4288, 0.0
        %v4321 = vmax.f32 %v4289, 0.0
        %v4322 = vmax.f32 %v4290, 0.0
        %v4323 = vmax.f32 %v4291, 0.0
        %v4324 = vmax.f32 %v4292, 0.0
        %v4325 = vmax.f32 %v4293, 0.0
        %v4326 = vmax.f32 %v4294, 0.0
        %v4327 = vmax.f32 %v4295, 0.0
        %v4328 = vmax.f32 %v4296, 0.0
        %v4329 = vmax.f32 %v4297, 0.0
        %v4330 = vmax.f32 %v4298, 0.0
        %v4331 = vmax.f32 %v4299, 0.0
        %v4332 = vmax.f32 %v4300, 0.0
        %v4333 = vmax.f32 %v4301, 0.0
        %v4334 = vmax.f32 %v4302, 0.0
        %v4335 = vmax.f32 %v4303, 0.0
        %v4336 = vmax.f32 %v4304, 0.0
        %v4337 = vmax.f32 %v4305, 0.0
        %v4338 = vpack.c.bf16 %v4310, %v4306
        %v4339 = vpack.c.bf16 %v4311, %v4307
        %v4340 = vpack.c.bf16 %v4312, %v4308
        %v4341 = vpack.c.bf16 %v4313, %v4309
        %v4342 = vpack.c.bf16 %v4318, %v4314
        %v4343 = vpack.c.bf16 %v4319, %v4315
        %v4344 = vpack.c.bf16 %v4320, %v4316
        %v4345 = vpack.c.bf16 %v4321, %v4317
        %v4346 = vpack.c.bf16 %v4326, %v4322
        %v4347 = vpack.c.bf16 %v4327, %v4323
        %v4348 = vpack.c.bf16 %v4328, %v4324
        %v4349 = vpack.c.bf16 %v4329, %v4325
        %v4350 = vpack.c.bf16 %v4334, %v4330
        %v4351 = vpack.c.bf16 %v4335, %v4331
        %v4352 = vpack.c.bf16 %v4336, %v4332
        %v4353 = vpack.c.bf16 %v4337, %v4333
        %v4354 = vld [vmem:[#allocation17] sm:$0xf]
        %v4355 = vld [vmem:[#allocation17 + $0x4] sm:$0xf]
        %v4356 = vld [vmem:[#allocation17 + $0x8] sm:$0xf]
        %v4357 = vld [vmem:[#allocation17 + $0xc] sm:$0xf]
        %v4358 = vld [vmem:[#allocation17 + $0x10] sm:$0xf]
        %v4359 = vld [vmem:[#allocation17 + $0x14] sm:$0xf]
        %v4360 = vld [vmem:[#allocation17 + $0x18] sm:$0xf]
        %v4361 = vld [vmem:[#allocation17 + $0x1c] sm:$0xf]
        %v4362 = vld [vmem:[#allocation17 + $0x20] sm:$0xf]
        %v4363 = vld [vmem:[#allocation17 + $0x24] sm:$0xf]
        %v4364 = vld [vmem:[#allocation17 + $0x28] sm:$0xf]
        %v4365 = vld [vmem:[#allocation17 + $0x2c] sm:$0xf]
        %v4366 = vld [vmem:[#allocation17 + $0x30] sm:$0xf]
        %v4367 = vld [vmem:[#allocation17 + $0x34] sm:$0xf]
        %v4368 = vld [vmem:[#allocation17 + $0x38] sm:$0xf]
        %v4369 = vld [vmem:[#allocation17 + $0x3c] sm:$0xf]
        %v4370 = vld [vmem:[#allocation17 + $0x40] sm:$0xf]
        %v4371 = vld [vmem:[#allocation17 + $0x44] sm:$0xf]
        %v4372 = vld [vmem:[#allocation17 + $0x48] sm:$0xf]
        %v4373 = vld [vmem:[#allocation17 + $0x4c] sm:$0xf]
        %v4374 = vld [vmem:[#allocation17 + $0x50] sm:$0xf]
        %v4375 = vld [vmem:[#allocation17 + $0x54] sm:$0xf]
        %v4376 = vld [vmem:[#allocation17 + $0x58] sm:$0xf]
        %v4377 = vld [vmem:[#allocation17 + $0x5c] sm:$0xf]
        %v4378 = vld [vmem:[#allocation17 + $0x60] sm:$0xf]
        %v4379 = vld [vmem:[#allocation17 + $0x64] sm:$0xf]
        %v4380 = vld [vmem:[#allocation17 + $0x68] sm:$0xf]
        %v4381 = vld [vmem:[#allocation17 + $0x6c] sm:$0xf]
        %v4382 = vld [vmem:[#allocation17 + $0x70] sm:$0xf]
        %v4383 = vld [vmem:[#allocation17 + $0x74] sm:$0xf]
        %v4384 = vld [vmem:[#allocation17 + $0x78] sm:$0xf]
        %v4385 = vld [vmem:[#allocation17 + $0x7c] sm:$0xf]
        %v4386 = vld [vmem:[#allocation17 + $0x80] sm:$0xf]
        %v4387 = vld [vmem:[#allocation17 + $0x84] sm:$0xf]
        %v4388 = vld [vmem:[#allocation17 + $0x88] sm:$0xf]
        %v4389 = vld [vmem:[#allocation17 + $0x8c] sm:$0xf]
        %v4390 = vld [vmem:[#allocation17 + $0x90] sm:$0xf]
        %v4391 = vld [vmem:[#allocation17 + $0x94] sm:$0xf]
        %v4392 = vld [vmem:[#allocation17 + $0x98] sm:$0xf]
        %v4393 = vld [vmem:[#allocation17 + $0x9c] sm:$0xf]
        %v4394 = vld [vmem:[#allocation17 + $0xa0] sm:$0xf]
        %v4395 = vld [vmem:[#allocation17 + $0xa4] sm:$0xf]
        %v4396 = vld [vmem:[#allocation17 + $0xa8] sm:$0xf]
        %v4397 = vld [vmem:[#allocation17 + $0xac] sm:$0xf]
        %v4398 = vld [vmem:[#allocation17 + $0xb0] sm:$0xf]
        %v4399 = vld [vmem:[#allocation17 + $0xb4] sm:$0xf]
        %v4400 = vld [vmem:[#allocation17 + $0xb8] sm:$0xf]
        %v4401 = vld [vmem:[#allocation17 + $0xbc] sm:$0xf]
        %v4402 = vld [vmem:[#allocation17 + $0xc0] sm:$0xf]
        %v4403 = vld [vmem:[#allocation17 + $0xc4] sm:$0xf]
        %v4404 = vld [vmem:[#allocation17 + $0xc8] sm:$0xf]
        %v4405 = vld [vmem:[#allocation17 + $0xcc] sm:$0xf]
        %v4406 = vld [vmem:[#allocation17 + $0xd0] sm:$0xf]
        %v4407 = vld [vmem:[#allocation17 + $0xd4] sm:$0xf]
        %v4408 = vld [vmem:[#allocation17 + $0xd8] sm:$0xf]
        %v4409 = vld [vmem:[#allocation17 + $0xdc] sm:$0xf]
        %v4410 = vld [vmem:[#allocation17 + $0xe0] sm:$0xf]
        %v4411 = vld [vmem:[#allocation17 + $0xe4] sm:$0xf]
        %v4412 = vld [vmem:[#allocation17 + $0xe8] sm:$0xf]
        %v4413 = vld [vmem:[#allocation17 + $0xec] sm:$0xf]
        %v4414 = vld [vmem:[#allocation17 + $0xf0] sm:$0xf]
        %v4415 = vld [vmem:[#allocation17 + $0xf4] sm:$0xf]
        %v4416 = vld [vmem:[#allocation17 + $0xf8] sm:$0xf]
        %v4417 = vld [vmem:[#allocation17 + $0xfc] sm:$0xf]
        %v4418 = vld [vmem:[%s15] sm:$0x1]
        %v4420 = vlaneseq
        %v4421 = vshrl.u32 %v4420, 7
        %v4422 = vsub.s32 0, %v4421
        %v4423 = vrot.slane %v4418, %v4422
        %v4489 = vunpack.c.l.b16 %v4354
        %v4490 = vunpack.c.l.b16 %v4355
        %v4491 = vunpack.c.l.b16 %v4356
        %v4492 = vunpack.c.l.b16 %v4357
        %v4493 = vunpack.c.l.b16 %v4358
        %v4494 = vunpack.c.l.b16 %v4359
        %v4495 = vunpack.c.l.b16 %v4360
        %v4496 = vunpack.c.l.b16 %v4361
        %v4497 = vunpack.c.l.b16 %v4362
        %v4498 = vunpack.c.l.b16 %v4363
        %v4499 = vunpack.c.l.b16 %v4364
        %v4500 = vunpack.c.l.b16 %v4365
        %v4501 = vunpack.c.l.b16 %v4366
        %v4502 = vunpack.c.l.b16 %v4367
        %v4503 = vunpack.c.l.b16 %v4368
        %v4504 = vunpack.c.l.b16 %v4369
        %v4505 = vunpack.c.l.b16 %v4370
        %v4506 = vunpack.c.l.b16 %v4371
        %v4507 = vunpack.c.l.b16 %v4372
        %v4508 = vunpack.c.l.b16 %v4373
        %v4509 = vunpack.c.l.b16 %v4374
        %v4510 = vunpack.c.l.b16 %v4375
        %v4511 = vunpack.c.l.b16 %v4376
        %v4512 = vunpack.c.l.b16 %v4377
        %v4513 = vunpack.c.l.b16 %v4378
        %v4514 = vunpack.c.l.b16 %v4379
        %v4515 = vunpack.c.l.b16 %v4380
        %v4516 = vunpack.c.l.b16 %v4381
        %v4517 = vunpack.c.l.b16 %v4382
        %v4518 = vunpack.c.l.b16 %v4383
        %v4519 = vunpack.c.l.b16 %v4384
        %v4520 = vunpack.c.l.b16 %v4385
        %v4521 = vunpack.c.l.b16 %v4386
        %v4522 = vunpack.c.l.b16 %v4387
        %v4523 = vunpack.c.l.b16 %v4388
        %v4524 = vunpack.c.l.b16 %v4389
        %v4525 = vunpack.c.l.b16 %v4390
        %v4526 = vunpack.c.l.b16 %v4391
        %v4527 = vunpack.c.l.b16 %v4392
        %v4528 = vunpack.c.l.b16 %v4393
        %v4529 = vunpack.c.l.b16 %v4394
        %v4530 = vunpack.c.l.b16 %v4395
        %v4531 = vunpack.c.l.b16 %v4396
        %v4532 = vunpack.c.l.b16 %v4397
        %v4533 = vunpack.c.l.b16 %v4398
        %v4534 = vunpack.c.l.b16 %v4399
        %v4535 = vunpack.c.l.b16 %v4400
        %v4536 = vunpack.c.l.b16 %v4401
        %v4537 = vunpack.c.l.b16 %v4402
        %v4538 = vunpack.c.l.b16 %v4403
        %v4539 = vunpack.c.l.b16 %v4404
        %v4540 = vunpack.c.l.b16 %v4405
        %v4541 = vunpack.c.l.b16 %v4406
        %v4542 = vunpack.c.l.b16 %v4407
        %v4543 = vunpack.c.l.b16 %v4408
        %v4544 = vunpack.c.l.b16 %v4409
        %v4545 = vunpack.c.l.b16 %v4410
        %v4546 = vunpack.c.l.b16 %v4411
        %v4547 = vunpack.c.l.b16 %v4412
        %v4548 = vunpack.c.l.b16 %v4413
        %v4549 = vunpack.c.l.b16 %v4414
        %v4550 = vunpack.c.l.b16 %v4415
        %v4551 = vunpack.c.l.b16 %v4416
        %v4552 = vunpack.c.l.b16 %v4417
        %v4553 = vpack.c.b16 %v4490, %v4489
        %v4554 = vpack.c.b16 %v4492, %v4491
        %v4555 = vpack.c.b16 %v4494, %v4493
        %v4556 = vpack.c.b16 %v4496, %v4495
        %v4557 = vpack.c.b16 %v4498, %v4497
        %v4558 = vpack.c.b16 %v4500, %v4499
        %v4559 = vpack.c.b16 %v4502, %v4501
        %v4560 = vpack.c.b16 %v4504, %v4503
        %v4561 = vpack.c.b16 %v4506, %v4505
        %v4562 = vpack.c.b16 %v4508, %v4507
        %v4563 = vpack.c.b16 %v4510, %v4509
        %v4564 = vpack.c.b16 %v4512, %v4511
        %v4565 = vpack.c.b16 %v4514, %v4513
        %v4566 = vpack.c.b16 %v4516, %v4515
        %v4567 = vpack.c.b16 %v4518, %v4517
        %v4568 = vpack.c.b16 %v4520, %v4519
        %v4569 = vpack.c.b16 %v4522, %v4521
        %v4570 = vpack.c.b16 %v4524, %v4523
        %v4571 = vpack.c.b16 %v4526, %v4525
        %v4572 = vpack.c.b16 %v4528, %v4527
        %v4573 = vpack.c.b16 %v4530, %v4529
        %v4574 = vpack.c.b16 %v4532, %v4531
        %v4575 = vpack.c.b16 %v4534, %v4533
        %v4576 = vpack.c.b16 %v4536, %v4535
        %v4577 = vpack.c.b16 %v4538, %v4537
        %v4578 = vpack.c.b16 %v4540, %v4539
        %v4579 = vpack.c.b16 %v4542, %v4541
        %v4580 = vpack.c.b16 %v4544, %v4543
        %v4581 = vpack.c.b16 %v4546, %v4545
        %v4582 = vpack.c.b16 %v4548, %v4547
        %v4583 = vpack.c.b16 %v4550, %v4549
        %v4584 = vpack.c.b16 %v4552, %v4551
        %4617 = vmatprep.subr.bf16.mxu0 0
        %4618 = vmatpush1.bf16.msra.mxu0 %v4553
        %4619 = vmatprep.subr.bf16.mxu0 0
        %4620 = vmatpush1.bf16.msra.mxu0 %v4554
        %4621 = vmatprep.subr.bf16.mxu0 0
        %4622 = vmatpush1.bf16.msra.mxu0 %v4555
        %4623 = vmatprep.subr.bf16.mxu0 0
        %4624 = vmatpush1.bf16.msra.mxu0 %v4556
        %4625 = vmatprep.subr.bf16.mxu0 0
        %4626 = vmatpush1.bf16.msra.mxu0 %v4557
        %4627 = vmatprep.subr.bf16.mxu0 0
        %4628 = vmatpush1.bf16.msra.mxu0 %v4558
        %4629 = vmatprep.subr.bf16.mxu0 0
        %4630 = vmatpush1.bf16.msra.mxu0 %v4559
        %4631 = vmatprep.subr.bf16.mxu0 0
        %4632 = vmatpush1.bf16.msra.mxu0 %v4560
        %4633 = vmatprep.subr.bf16.mxu0 0
        %4634 = vmatpush1.bf16.msra.mxu0 %v4561
        %4635 = vmatprep.subr.bf16.mxu0 0
        %4636 = vmatpush1.bf16.msra.mxu0 %v4562
        %4637 = vmatprep.subr.bf16.mxu0 0
        %4638 = vmatpush1.bf16.msra.mxu0 %v4563
        %4639 = vmatprep.subr.bf16.mxu0 0
        %4640 = vmatpush1.bf16.msra.mxu0 %v4564
        %4641 = vmatprep.subr.bf16.mxu0 0
        %4642 = vmatpush1.bf16.msra.mxu0 %v4565
        %4643 = vmatprep.subr.bf16.mxu0 0
        %4644 = vmatpush1.bf16.msra.mxu0 %v4566
        %4645 = vmatprep.subr.bf16.mxu0 0
        %4646 = vmatpush1.bf16.msra.mxu0 %v4567
        %4647 = vmatprep.subr.bf16.mxu0 0
        %4648 = vmatpush1.bf16.msra.mxu0 %v4568
        %4649 = vmatprep.mubr.bf16.mxu0 %v4339
        %4650 = vmatmul.mubr.bf16.gmra.mrb[0].mxu0 %v4338
        %v4651 = vpop.f32.mrb[0].mxu0
        %v4652 = vadd.f32 %v4423, %v4651
        %v4653 = vpop.f32.mrb[0].mxu0
        %v4654 = vpop.f32.mrb[0].mxu0
        %v4655 = vadd.f32 %v4423, %v4654
        %v4656 = vpop.f32.mrb[0].mxu0
        %4657 = vmatprep.mubr.bf16.mxu0 %v4343
        %4658 = vmatmul.mubr.bf16.gmra.mrb[0].mxu0 %v4342
        %v4659 = vpop.f32.mrb[0].mxu0
        %v4660 = vadd.f32 %v4423, %v4659
        %v4661 = vpop.f32.mrb[0].mxu0
        %v4662 = vpop.f32.mrb[0].mxu0
        %v4663 = vadd.f32 %v4423, %v4662
        %v4664 = vpop.f32.mrb[0].mxu0
        %4665 = vmatprep.mubr.bf16.mxu0 %v4347
        %4666 = vmatmul.mubr.bf16.gmra.mrb[0].mxu0 %v4346
        %v4667 = vpop.f32.mrb[0].mxu0
        %v4668 = vadd.f32 %v4423, %v4667
        %v4669 = vpop.f32.mrb[0].mxu0
        %v4670 = vpop.f32.mrb[0].mxu0
        %v4671 = vadd.f32 %v4423, %v4670
        %v4672 = vpop.f32.mrb[0].mxu0
        %4673 = vmatprep.mubr.bf16.mxu0 %v4351
        %4674 = vmatmul.mubr.bf16.gmra.mrb[0].mxu0 %v4350
        %v4675 = vpop.f32.mrb[0].mxu0
        %v4676 = vadd.f32 %v4423, %v4675
        %v4677 = vpop.f32.mrb[0].mxu0
        %v4678 = vpop.f32.mrb[0].mxu0
        %v4679 = vadd.f32 %v4423, %v4678
        %v4680 = vpop.f32.mrb[0].mxu0
        %4681 = vdwg.mxu0
        %4682 = vmatprep.subr.bf16.mxu0 0
        %4683 = vmatpush1.bf16.msra.mxu0 %v4569
        %4684 = vmatprep.subr.bf16.mxu0 0
        %4685 = vmatpush1.bf16.msra.mxu0 %v4570
        %4686 = vmatprep.subr.bf16.mxu0 0
        %4687 = vmatpush1.bf16.msra.mxu0 %v4571
        %4688 = vmatprep.subr.bf16.mxu0 0
        %4689 = vmatpush1.bf16.msra.mxu0 %v4572
        %4690 = vmatprep.subr.bf16.mxu0 0
        %4691 = vmatpush1.bf16.msra.mxu0 %v4573
        %4692 = vmatprep.subr.bf16.mxu0 0
        %4693 = vmatpush1.bf16.msra.mxu0 %v4574
        %4694 = vmatprep.subr.bf16.mxu0 0
        %4695 = vmatpush1.bf16.msra.mxu0 %v4575
        %4696 = vmatprep.subr.bf16.mxu0 0
        %4697 = vmatpush1.bf16.msra.mxu0 %v4576
        %4698 = vmatprep.subr.bf16.mxu0 0
        %4699 = vmatpush1.bf16.msra.mxu0 %v4577
        %4700 = vmatprep.subr.bf16.mxu0 0
        %4701 = vmatpush1.bf16.msra.mxu0 %v4578
        %4702 = vmatprep.subr.bf16.mxu0 0
        %4703 = vmatpush1.bf16.msra.mxu0 %v4579
        %4704 = vmatprep.subr.bf16.mxu0 0
        %4705 = vmatpush1.bf16.msra.mxu0 %v4580
        %4706 = vmatprep.subr.bf16.mxu0 0
        %4707 = vmatpush1.bf16.msra.mxu0 %v4581
        %4708 = vmatprep.subr.bf16.mxu0 0
        %4709 = vmatpush1.bf16.msra.mxu0 %v4582
        %4710 = vmatprep.subr.bf16.mxu0 0
        %4711 = vmatpush1.bf16.msra.mxu0 %v4583
        %4712 = vmatprep.subr.bf16.mxu0 0
        %4713 = vmatpush1.bf16.msra.mxu0 %v4584
        %4714 = vmatprep.mubr.bf16.mxu0 %v4341
        %4715 = vmatmul.mubr.bf16.gmra.mrb[0].mxu0 %v4340
        %v4716 = vpop.f32.mrb[0].mxu0
        %v4717 = vadd.f32 %v4652, %v4716
        %v4718 = vpop.f32.mrb[0].mxu0
        %v4719 = vpop.f32.mrb[0].mxu0
        %v4720 = vadd.f32 %v4655, %v4719
        %v4721 = vpop.f32.mrb[0].mxu0
        %4722 = vmatprep.mubr.bf16.mxu0 %v4345
        %4723 = vmatmul.mubr.bf16.gmra.mrb[0].mxu0 %v4344
        %v4724 = vpop.f32.mrb[0].mxu0
        %v4725 = vadd.f32 %v4660, %v4724
        %v4726 = vpop.f32.mrb[0].mxu0
        %v4727 = vpop.f32.mrb[0].mxu0
        %v4728 = vadd.f32 %v4663, %v4727
        %v4729 = vpop.f32.mrb[0].mxu0
        %4730 = vmatprep.mubr.bf16.mxu0 %v4349
        %4731 = vmatmul.mubr.bf16.gmra.mrb[0].mxu0 %v4348
        %v4732 = vpop.f32.mrb[0].mxu0
        %v4733 = vadd.f32 %v4668, %v4732
        %v4734 = vpop.f32.mrb[0].mxu0
        %v4735 = vpop.f32.mrb[0].mxu0
        %v4736 = vadd.f32 %v4671, %v4735
        %v4737 = vpop.f32.mrb[0].mxu0
        %4738 = vmatprep.mubr.bf16.mxu0 %v4353
        %4739 = vmatmul.mubr.bf16.gmra.mrb[0].mxu0 %v4352
        %v4740 = vpop.f32.mrb[0].mxu0
        %v4741 = vadd.f32 %v4676, %v4740
        %v4742 = vpop.f32.mrb[0].mxu0
        %v4743 = vpop.f32.mrb[0].mxu0
        %v4744 = vadd.f32 %v4679, %v4743
        %v4745 = vpop.f32.mrb[0].mxu0
        %4746 = vdwg.mxu0
        %4747 = vst [vmem:[%s724] sm:$0xff] %v4717
        %4748 = vst [vmem:[%s724 + $0x8] sm:$0xff] %v4720
        %4749 = vst [vmem:[%s724 + $0x10] sm:$0xff] %v4725
        %4750 = vst [vmem:[%s724 + $0x18] sm:$0xff] %v4728
        %4751 = vst [vmem:[%s724 + $0x20] sm:$0xff] %v4733
        %4752 = vst [vmem:[%s724 + $0x28] sm:$0xff] %v4736
        %4753 = vst [vmem:[%s724 + $0x30] sm:$0xff] %v4741
        %4754 = vst [vmem:[%s724 + $0x38] sm:$0xff] %v4744
        %v4755 = vunpack.c.l.bf16 %v741
        %v4756 = vunpack.c.l.bf16 %v742
        %v4757 = vpack.c.bf16 %v4756, %v4755
        %v4758 = vpack.c.bf16 %v1407, %v1406
        %s4759 = scalar_lea.vmem [#allocation11], 256
        %v4760 = vld [vmem:[%s4759] sm:$0xff]
        %v4761 = vld [vmem:[%s4759 + $0x8] sm:$0xff]
        %v4762 = vld [vmem:[%s4759 + $0x10] sm:$0xff]
        %v4763 = vld [vmem:[%s4759 + $0x18] sm:$0xff]
        %v4764 = vld [vmem:[%s4759 + $0x20] sm:$0xff]
        %v4765 = vld [vmem:[%s4759 + $0x28] sm:$0xff]
        %v4766 = vld [vmem:[%s4759 + $0x30] sm:$0xff]
        %v4767 = vld [vmem:[%s4759 + $0x38] sm:$0xff]
        %v4768 = vld [vmem:[%s4759 + $0x40] sm:$0xff]
        %v4769 = vld [vmem:[%s4759 + $0x48] sm:$0xff]
        %v4770 = vld [vmem:[%s4759 + $0x50] sm:$0xff]
        %v4771 = vld [vmem:[%s4759 + $0x58] sm:$0xff]
        %v4772 = vld [vmem:[%s4759 + $0x60] sm:$0xff]
        %v4773 = vld [vmem:[%s4759 + $0x68] sm:$0xff]
        %v4774 = vld [vmem:[%s4759 + $0x70] sm:$0xff]
        %v4775 = vld [vmem:[%s4759 + $0x78] sm:$0xff]
        %v4776 = vld [vmem:[%s4759 + $0x80] sm:$0xff]
        %v4777 = vld [vmem:[%s4759 + $0x88] sm:$0xff]
        %v4778 = vld [vmem:[%s4759 + $0x90] sm:$0xff]
        %v4779 = vld [vmem:[%s4759 + $0x98] sm:$0xff]
        %v4780 = vld [vmem:[%s4759 + $0xa0] sm:$0xff]
        %v4781 = vld [vmem:[%s4759 + $0xa8] sm:$0xff]
        %v4782 = vld [vmem:[%s4759 + $0xb0] sm:$0xff]
        %v4783 = vld [vmem:[%s4759 + $0xb8] sm:$0xff]
        %v4784 = vld [vmem:[%s4759 + $0xc0] sm:$0xff]
        %v4785 = vld [vmem:[%s4759 + $0xc8] sm:$0xff]
        %v4786 = vld [vmem:[%s4759 + $0xd0] sm:$0xff]
        %v4787 = vld [vmem:[%s4759 + $0xd8] sm:$0xff]
        %v4788 = vld [vmem:[%s4759 + $0xe0] sm:$0xff]
        %v4789 = vld [vmem:[%s4759 + $0xe8] sm:$0xff]
        %v4790 = vld [vmem:[%s4759 + $0xf0] sm:$0xff]
        %v4791 = vld [vmem:[%s4759 + $0xf8] sm:$0xff]
        %s4792 = scalar_lea.vmem %s7, 2
        %v4793 = vld [vmem:[%s4792] sm:$0x3]
        %v4795 = vlaneseq
        %v4796 = vshrl.u32 %v4795, 7
        %v4797 = vsub.s32 0, %v4796
        %v4798 = vrot.slane %v4793, %v4797
        %v4799 = vlaneseq
        %v4800 = vshrl.u32 %v4799, 7
        %v4801 = vsub.s32 1, %v4800
        %v4802 = vrot.slane %v4793, %v4801
        %v4837 = vunpack.c.l.b16 %v4760
        %v4838 = vunpack.c.h.b16 %v4760
        %v4839 = vunpack.c.l.b16 %v4761
        %v4840 = vunpack.c.h.b16 %v4761
        %v4841 = vunpack.c.l.b16 %v4762
        %v4842 = vunpack.c.h.b16 %v4762
        %v4843 = vunpack.c.l.b16 %v4763
        %v4844 = vunpack.c.h.b16 %v4763
        %v4845 = vunpack.c.l.b16 %v4764
        %v4846 = vunpack.c.h.b16 %v4764
        %v4847 = vunpack.c.l.b16 %v4765
        %v4848 = vunpack.c.h.b16 %v4765
        %v4849 = vunpack.c.l.b16 %v4766
        %v4850 = vunpack.c.h.b16 %v4766
        %v4851 = vunpack.c.l.b16 %v4767
        %v4852 = vunpack.c.h.b16 %v4767
        %v4853 = vunpack.c.l.b16 %v4768
        %v4854 = vunpack.c.h.b16 %v4768
        %v4855 = vunpack.c.l.b16 %v4769
        %v4856 = vunpack.c.h.b16 %v4769
        %v4857 = vunpack.c.l.b16 %v4770
        %v4858 = vunpack.c.h.b16 %v4770
        %v4859 = vunpack.c.l.b16 %v4771
        %v4860 = vunpack.c.h.b16 %v4771
        %v4861 = vunpack.c.l.b16 %v4772
        %v4862 = vunpack.c.h.b16 %v4772
        %v4863 = vunpack.c.l.b16 %v4773
        %v4864 = vunpack.c.h.b16 %v4773
        %v4865 = vunpack.c.l.b16 %v4774
        %v4866 = vunpack.c.h.b16 %v4774
        %v4867 = vunpack.c.l.b16 %v4775
        %v4868 = vunpack.c.h.b16 %v4775
        %v4869 = vunpack.c.l.b16 %v4776
        %v4870 = vunpack.c.h.b16 %v4776
        %v4871 = vunpack.c.l.b16 %v4777
        %v4872 = vunpack.c.h.b16 %v4777
        %v4873 = vunpack.c.l.b16 %v4778
        %v4874 = vunpack.c.h.b16 %v4778
        %v4875 = vunpack.c.l.b16 %v4779
        %v4876 = vunpack.c.h.b16 %v4779
        %v4877 = vunpack.c.l.b16 %v4780
        %v4878 = vunpack.c.h.b16 %v4780
        %v4879 = vunpack.c.l.b16 %v4781
        %v4880 = vunpack.c.h.b16 %v4781
        %v4881 = vunpack.c.l.b16 %v4782
        %v4882 = vunpack.c.h.b16 %v4782
        %v4883 = vunpack.c.l.b16 %v4783
        %v4884 = vunpack.c.h.b16 %v4783
        %v4885 = vunpack.c.l.b16 %v4784
        %v4886 = vunpack.c.h.b16 %v4784
        %v4887 = vunpack.c.l.b16 %v4785
        %v4888 = vunpack.c.h.b16 %v4785
        %v4889 = vunpack.c.l.b16 %v4786
        %v4890 = vunpack.c.h.b16 %v4786
        %v4891 = vunpack.c.l.b16 %v4787
        %v4892 = vunpack.c.h.b16 %v4787
        %v4893 = vunpack.c.l.b16 %v4788
        %v4894 = vunpack.c.h.b16 %v4788
        %v4895 = vunpack.c.l.b16 %v4789
        %v4896 = vunpack.c.h.b16 %v4789
        %v4897 = vunpack.c.l.b16 %v4790
        %v4898 = vunpack.c.h.b16 %v4790
        %v4899 = vunpack.c.l.b16 %v4791
        %v4900 = vunpack.c.h.b16 %v4791
        %v4901 = vpack.c.b16 %v4839, %v4837
        %v4902 = vpack.c.b16 %v4840, %v4838
        %v4903 = vpack.c.b16 %v4843, %v4841
        %v4904 = vpack.c.b16 %v4844, %v4842
        %v4905 = vpack.c.b16 %v4847, %v4845
        %v4906 = vpack.c.b16 %v4848, %v4846
        %v4907 = vpack.c.b16 %v4851, %v4849
        %v4908 = vpack.c.b16 %v4852, %v4850
        %v4909 = vpack.c.b16 %v4855, %v4853
        %v4910 = vpack.c.b16 %v4856, %v4854
        %v4911 = vpack.c.b16 %v4859, %v4857
        %v4912 = vpack.c.b16 %v4860, %v4858
        %v4913 = vpack.c.b16 %v4863, %v4861
        %v4914 = vpack.c.b16 %v4864, %v4862
        %v4915 = vpack.c.b16 %v4867, %v4865
        %v4916 = vpack.c.b16 %v4868, %v4866
        %v4917 = vpack.c.b16 %v4871, %v4869
        %v4918 = vpack.c.b16 %v4872, %v4870
        %v4919 = vpack.c.b16 %v4875, %v4873
        %v4920 = vpack.c.b16 %v4876, %v4874
        %v4921 = vpack.c.b16 %v4879, %v4877
        %v4922 = vpack.c.b16 %v4880, %v4878
        %v4923 = vpack.c.b16 %v4883, %v4881
        %v4924 = vpack.c.b16 %v4884, %v4882
        %v4925 = vpack.c.b16 %v4887, %v4885
        %v4926 = vpack.c.b16 %v4888, %v4886
        %v4927 = vpack.c.b16 %v4891, %v4889
        %v4928 = vpack.c.b16 %v4892, %v4890
        %v4929 = vpack.c.b16 %v4895, %v4893
        %v4930 = vpack.c.b16 %v4896, %v4894
        %v4931 = vpack.c.b16 %v4899, %v4897
        %v4932 = vpack.c.b16 %v4900, %v4898
        %4965 = vmatprep.subr.bf16.mxu0 %v4902
        %4966 = vmatpush1.bf16.msra.mxu0 %v4901
        %4967 = vmatprep.subr.bf16.mxu0 %v4904
        %4968 = vmatpush1.bf16.msra.mxu0 %v4903
        %4969 = vmatprep.subr.bf16.mxu0 %v4906
        %4970 = vmatpush1.bf16.msra.mxu0 %v4905
        %4971 = vmatprep.subr.bf16.mxu0 %v4908
        %4972 = vmatpush1.bf16.msra.mxu0 %v4907
        %4973 = vmatprep.subr.bf16.mxu0 %v4910
        %4974 = vmatpush1.bf16.msra.mxu0 %v4909
        %4975 = vmatprep.subr.bf16.mxu0 %v4912
        %4976 = vmatpush1.bf16.msra.mxu0 %v4911
        %4977 = vmatprep.subr.bf16.mxu0 %v4914
        %4978 = vmatpush1.bf16.msra.mxu0 %v4913
        %4979 = vmatprep.subr.bf16.mxu0 %v4916
        %4980 = vmatpush1.bf16.msra.mxu0 %v4915
        %4981 = vmatprep.subr.bf16.mxu0 %v4918
        %4982 = vmatpush1.bf16.msra.mxu0 %v4917
        %4983 = vmatprep.subr.bf16.mxu0 %v4920
        %4984 = vmatpush1.bf16.msra.mxu0 %v4919
        %4985 = vmatprep.subr.bf16.mxu0 %v4922
        %4986 = vmatpush1.bf16.msra.mxu0 %v4921
        %4987 = vmatprep.subr.bf16.mxu0 %v4924
        %4988 = vmatpush1.bf16.msra.mxu0 %v4923
        %4989 = vmatprep.subr.bf16.mxu0 %v4926
        %4990 = vmatpush1.bf16.msra.mxu0 %v4925
        %4991 = vmatprep.subr.bf16.mxu0 %v4928
        %4992 = vmatpush1.bf16.msra.mxu0 %v4927
        %4993 = vmatprep.subr.bf16.mxu0 %v4930
        %4994 = vmatpush1.bf16.msra.mxu0 %v4929
        %4995 = vmatprep.subr.bf16.mxu0 %v4932
        %4996 = vmatpush1.bf16.msra.mxu0 %v4931
        %4997 = vmatprep.mubr.bf16.mxu0 %v4758
        %4998 = vmatmul.mubr.bf16.gmra.mrb[0].mxu0 %v4757
        %v4999 = vpop.f32.mrb[0].mxu0
        %v5000 = vadd.f32 %v4798, %v4999
        %v5001 = vpop.f32.mrb[0].mxu0
        %v5002 = vadd.f32 %v4802, %v5001
        %v5003 = vpop.f32.mrb[0].mxu0
        %v5004 = vadd.f32 %v4798, %v5003
        %v5005 = vpop.f32.mrb[0].mxu0
        %v5006 = vadd.f32 %v4802, %v5005
        %5007 = vdwg.mxu0
        %v5008 = vmax.f32 %v5000, 0.0
        %v5009 = vmax.f32 %v5002, 0.0
        %v5010 = vmax.f32 %v5004, 0.0
        %v5011 = vmax.f32 %v5006, 0.0
        %v5012 = vpack.c.bf16 %v5010, %v5008
        %v5013 = vpack.c.bf16 %v5011, %v5009
        %s5014 = scalar_lea.vmem [#allocation13], 256
        %v5015 = vld [vmem:[%s5014] sm:$0xff]
        %v5016 = vld [vmem:[%s5014 + $0x8] sm:$0xff]
        %v5017 = vld [vmem:[%s5014 + $0x10] sm:$0xff]
        %v5018 = vld [vmem:[%s5014 + $0x18] sm:$0xff]
        %v5019 = vld [vmem:[%s5014 + $0x20] sm:$0xff]
        %v5020 = vld [vmem:[%s5014 + $0x28] sm:$0xff]
        %v5021 = vld [vmem:[%s5014 + $0x30] sm:$0xff]
        %v5022 = vld [vmem:[%s5014 + $0x38] sm:$0xff]
        %v5023 = vld [vmem:[%s5014 + $0x40] sm:$0xff]
        %v5024 = vld [vmem:[%s5014 + $0x48] sm:$0xff]
        %v5025 = vld [vmem:[%s5014 + $0x50] sm:$0xff]
        %v5026 = vld [vmem:[%s5014 + $0x58] sm:$0xff]
        %v5027 = vld [vmem:[%s5014 + $0x60] sm:$0xff]
        %v5028 = vld [vmem:[%s5014 + $0x68] sm:$0xff]
        %v5029 = vld [vmem:[%s5014 + $0x70] sm:$0xff]
        %v5030 = vld [vmem:[%s5014 + $0x78] sm:$0xff]
        %v5031 = vld [vmem:[%s5014 + $0x80] sm:$0xff]
        %v5032 = vld [vmem:[%s5014 + $0x88] sm:$0xff]
        %v5033 = vld [vmem:[%s5014 + $0x90] sm:$0xff]
        %v5034 = vld [vmem:[%s5014 + $0x98] sm:$0xff]
        %v5035 = vld [vmem:[%s5014 + $0xa0] sm:$0xff]
        %v5036 = vld [vmem:[%s5014 + $0xa8] sm:$0xff]
        %v5037 = vld [vmem:[%s5014 + $0xb0] sm:$0xff]
        %v5038 = vld [vmem:[%s5014 + $0xb8] sm:$0xff]
        %v5039 = vld [vmem:[%s5014 + $0xc0] sm:$0xff]
        %v5040 = vld [vmem:[%s5014 + $0xc8] sm:$0xff]
        %v5041 = vld [vmem:[%s5014 + $0xd0] sm:$0xff]
        %v5042 = vld [vmem:[%s5014 + $0xd8] sm:$0xff]
        %v5043 = vld [vmem:[%s5014 + $0xe0] sm:$0xff]
        %v5044 = vld [vmem:[%s5014 + $0xe8] sm:$0xff]
        %v5045 = vld [vmem:[%s5014 + $0xf0] sm:$0xff]
        %v5046 = vld [vmem:[%s5014 + $0xf8] sm:$0xff]
        %s5047 = scalar_lea.vmem %s9, 2
        %v5048 = vld [vmem:[%s5047] sm:$0x3]
        %v5050 = vlaneseq
        %v5051 = vshrl.u32 %v5050, 7
        %v5052 = vsub.s32 0, %v5051
        %v5053 = vrot.slane %v5048, %v5052
        %v5054 = vlaneseq
        %v5055 = vshrl.u32 %v5054, 7
        %v5056 = vsub.s32 1, %v5055
        %v5057 = vrot.slane %v5048, %v5056
        %v5092 = vunpack.c.l.b16 %v5015
        %v5093 = vunpack.c.h.b16 %v5015
        %v5094 = vunpack.c.l.b16 %v5016
        %v5095 = vunpack.c.h.b16 %v5016
        %v5096 = vunpack.c.l.b16 %v5017
        %v5097 = vunpack.c.h.b16 %v5017
        %v5098 = vunpack.c.l.b16 %v5018
        %v5099 = vunpack.c.h.b16 %v5018
        %v5100 = vunpack.c.l.b16 %v5019
        %v5101 = vunpack.c.h.b16 %v5019
        %v5102 = vunpack.c.l.b16 %v5020
        %v5103 = vunpack.c.h.b16 %v5020
        %v5104 = vunpack.c.l.b16 %v5021
        %v5105 = vunpack.c.h.b16 %v5021
        %v5106 = vunpack.c.l.b16 %v5022
        %v5107 = vunpack.c.h.b16 %v5022
        %v5108 = vunpack.c.l.b16 %v5023
        %v5109 = vunpack.c.h.b16 %v5023
        %v5110 = vunpack.c.l.b16 %v5024
        %v5111 = vunpack.c.h.b16 %v5024
        %v5112 = vunpack.c.l.b16 %v5025
        %v5113 = vunpack.c.h.b16 %v5025
        %v5114 = vunpack.c.l.b16 %v5026
        %v5115 = vunpack.c.h.b16 %v5026
        %v5116 = vunpack.c.l.b16 %v5027
        %v5117 = vunpack.c.h.b16 %v5027
        %v5118 = vunpack.c.l.b16 %v5028
        %v5119 = vunpack.c.h.b16 %v5028
        %v5120 = vunpack.c.l.b16 %v5029
        %v5121 = vunpack.c.h.b16 %v5029
        %v5122 = vunpack.c.l.b16 %v5030
        %v5123 = vunpack.c.h.b16 %v5030
        %v5124 = vunpack.c.l.b16 %v5031
        %v5125 = vunpack.c.h.b16 %v5031
        %v5126 = vunpack.c.l.b16 %v5032
        %v5127 = vunpack.c.h.b16 %v5032
        %v5128 = vunpack.c.l.b16 %v5033
        %v5129 = vunpack.c.h.b16 %v5033
        %v5130 = vunpack.c.l.b16 %v5034
        %v5131 = vunpack.c.h.b16 %v5034
        %v5132 = vunpack.c.l.b16 %v5035
        %v5133 = vunpack.c.h.b16 %v5035
        %v5134 = vunpack.c.l.b16 %v5036
        %v5135 = vunpack.c.h.b16 %v5036
        %v5136 = vunpack.c.l.b16 %v5037
        %v5137 = vunpack.c.h.b16 %v5037
        %v5138 = vunpack.c.l.b16 %v5038
        %v5139 = vunpack.c.h.b16 %v5038
        %v5140 = vunpack.c.l.b16 %v5039
        %v5141 = vunpack.c.h.b16 %v5039
        %v5142 = vunpack.c.l.b16 %v5040
        %v5143 = vunpack.c.h.b16 %v5040
        %v5144 = vunpack.c.l.b16 %v5041
        %v5145 = vunpack.c.h.b16 %v5041
        %v5146 = vunpack.c.l.b16 %v5042
        %v5147 = vunpack.c.h.b16 %v5042
        %v5148 = vunpack.c.l.b16 %v5043
        %v5149 = vunpack.c.h.b16 %v5043
        %v5150 = vunpack.c.l.b16 %v5044
        %v5151 = vunpack.c.h.b16 %v5044
        %v5152 = vunpack.c.l.b16 %v5045
        %v5153 = vunpack.c.h.b16 %v5045
        %v5154 = vunpack.c.l.b16 %v5046
        %v5155 = vunpack.c.h.b16 %v5046
        %v5156 = vpack.c.b16 %v5094, %v5092
        %v5157 = vpack.c.b16 %v5095, %v5093
        %v5158 = vpack.c.b16 %v5098, %v5096
        %v5159 = vpack.c.b16 %v5099, %v5097
        %v5160 = vpack.c.b16 %v5102, %v5100
        %v5161 = vpack.c.b16 %v5103, %v5101
        %v5162 = vpack.c.b16 %v5106, %v5104
        %v5163 = vpack.c.b16 %v5107, %v5105
        %v5164 = vpack.c.b16 %v5110, %v5108
        %v5165 = vpack.c.b16 %v5111, %v5109
        %v5166 = vpack.c.b16 %v5114, %v5112
        %v5167 = vpack.c.b16 %v5115, %v5113
        %v5168 = vpack.c.b16 %v5118, %v5116
        %v5169 = vpack.c.b16 %v5119, %v5117
        %v5170 = vpack.c.b16 %v5122, %v5120
        %v5171 = vpack.c.b16 %v5123, %v5121
        %v5172 = vpack.c.b16 %v5126, %v5124
        %v5173 = vpack.c.b16 %v5127, %v5125
        %v5174 = vpack.c.b16 %v5130, %v5128
        %v5175 = vpack.c.b16 %v5131, %v5129
        %v5176 = vpack.c.b16 %v5134, %v5132
        %v5177 = vpack.c.b16 %v5135, %v5133
        %v5178 = vpack.c.b16 %v5138, %v5136
        %v5179 = vpack.c.b16 %v5139, %v5137
        %v5180 = vpack.c.b16 %v5142, %v5140
        %v5181 = vpack.c.b16 %v5143, %v5141
        %v5182 = vpack.c.b16 %v5146, %v5144
        %v5183 = vpack.c.b16 %v5147, %v5145
        %v5184 = vpack.c.b16 %v5150, %v5148
        %v5185 = vpack.c.b16 %v5151, %v5149
        %v5186 = vpack.c.b16 %v5154, %v5152
        %v5187 = vpack.c.b16 %v5155, %v5153
        %5220 = vmatprep.subr.bf16.mxu0 %v5157
        %5221 = vmatpush1.bf16.msra.mxu0 %v5156
        %5222 = vmatprep.subr.bf16.mxu0 %v5159
        %5223 = vmatpush1.bf16.msra.mxu0 %v5158
        %5224 = vmatprep.subr.bf16.mxu0 %v5161
        %5225 = vmatpush1.bf16.msra.mxu0 %v5160
        %5226 = vmatprep.subr.bf16.mxu0 %v5163
        %5227 = vmatpush1.bf16.msra.mxu0 %v5162
        %5228 = vmatprep.subr.bf16.mxu0 %v5165
        %5229 = vmatpush1.bf16.msra.mxu0 %v5164
        %5230 = vmatprep.subr.bf16.mxu0 %v5167
        %5231 = vmatpush1.bf16.msra.mxu0 %v5166
        %5232 = vmatprep.subr.bf16.mxu0 %v5169
        %5233 = vmatpush1.bf16.msra.mxu0 %v5168
        %5234 = vmatprep.subr.bf16.mxu0 %v5171
        %5235 = vmatpush1.bf16.msra.mxu0 %v5170
        %5236 = vmatprep.subr.bf16.mxu0 %v5173
        %5237 = vmatpush1.bf16.msra.mxu0 %v5172
        %5238 = vmatprep.subr.bf16.mxu0 %v5175
        %5239 = vmatpush1.bf16.msra.mxu0 %v5174
        %5240 = vmatprep.subr.bf16.mxu0 %v5177
        %5241 = vmatpush1.bf16.msra.mxu0 %v5176
        %5242 = vmatprep.subr.bf16.mxu0 %v5179
        %5243 = vmatpush1.bf16.msra.mxu0 %v5178
        %5244 = vmatprep.subr.bf16.mxu0 %v5181
        %5245 = vmatpush1.bf16.msra.mxu0 %v5180
        %5246 = vmatprep.subr.bf16.mxu0 %v5183
        %5247 = vmatpush1.bf16.msra.mxu0 %v5182
        %5248 = vmatprep.subr.bf16.mxu0 %v5185
        %5249 = vmatpush1.bf16.msra.mxu0 %v5184
        %5250 = vmatprep.subr.bf16.mxu0 %v5187
        %5251 = vmatpush1.bf16.msra.mxu0 %v5186
        %5252 = vmatprep.mubr.bf16.mxu0 %v5013
        %5253 = vmatmul.mubr.bf16.gmra.mrb[0].mxu0 %v5012
        %v5254 = vpop.f32.mrb[0].mxu0
        %v5255 = vadd.f32 %v5053, %v5254
        %v5256 = vpop.f32.mrb[0].mxu0
        %v5257 = vadd.f32 %v5057, %v5256
        %v5258 = vpop.f32.mrb[0].mxu0
        %v5259 = vadd.f32 %v5053, %v5258
        %v5260 = vpop.f32.mrb[0].mxu0
        %v5261 = vadd.f32 %v5057, %v5260
        %5262 = vdwg.mxu0
        %v5263 = vadd.f32 %v5255, %v4755
        %v5264 = vadd.f32 %v5257, %v1406
        %v5265 = vadd.f32 %v5259, %v4756
        %v5266 = vadd.f32 %v5261, %v1407
        %v5267 = vmax.f32 %v5263, 0.0
        %v5268 = vmax.f32 %v5264, 0.0
        %v5269 = vmax.f32 %v5265, 0.0
        %v5270 = vmax.f32 %v5266, 0.0
        %v5271 = vpack.c.bf16 %v5269, %v5267
        %v5272 = vpack.c.bf16 %v5270, %v5268
        %s5273 = scalar_lea.vmem [#allocation14], 1024
        %v5274 = vld [vmem:[%s5273] sm:$0xff]
        %v5275 = vld [vmem:[%s5273 + $0x8] sm:$0xff]
        %v5276 = vld [vmem:[%s5273 + $0x10] sm:$0xff]
        %v5277 = vld [vmem:[%s5273 + $0x18] sm:$0xff]
        %v5278 = vld [vmem:[%s5273 + $0x20] sm:$0xff]
        %v5279 = vld [vmem:[%s5273 + $0x28] sm:$0xff]
        %v5280 = vld [vmem:[%s5273 + $0x30] sm:$0xff]
        %v5281 = vld [vmem:[%s5273 + $0x38] sm:$0xff]
        %v5282 = vld [vmem:[%s5273 + $0x40] sm:$0xff]
        %v5283 = vld [vmem:[%s5273 + $0x48] sm:$0xff]
        %v5284 = vld [vmem:[%s5273 + $0x50] sm:$0xff]
        %v5285 = vld [vmem:[%s5273 + $0x58] sm:$0xff]
        %v5286 = vld [vmem:[%s5273 + $0x60] sm:$0xff]
        %v5287 = vld [vmem:[%s5273 + $0x68] sm:$0xff]
        %v5288 = vld [vmem:[%s5273 + $0x70] sm:$0xff]
        %v5289 = vld [vmem:[%s5273 + $0x78] sm:$0xff]
        %v5290 = vld [vmem:[%s5273 + $0x80] sm:$0xff]
        %v5291 = vld [vmem:[%s5273 + $0x88] sm:$0xff]
        %v5292 = vld [vmem:[%s5273 + $0x90] sm:$0xff]
        %v5293 = vld [vmem:[%s5273 + $0x98] sm:$0xff]
        %v5294 = vld [vmem:[%s5273 + $0xa0] sm:$0xff]
        %v5295 = vld [vmem:[%s5273 + $0xa8] sm:$0xff]
        %v5296 = vld [vmem:[%s5273 + $0xb0] sm:$0xff]
        %v5297 = vld [vmem:[%s5273 + $0xb8] sm:$0xff]
        %v5298 = vld [vmem:[%s5273 + $0xc0] sm:$0xff]
        %v5299 = vld [vmem:[%s5273 + $0xc8] sm:$0xff]
        %v5300 = vld [vmem:[%s5273 + $0xd0] sm:$0xff]
        %v5301 = vld [vmem:[%s5273 + $0xd8] sm:$0xff]
        %v5302 = vld [vmem:[%s5273 + $0xe0] sm:$0xff]
        %v5303 = vld [vmem:[%s5273 + $0xe8] sm:$0xff]
        %v5304 = vld [vmem:[%s5273 + $0xf0] sm:$0xff]
        %v5305 = vld [vmem:[%s5273 + $0xf8] sm:$0xff]
        %v5306 = vld [vmem:[%s5273 + $0x100] sm:$0xff]
        %v5307 = vld [vmem:[%s5273 + $0x108] sm:$0xff]
        %v5308 = vld [vmem:[%s5273 + $0x110] sm:$0xff]
        %v5309 = vld [vmem:[%s5273 + $0x118] sm:$0xff]
        %v5310 = vld [vmem:[%s5273 + $0x120] sm:$0xff]
        %v5311 = vld [vmem:[%s5273 + $0x128] sm:$0xff]
        %v5312 = vld [vmem:[%s5273 + $0x130] sm:$0xff]
        %v5313 = vld [vmem:[%s5273 + $0x138] sm:$0xff]
        %v5314 = vld [vmem:[%s5273 + $0x140] sm:$0xff]
        %v5315 = vld [vmem:[%s5273 + $0x148] sm:$0xff]
        %v5316 = vld [vmem:[%s5273 + $0x150] sm:$0xff]
        %v5317 = vld [vmem:[%s5273 + $0x158] sm:$0xff]
        %v5318 = vld [vmem:[%s5273 + $0x160] sm:$0xff]
        %v5319 = vld [vmem:[%s5273 + $0x168] sm:$0xff]
        %v5320 = vld [vmem:[%s5273 + $0x170] sm:$0xff]
        %v5321 = vld [vmem:[%s5273 + $0x178] sm:$0xff]
        %v5322 = vld [vmem:[%s5273 + $0x180] sm:$0xff]
        %v5323 = vld [vmem:[%s5273 + $0x188] sm:$0xff]
        %v5324 = vld [vmem:[%s5273 + $0x190] sm:$0xff]
        %v5325 = vld [vmem:[%s5273 + $0x198] sm:$0xff]
        %v5326 = vld [vmem:[%s5273 + $0x1a0] sm:$0xff]
        %v5327 = vld [vmem:[%s5273 + $0x1a8] sm:$0xff]
        %v5328 = vld [vmem:[%s5273 + $0x1b0] sm:$0xff]
        %v5329 = vld [vmem:[%s5273 + $0x1b8] sm:$0xff]
        %v5330 = vld [vmem:[%s5273 + $0x1c0] sm:$0xff]
        %v5331 = vld [vmem:[%s5273 + $0x1c8] sm:$0xff]
        %v5332 = vld [vmem:[%s5273 + $0x1d0] sm:$0xff]
        %v5333 = vld [vmem:[%s5273 + $0x1d8] sm:$0xff]
        %v5334 = vld [vmem:[%s5273 + $0x1e0] sm:$0xff]
        %v5335 = vld [vmem:[%s5273 + $0x1e8] sm:$0xff]
        %v5336 = vld [vmem:[%s5273 + $0x1f0] sm:$0xff]
        %v5337 = vld [vmem:[%s5273 + $0x1f8] sm:$0xff]
        %v5338 = vld [vmem:[%s5273 + $0x200] sm:$0xff]
        %v5339 = vld [vmem:[%s5273 + $0x208] sm:$0xff]
        %v5340 = vld [vmem:[%s5273 + $0x210] sm:$0xff]
        %v5341 = vld [vmem:[%s5273 + $0x218] sm:$0xff]
        %v5342 = vld [vmem:[%s5273 + $0x220] sm:$0xff]
        %v5343 = vld [vmem:[%s5273 + $0x228] sm:$0xff]
        %v5344 = vld [vmem:[%s5273 + $0x230] sm:$0xff]
        %v5345 = vld [vmem:[%s5273 + $0x238] sm:$0xff]
        %v5346 = vld [vmem:[%s5273 + $0x240] sm:$0xff]
        %v5347 = vld [vmem:[%s5273 + $0x248] sm:$0xff]
        %v5348 = vld [vmem:[%s5273 + $0x250] sm:$0xff]
        %v5349 = vld [vmem:[%s5273 + $0x258] sm:$0xff]
        %v5350 = vld [vmem:[%s5273 + $0x260] sm:$0xff]
        %v5351 = vld [vmem:[%s5273 + $0x268] sm:$0xff]
        %v5352 = vld [vmem:[%s5273 + $0x270] sm:$0xff]
        %v5353 = vld [vmem:[%s5273 + $0x278] sm:$0xff]
        %v5354 = vld [vmem:[%s5273 + $0x280] sm:$0xff]
        %v5355 = vld [vmem:[%s5273 + $0x288] sm:$0xff]
        %v5356 = vld [vmem:[%s5273 + $0x290] sm:$0xff]
        %v5357 = vld [vmem:[%s5273 + $0x298] sm:$0xff]
        %v5358 = vld [vmem:[%s5273 + $0x2a0] sm:$0xff]
        %v5359 = vld [vmem:[%s5273 + $0x2a8] sm:$0xff]
        %v5360 = vld [vmem:[%s5273 + $0x2b0] sm:$0xff]
        %v5361 = vld [vmem:[%s5273 + $0x2b8] sm:$0xff]
        %v5362 = vld [vmem:[%s5273 + $0x2c0] sm:$0xff]
        %v5363 = vld [vmem:[%s5273 + $0x2c8] sm:$0xff]
        %v5364 = vld [vmem:[%s5273 + $0x2d0] sm:$0xff]
        %v5365 = vld [vmem:[%s5273 + $0x2d8] sm:$0xff]
        %v5366 = vld [vmem:[%s5273 + $0x2e0] sm:$0xff]
        %v5367 = vld [vmem:[%s5273 + $0x2e8] sm:$0xff]
        %v5368 = vld [vmem:[%s5273 + $0x2f0] sm:$0xff]
        %v5369 = vld [vmem:[%s5273 + $0x2f8] sm:$0xff]
        %v5370 = vld [vmem:[%s5273 + $0x300] sm:$0xff]
        %v5371 = vld [vmem:[%s5273 + $0x308] sm:$0xff]
        %v5372 = vld [vmem:[%s5273 + $0x310] sm:$0xff]
        %v5373 = vld [vmem:[%s5273 + $0x318] sm:$0xff]
        %v5374 = vld [vmem:[%s5273 + $0x320] sm:$0xff]
        %v5375 = vld [vmem:[%s5273 + $0x328] sm:$0xff]
        %v5376 = vld [vmem:[%s5273 + $0x330] sm:$0xff]
        %v5377 = vld [vmem:[%s5273 + $0x338] sm:$0xff]
        %v5378 = vld [vmem:[%s5273 + $0x340] sm:$0xff]
        %v5379 = vld [vmem:[%s5273 + $0x348] sm:$0xff]
        %v5380 = vld [vmem:[%s5273 + $0x350] sm:$0xff]
        %v5381 = vld [vmem:[%s5273 + $0x358] sm:$0xff]
        %v5382 = vld [vmem:[%s5273 + $0x360] sm:$0xff]
        %v5383 = vld [vmem:[%s5273 + $0x368] sm:$0xff]
        %v5384 = vld [vmem:[%s5273 + $0x370] sm:$0xff]
        %v5385 = vld [vmem:[%s5273 + $0x378] sm:$0xff]
        %v5386 = vld [vmem:[%s5273 + $0x380] sm:$0xff]
        %v5387 = vld [vmem:[%s5273 + $0x388] sm:$0xff]
        %v5388 = vld [vmem:[%s5273 + $0x390] sm:$0xff]
        %v5389 = vld [vmem:[%s5273 + $0x398] sm:$0xff]
        %v5390 = vld [vmem:[%s5273 + $0x3a0] sm:$0xff]
        %v5391 = vld [vmem:[%s5273 + $0x3a8] sm:$0xff]
        %v5392 = vld [vmem:[%s5273 + $0x3b0] sm:$0xff]
        %v5393 = vld [vmem:[%s5273 + $0x3b8] sm:$0xff]
        %v5394 = vld [vmem:[%s5273 + $0x3c0] sm:$0xff]
        %v5395 = vld [vmem:[%s5273 + $0x3c8] sm:$0xff]
        %v5396 = vld [vmem:[%s5273 + $0x3d0] sm:$0xff]
        %v5397 = vld [vmem:[%s5273 + $0x3d8] sm:$0xff]
        %v5398 = vld [vmem:[%s5273 + $0x3e0] sm:$0xff]
        %v5399 = vld [vmem:[%s5273 + $0x3e8] sm:$0xff]
        %v5400 = vld [vmem:[%s5273 + $0x3f0] sm:$0xff]
        %v5401 = vld [vmem:[%s5273 + $0x3f8] sm:$0xff]
        %s5402 = scalar_lea.vmem %s11, 8
        %v5403 = vld [vmem:[%s5402] sm:$0xff]
        %v5405 = vlaneseq
        %v5406 = vshrl.u32 %v5405, 7
        %v5407 = vsub.s32 0, %v5406
        %v5408 = vrot.slane %v5403, %v5407
        %v5409 = vlaneseq
        %v5410 = vshrl.u32 %v5409, 7
        %v5411 = vsub.s32 1, %v5410
        %v5412 = vrot.slane %v5403, %v5411
        %v5413 = vlaneseq
        %v5414 = vshrl.u32 %v5413, 7
        %v5415 = vsub.s32 2, %v5414
        %v5416 = vrot.slane %v5403, %v5415
        %v5417 = vlaneseq
        %v5418 = vshrl.u32 %v5417, 7
        %v5419 = vsub.s32 3, %v5418
        %v5420 = vrot.slane %v5403, %v5419
        %v5421 = vlaneseq
        %v5422 = vshrl.u32 %v5421, 7
        %v5423 = vsub.s32 4, %v5422
        %v5424 = vrot.slane %v5403, %v5423
        %v5425 = vlaneseq
        %v5426 = vshrl.u32 %v5425, 7
        %v5427 = vsub.s32 5, %v5426
        %v5428 = vrot.slane %v5403, %v5427
        %v5429 = vlaneseq
        %v5430 = vshrl.u32 %v5429, 7
        %v5431 = vsub.s32 6, %v5430
        %v5432 = vrot.slane %v5403, %v5431
        %v5433 = vlaneseq
        %v5434 = vshrl.u32 %v5433, 7
        %v5435 = vsub.s32 7, %v5434
        %v5436 = vrot.slane %v5403, %v5435
        %v5573 = vunpack.c.l.b16 %v5274
        %v5574 = vunpack.c.h.b16 %v5274
        %v5575 = vunpack.c.l.b16 %v5275
        %v5576 = vunpack.c.h.b16 %v5275
        %v5577 = vunpack.c.l.b16 %v5276
        %v5578 = vunpack.c.h.b16 %v5276
        %v5579 = vunpack.c.l.b16 %v5277
        %v5580 = vunpack.c.h.b16 %v5277
        %v5581 = vunpack.c.l.b16 %v5278
        %v5582 = vunpack.c.h.b16 %v5278
        %v5583 = vunpack.c.l.b16 %v5279
        %v5584 = vunpack.c.h.b16 %v5279
        %v5585 = vunpack.c.l.b16 %v5280
        %v5586 = vunpack.c.h.b16 %v5280
        %v5587 = vunpack.c.l.b16 %v5281
        %v5588 = vunpack.c.h.b16 %v5281
        %v5589 = vunpack.c.l.b16 %v5282
        %v5590 = vunpack.c.h.b16 %v5282
        %v5591 = vunpack.c.l.b16 %v5283
        %v5592 = vunpack.c.h.b16 %v5283
        %v5593 = vunpack.c.l.b16 %v5284
        %v5594 = vunpack.c.h.b16 %v5284
        %v5595 = vunpack.c.l.b16 %v5285
        %v5596 = vunpack.c.h.b16 %v5285
        %v5597 = vunpack.c.l.b16 %v5286
        %v5598 = vunpack.c.h.b16 %v5286
        %v5599 = vunpack.c.l.b16 %v5287
        %v5600 = vunpack.c.h.b16 %v5287
        %v5601 = vunpack.c.l.b16 %v5288
        %v5602 = vunpack.c.h.b16 %v5288
        %v5603 = vunpack.c.l.b16 %v5289
        %v5604 = vunpack.c.h.b16 %v5289
        %v5605 = vunpack.c.l.b16 %v5290
        %v5606 = vunpack.c.h.b16 %v5290
        %v5607 = vunpack.c.l.b16 %v5291
        %v5608 = vunpack.c.h.b16 %v5291
        %v5609 = vunpack.c.l.b16 %v5292
        %v5610 = vunpack.c.h.b16 %v5292
        %v5611 = vunpack.c.l.b16 %v5293
        %v5612 = vunpack.c.h.b16 %v5293
        %v5613 = vunpack.c.l.b16 %v5294
        %v5614 = vunpack.c.h.b16 %v5294
        %v5615 = vunpack.c.l.b16 %v5295
        %v5616 = vunpack.c.h.b16 %v5295
        %v5617 = vunpack.c.l.b16 %v5296
        %v5618 = vunpack.c.h.b16 %v5296
        %v5619 = vunpack.c.l.b16 %v5297
        %v5620 = vunpack.c.h.b16 %v5297
        %v5621 = vunpack.c.l.b16 %v5298
        %v5622 = vunpack.c.h.b16 %v5298
        %v5623 = vunpack.c.l.b16 %v5299
        %v5624 = vunpack.c.h.b16 %v5299
        %v5625 = vunpack.c.l.b16 %v5300
        %v5626 = vunpack.c.h.b16 %v5300
        %v5627 = vunpack.c.l.b16 %v5301
        %v5628 = vunpack.c.h.b16 %v5301
        %v5629 = vunpack.c.l.b16 %v5302
        %v5630 = vunpack.c.h.b16 %v5302
        %v5631 = vunpack.c.l.b16 %v5303
        %v5632 = vunpack.c.h.b16 %v5303
        %v5633 = vunpack.c.l.b16 %v5304
        %v5634 = vunpack.c.h.b16 %v5304
        %v5635 = vunpack.c.l.b16 %v5305
        %v5636 = vunpack.c.h.b16 %v5305
        %v5637 = vunpack.c.l.b16 %v5306
        %v5638 = vunpack.c.h.b16 %v5306
        %v5639 = vunpack.c.l.b16 %v5307
        %v5640 = vunpack.c.h.b16 %v5307
        %v5641 = vunpack.c.l.b16 %v5308
        %v5642 = vunpack.c.h.b16 %v5308
        %v5643 = vunpack.c.l.b16 %v5309
        %v5644 = vunpack.c.h.b16 %v5309
        %v5645 = vunpack.c.l.b16 %v5310
        %v5646 = vunpack.c.h.b16 %v5310
        %v5647 = vunpack.c.l.b16 %v5311
        %v5648 = vunpack.c.h.b16 %v5311
        %v5649 = vunpack.c.l.b16 %v5312
        %v5650 = vunpack.c.h.b16 %v5312
        %v5651 = vunpack.c.l.b16 %v5313
        %v5652 = vunpack.c.h.b16 %v5313
        %v5653 = vunpack.c.l.b16 %v5314
        %v5654 = vunpack.c.h.b16 %v5314
        %v5655 = vunpack.c.l.b16 %v5315
        %v5656 = vunpack.c.h.b16 %v5315
        %v5657 = vunpack.c.l.b16 %v5316
        %v5658 = vunpack.c.h.b16 %v5316
        %v5659 = vunpack.c.l.b16 %v5317
        %v5660 = vunpack.c.h.b16 %v5317
        %v5661 = vunpack.c.l.b16 %v5318
        %v5662 = vunpack.c.h.b16 %v5318
        %v5663 = vunpack.c.l.b16 %v5319
        %v5664 = vunpack.c.h.b16 %v5319
        %v5665 = vunpack.c.l.b16 %v5320
        %v5666 = vunpack.c.h.b16 %v5320
        %v5667 = vunpack.c.l.b16 %v5321
        %v5668 = vunpack.c.h.b16 %v5321
        %v5669 = vunpack.c.l.b16 %v5322
        %v5670 = vunpack.c.h.b16 %v5322
        %v5671 = vunpack.c.l.b16 %v5323
        %v5672 = vunpack.c.h.b16 %v5323
        %v5673 = vunpack.c.l.b16 %v5324
        %v5674 = vunpack.c.h.b16 %v5324
        %v5675 = vunpack.c.l.b16 %v5325
        %v5676 = vunpack.c.h.b16 %v5325
        %v5677 = vunpack.c.l.b16 %v5326
        %v5678 = vunpack.c.h.b16 %v5326
        %v5679 = vunpack.c.l.b16 %v5327
        %v5680 = vunpack.c.h.b16 %v5327
        %v5681 = vunpack.c.l.b16 %v5328
        %v5682 = vunpack.c.h.b16 %v5328
        %v5683 = vunpack.c.l.b16 %v5329
        %v5684 = vunpack.c.h.b16 %v5329
        %v5685 = vunpack.c.l.b16 %v5330
        %v5686 = vunpack.c.h.b16 %v5330
        %v5687 = vunpack.c.l.b16 %v5331
        %v5688 = vunpack.c.h.b16 %v5331
        %v5689 = vunpack.c.l.b16 %v5332
        %v5690 = vunpack.c.h.b16 %v5332
        %v5691 = vunpack.c.l.b16 %v5333
        %v5692 = vunpack.c.h.b16 %v5333
        %v5693 = vunpack.c.l.b16 %v5334
        %v5694 = vunpack.c.h.b16 %v5334
        %v5695 = vunpack.c.l.b16 %v5335
        %v5696 = vunpack.c.h.b16 %v5335
        %v5697 = vunpack.c.l.b16 %v5336
        %v5698 = vunpack.c.h.b16 %v5336
        %v5699 = vunpack.c.l.b16 %v5337
        %v5700 = vunpack.c.h.b16 %v5337
        %v5701 = vunpack.c.l.b16 %v5338
        %v5702 = vunpack.c.h.b16 %v5338
        %v5703 = vunpack.c.l.b16 %v5339
        %v5704 = vunpack.c.h.b16 %v5339
        %v5705 = vunpack.c.l.b16 %v5340
        %v5706 = vunpack.c.h.b16 %v5340
        %v5707 = vunpack.c.l.b16 %v5341
        %v5708 = vunpack.c.h.b16 %v5341
        %v5709 = vunpack.c.l.b16 %v5342
        %v5710 = vunpack.c.h.b16 %v5342
        %v5711 = vunpack.c.l.b16 %v5343
        %v5712 = vunpack.c.h.b16 %v5343
        %v5713 = vunpack.c.l.b16 %v5344
        %v5714 = vunpack.c.h.b16 %v5344
        %v5715 = vunpack.c.l.b16 %v5345
        %v5716 = vunpack.c.h.b16 %v5345
        %v5717 = vunpack.c.l.b16 %v5346
        %v5718 = vunpack.c.h.b16 %v5346
        %v5719 = vunpack.c.l.b16 %v5347
        %v5720 = vunpack.c.h.b16 %v5347
        %v5721 = vunpack.c.l.b16 %v5348
        %v5722 = vunpack.c.h.b16 %v5348
        %v5723 = vunpack.c.l.b16 %v5349
        %v5724 = vunpack.c.h.b16 %v5349
        %v5725 = vunpack.c.l.b16 %v5350
        %v5726 = vunpack.c.h.b16 %v5350
        %v5727 = vunpack.c.l.b16 %v5351
        %v5728 = vunpack.c.h.b16 %v5351
        %v5729 = vunpack.c.l.b16 %v5352
        %v5730 = vunpack.c.h.b16 %v5352
        %v5731 = vunpack.c.l.b16 %v5353
        %v5732 = vunpack.c.h.b16 %v5353
        %v5733 = vunpack.c.l.b16 %v5354
        %v5734 = vunpack.c.h.b16 %v5354
        %v5735 = vunpack.c.l.b16 %v5355
        %v5736 = vunpack.c.h.b16 %v5355
        %v5737 = vunpack.c.l.b16 %v5356
        %v5738 = vunpack.c.h.b16 %v5356
        %v5739 = vunpack.c.l.b16 %v5357
        %v5740 = vunpack.c.h.b16 %v5357
        %v5741 = vunpack.c.l.b16 %v5358
        %v5742 = vunpack.c.h.b16 %v5358
        %v5743 = vunpack.c.l.b16 %v5359
        %v5744 = vunpack.c.h.b16 %v5359
        %v5745 = vunpack.c.l.b16 %v5360
        %v5746 = vunpack.c.h.b16 %v5360
        %v5747 = vunpack.c.l.b16 %v5361
        %v5748 = vunpack.c.h.b16 %v5361
        %v5749 = vunpack.c.l.b16 %v5362
        %v5750 = vunpack.c.h.b16 %v5362
        %v5751 = vunpack.c.l.b16 %v5363
        %v5752 = vunpack.c.h.b16 %v5363
        %v5753 = vunpack.c.l.b16 %v5364
        %v5754 = vunpack.c.h.b16 %v5364
        %v5755 = vunpack.c.l.b16 %v5365
        %v5756 = vunpack.c.h.b16 %v5365
        %v5757 = vunpack.c.l.b16 %v5366
        %v5758 = vunpack.c.h.b16 %v5366
        %v5759 = vunpack.c.l.b16 %v5367
        %v5760 = vunpack.c.h.b16 %v5367
        %v5761 = vunpack.c.l.b16 %v5368
        %v5762 = vunpack.c.h.b16 %v5368
        %v5763 = vunpack.c.l.b16 %v5369
        %v5764 = vunpack.c.h.b16 %v5369
        %v5765 = vunpack.c.l.b16 %v5370
        %v5766 = vunpack.c.h.b16 %v5370
        %v5767 = vunpack.c.l.b16 %v5371
        %v5768 = vunpack.c.h.b16 %v5371
        %v5769 = vunpack.c.l.b16 %v5372
        %v5770 = vunpack.c.h.b16 %v5372
        %v5771 = vunpack.c.l.b16 %v5373
        %v5772 = vunpack.c.h.b16 %v5373
        %v5773 = vunpack.c.l.b16 %v5374
        %v5774 = vunpack.c.h.b16 %v5374
        %v5775 = vunpack.c.l.b16 %v5375
        %v5776 = vunpack.c.h.b16 %v5375
        %v5777 = vunpack.c.l.b16 %v5376
        %v5778 = vunpack.c.h.b16 %v5376
        %v5779 = vunpack.c.l.b16 %v5377
        %v5780 = vunpack.c.h.b16 %v5377
        %v5781 = vunpack.c.l.b16 %v5378
        %v5782 = vunpack.c.h.b16 %v5378
        %v5783 = vunpack.c.l.b16 %v5379
        %v5784 = vunpack.c.h.b16 %v5379
        %v5785 = vunpack.c.l.b16 %v5380
        %v5786 = vunpack.c.h.b16 %v5380
        %v5787 = vunpack.c.l.b16 %v5381
        %v5788 = vunpack.c.h.b16 %v5381
        %v5789 = vunpack.c.l.b16 %v5382
        %v5790 = vunpack.c.h.b16 %v5382
        %v5791 = vunpack.c.l.b16 %v5383
        %v5792 = vunpack.c.h.b16 %v5383
        %v5793 = vunpack.c.l.b16 %v5384
        %v5794 = vunpack.c.h.b16 %v5384
        %v5795 = vunpack.c.l.b16 %v5385
        %v5796 = vunpack.c.h.b16 %v5385
        %v5797 = vunpack.c.l.b16 %v5386
        %v5798 = vunpack.c.h.b16 %v5386
        %v5799 = vunpack.c.l.b16 %v5387
        %v5800 = vunpack.c.h.b16 %v5387
        %v5801 = vunpack.c.l.b16 %v5388
        %v5802 = vunpack.c.h.b16 %v5388
        %v5803 = vunpack.c.l.b16 %v5389
        %v5804 = vunpack.c.h.b16 %v5389
        %v5805 = vunpack.c.l.b16 %v5390
        %v5806 = vunpack.c.h.b16 %v5390
        %v5807 = vunpack.c.l.b16 %v5391
        %v5808 = vunpack.c.h.b16 %v5391
        %v5809 = vunpack.c.l.b16 %v5392
        %v5810 = vunpack.c.h.b16 %v5392
        %v5811 = vunpack.c.l.b16 %v5393
        %v5812 = vunpack.c.h.b16 %v5393
        %v5813 = vunpack.c.l.b16 %v5394
        %v5814 = vunpack.c.h.b16 %v5394
        %v5815 = vunpack.c.l.b16 %v5395
        %v5816 = vunpack.c.h.b16 %v5395
        %v5817 = vunpack.c.l.b16 %v5396
        %v5818 = vunpack.c.h.b16 %v5396
        %v5819 = vunpack.c.l.b16 %v5397
        %v5820 = vunpack.c.h.b16 %v5397
        %v5821 = vunpack.c.l.b16 %v5398
        %v5822 = vunpack.c.h.b16 %v5398
        %v5823 = vunpack.c.l.b16 %v5399
        %v5824 = vunpack.c.h.b16 %v5399
        %v5825 = vunpack.c.l.b16 %v5400
        %v5826 = vunpack.c.h.b16 %v5400
        %v5827 = vunpack.c.l.b16 %v5401
        %v5828 = vunpack.c.h.b16 %v5401
        %v5829 = vpack.c.b16 %v5581, %v5573
        %v5830 = vpack.c.b16 %v5582, %v5574
        %v5831 = vpack.c.b16 %v5583, %v5575
        %v5832 = vpack.c.b16 %v5584, %v5576
        %v5833 = vpack.c.b16 %v5585, %v5577
        %v5834 = vpack.c.b16 %v5586, %v5578
        %v5835 = vpack.c.b16 %v5587, %v5579
        %v5836 = vpack.c.b16 %v5588, %v5580
        %v5837 = vpack.c.b16 %v5597, %v5589
        %v5838 = vpack.c.b16 %v5598, %v5590
        %v5839 = vpack.c.b16 %v5599, %v5591
        %v5840 = vpack.c.b16 %v5600, %v5592
        %v5841 = vpack.c.b16 %v5601, %v5593
        %v5842 = vpack.c.b16 %v5602, %v5594
        %v5843 = vpack.c.b16 %v5603, %v5595
        %v5844 = vpack.c.b16 %v5604, %v5596
        %v5845 = vpack.c.b16 %v5613, %v5605
        %v5846 = vpack.c.b16 %v5614, %v5606
        %v5847 = vpack.c.b16 %v5615, %v5607
        %v5848 = vpack.c.b16 %v5616, %v5608
        %v5849 = vpack.c.b16 %v5617, %v5609
        %v5850 = vpack.c.b16 %v5618, %v5610
        %v5851 = vpack.c.b16 %v5619, %v5611
        %v5852 = vpack.c.b16 %v5620, %v5612
        %v5853 = vpack.c.b16 %v5629, %v5621
        %v5854 = vpack.c.b16 %v5630, %v5622
        %v5855 = vpack.c.b16 %v5631, %v5623
        %v5856 = vpack.c.b16 %v5632, %v5624
        %v5857 = vpack.c.b16 %v5633, %v5625
        %v5858 = vpack.c.b16 %v5634, %v5626
        %v5859 = vpack.c.b16 %v5635, %v5627
        %v5860 = vpack.c.b16 %v5636, %v5628
        %v5861 = vpack.c.b16 %v5645, %v5637
        %v5862 = vpack.c.b16 %v5646, %v5638
        %v5863 = vpack.c.b16 %v5647, %v5639
        %v5864 = vpack.c.b16 %v5648, %v5640
        %v5865 = vpack.c.b16 %v5649, %v5641
        %v5866 = vpack.c.b16 %v5650, %v5642
        %v5867 = vpack.c.b16 %v5651, %v5643
        %v5868 = vpack.c.b16 %v5652, %v5644
        %v5869 = vpack.c.b16 %v5661, %v5653
        %v5870 = vpack.c.b16 %v5662, %v5654
        %v5871 = vpack.c.b16 %v5663, %v5655
        %v5872 = vpack.c.b16 %v5664, %v5656
        %v5873 = vpack.c.b16 %v5665, %v5657
        %v5874 = vpack.c.b16 %v5666, %v5658
        %v5875 = vpack.c.b16 %v5667, %v5659
        %v5876 = vpack.c.b16 %v5668, %v5660
        %v5877 = vpack.c.b16 %v5677, %v5669
        %v5878 = vpack.c.b16 %v5678, %v5670
        %v5879 = vpack.c.b16 %v5679, %v5671
        %v5880 = vpack.c.b16 %v5680, %v5672
        %v5881 = vpack.c.b16 %v5681, %v5673
        %v5882 = vpack.c.b16 %v5682, %v5674
        %v5883 = vpack.c.b16 %v5683, %v5675
        %v5884 = vpack.c.b16 %v5684, %v5676
        %v5885 = vpack.c.b16 %v5693, %v5685
        %v5886 = vpack.c.b16 %v5694, %v5686
        %v5887 = vpack.c.b16 %v5695, %v5687
        %v5888 = vpack.c.b16 %v5696, %v5688
        %v5889 = vpack.c.b16 %v5697, %v5689
        %v5890 = vpack.c.b16 %v5698, %v5690
        %v5891 = vpack.c.b16 %v5699, %v5691
        %v5892 = vpack.c.b16 %v5700, %v5692
        %v5893 = vpack.c.b16 %v5709, %v5701
        %v5894 = vpack.c.b16 %v5710, %v5702
        %v5895 = vpack.c.b16 %v5711, %v5703
        %v5896 = vpack.c.b16 %v5712, %v5704
        %v5897 = vpack.c.b16 %v5713, %v5705
        %v5898 = vpack.c.b16 %v5714, %v5706
        %v5899 = vpack.c.b16 %v5715, %v5707
        %v5900 = vpack.c.b16 %v5716, %v5708
        %v5901 = vpack.c.b16 %v5725, %v5717
        %v5902 = vpack.c.b16 %v5726, %v5718
        %v5903 = vpack.c.b16 %v5727, %v5719
        %v5904 = vpack.c.b16 %v5728, %v5720
        %v5905 = vpack.c.b16 %v5729, %v5721
        %v5906 = vpack.c.b16 %v5730, %v5722
        %v5907 = vpack.c.b16 %v5731, %v5723
        %v5908 = vpack.c.b16 %v5732, %v5724
        %v5909 = vpack.c.b16 %v5741, %v5733
        %v5910 = vpack.c.b16 %v5742, %v5734
        %v5911 = vpack.c.b16 %v5743, %v5735
        %v5912 = vpack.c.b16 %v5744, %v5736
        %v5913 = vpack.c.b16 %v5745, %v5737
        %v5914 = vpack.c.b16 %v5746, %v5738
        %v5915 = vpack.c.b16 %v5747, %v5739
        %v5916 = vpack.c.b16 %v5748, %v5740
        %v5917 = vpack.c.b16 %v5757, %v5749
        %v5918 = vpack.c.b16 %v5758, %v5750
        %v5919 = vpack.c.b16 %v5759, %v5751
        %v5920 = vpack.c.b16 %v5760, %v5752
        %v5921 = vpack.c.b16 %v5761, %v5753
        %v5922 = vpack.c.b16 %v5762, %v5754
        %v5923 = vpack.c.b16 %v5763, %v5755
        %v5924 = vpack.c.b16 %v5764, %v5756
        %v5925 = vpack.c.b16 %v5773, %v5765
        %v5926 = vpack.c.b16 %v5774, %v5766
        %v5927 = vpack.c.b16 %v5775, %v5767
        %v5928 = vpack.c.b16 %v5776, %v5768
        %v5929 = vpack.c.b16 %v5777, %v5769
        %v5930 = vpack.c.b16 %v5778, %v5770
        %v5931 = vpack.c.b16 %v5779, %v5771
        %v5932 = vpack.c.b16 %v5780, %v5772
        %v5933 = vpack.c.b16 %v5789, %v5781
        %v5934 = vpack.c.b16 %v5790, %v5782
        %v5935 = vpack.c.b16 %v5791, %v5783
        %v5936 = vpack.c.b16 %v5792, %v5784
        %v5937 = vpack.c.b16 %v5793, %v5785
        %v5938 = vpack.c.b16 %v5794, %v5786
        %v5939 = vpack.c.b16 %v5795, %v5787
        %v5940 = vpack.c.b16 %v5796, %v5788
        %v5941 = vpack.c.b16 %v5805, %v5797
        %v5942 = vpack.c.b16 %v5806, %v5798
        %v5943 = vpack.c.b16 %v5807, %v5799
        %v5944 = vpack.c.b16 %v5808, %v5800
        %v5945 = vpack.c.b16 %v5809, %v5801
        %v5946 = vpack.c.b16 %v5810, %v5802
        %v5947 = vpack.c.b16 %v5811, %v5803
        %v5948 = vpack.c.b16 %v5812, %v5804
        %v5949 = vpack.c.b16 %v5821, %v5813
        %v5950 = vpack.c.b16 %v5822, %v5814
        %v5951 = vpack.c.b16 %v5823, %v5815
        %v5952 = vpack.c.b16 %v5824, %v5816
        %v5953 = vpack.c.b16 %v5825, %v5817
        %v5954 = vpack.c.b16 %v5826, %v5818
        %v5955 = vpack.c.b16 %v5827, %v5819
        %v5956 = vpack.c.b16 %v5828, %v5820
        %6085 = vmatprep.subr.bf16.mxu0 %v5830
        %6086 = vmatpush1.bf16.msra.mxu0 %v5829
        %6087 = vmatprep.subr.bf16.mxu0 %v5838
        %6088 = vmatpush1.bf16.msra.mxu0 %v5837
        %6089 = vmatprep.subr.bf16.mxu0 %v5846
        %6090 = vmatpush1.bf16.msra.mxu0 %v5845
        %6091 = vmatprep.subr.bf16.mxu0 %v5854
        %6092 = vmatpush1.bf16.msra.mxu0 %v5853
        %6093 = vmatprep.subr.bf16.mxu0 %v5862
        %6094 = vmatpush1.bf16.msra.mxu0 %v5861
        %6095 = vmatprep.subr.bf16.mxu0 %v5870
        %6096 = vmatpush1.bf16.msra.mxu0 %v5869
        %6097 = vmatprep.subr.bf16.mxu0 %v5878
        %6098 = vmatpush1.bf16.msra.mxu0 %v5877
        %6099 = vmatprep.subr.bf16.mxu0 %v5886
        %6100 = vmatpush1.bf16.msra.mxu0 %v5885
        %6101 = vmatprep.subr.bf16.mxu0 %v5894
        %6102 = vmatpush1.bf16.msra.mxu0 %v5893
        %6103 = vmatprep.subr.bf16.mxu0 %v5902
        %6104 = vmatpush1.bf16.msra.mxu0 %v5901
        %6105 = vmatprep.subr.bf16.mxu0 %v5910
        %6106 = vmatpush1.bf16.msra.mxu0 %v5909
        %6107 = vmatprep.subr.bf16.mxu0 %v5918
        %6108 = vmatpush1.bf16.msra.mxu0 %v5917
        %6109 = vmatprep.subr.bf16.mxu0 %v5926
        %6110 = vmatpush1.bf16.msra.mxu0 %v5925
        %6111 = vmatprep.subr.bf16.mxu0 %v5934
        %6112 = vmatpush1.bf16.msra.mxu0 %v5933
        %6113 = vmatprep.subr.bf16.mxu0 %v5942
        %6114 = vmatpush1.bf16.msra.mxu0 %v5941
        %6115 = vmatprep.subr.bf16.mxu0 %v5950
        %6116 = vmatpush1.bf16.msra.mxu0 %v5949
        %6117 = vmatprep.mubr.bf16.mxu0 %v5272
        %6118 = vmatmul.mubr.bf16.gmra.mrb[0].mxu0 %v5271
        %v6119 = vpop.f32.mrb[0].mxu0
        %v6120 = vadd.f32 %v5408, %v6119
        %v6121 = vpop.f32.mrb[0].mxu0
        %v6122 = vadd.f32 %v5412, %v6121
        %v6123 = vpop.f32.mrb[0].mxu0
        %v6124 = vadd.f32 %v5408, %v6123
        %v6125 = vpop.f32.mrb[0].mxu0
        %v6126 = vadd.f32 %v5412, %v6125
        %6127 = vdwg.mxu0
        %6128 = vmatprep.subr.bf16.mxu0 %v5832
        %6129 = vmatpush1.bf16.msra.mxu0 %v5831
        %6130 = vmatprep.subr.bf16.mxu0 %v5840
        %6131 = vmatpush1.bf16.msra.mxu0 %v5839
        %6132 = vmatprep.subr.bf16.mxu0 %v5848
        %6133 = vmatpush1.bf16.msra.mxu0 %v5847
        %6134 = vmatprep.subr.bf16.mxu0 %v5856
        %6135 = vmatpush1.bf16.msra.mxu0 %v5855
        %6136 = vmatprep.subr.bf16.mxu0 %v5864
        %6137 = vmatpush1.bf16.msra.mxu0 %v5863
        %6138 = vmatprep.subr.bf16.mxu0 %v5872
        %6139 = vmatpush1.bf16.msra.mxu0 %v5871
        %6140 = vmatprep.subr.bf16.mxu0 %v5880
        %6141 = vmatpush1.bf16.msra.mxu0 %v5879
        %6142 = vmatprep.subr.bf16.mxu0 %v5888
        %6143 = vmatpush1.bf16.msra.mxu0 %v5887
        %6144 = vmatprep.subr.bf16.mxu0 %v5896
        %6145 = vmatpush1.bf16.msra.mxu0 %v5895
        %6146 = vmatprep.subr.bf16.mxu0 %v5904
        %6147 = vmatpush1.bf16.msra.mxu0 %v5903
        %6148 = vmatprep.subr.bf16.mxu0 %v5912
        %6149 = vmatpush1.bf16.msra.mxu0 %v5911
        %6150 = vmatprep.subr.bf16.mxu0 %v5920
        %6151 = vmatpush1.bf16.msra.mxu0 %v5919
        %6152 = vmatprep.subr.bf16.mxu0 %v5928
        %6153 = vmatpush1.bf16.msra.mxu0 %v5927
        %6154 = vmatprep.subr.bf16.mxu0 %v5936
        %6155 = vmatpush1.bf16.msra.mxu0 %v5935
        %6156 = vmatprep.subr.bf16.mxu0 %v5944
        %6157 = vmatpush1.bf16.msra.mxu0 %v5943
        %6158 = vmatprep.subr.bf16.mxu0 %v5952
        %6159 = vmatpush1.bf16.msra.mxu0 %v5951
        %6160 = vmatprep.mubr.bf16.mxu0 %v5272
        %6161 = vmatmul.mubr.bf16.gmra.mrb[0].mxu0 %v5271
        %v6162 = vpop.f32.mrb[0].mxu0
        %v6163 = vadd.f32 %v5416, %v6162
        %v6164 = vpop.f32.mrb[0].mxu0
        %v6165 = vadd.f32 %v5420, %v6164
        %v6166 = vpop.f32.mrb[0].mxu0
        %v6167 = vadd.f32 %v5416, %v6166
        %v6168 = vpop.f32.mrb[0].mxu0
        %v6169 = vadd.f32 %v5420, %v6168
        %6170 = vdwg.mxu0
        %6171 = vmatprep.subr.bf16.mxu0 %v5834
        %6172 = vmatpush1.bf16.msra.mxu0 %v5833
        %6173 = vmatprep.subr.bf16.mxu0 %v5842
        %6174 = vmatpush1.bf16.msra.mxu0 %v5841
        %6175 = vmatprep.subr.bf16.mxu0 %v5850
        %6176 = vmatpush1.bf16.msra.mxu0 %v5849
        %6177 = vmatprep.subr.bf16.mxu0 %v5858
        %6178 = vmatpush1.bf16.msra.mxu0 %v5857
        %6179 = vmatprep.subr.bf16.mxu0 %v5866
        %6180 = vmatpush1.bf16.msra.mxu0 %v5865
        %6181 = vmatprep.subr.bf16.mxu0 %v5874
        %6182 = vmatpush1.bf16.msra.mxu0 %v5873
        %6183 = vmatprep.subr.bf16.mxu0 %v5882
        %6184 = vmatpush1.bf16.msra.mxu0 %v5881
        %6185 = vmatprep.subr.bf16.mxu0 %v5890
        %6186 = vmatpush1.bf16.msra.mxu0 %v5889
        %6187 = vmatprep.subr.bf16.mxu0 %v5898
        %6188 = vmatpush1.bf16.msra.mxu0 %v5897
        %6189 = vmatprep.subr.bf16.mxu0 %v5906
        %6190 = vmatpush1.bf16.msra.mxu0 %v5905
        %6191 = vmatprep.subr.bf16.mxu0 %v5914
        %6192 = vmatpush1.bf16.msra.mxu0 %v5913
        %6193 = vmatprep.subr.bf16.mxu0 %v5922
        %6194 = vmatpush1.bf16.msra.mxu0 %v5921
        %6195 = vmatprep.subr.bf16.mxu0 %v5930
        %6196 = vmatpush1.bf16.msra.mxu0 %v5929
        %6197 = vmatprep.subr.bf16.mxu0 %v5938
        %6198 = vmatpush1.bf16.msra.mxu0 %v5937
        %6199 = vmatprep.subr.bf16.mxu0 %v5946
        %6200 = vmatpush1.bf16.msra.mxu0 %v5945
        %6201 = vmatprep.subr.bf16.mxu0 %v5954
        %6202 = vmatpush1.bf16.msra.mxu0 %v5953
        %6203 = vmatprep.mubr.bf16.mxu0 %v5272
        %6204 = vmatmul.mubr.bf16.gmra.mrb[0].mxu0 %v5271
        %v6205 = vpop.f32.mrb[0].mxu0
        %v6206 = vadd.f32 %v5424, %v6205
        %v6207 = vpop.f32.mrb[0].mxu0
        %v6208 = vadd.f32 %v5428, %v6207
        %v6209 = vpop.f32.mrb[0].mxu0
        %v6210 = vadd.f32 %v5424, %v6209
        %v6211 = vpop.f32.mrb[0].mxu0
        %v6212 = vadd.f32 %v5428, %v6211
        %6213 = vdwg.mxu0
        %6214 = vmatprep.subr.bf16.mxu0 %v5836
        %6215 = vmatpush1.bf16.msra.mxu0 %v5835
        %6216 = vmatprep.subr.bf16.mxu0 %v5844
        %6217 = vmatpush1.bf16.msra.mxu0 %v5843
        %6218 = vmatprep.subr.bf16.mxu0 %v5852
        %6219 = vmatpush1.bf16.msra.mxu0 %v5851
        %6220 = vmatprep.subr.bf16.mxu0 %v5860
        %6221 = vmatpush1.bf16.msra.mxu0 %v5859
        %6222 = vmatprep.subr.bf16.mxu0 %v5868
        %6223 = vmatpush1.bf16.msra.mxu0 %v5867
        %6224 = vmatprep.subr.bf16.mxu0 %v5876
        %6225 = vmatpush1.bf16.msra.mxu0 %v5875
        %6226 = vmatprep.subr.bf16.mxu0 %v5884
        %6227 = vmatpush1.bf16.msra.mxu0 %v5883
        %6228 = vmatprep.subr.bf16.mxu0 %v5892
        %6229 = vmatpush1.bf16.msra.mxu0 %v5891
        %6230 = vmatprep.subr.bf16.mxu0 %v5900
        %6231 = vmatpush1.bf16.msra.mxu0 %v5899
        %6232 = vmatprep.subr.bf16.mxu0 %v5908
        %6233 = vmatpush1.bf16.msra.mxu0 %v5907
        %6234 = vmatprep.subr.bf16.mxu0 %v5916
        %6235 = vmatpush1.bf16.msra.mxu0 %v5915
        %6236 = vmatprep.subr.bf16.mxu0 %v5924
        %6237 = vmatpush1.bf16.msra.mxu0 %v5923
        %6238 = vmatprep.subr.bf16.mxu0 %v5932
        %6239 = vmatpush1.bf16.msra.mxu0 %v5931
        %6240 = vmatprep.subr.bf16.mxu0 %v5940
        %6241 = vmatpush1.bf16.msra.mxu0 %v5939
        %6242 = vmatprep.subr.bf16.mxu0 %v5948
        %6243 = vmatpush1.bf16.msra.mxu0 %v5947
        %6244 = vmatprep.subr.bf16.mxu0 %v5956
        %6245 = vmatpush1.bf16.msra.mxu0 %v5955
        %6246 = vmatprep.mubr.bf16.mxu0 %v5272
        %6247 = vmatmul.mubr.bf16.gmra.mrb[0].mxu0 %v5271
        %v6248 = vpop.f32.mrb[0].mxu0
        %v6249 = vadd.f32 %v5432, %v6248
        %v6250 = vpop.f32.mrb[0].mxu0
        %v6251 = vadd.f32 %v5436, %v6250
        %v6252 = vpop.f32.mrb[0].mxu0
        %v6253 = vadd.f32 %v5432, %v6252
        %v6254 = vpop.f32.mrb[0].mxu0
        %v6255 = vadd.f32 %v5436, %v6254
        %6256 = vdwg.mxu0
        %v6257 = vmax.f32 %v6120, 0.0
        %v6258 = vmax.f32 %v6122, 0.0
        %v6259 = vmax.f32 %v6163, 0.0
        %v6260 = vmax.f32 %v6165, 0.0
        %v6261 = vmax.f32 %v6124, 0.0
        %v6262 = vmax.f32 %v6126, 0.0
        %v6263 = vmax.f32 %v6167, 0.0
        %v6264 = vmax.f32 %v6169, 0.0
        %v6265 = vpack.c.bf16 %v6261, %v6257
        %v6266 = vpack.c.bf16 %v6262, %v6258
        %v6267 = vpack.c.bf16 %v6263, %v6259
        %v6268 = vpack.c.bf16 %v6264, %v6260
        %s6269 = scalar_lea.vmem [#allocation16], 1024
        %v6270 = vld [vmem:[%s6269] sm:$0xff]
        %v6271 = vld [vmem:[%s6269 + $0x8] sm:$0xff]
        %v6272 = vld [vmem:[%s6269 + $0x10] sm:$0xff]
        %v6273 = vld [vmem:[%s6269 + $0x18] sm:$0xff]
        %v6274 = vld [vmem:[%s6269 + $0x20] sm:$0xff]
        %v6275 = vld [vmem:[%s6269 + $0x28] sm:$0xff]
        %v6276 = vld [vmem:[%s6269 + $0x30] sm:$0xff]
        %v6277 = vld [vmem:[%s6269 + $0x38] sm:$0xff]
        %v6278 = vld [vmem:[%s6269 + $0x40] sm:$0xff]
        %v6279 = vld [vmem:[%s6269 + $0x48] sm:$0xff]
        %v6280 = vld [vmem:[%s6269 + $0x50] sm:$0xff]
        %v6281 = vld [vmem:[%s6269 + $0x58] sm:$0xff]
        %v6282 = vld [vmem:[%s6269 + $0x60] sm:$0xff]
        %v6283 = vld [vmem:[%s6269 + $0x68] sm:$0xff]
        %v6284 = vld [vmem:[%s6269 + $0x70] sm:$0xff]
        %v6285 = vld [vmem:[%s6269 + $0x78] sm:$0xff]
        %v6286 = vld [vmem:[%s6269 + $0x80] sm:$0xff]
        %v6287 = vld [vmem:[%s6269 + $0x88] sm:$0xff]
        %v6288 = vld [vmem:[%s6269 + $0x90] sm:$0xff]
        %v6289 = vld [vmem:[%s6269 + $0x98] sm:$0xff]
        %v6290 = vld [vmem:[%s6269 + $0xa0] sm:$0xff]
        %v6291 = vld [vmem:[%s6269 + $0xa8] sm:$0xff]
        %v6292 = vld [vmem:[%s6269 + $0xb0] sm:$0xff]
        %v6293 = vld [vmem:[%s6269 + $0xb8] sm:$0xff]
        %v6294 = vld [vmem:[%s6269 + $0xc0] sm:$0xff]
        %v6295 = vld [vmem:[%s6269 + $0xc8] sm:$0xff]
        %v6296 = vld [vmem:[%s6269 + $0xd0] sm:$0xff]
        %v6297 = vld [vmem:[%s6269 + $0xd8] sm:$0xff]
        %v6298 = vld [vmem:[%s6269 + $0xe0] sm:$0xff]
        %v6299 = vld [vmem:[%s6269 + $0xe8] sm:$0xff]
        %v6300 = vld [vmem:[%s6269 + $0xf0] sm:$0xff]
        %v6301 = vld [vmem:[%s6269 + $0xf8] sm:$0xff]
        %v6302 = vld [vmem:[%s6269 + $0x100] sm:$0xff]
        %v6303 = vld [vmem:[%s6269 + $0x108] sm:$0xff]
        %v6304 = vld [vmem:[%s6269 + $0x110] sm:$0xff]
        %v6305 = vld [vmem:[%s6269 + $0x118] sm:$0xff]
        %v6306 = vld [vmem:[%s6269 + $0x120] sm:$0xff]
        %v6307 = vld [vmem:[%s6269 + $0x128] sm:$0xff]
        %v6308 = vld [vmem:[%s6269 + $0x130] sm:$0xff]
        %v6309 = vld [vmem:[%s6269 + $0x138] sm:$0xff]
        %v6310 = vld [vmem:[%s6269 + $0x140] sm:$0xff]
        %v6311 = vld [vmem:[%s6269 + $0x148] sm:$0xff]
        %v6312 = vld [vmem:[%s6269 + $0x150] sm:$0xff]
        %v6313 = vld [vmem:[%s6269 + $0x158] sm:$0xff]
        %v6314 = vld [vmem:[%s6269 + $0x160] sm:$0xff]
        %v6315 = vld [vmem:[%s6269 + $0x168] sm:$0xff]
        %v6316 = vld [vmem:[%s6269 + $0x170] sm:$0xff]
        %v6317 = vld [vmem:[%s6269 + $0x178] sm:$0xff]
        %v6318 = vld [vmem:[%s6269 + $0x180] sm:$0xff]
        %v6319 = vld [vmem:[%s6269 + $0x188] sm:$0xff]
        %v6320 = vld [vmem:[%s6269 + $0x190] sm:$0xff]
        %v6321 = vld [vmem:[%s6269 + $0x198] sm:$0xff]
        %v6322 = vld [vmem:[%s6269 + $0x1a0] sm:$0xff]
        %v6323 = vld [vmem:[%s6269 + $0x1a8] sm:$0xff]
        %v6324 = vld [vmem:[%s6269 + $0x1b0] sm:$0xff]
        %v6325 = vld [vmem:[%s6269 + $0x1b8] sm:$0xff]
        %v6326 = vld [vmem:[%s6269 + $0x1c0] sm:$0xff]
        %v6327 = vld [vmem:[%s6269 + $0x1c8] sm:$0xff]
        %v6328 = vld [vmem:[%s6269 + $0x1d0] sm:$0xff]
        %v6329 = vld [vmem:[%s6269 + $0x1d8] sm:$0xff]
        %v6330 = vld [vmem:[%s6269 + $0x1e0] sm:$0xff]
        %v6331 = vld [vmem:[%s6269 + $0x1e8] sm:$0xff]
        %v6332 = vld [vmem:[%s6269 + $0x1f0] sm:$0xff]
        %v6333 = vld [vmem:[%s6269 + $0x1f8] sm:$0xff]
        %v6334 = vld [vmem:[%s6269 + $0x200] sm:$0xff]
        %v6335 = vld [vmem:[%s6269 + $0x208] sm:$0xff]
        %v6336 = vld [vmem:[%s6269 + $0x210] sm:$0xff]
        %v6337 = vld [vmem:[%s6269 + $0x218] sm:$0xff]
        %v6338 = vld [vmem:[%s6269 + $0x220] sm:$0xff]
        %v6339 = vld [vmem:[%s6269 + $0x228] sm:$0xff]
        %v6340 = vld [vmem:[%s6269 + $0x230] sm:$0xff]
        %v6341 = vld [vmem:[%s6269 + $0x238] sm:$0xff]
        %v6342 = vld [vmem:[%s6269 + $0x240] sm:$0xff]
        %v6343 = vld [vmem:[%s6269 + $0x248] sm:$0xff]
        %v6344 = vld [vmem:[%s6269 + $0x250] sm:$0xff]
        %v6345 = vld [vmem:[%s6269 + $0x258] sm:$0xff]
        %v6346 = vld [vmem:[%s6269 + $0x260] sm:$0xff]
        %v6347 = vld [vmem:[%s6269 + $0x268] sm:$0xff]
        %v6348 = vld [vmem:[%s6269 + $0x270] sm:$0xff]
        %v6349 = vld [vmem:[%s6269 + $0x278] sm:$0xff]
        %v6350 = vld [vmem:[%s6269 + $0x280] sm:$0xff]
        %v6351 = vld [vmem:[%s6269 + $0x288] sm:$0xff]
        %v6352 = vld [vmem:[%s6269 + $0x290] sm:$0xff]
        %v6353 = vld [vmem:[%s6269 + $0x298] sm:$0xff]
        %v6354 = vld [vmem:[%s6269 + $0x2a0] sm:$0xff]
        %v6355 = vld [vmem:[%s6269 + $0x2a8] sm:$0xff]
        %v6356 = vld [vmem:[%s6269 + $0x2b0] sm:$0xff]
        %v6357 = vld [vmem:[%s6269 + $0x2b8] sm:$0xff]
        %v6358 = vld [vmem:[%s6269 + $0x2c0] sm:$0xff]
        %v6359 = vld [vmem:[%s6269 + $0x2c8] sm:$0xff]
        %v6360 = vld [vmem:[%s6269 + $0x2d0] sm:$0xff]
        %v6361 = vld [vmem:[%s6269 + $0x2d8] sm:$0xff]
        %v6362 = vld [vmem:[%s6269 + $0x2e0] sm:$0xff]
        %v6363 = vld [vmem:[%s6269 + $0x2e8] sm:$0xff]
        %v6364 = vld [vmem:[%s6269 + $0x2f0] sm:$0xff]
        %v6365 = vld [vmem:[%s6269 + $0x2f8] sm:$0xff]
        %v6366 = vld [vmem:[%s6269 + $0x300] sm:$0xff]
        %v6367 = vld [vmem:[%s6269 + $0x308] sm:$0xff]
        %v6368 = vld [vmem:[%s6269 + $0x310] sm:$0xff]
        %v6369 = vld [vmem:[%s6269 + $0x318] sm:$0xff]
        %v6370 = vld [vmem:[%s6269 + $0x320] sm:$0xff]
        %v6371 = vld [vmem:[%s6269 + $0x328] sm:$0xff]
        %v6372 = vld [vmem:[%s6269 + $0x330] sm:$0xff]
        %v6373 = vld [vmem:[%s6269 + $0x338] sm:$0xff]
        %v6374 = vld [vmem:[%s6269 + $0x340] sm:$0xff]
        %v6375 = vld [vmem:[%s6269 + $0x348] sm:$0xff]
        %v6376 = vld [vmem:[%s6269 + $0x350] sm:$0xff]
        %v6377 = vld [vmem:[%s6269 + $0x358] sm:$0xff]
        %v6378 = vld [vmem:[%s6269 + $0x360] sm:$0xff]
        %v6379 = vld [vmem:[%s6269 + $0x368] sm:$0xff]
        %v6380 = vld [vmem:[%s6269 + $0x370] sm:$0xff]
        %v6381 = vld [vmem:[%s6269 + $0x378] sm:$0xff]
        %v6382 = vld [vmem:[%s6269 + $0x380] sm:$0xff]
        %v6383 = vld [vmem:[%s6269 + $0x388] sm:$0xff]
        %v6384 = vld [vmem:[%s6269 + $0x390] sm:$0xff]
        %v6385 = vld [vmem:[%s6269 + $0x398] sm:$0xff]
        %v6386 = vld [vmem:[%s6269 + $0x3a0] sm:$0xff]
        %v6387 = vld [vmem:[%s6269 + $0x3a8] sm:$0xff]
        %v6388 = vld [vmem:[%s6269 + $0x3b0] sm:$0xff]
        %v6389 = vld [vmem:[%s6269 + $0x3b8] sm:$0xff]
        %v6390 = vld [vmem:[%s6269 + $0x3c0] sm:$0xff]
        %v6391 = vld [vmem:[%s6269 + $0x3c8] sm:$0xff]
        %v6392 = vld [vmem:[%s6269 + $0x3d0] sm:$0xff]
        %v6393 = vld [vmem:[%s6269 + $0x3d8] sm:$0xff]
        %v6394 = vld [vmem:[%s6269 + $0x3e0] sm:$0xff]
        %v6395 = vld [vmem:[%s6269 + $0x3e8] sm:$0xff]
        %v6396 = vld [vmem:[%s6269 + $0x3f0] sm:$0xff]
        %v6397 = vld [vmem:[%s6269 + $0x3f8] sm:$0xff]
        %s6398 = scalar_lea.vmem %s13, 4
        %v6399 = vld [vmem:[%s6398] sm:$0xf]
        %v6401 = vlaneseq
        %v6402 = vshrl.u32 %v6401, 7
        %v6403 = vsub.s32 0, %v6402
        %v6404 = vrot.slane %v6399, %v6403
        %v6405 = vlaneseq
        %v6406 = vshrl.u32 %v6405, 7
        %v6407 = vsub.s32 1, %v6406
        %v6408 = vrot.slane %v6399, %v6407
        %v6409 = vlaneseq
        %v6410 = vshrl.u32 %v6409, 7
        %v6411 = vsub.s32 2, %v6410
        %v6412 = vrot.slane %v6399, %v6411
        %v6413 = vlaneseq
        %v6414 = vshrl.u32 %v6413, 7
        %v6415 = vsub.s32 3, %v6414
        %v6416 = vrot.slane %v6399, %v6415
        %v6549 = vunpack.c.l.b16 %v6270
        %v6550 = vunpack.c.h.b16 %v6270
        %v6551 = vunpack.c.l.b16 %v6271
        %v6552 = vunpack.c.h.b16 %v6271
        %v6553 = vunpack.c.l.b16 %v6272
        %v6554 = vunpack.c.h.b16 %v6272
        %v6555 = vunpack.c.l.b16 %v6273
        %v6556 = vunpack.c.h.b16 %v6273
        %v6557 = vunpack.c.l.b16 %v6274
        %v6558 = vunpack.c.h.b16 %v6274
        %v6559 = vunpack.c.l.b16 %v6275
        %v6560 = vunpack.c.h.b16 %v6275
        %v6561 = vunpack.c.l.b16 %v6276
        %v6562 = vunpack.c.h.b16 %v6276
        %v6563 = vunpack.c.l.b16 %v6277
        %v6564 = vunpack.c.h.b16 %v6277
        %v6565 = vunpack.c.l.b16 %v6278
        %v6566 = vunpack.c.h.b16 %v6278
        %v6567 = vunpack.c.l.b16 %v6279
        %v6568 = vunpack.c.h.b16 %v6279
        %v6569 = vunpack.c.l.b16 %v6280
        %v6570 = vunpack.c.h.b16 %v6280
        %v6571 = vunpack.c.l.b16 %v6281
        %v6572 = vunpack.c.h.b16 %v6281
        %v6573 = vunpack.c.l.b16 %v6282
        %v6574 = vunpack.c.h.b16 %v6282
        %v6575 = vunpack.c.l.b16 %v6283
        %v6576 = vunpack.c.h.b16 %v6283
        %v6577 = vunpack.c.l.b16 %v6284
        %v6578 = vunpack.c.h.b16 %v6284
        %v6579 = vunpack.c.l.b16 %v6285
        %v6580 = vunpack.c.h.b16 %v6285
        %v6581 = vunpack.c.l.b16 %v6286
        %v6582 = vunpack.c.h.b16 %v6286
        %v6583 = vunpack.c.l.b16 %v6287
        %v6584 = vunpack.c.h.b16 %v6287
        %v6585 = vunpack.c.l.b16 %v6288
        %v6586 = vunpack.c.h.b16 %v6288
        %v6587 = vunpack.c.l.b16 %v6289
        %v6588 = vunpack.c.h.b16 %v6289
        %v6589 = vunpack.c.l.b16 %v6290
        %v6590 = vunpack.c.h.b16 %v6290
        %v6591 = vunpack.c.l.b16 %v6291
        %v6592 = vunpack.c.h.b16 %v6291
        %v6593 = vunpack.c.l.b16 %v6292
        %v6594 = vunpack.c.h.b16 %v6292
        %v6595 = vunpack.c.l.b16 %v6293
        %v6596 = vunpack.c.h.b16 %v6293
        %v6597 = vunpack.c.l.b16 %v6294
        %v6598 = vunpack.c.h.b16 %v6294
        %v6599 = vunpack.c.l.b16 %v6295
        %v6600 = vunpack.c.h.b16 %v6295
        %v6601 = vunpack.c.l.b16 %v6296
        %v6602 = vunpack.c.h.b16 %v6296
        %v6603 = vunpack.c.l.b16 %v6297
        %v6604 = vunpack.c.h.b16 %v6297
        %v6605 = vunpack.c.l.b16 %v6298
        %v6606 = vunpack.c.h.b16 %v6298
        %v6607 = vunpack.c.l.b16 %v6299
        %v6608 = vunpack.c.h.b16 %v6299
        %v6609 = vunpack.c.l.b16 %v6300
        %v6610 = vunpack.c.h.b16 %v6300
        %v6611 = vunpack.c.l.b16 %v6301
        %v6612 = vunpack.c.h.b16 %v6301
        %v6613 = vunpack.c.l.b16 %v6302
        %v6614 = vunpack.c.h.b16 %v6302
        %v6615 = vunpack.c.l.b16 %v6303
        %v6616 = vunpack.c.h.b16 %v6303
        %v6617 = vunpack.c.l.b16 %v6304
        %v6618 = vunpack.c.h.b16 %v6304
        %v6619 = vunpack.c.l.b16 %v6305
        %v6620 = vunpack.c.h.b16 %v6305
        %v6621 = vunpack.c.l.b16 %v6306
        %v6622 = vunpack.c.h.b16 %v6306
        %v6623 = vunpack.c.l.b16 %v6307
        %v6624 = vunpack.c.h.b16 %v6307
        %v6625 = vunpack.c.l.b16 %v6308
        %v6626 = vunpack.c.h.b16 %v6308
        %v6627 = vunpack.c.l.b16 %v6309
        %v6628 = vunpack.c.h.b16 %v6309
        %v6629 = vunpack.c.l.b16 %v6310
        %v6630 = vunpack.c.h.b16 %v6310
        %v6631 = vunpack.c.l.b16 %v6311
        %v6632 = vunpack.c.h.b16 %v6311
        %v6633 = vunpack.c.l.b16 %v6312
        %v6634 = vunpack.c.h.b16 %v6312
        %v6635 = vunpack.c.l.b16 %v6313
        %v6636 = vunpack.c.h.b16 %v6313
        %v6637 = vunpack.c.l.b16 %v6314
        %v6638 = vunpack.c.h.b16 %v6314
        %v6639 = vunpack.c.l.b16 %v6315
        %v6640 = vunpack.c.h.b16 %v6315
        %v6641 = vunpack.c.l.b16 %v6316
        %v6642 = vunpack.c.h.b16 %v6316
        %v6643 = vunpack.c.l.b16 %v6317
        %v6644 = vunpack.c.h.b16 %v6317
        %v6645 = vunpack.c.l.b16 %v6318
        %v6646 = vunpack.c.h.b16 %v6318
        %v6647 = vunpack.c.l.b16 %v6319
        %v6648 = vunpack.c.h.b16 %v6319
        %v6649 = vunpack.c.l.b16 %v6320
        %v6650 = vunpack.c.h.b16 %v6320
        %v6651 = vunpack.c.l.b16 %v6321
        %v6652 = vunpack.c.h.b16 %v6321
        %v6653 = vunpack.c.l.b16 %v6322
        %v6654 = vunpack.c.h.b16 %v6322
        %v6655 = vunpack.c.l.b16 %v6323
        %v6656 = vunpack.c.h.b16 %v6323
        %v6657 = vunpack.c.l.b16 %v6324
        %v6658 = vunpack.c.h.b16 %v6324
        %v6659 = vunpack.c.l.b16 %v6325
        %v6660 = vunpack.c.h.b16 %v6325
        %v6661 = vunpack.c.l.b16 %v6326
        %v6662 = vunpack.c.h.b16 %v6326
        %v6663 = vunpack.c.l.b16 %v6327
        %v6664 = vunpack.c.h.b16 %v6327
        %v6665 = vunpack.c.l.b16 %v6328
        %v6666 = vunpack.c.h.b16 %v6328
        %v6667 = vunpack.c.l.b16 %v6329
        %v6668 = vunpack.c.h.b16 %v6329
        %v6669 = vunpack.c.l.b16 %v6330
        %v6670 = vunpack.c.h.b16 %v6330
        %v6671 = vunpack.c.l.b16 %v6331
        %v6672 = vunpack.c.h.b16 %v6331
        %v6673 = vunpack.c.l.b16 %v6332
        %v6674 = vunpack.c.h.b16 %v6332
        %v6675 = vunpack.c.l.b16 %v6333
        %v6676 = vunpack.c.h.b16 %v6333
        %v6677 = vunpack.c.l.b16 %v6334
        %v6678 = vunpack.c.h.b16 %v6334
        %v6679 = vunpack.c.l.b16 %v6335
        %v6680 = vunpack.c.h.b16 %v6335
        %v6681 = vunpack.c.l.b16 %v6336
        %v6682 = vunpack.c.h.b16 %v6336
        %v6683 = vunpack.c.l.b16 %v6337
        %v6684 = vunpack.c.h.b16 %v6337
        %v6685 = vunpack.c.l.b16 %v6338
        %v6686 = vunpack.c.h.b16 %v6338
        %v6687 = vunpack.c.l.b16 %v6339
        %v6688 = vunpack.c.h.b16 %v6339
        %v6689 = vunpack.c.l.b16 %v6340
        %v6690 = vunpack.c.h.b16 %v6340
        %v6691 = vunpack.c.l.b16 %v6341
        %v6692 = vunpack.c.h.b16 %v6341
        %v6693 = vunpack.c.l.b16 %v6342
        %v6694 = vunpack.c.h.b16 %v6342
        %v6695 = vunpack.c.l.b16 %v6343
        %v6696 = vunpack.c.h.b16 %v6343
        %v6697 = vunpack.c.l.b16 %v6344
        %v6698 = vunpack.c.h.b16 %v6344
        %v6699 = vunpack.c.l.b16 %v6345
        %v6700 = vunpack.c.h.b16 %v6345
        %v6701 = vunpack.c.l.b16 %v6346
        %v6702 = vunpack.c.h.b16 %v6346
        %v6703 = vunpack.c.l.b16 %v6347
        %v6704 = vunpack.c.h.b16 %v6347
        %v6705 = vunpack.c.l.b16 %v6348
        %v6706 = vunpack.c.h.b16 %v6348
        %v6707 = vunpack.c.l.b16 %v6349
        %v6708 = vunpack.c.h.b16 %v6349
        %v6709 = vunpack.c.l.b16 %v6350
        %v6710 = vunpack.c.h.b16 %v6350
        %v6711 = vunpack.c.l.b16 %v6351
        %v6712 = vunpack.c.h.b16 %v6351
        %v6713 = vunpack.c.l.b16 %v6352
        %v6714 = vunpack.c.h.b16 %v6352
        %v6715 = vunpack.c.l.b16 %v6353
        %v6716 = vunpack.c.h.b16 %v6353
        %v6717 = vunpack.c.l.b16 %v6354
        %v6718 = vunpack.c.h.b16 %v6354
        %v6719 = vunpack.c.l.b16 %v6355
        %v6720 = vunpack.c.h.b16 %v6355
        %v6721 = vunpack.c.l.b16 %v6356
        %v6722 = vunpack.c.h.b16 %v6356
        %v6723 = vunpack.c.l.b16 %v6357
        %v6724 = vunpack.c.h.b16 %v6357
        %v6725 = vunpack.c.l.b16 %v6358
        %v6726 = vunpack.c.h.b16 %v6358
        %v6727 = vunpack.c.l.b16 %v6359
        %v6728 = vunpack.c.h.b16 %v6359
        %v6729 = vunpack.c.l.b16 %v6360
        %v6730 = vunpack.c.h.b16 %v6360
        %v6731 = vunpack.c.l.b16 %v6361
        %v6732 = vunpack.c.h.b16 %v6361
        %v6733 = vunpack.c.l.b16 %v6362
        %v6734 = vunpack.c.h.b16 %v6362
        %v6735 = vunpack.c.l.b16 %v6363
        %v6736 = vunpack.c.h.b16 %v6363
        %v6737 = vunpack.c.l.b16 %v6364
        %v6738 = vunpack.c.h.b16 %v6364
        %v6739 = vunpack.c.l.b16 %v6365
        %v6740 = vunpack.c.h.b16 %v6365
        %v6741 = vunpack.c.l.b16 %v6366
        %v6742 = vunpack.c.h.b16 %v6366
        %v6743 = vunpack.c.l.b16 %v6367
        %v6744 = vunpack.c.h.b16 %v6367
        %v6745 = vunpack.c.l.b16 %v6368
        %v6746 = vunpack.c.h.b16 %v6368
        %v6747 = vunpack.c.l.b16 %v6369
        %v6748 = vunpack.c.h.b16 %v6369
        %v6749 = vunpack.c.l.b16 %v6370
        %v6750 = vunpack.c.h.b16 %v6370
        %v6751 = vunpack.c.l.b16 %v6371
        %v6752 = vunpack.c.h.b16 %v6371
        %v6753 = vunpack.c.l.b16 %v6372
        %v6754 = vunpack.c.h.b16 %v6372
        %v6755 = vunpack.c.l.b16 %v6373
        %v6756 = vunpack.c.h.b16 %v6373
        %v6757 = vunpack.c.l.b16 %v6374
        %v6758 = vunpack.c.h.b16 %v6374
        %v6759 = vunpack.c.l.b16 %v6375
        %v6760 = vunpack.c.h.b16 %v6375
        %v6761 = vunpack.c.l.b16 %v6376
        %v6762 = vunpack.c.h.b16 %v6376
        %v6763 = vunpack.c.l.b16 %v6377
        %v6764 = vunpack.c.h.b16 %v6377
        %v6765 = vunpack.c.l.b16 %v6378
        %v6766 = vunpack.c.h.b16 %v6378
        %v6767 = vunpack.c.l.b16 %v6379
        %v6768 = vunpack.c.h.b16 %v6379
        %v6769 = vunpack.c.l.b16 %v6380
        %v6770 = vunpack.c.h.b16 %v6380
        %v6771 = vunpack.c.l.b16 %v6381
        %v6772 = vunpack.c.h.b16 %v6381
        %v6773 = vunpack.c.l.b16 %v6382
        %v6774 = vunpack.c.h.b16 %v6382
        %v6775 = vunpack.c.l.b16 %v6383
        %v6776 = vunpack.c.h.b16 %v6383
        %v6777 = vunpack.c.l.b16 %v6384
        %v6778 = vunpack.c.h.b16 %v6384
        %v6779 = vunpack.c.l.b16 %v6385
        %v6780 = vunpack.c.h.b16 %v6385
        %v6781 = vunpack.c.l.b16 %v6386
        %v6782 = vunpack.c.h.b16 %v6386
        %v6783 = vunpack.c.l.b16 %v6387
        %v6784 = vunpack.c.h.b16 %v6387
        %v6785 = vunpack.c.l.b16 %v6388
        %v6786 = vunpack.c.h.b16 %v6388
        %v6787 = vunpack.c.l.b16 %v6389
        %v6788 = vunpack.c.h.b16 %v6389
        %v6789 = vunpack.c.l.b16 %v6390
        %v6790 = vunpack.c.h.b16 %v6390
        %v6791 = vunpack.c.l.b16 %v6391
        %v6792 = vunpack.c.h.b16 %v6391
        %v6793 = vunpack.c.l.b16 %v6392
        %v6794 = vunpack.c.h.b16 %v6392
        %v6795 = vunpack.c.l.b16 %v6393
        %v6796 = vunpack.c.h.b16 %v6393
        %v6797 = vunpack.c.l.b16 %v6394
        %v6798 = vunpack.c.h.b16 %v6394
        %v6799 = vunpack.c.l.b16 %v6395
        %v6800 = vunpack.c.h.b16 %v6395
        %v6801 = vunpack.c.l.b16 %v6396
        %v6802 = vunpack.c.h.b16 %v6396
        %v6803 = vunpack.c.l.b16 %v6397
        %v6804 = vunpack.c.h.b16 %v6397
        %v6805 = vpack.c.b16 %v6553, %v6549
        %v6806 = vpack.c.b16 %v6554, %v6550
        %v6807 = vpack.c.b16 %v6555, %v6551
        %v6808 = vpack.c.b16 %v6556, %v6552
        %v6809 = vpack.c.b16 %v6561, %v6557
        %v6810 = vpack.c.b16 %v6562, %v6558
        %v6811 = vpack.c.b16 %v6563, %v6559
        %v6812 = vpack.c.b16 %v6564, %v6560
        %v6813 = vpack.c.b16 %v6569, %v6565
        %v6814 = vpack.c.b16 %v6570, %v6566
        %v6815 = vpack.c.b16 %v6571, %v6567
        %v6816 = vpack.c.b16 %v6572, %v6568
        %v6817 = vpack.c.b16 %v6577, %v6573
        %v6818 = vpack.c.b16 %v6578, %v6574
        %v6819 = vpack.c.b16 %v6579, %v6575
        %v6820 = vpack.c.b16 %v6580, %v6576
        %v6821 = vpack.c.b16 %v6585, %v6581
        %v6822 = vpack.c.b16 %v6586, %v6582
        %v6823 = vpack.c.b16 %v6587, %v6583
        %v6824 = vpack.c.b16 %v6588, %v6584
        %v6825 = vpack.c.b16 %v6593, %v6589
        %v6826 = vpack.c.b16 %v6594, %v6590
        %v6827 = vpack.c.b16 %v6595, %v6591
        %v6828 = vpack.c.b16 %v6596, %v6592
        %v6829 = vpack.c.b16 %v6601, %v6597
        %v6830 = vpack.c.b16 %v6602, %v6598
        %v6831 = vpack.c.b16 %v6603, %v6599
        %v6832 = vpack.c.b16 %v6604, %v6600
        %v6833 = vpack.c.b16 %v6609, %v6605
        %v6834 = vpack.c.b16 %v6610, %v6606
        %v6835 = vpack.c.b16 %v6611, %v6607
        %v6836 = vpack.c.b16 %v6612, %v6608
        %v6837 = vpack.c.b16 %v6617, %v6613
        %v6838 = vpack.c.b16 %v6618, %v6614
        %v6839 = vpack.c.b16 %v6619, %v6615
        %v6840 = vpack.c.b16 %v6620, %v6616
        %v6841 = vpack.c.b16 %v6625, %v6621
        %v6842 = vpack.c.b16 %v6626, %v6622
        %v6843 = vpack.c.b16 %v6627, %v6623
        %v6844 = vpack.c.b16 %v6628, %v6624
        %v6845 = vpack.c.b16 %v6633, %v6629
        %v6846 = vpack.c.b16 %v6634, %v6630
        %v6847 = vpack.c.b16 %v6635, %v6631
        %v6848 = vpack.c.b16 %v6636, %v6632
        %v6849 = vpack.c.b16 %v6641, %v6637
        %v6850 = vpack.c.b16 %v6642, %v6638
        %v6851 = vpack.c.b16 %v6643, %v6639
        %v6852 = vpack.c.b16 %v6644, %v6640
        %v6853 = vpack.c.b16 %v6649, %v6645
        %v6854 = vpack.c.b16 %v6650, %v6646
        %v6855 = vpack.c.b16 %v6651, %v6647
        %v6856 = vpack.c.b16 %v6652, %v6648
        %v6857 = vpack.c.b16 %v6657, %v6653
        %v6858 = vpack.c.b16 %v6658, %v6654
        %v6859 = vpack.c.b16 %v6659, %v6655
        %v6860 = vpack.c.b16 %v6660, %v6656
        %v6861 = vpack.c.b16 %v6665, %v6661
        %v6862 = vpack.c.b16 %v6666, %v6662
        %v6863 = vpack.c.b16 %v6667, %v6663
        %v6864 = vpack.c.b16 %v6668, %v6664
        %v6865 = vpack.c.b16 %v6673, %v6669
        %v6866 = vpack.c.b16 %v6674, %v6670
        %v6867 = vpack.c.b16 %v6675, %v6671
        %v6868 = vpack.c.b16 %v6676, %v6672
        %v6869 = vpack.c.b16 %v6681, %v6677
        %v6870 = vpack.c.b16 %v6682, %v6678
        %v6871 = vpack.c.b16 %v6683, %v6679
        %v6872 = vpack.c.b16 %v6684, %v6680
        %v6873 = vpack.c.b16 %v6689, %v6685
        %v6874 = vpack.c.b16 %v6690, %v6686
        %v6875 = vpack.c.b16 %v6691, %v6687
        %v6876 = vpack.c.b16 %v6692, %v6688
        %v6877 = vpack.c.b16 %v6697, %v6693
        %v6878 = vpack.c.b16 %v6698, %v6694
        %v6879 = vpack.c.b16 %v6699, %v6695
        %v6880 = vpack.c.b16 %v6700, %v6696
        %v6881 = vpack.c.b16 %v6705, %v6701
        %v6882 = vpack.c.b16 %v6706, %v6702
        %v6883 = vpack.c.b16 %v6707, %v6703
        %v6884 = vpack.c.b16 %v6708, %v6704
        %v6885 = vpack.c.b16 %v6713, %v6709
        %v6886 = vpack.c.b16 %v6714, %v6710
        %v6887 = vpack.c.b16 %v6715, %v6711
        %v6888 = vpack.c.b16 %v6716, %v6712
        %v6889 = vpack.c.b16 %v6721, %v6717
        %v6890 = vpack.c.b16 %v6722, %v6718
        %v6891 = vpack.c.b16 %v6723, %v6719
        %v6892 = vpack.c.b16 %v6724, %v6720
        %v6893 = vpack.c.b16 %v6729, %v6725
        %v6894 = vpack.c.b16 %v6730, %v6726
        %v6895 = vpack.c.b16 %v6731, %v6727
        %v6896 = vpack.c.b16 %v6732, %v6728
        %v6897 = vpack.c.b16 %v6737, %v6733
        %v6898 = vpack.c.b16 %v6738, %v6734
        %v6899 = vpack.c.b16 %v6739, %v6735
        %v6900 = vpack.c.b16 %v6740, %v6736
        %v6901 = vpack.c.b16 %v6745, %v6741
        %v6902 = vpack.c.b16 %v6746, %v6742
        %v6903 = vpack.c.b16 %v6747, %v6743
        %v6904 = vpack.c.b16 %v6748, %v6744
        %v6905 = vpack.c.b16 %v6753, %v6749
        %v6906 = vpack.c.b16 %v6754, %v6750
        %v6907 = vpack.c.b16 %v6755, %v6751
        %v6908 = vpack.c.b16 %v6756, %v6752
        %v6909 = vpack.c.b16 %v6761, %v6757
        %v6910 = vpack.c.b16 %v6762, %v6758
        %v6911 = vpack.c.b16 %v6763, %v6759
        %v6912 = vpack.c.b16 %v6764, %v6760
        %v6913 = vpack.c.b16 %v6769, %v6765
        %v6914 = vpack.c.b16 %v6770, %v6766
        %v6915 = vpack.c.b16 %v6771, %v6767
        %v6916 = vpack.c.b16 %v6772, %v6768
        %v6917 = vpack.c.b16 %v6777, %v6773
        %v6918 = vpack.c.b16 %v6778, %v6774
        %v6919 = vpack.c.b16 %v6779, %v6775
        %v6920 = vpack.c.b16 %v6780, %v6776
        %v6921 = vpack.c.b16 %v6785, %v6781
        %v6922 = vpack.c.b16 %v6786, %v6782
        %v6923 = vpack.c.b16 %v6787, %v6783
        %v6924 = vpack.c.b16 %v6788, %v6784
        %v6925 = vpack.c.b16 %v6793, %v6789
        %v6926 = vpack.c.b16 %v6794, %v6790
        %v6927 = vpack.c.b16 %v6795, %v6791
        %v6928 = vpack.c.b16 %v6796, %v6792
        %v6929 = vpack.c.b16 %v6801, %v6797
        %v6930 = vpack.c.b16 %v6802, %v6798
        %v6931 = vpack.c.b16 %v6803, %v6799
        %v6932 = vpack.c.b16 %v6804, %v6800
        %7061 = vmatprep.subr.bf16.mxu0 %v6806
        %7062 = vmatpush1.bf16.msra.mxu0 %v6805
        %7063 = vmatprep.subr.bf16.mxu0 %v6810
        %7064 = vmatpush1.bf16.msra.mxu0 %v6809
        %7065 = vmatprep.subr.bf16.mxu0 %v6814
        %7066 = vmatpush1.bf16.msra.mxu0 %v6813
        %7067 = vmatprep.subr.bf16.mxu0 %v6818
        %7068 = vmatpush1.bf16.msra.mxu0 %v6817
        %7069 = vmatprep.subr.bf16.mxu0 %v6822
        %7070 = vmatpush1.bf16.msra.mxu0 %v6821
        %7071 = vmatprep.subr.bf16.mxu0 %v6826
        %7072 = vmatpush1.bf16.msra.mxu0 %v6825
        %7073 = vmatprep.subr.bf16.mxu0 %v6830
        %7074 = vmatpush1.bf16.msra.mxu0 %v6829
        %7075 = vmatprep.subr.bf16.mxu0 %v6834
        %7076 = vmatpush1.bf16.msra.mxu0 %v6833
        %7077 = vmatprep.subr.bf16.mxu0 %v6838
        %7078 = vmatpush1.bf16.msra.mxu0 %v6837
        %7079 = vmatprep.subr.bf16.mxu0 %v6842
        %7080 = vmatpush1.bf16.msra.mxu0 %v6841
        %7081 = vmatprep.subr.bf16.mxu0 %v6846
        %7082 = vmatpush1.bf16.msra.mxu0 %v6845
        %7083 = vmatprep.subr.bf16.mxu0 %v6850
        %7084 = vmatpush1.bf16.msra.mxu0 %v6849
        %7085 = vmatprep.subr.bf16.mxu0 %v6854
        %7086 = vmatpush1.bf16.msra.mxu0 %v6853
        %7087 = vmatprep.subr.bf16.mxu0 %v6858
        %7088 = vmatpush1.bf16.msra.mxu0 %v6857
        %7089 = vmatprep.subr.bf16.mxu0 %v6862
        %7090 = vmatpush1.bf16.msra.mxu0 %v6861
        %7091 = vmatprep.subr.bf16.mxu0 %v6866
        %7092 = vmatpush1.bf16.msra.mxu0 %v6865
        %7093 = vmatprep.mubr.bf16.mxu0 %v6266
        %7094 = vmatmul.mubr.bf16.gmra.mrb[0].mxu0 %v6265
        %v7095 = vpop.f32.mrb[0].mxu0
        %v7096 = vadd.f32 %v6404, %v7095
        %v7097 = vpop.f32.mrb[0].mxu0
        %v7098 = vadd.f32 %v6408, %v7097
        %v7099 = vpop.f32.mrb[0].mxu0
        %v7100 = vadd.f32 %v6404, %v7099
        %v7101 = vpop.f32.mrb[0].mxu0
        %v7102 = vadd.f32 %v6408, %v7101
        %7103 = vdwg.mxu0
        %7104 = vmatprep.subr.bf16.mxu0 %v6870
        %7105 = vmatpush1.bf16.msra.mxu0 %v6869
        %7106 = vmatprep.subr.bf16.mxu0 %v6874
        %7107 = vmatpush1.bf16.msra.mxu0 %v6873
        %7108 = vmatprep.subr.bf16.mxu0 %v6878
        %7109 = vmatpush1.bf16.msra.mxu0 %v6877
        %7110 = vmatprep.subr.bf16.mxu0 %v6882
        %7111 = vmatpush1.bf16.msra.mxu0 %v6881
        %7112 = vmatprep.subr.bf16.mxu0 %v6886
        %7113 = vmatpush1.bf16.msra.mxu0 %v6885
        %7114 = vmatprep.subr.bf16.mxu0 %v6890
        %7115 = vmatpush1.bf16.msra.mxu0 %v6889
        %7116 = vmatprep.subr.bf16.mxu0 %v6894
        %7117 = vmatpush1.bf16.msra.mxu0 %v6893
        %7118 = vmatprep.subr.bf16.mxu0 %v6898
        %7119 = vmatpush1.bf16.msra.mxu0 %v6897
        %7120 = vmatprep.subr.bf16.mxu0 %v6902
        %7121 = vmatpush1.bf16.msra.mxu0 %v6901
        %7122 = vmatprep.subr.bf16.mxu0 %v6906
        %7123 = vmatpush1.bf16.msra.mxu0 %v6905
        %7124 = vmatprep.subr.bf16.mxu0 %v6910
        %7125 = vmatpush1.bf16.msra.mxu0 %v6909
        %7126 = vmatprep.subr.bf16.mxu0 %v6914
        %7127 = vmatpush1.bf16.msra.mxu0 %v6913
        %7128 = vmatprep.subr.bf16.mxu0 %v6918
        %7129 = vmatpush1.bf16.msra.mxu0 %v6917
        %7130 = vmatprep.subr.bf16.mxu0 %v6922
        %7131 = vmatpush1.bf16.msra.mxu0 %v6921
        %7132 = vmatprep.subr.bf16.mxu0 %v6926
        %7133 = vmatpush1.bf16.msra.mxu0 %v6925
        %7134 = vmatprep.subr.bf16.mxu0 %v6930
        %7135 = vmatpush1.bf16.msra.mxu0 %v6929
        %7136 = vmatprep.mubr.bf16.mxu0 %v6268
        %7137 = vmatmul.mubr.bf16.gmra.mrb[0].mxu0 %v6267
        %v7138 = vpop.f32.mrb[0].mxu0
        %v7139 = vadd.f32 %v7096, %v7138
        %v7140 = vpop.f32.mrb[0].mxu0
        %v7141 = vadd.f32 %v7098, %v7140
        %v7142 = vpop.f32.mrb[0].mxu0
        %v7143 = vadd.f32 %v7100, %v7142
        %v7144 = vpop.f32.mrb[0].mxu0
        %v7145 = vadd.f32 %v7102, %v7144
        %7146 = vdwg.mxu0
        %7147 = vmatprep.subr.bf16.mxu0 %v6808
        %7148 = vmatpush1.bf16.msra.mxu0 %v6807
        %7149 = vmatprep.subr.bf16.mxu0 %v6812
        %7150 = vmatpush1.bf16.msra.mxu0 %v6811
        %7151 = vmatprep.subr.bf16.mxu0 %v6816
        %7152 = vmatpush1.bf16.msra.mxu0 %v6815
        %7153 = vmatprep.subr.bf16.mxu0 %v6820
        %7154 = vmatpush1.bf16.msra.mxu0 %v6819
        %7155 = vmatprep.subr.bf16.mxu0 %v6824
        %7156 = vmatpush1.bf16.msra.mxu0 %v6823
        %7157 = vmatprep.subr.bf16.mxu0 %v6828
        %7158 = vmatpush1.bf16.msra.mxu0 %v6827
        %7159 = vmatprep.subr.bf16.mxu0 %v6832
        %7160 = vmatpush1.bf16.msra.mxu0 %v6831
        %7161 = vmatprep.subr.bf16.mxu0 %v6836
        %7162 = vmatpush1.bf16.msra.mxu0 %v6835
        %7163 = vmatprep.subr.bf16.mxu0 %v6840
        %7164 = vmatpush1.bf16.msra.mxu0 %v6839
        %7165 = vmatprep.subr.bf16.mxu0 %v6844
        %7166 = vmatpush1.bf16.msra.mxu0 %v6843
        %7167 = vmatprep.subr.bf16.mxu0 %v6848
        %7168 = vmatpush1.bf16.msra.mxu0 %v6847
        %7169 = vmatprep.subr.bf16.mxu0 %v6852
        %7170 = vmatpush1.bf16.msra.mxu0 %v6851
        %7171 = vmatprep.subr.bf16.mxu0 %v6856
        %7172 = vmatpush1.bf16.msra.mxu0 %v6855
        %7173 = vmatprep.subr.bf16.mxu0 %v6860
        %7174 = vmatpush1.bf16.msra.mxu0 %v6859
        %7175 = vmatprep.subr.bf16.mxu0 %v6864
        %7176 = vmatpush1.bf16.msra.mxu0 %v6863
        %7177 = vmatprep.subr.bf16.mxu0 %v6868
        %7178 = vmatpush1.bf16.msra.mxu0 %v6867
        %7179 = vmatprep.mubr.bf16.mxu0 %v6266
        %7180 = vmatmul.mubr.bf16.gmra.mrb[0].mxu0 %v6265
        %v7181 = vpop.f32.mrb[0].mxu0
        %v7182 = vadd.f32 %v6412, %v7181
        %v7183 = vpop.f32.mrb[0].mxu0
        %v7184 = vadd.f32 %v6416, %v7183
        %v7185 = vpop.f32.mrb[0].mxu0
        %v7186 = vadd.f32 %v6412, %v7185
        %v7187 = vpop.f32.mrb[0].mxu0
        %v7188 = vadd.f32 %v6416, %v7187
        %7189 = vdwg.mxu0
        %7190 = vmatprep.subr.bf16.mxu0 %v6872
        %7191 = vmatpush1.bf16.msra.mxu0 %v6871
        %7192 = vmatprep.subr.bf16.mxu0 %v6876
        %7193 = vmatpush1.bf16.msra.mxu0 %v6875
        %7194 = vmatprep.subr.bf16.mxu0 %v6880
        %7195 = vmatpush1.bf16.msra.mxu0 %v6879
        %7196 = vmatprep.subr.bf16.mxu0 %v6884
        %7197 = vmatpush1.bf16.msra.mxu0 %v6883
        %7198 = vmatprep.subr.bf16.mxu0 %v6888
        %7199 = vmatpush1.bf16.msra.mxu0 %v6887
        %7200 = vmatprep.subr.bf16.mxu0 %v6892
        %7201 = vmatpush1.bf16.msra.mxu0 %v6891
        %7202 = vmatprep.subr.bf16.mxu0 %v6896
        %7203 = vmatpush1.bf16.msra.mxu0 %v6895
        %7204 = vmatprep.subr.bf16.mxu0 %v6900
        %7205 = vmatpush1.bf16.msra.mxu0 %v6899
        %7206 = vmatprep.subr.bf16.mxu0 %v6904
        %7207 = vmatpush1.bf16.msra.mxu0 %v6903
        %7208 = vmatprep.subr.bf16.mxu0 %v6908
        %7209 = vmatpush1.bf16.msra.mxu0 %v6907
        %7210 = vmatprep.subr.bf16.mxu0 %v6912
        %7211 = vmatpush1.bf16.msra.mxu0 %v6911
        %7212 = vmatprep.subr.bf16.mxu0 %v6916
        %7213 = vmatpush1.bf16.msra.mxu0 %v6915
        %7214 = vmatprep.subr.bf16.mxu0 %v6920
        %7215 = vmatpush1.bf16.msra.mxu0 %v6919
        %7216 = vmatprep.subr.bf16.mxu0 %v6924
        %7217 = vmatpush1.bf16.msra.mxu0 %v6923
        %7218 = vmatprep.subr.bf16.mxu0 %v6928
        %7219 = vmatpush1.bf16.msra.mxu0 %v6927
        %7220 = vmatprep.subr.bf16.mxu0 %v6932
        %7221 = vmatpush1.bf16.msra.mxu0 %v6931
        %7222 = vmatprep.mubr.bf16.mxu0 %v6268
        %7223 = vmatmul.mubr.bf16.gmra.mrb[0].mxu0 %v6267
        %v7224 = vpop.f32.mrb[0].mxu0
        %v7225 = vadd.f32 %v7182, %v7224
        %v7226 = vpop.f32.mrb[0].mxu0
        %v7227 = vadd.f32 %v7184, %v7226
        %v7228 = vpop.f32.mrb[0].mxu0
        %v7229 = vadd.f32 %v7186, %v7228
        %v7230 = vpop.f32.mrb[0].mxu0
        %v7231 = vadd.f32 %v7188, %v7230
        %7232 = vdwg.mxu0
        %v7233 = vadd.f32 %v7139, %v6206
        %v7234 = vadd.f32 %v7141, %v6208
        %v7235 = vadd.f32 %v7225, %v6249
        %v7236 = vadd.f32 %v7227, %v6251
        %v7237 = vadd.f32 %v7143, %v6210
        %v7238 = vadd.f32 %v7145, %v6212
        %v7239 = vadd.f32 %v7229, %v6253
        %v7240 = vadd.f32 %v7231, %v6255
        %v7241 = vmax.f32 %v7233, 0.0
        %v7242 = vmax.f32 %v7234, 0.0
        %v7243 = vmax.f32 %v7235, 0.0
        %v7244 = vmax.f32 %v7236, 0.0
        %v7245 = vmax.f32 %v7237, 0.0
        %v7246 = vmax.f32 %v7238, 0.0
        %v7247 = vmax.f32 %v7239, 0.0
        %v7248 = vmax.f32 %v7240, 0.0
        %v7249 = vpack.c.bf16 %v7245, %v7241
        %v7250 = vpack.c.bf16 %v7246, %v7242
        %v7251 = vpack.c.bf16 %v7247, %v7243
        %v7252 = vpack.c.bf16 %v7248, %v7244
        %s7253 = scalar_lea.vmem [#allocation17], 256
        %v7254 = vld [vmem:[%s7253] sm:$0xf]
        %v7255 = vld [vmem:[%s7253 + $0x4] sm:$0xf]
        %v7256 = vld [vmem:[%s7253 + $0x8] sm:$0xf]
        %v7257 = vld [vmem:[%s7253 + $0xc] sm:$0xf]
        %v7258 = vld [vmem:[%s7253 + $0x10] sm:$0xf]
        %v7259 = vld [vmem:[%s7253 + $0x14] sm:$0xf]
        %v7260 = vld [vmem:[%s7253 + $0x18] sm:$0xf]
        %v7261 = vld [vmem:[%s7253 + $0x1c] sm:$0xf]
        %v7262 = vld [vmem:[%s7253 + $0x20] sm:$0xf]
        %v7263 = vld [vmem:[%s7253 + $0x24] sm:$0xf]
        %v7264 = vld [vmem:[%s7253 + $0x28] sm:$0xf]
        %v7265 = vld [vmem:[%s7253 + $0x2c] sm:$0xf]
        %v7266 = vld [vmem:[%s7253 + $0x30] sm:$0xf]
        %v7267 = vld [vmem:[%s7253 + $0x34] sm:$0xf]
        %v7268 = vld [vmem:[%s7253 + $0x38] sm:$0xf]
        %v7269 = vld [vmem:[%s7253 + $0x3c] sm:$0xf]
        %v7270 = vld [vmem:[%s7253 + $0x40] sm:$0xf]
        %v7271 = vld [vmem:[%s7253 + $0x44] sm:$0xf]
        %v7272 = vld [vmem:[%s7253 + $0x48] sm:$0xf]
        %v7273 = vld [vmem:[%s7253 + $0x4c] sm:$0xf]
        %v7274 = vld [vmem:[%s7253 + $0x50] sm:$0xf]
        %v7275 = vld [vmem:[%s7253 + $0x54] sm:$0xf]
        %v7276 = vld [vmem:[%s7253 + $0x58] sm:$0xf]
        %v7277 = vld [vmem:[%s7253 + $0x5c] sm:$0xf]
        %v7278 = vld [vmem:[%s7253 + $0x60] sm:$0xf]
        %v7279 = vld [vmem:[%s7253 + $0x64] sm:$0xf]
        %v7280 = vld [vmem:[%s7253 + $0x68] sm:$0xf]
        %v7281 = vld [vmem:[%s7253 + $0x6c] sm:$0xf]
        %v7282 = vld [vmem:[%s7253 + $0x70] sm:$0xf]
        %v7283 = vld [vmem:[%s7253 + $0x74] sm:$0xf]
        %v7284 = vld [vmem:[%s7253 + $0x78] sm:$0xf]
        %v7285 = vld [vmem:[%s7253 + $0x7c] sm:$0xf]
        %v7286 = vld [vmem:[%s7253 + $0x80] sm:$0xf]
        %v7287 = vld [vmem:[%s7253 + $0x84] sm:$0xf]
        %v7288 = vld [vmem:[%s7253 + $0x88] sm:$0xf]
        %v7289 = vld [vmem:[%s7253 + $0x8c] sm:$0xf]
        %v7290 = vld [vmem:[%s7253 + $0x90] sm:$0xf]
        %v7291 = vld [vmem:[%s7253 + $0x94] sm:$0xf]
        %v7292 = vld [vmem:[%s7253 + $0x98] sm:$0xf]
        %v7293 = vld [vmem:[%s7253 + $0x9c] sm:$0xf]
        %v7294 = vld [vmem:[%s7253 + $0xa0] sm:$0xf]
        %v7295 = vld [vmem:[%s7253 + $0xa4] sm:$0xf]
        %v7296 = vld [vmem:[%s7253 + $0xa8] sm:$0xf]
        %v7297 = vld [vmem:[%s7253 + $0xac] sm:$0xf]
        %v7298 = vld [vmem:[%s7253 + $0xb0] sm:$0xf]
        %v7299 = vld [vmem:[%s7253 + $0xb4] sm:$0xf]
        %v7300 = vld [vmem:[%s7253 + $0xb8] sm:$0xf]
        %v7301 = vld [vmem:[%s7253 + $0xbc] sm:$0xf]
        %v7302 = vld [vmem:[%s7253 + $0xc0] sm:$0xf]
        %v7303 = vld [vmem:[%s7253 + $0xc4] sm:$0xf]
        %v7304 = vld [vmem:[%s7253 + $0xc8] sm:$0xf]
        %v7305 = vld [vmem:[%s7253 + $0xcc] sm:$0xf]
        %v7306 = vld [vmem:[%s7253 + $0xd0] sm:$0xf]
        %v7307 = vld [vmem:[%s7253 + $0xd4] sm:$0xf]
        %v7308 = vld [vmem:[%s7253 + $0xd8] sm:$0xf]
        %v7309 = vld [vmem:[%s7253 + $0xdc] sm:$0xf]
        %v7310 = vld [vmem:[%s7253 + $0xe0] sm:$0xf]
        %v7311 = vld [vmem:[%s7253 + $0xe4] sm:$0xf]
        %v7312 = vld [vmem:[%s7253 + $0xe8] sm:$0xf]
        %v7313 = vld [vmem:[%s7253 + $0xec] sm:$0xf]
        %v7314 = vld [vmem:[%s7253 + $0xf0] sm:$0xf]
        %v7315 = vld [vmem:[%s7253 + $0xf4] sm:$0xf]
        %v7316 = vld [vmem:[%s7253 + $0xf8] sm:$0xf]
        %v7317 = vld [vmem:[%s7253 + $0xfc] sm:$0xf]
        %s7318 = scalar_lea.vmem %s15, 1
        %v7319 = vld [vmem:[%s7318] sm:$0x1]
        %v7321 = vlaneseq
        %v7322 = vshrl.u32 %v7321, 7
        %v7323 = vsub.s32 0, %v7322
        %v7324 = vrot.slane %v7319, %v7323
        %v7390 = vunpack.c.l.b16 %v7254
        %v7391 = vunpack.c.l.b16 %v7255
        %v7392 = vunpack.c.l.b16 %v7256
        %v7393 = vunpack.c.l.b16 %v7257
        %v7394 = vunpack.c.l.b16 %v7258
        %v7395 = vunpack.c.l.b16 %v7259
        %v7396 = vunpack.c.l.b16 %v7260
        %v7397 = vunpack.c.l.b16 %v7261
        %v7398 = vunpack.c.l.b16 %v7262
        %v7399 = vunpack.c.l.b16 %v7263
        %v7400 = vunpack.c.l.b16 %v7264
        %v7401 = vunpack.c.l.b16 %v7265
        %v7402 = vunpack.c.l.b16 %v7266
        %v7403 = vunpack.c.l.b16 %v7267
        %v7404 = vunpack.c.l.b16 %v7268
        %v7405 = vunpack.c.l.b16 %v7269
        %v7406 = vunpack.c.l.b16 %v7270
        %v7407 = vunpack.c.l.b16 %v7271
        %v7408 = vunpack.c.l.b16 %v7272
        %v7409 = vunpack.c.l.b16 %v7273
        %v7410 = vunpack.c.l.b16 %v7274
        %v7411 = vunpack.c.l.b16 %v7275
        %v7412 = vunpack.c.l.b16 %v7276
        %v7413 = vunpack.c.l.b16 %v7277
        %v7414 = vunpack.c.l.b16 %v7278
        %v7415 = vunpack.c.l.b16 %v7279
        %v7416 = vunpack.c.l.b16 %v7280
        %v7417 = vunpack.c.l.b16 %v7281
        %v7418 = vunpack.c.l.b16 %v7282
        %v7419 = vunpack.c.l.b16 %v7283
        %v7420 = vunpack.c.l.b16 %v7284
        %v7421 = vunpack.c.l.b16 %v7285
        %v7422 = vunpack.c.l.b16 %v7286
        %v7423 = vunpack.c.l.b16 %v7287
        %v7424 = vunpack.c.l.b16 %v7288
        %v7425 = vunpack.c.l.b16 %v7289
        %v7426 = vunpack.c.l.b16 %v7290
        %v7427 = vunpack.c.l.b16 %v7291
        %v7428 = vunpack.c.l.b16 %v7292
        %v7429 = vunpack.c.l.b16 %v7293
        %v7430 = vunpack.c.l.b16 %v7294
        %v7431 = vunpack.c.l.b16 %v7295
        %v7432 = vunpack.c.l.b16 %v7296
        %v7433 = vunpack.c.l.b16 %v7297
        %v7434 = vunpack.c.l.b16 %v7298
        %v7435 = vunpack.c.l.b16 %v7299
        %v7436 = vunpack.c.l.b16 %v7300
        %v7437 = vunpack.c.l.b16 %v7301
        %v7438 = vunpack.c.l.b16 %v7302
        %v7439 = vunpack.c.l.b16 %v7303
        %v7440 = vunpack.c.l.b16 %v7304
        %v7441 = vunpack.c.l.b16 %v7305
        %v7442 = vunpack.c.l.b16 %v7306
        %v7443 = vunpack.c.l.b16 %v7307
        %v7444 = vunpack.c.l.b16 %v7308
        %v7445 = vunpack.c.l.b16 %v7309
        %v7446 = vunpack.c.l.b16 %v7310
        %v7447 = vunpack.c.l.b16 %v7311
        %v7448 = vunpack.c.l.b16 %v7312
        %v7449 = vunpack.c.l.b16 %v7313
        %v7450 = vunpack.c.l.b16 %v7314
        %v7451 = vunpack.c.l.b16 %v7315
        %v7452 = vunpack.c.l.b16 %v7316
        %v7453 = vunpack.c.l.b16 %v7317
        %v7454 = vpack.c.b16 %v7391, %v7390
        %v7455 = vpack.c.b16 %v7393, %v7392
        %v7456 = vpack.c.b16 %v7395, %v7394
        %v7457 = vpack.c.b16 %v7397, %v7396
        %v7458 = vpack.c.b16 %v7399, %v7398
        %v7459 = vpack.c.b16 %v7401, %v7400
        %v7460 = vpack.c.b16 %v7403, %v7402
        %v7461 = vpack.c.b16 %v7405, %v7404
        %v7462 = vpack.c.b16 %v7407, %v7406
        %v7463 = vpack.c.b16 %v7409, %v7408
        %v7464 = vpack.c.b16 %v7411, %v7410
        %v7465 = vpack.c.b16 %v7413, %v7412
        %v7466 = vpack.c.b16 %v7415, %v7414
        %v7467 = vpack.c.b16 %v7417, %v7416
        %v7468 = vpack.c.b16 %v7419, %v7418
        %v7469 = vpack.c.b16 %v7421, %v7420
        %v7470 = vpack.c.b16 %v7423, %v7422
        %v7471 = vpack.c.b16 %v7425, %v7424
        %v7472 = vpack.c.b16 %v7427, %v7426
        %v7473 = vpack.c.b16 %v7429, %v7428
        %v7474 = vpack.c.b16 %v7431, %v7430
        %v7475 = vpack.c.b16 %v7433, %v7432
        %v7476 = vpack.c.b16 %v7435, %v7434
        %v7477 = vpack.c.b16 %v7437, %v7436
        %v7478 = vpack.c.b16 %v7439, %v7438
        %v7479 = vpack.c.b16 %v7441, %v7440
        %v7480 = vpack.c.b16 %v7443, %v7442
        %v7481 = vpack.c.b16 %v7445, %v7444
        %v7482 = vpack.c.b16 %v7447, %v7446
        %v7483 = vpack.c.b16 %v7449, %v7448
        %v7484 = vpack.c.b16 %v7451, %v7450
        %v7485 = vpack.c.b16 %v7453, %v7452
        %7518 = vmatprep.subr.bf16.mxu0 0
        %7519 = vmatpush1.bf16.msra.mxu0 %v7454
        %7520 = vmatprep.subr.bf16.mxu0 0
        %7521 = vmatpush1.bf16.msra.mxu0 %v7455
        %7522 = vmatprep.subr.bf16.mxu0 0
        %7523 = vmatpush1.bf16.msra.mxu0 %v7456
        %7524 = vmatprep.subr.bf16.mxu0 0
        %7525 = vmatpush1.bf16.msra.mxu0 %v7457
        %7526 = vmatprep.subr.bf16.mxu0 0
        %7527 = vmatpush1.bf16.msra.mxu0 %v7458
        %7528 = vmatprep.subr.bf16.mxu0 0
        %7529 = vmatpush1.bf16.msra.mxu0 %v7459
        %7530 = vmatprep.subr.bf16.mxu0 0
        %7531 = vmatpush1.bf16.msra.mxu0 %v7460
        %7532 = vmatprep.subr.bf16.mxu0 0
        %7533 = vmatpush1.bf16.msra.mxu0 %v7461
        %7534 = vmatprep.subr.bf16.mxu0 0
        %7535 = vmatpush1.bf16.msra.mxu0 %v7462
        %7536 = vmatprep.subr.bf16.mxu0 0
        %7537 = vmatpush1.bf16.msra.mxu0 %v7463
        %7538 = vmatprep.subr.bf16.mxu0 0
        %7539 = vmatpush1.bf16.msra.mxu0 %v7464
        %7540 = vmatprep.subr.bf16.mxu0 0
        %7541 = vmatpush1.bf16.msra.mxu0 %v7465
        %7542 = vmatprep.subr.bf16.mxu0 0
        %7543 = vmatpush1.bf16.msra.mxu0 %v7466
        %7544 = vmatprep.subr.bf16.mxu0 0
        %7545 = vmatpush1.bf16.msra.mxu0 %v7467
        %7546 = vmatprep.subr.bf16.mxu0 0
        %7547 = vmatpush1.bf16.msra.mxu0 %v7468
        %7548 = vmatprep.subr.bf16.mxu0 0
        %7549 = vmatpush1.bf16.msra.mxu0 %v7469
        %7550 = vmatprep.mubr.bf16.mxu0 %v7250
        %7551 = vmatmul.mubr.bf16.gmra.mrb[0].mxu0 %v7249
        %v7552 = vpop.f32.mrb[0].mxu0
        %v7553 = vadd.f32 %v7324, %v7552
        %v7554 = vpop.f32.mrb[0].mxu0
        %v7555 = vpop.f32.mrb[0].mxu0
        %v7556 = vadd.f32 %v7324, %v7555
        %v7557 = vpop.f32.mrb[0].mxu0
        %7558 = vdwg.mxu0
        %7559 = vmatprep.subr.bf16.mxu0 0
        %7560 = vmatpush1.bf16.msra.mxu0 %v7470
        %7561 = vmatprep.subr.bf16.mxu0 0
        %7562 = vmatpush1.bf16.msra.mxu0 %v7471
        %7563 = vmatprep.subr.bf16.mxu0 0
        %7564 = vmatpush1.bf16.msra.mxu0 %v7472
        %7565 = vmatprep.subr.bf16.mxu0 0
        %7566 = vmatpush1.bf16.msra.mxu0 %v7473
        %7567 = vmatprep.subr.bf16.mxu0 0
        %7568 = vmatpush1.bf16.msra.mxu0 %v7474
        %7569 = vmatprep.subr.bf16.mxu0 0
        %7570 = vmatpush1.bf16.msra.mxu0 %v7475
        %7571 = vmatprep.subr.bf16.mxu0 0
        %7572 = vmatpush1.bf16.msra.mxu0 %v7476
        %7573 = vmatprep.subr.bf16.mxu0 0
        %7574 = vmatpush1.bf16.msra.mxu0 %v7477
        %7575 = vmatprep.subr.bf16.mxu0 0
        %7576 = vmatpush1.bf16.msra.mxu0 %v7478
        %7577 = vmatprep.subr.bf16.mxu0 0
        %7578 = vmatpush1.bf16.msra.mxu0 %v7479
        %7579 = vmatprep.subr.bf16.mxu0 0
        %7580 = vmatpush1.bf16.msra.mxu0 %v7480
        %7581 = vmatprep.subr.bf16.mxu0 0
        %7582 = vmatpush1.bf16.msra.mxu0 %v7481
        %7583 = vmatprep.subr.bf16.mxu0 0
        %7584 = vmatpush1.bf16.msra.mxu0 %v7482
        %7585 = vmatprep.subr.bf16.mxu0 0
        %7586 = vmatpush1.bf16.msra.mxu0 %v7483
        %7587 = vmatprep.subr.bf16.mxu0 0
        %7588 = vmatpush1.bf16.msra.mxu0 %v7484
        %7589 = vmatprep.subr.bf16.mxu0 0
        %7590 = vmatpush1.bf16.msra.mxu0 %v7485
        %7591 = vmatprep.mubr.bf16.mxu0 %v7252
        %7592 = vmatmul.mubr.bf16.gmra.mrb[0].mxu0 %v7251
        %v7593 = vpop.f32.mrb[0].mxu0
        %v7594 = vadd.f32 %v7553, %v7593
        %v7595 = vpop.f32.mrb[0].mxu0
        %v7596 = vpop.f32.mrb[0].mxu0
        %v7597 = vadd.f32 %v7556, %v7596
        %v7598 = vpop.f32.mrb[0].mxu0
        %7599 = vdwg.mxu0
        %7600 = vst [vmem:[%s731] sm:$0xff] %v7594
        %7601 = vst [vmem:[%s731 + $0x8] sm:$0xff] %v7597
        %s7602 = sand.u32 %s399, 1
        %s7603 = scalar_lea.sflag [#allocation4], %s7602
        %s7604 = sand.u32 %s399, 1
        %s7605 = smul.addr %s7604, 64
        %s7606 = scalar_lea.vmem [#allocation19], %s7605
        %s7607 = sand.u32 %s425, 1
        %s7608 = scalar_lea.sflag [#allocation21], %s7607
        %s7609 = sand.u32 %s425, 1
        %s7610 = smul.addr %s7609, 16
        %s7611 = scalar_lea.vmem [#allocation20], %s7610
        // Predicated region
        $region125: #{tpu_custom_call.1} parent=83 // pred_check
          %p7612 = pneg %p409
        $region126: #{tpu_custom_call.1} parent=83 // pred_check_branch
          %7614 = sbr.rel (%p7612) target = $region128
        $region127: #{tpu_custom_call.1} parent=83 // pred_region
          %s7616 = ssub.s32 1024, 1024
          %7617 = vsyncadd %s7603, %s7616
          %s7618 = smul.addr %s45, 8
          %s7619 = smul.addr %s7618, 128
          %s7620 = scalar_lea.hbm %s16, %s7619
          %s7621 = sshll.u32 %s7606, 4
          %s7622 = int_to_ptr.vmem [resolvable:$true] %s7621
          %7627 = dma.vmem_to_hbm [thread:$0]  %s7622, 1024, %s7620, %s7603, 128, 128, 8
        $region128: #{tpu_custom_call.1} parent=83 // pred_fallthru
          _
        // Predicated region
        $region129: #{tpu_custom_call.1} parent=83 // pred_check
          %p7628 = pneg %p435
        $region130: #{tpu_custom_call.1} parent=83 // pred_check_branch
          %7630 = sbr.rel (%p7628) target = $region132
        $region131: #{tpu_custom_call.1} parent=83 // pred_region
          %s7632 = ssub.s32 256, 256
          %7633 = vsyncadd %s7608, %s7632
          %s7634 = smul.addr %s45, 2
          %s7635 = smul.addr %s7634, 128
          %s7636 = scalar_lea.hbm %s17, %s7635
          %s7637 = sshll.u32 %s7611, 4
          %s7638 = int_to_ptr.vmem [resolvable:$true] %s7637
          %7643 = dma.vmem_to_hbm [thread:$0]  %s7638, 256, %s7636, %s7608, 128, 128, 8
        $region132: #{tpu_custom_call.1} parent=83 // pred_fallthru
          _
      $region84: #{tpu_custom_call.1} parent=5 // pred_fallthru
        _
      %p7644 = scmp.le.s32.totalorder 2, %s40
      // Predicated region
      $region133: #{tpu_custom_call.1} parent=5 // pred_check
        %p7645 = pneg %p7644
      $region134: #{tpu_custom_call.1} parent=5 // pred_check_branch
        %7647 = sbr.rel (%p7645) target = $region136
      $region135: #{tpu_custom_call.1} parent=5 // pred_region
        %s7648 = ssub.s32 %s40, 2
        // Predicated region
        $region137: #{tpu_custom_call.1} parent=135 // pred_check
          %p7649 = pneg %p415
        $region138: #{tpu_custom_call.1} parent=135 // pred_check_branch
          %7651 = sbr.rel (%p7649) target = $region140
        $region139: #{tpu_custom_call.1} parent=135 // pred_region
          %s7652 = sand.u32 %s400, 1
          %s7653 = scalar_lea.sflag [#allocation4], %s7652
          %s7654 = sand.u32 %s400, 1
          %s7655 = smul.addr %s7654, 64
          %s7656 = scalar_lea.vmem [#allocation19], %s7655
          %7657 = dma.done %s7653, 1024
        $region140: #{tpu_custom_call.1} parent=135 // pred_fallthru
          _
        // Predicated region
        $region141: #{tpu_custom_call.1} parent=135 // pred_check
          %p7658 = pneg %p441
        $region142: #{tpu_custom_call.1} parent=135 // pred_check_branch
          %7660 = sbr.rel (%p7658) target = $region144
        $region143: #{tpu_custom_call.1} parent=135 // pred_region
          %s7661 = sand.u32 %s426, 1
          %s7662 = scalar_lea.sflag [#allocation21], %s7661
          %s7663 = sand.u32 %s426, 1
          %s7664 = smul.addr %s7663, 16
          %s7665 = scalar_lea.vmem [#allocation20], %s7664
          %7666 = dma.done %s7662, 256
        $region144: #{tpu_custom_call.1} parent=135 // pred_fallthru
          _
      $region136: #{tpu_custom_call.1} parent=5 // pred_fallthru
        _
    $region6: #{tpu_custom_call.1} parent=1 // loop_footer
      %s44 = sadd.s32 1, %s40
    $region7: #{tpu_custom_call.1} parent=1 // loop_footer_branch
      %39 = sbr.rel target = $region3
    $region8: #{tpu_custom_call.1} parent=1 // loop_exit
      _
    %7667 = vsyncpa [#allocation3], 1
    %s7668 = scalar_lea.sflag [#allocation3], 1
    %7669 = vsyncpa %s7668, 1
    %7670 = vsyncpa [#allocation6], 1
    %s7671 = scalar_lea.sflag [#allocation6], 1
    %7672 = vsyncpa %s7671, 1
    %7673 = vsyncpa [#allocation9], 1
    %7674 = vsyncpa [#allocation12], 1
    %7675 = vsyncpa [#allocation15], 1
    %7676 = vsyncpa [#allocation18], 1
    %7677 = vsyncpa [#allocation4], 1
    %s7678 = scalar_lea.sflag [#allocation4], 1
    %7679 = vsyncpa %s7678, 1
    %7680 = vsyncpa [#allocation21], 1
    %s7681 = scalar_lea.sflag [#allocation21], 1
    %7682 = vsyncpa %s7681, 1

</llo_original>
